<compile_context>
chip_gen: v6e
topology: v6e:2x2x1
jax: 0.10.0
libtpu: 0.0.40
codegen_flags: <defaults>
</compile_context>

<pallas_src>
import numpy as np
import jax
import jax.numpy as jnp
from jax.experimental import pallas as pl
from jax.experimental.pallas import tpu as pltpu

D1, D2 = 512, 1024  # fc1 / fc2 widths

_BUFFERED_OK = None  # lazily-detected support for pl.Buffered(1) on weights


def _round_up(x, m):
    return (x + m - 1) // m * m


def _mlp_kernel(x_ref, w1_ref, w2_ref, w3_ref, b_ref, o_ref):
    # One batch tile of the fused 3-layer MLP. bf16 weights stay resident in
    # VMEM across grid steps (constant index_map); matmuls accumulate in f32
    # on the MXU; bias/ReLU/sigmoid math stays f32 (safe on v5e's f32-only
    # VPU/EUP); only the MXU inputs are cast to bf16.
    x = x_ref[...].astype(jnp.bfloat16)
    b1 = b_ref[:, 0:D1]
    b2 = b_ref[:, D1:D1 + D2]
    b3 = b_ref[:, D1 + D2:]

    h1 = jnp.dot(x, w1_ref[...], preferred_element_type=jnp.float32) + b1
    h1 = jnp.maximum(h1, 0.0).astype(jnp.bfloat16)
    h2 = jnp.dot(h1, w2_ref[...], preferred_element_type=jnp.float32) + b2
    h2 = jnp.maximum(h2, 0.0).astype(jnp.bfloat16)
    h3 = jnp.dot(h2, w3_ref[...], preferred_element_type=jnp.float32) + b3
    o_ref[...] = jax.nn.sigmoid(h3).astype(o_ref.dtype)


def pack_params(params):
    """f32 (w1,b1,w2,b2,w3,b3) -> kernel-ready params: bf16 weights stored
    (in_features, out_features) and a single concatenated f32 bias buffer.
    Call once; keep the (device-resident) result across forward calls."""
    w1, b1, w2, b2, w3, b3 = params
    d_out = w3.shape[1]
    bcat = jnp.concatenate([b1, b2, b3], axis=1).astype(jnp.float32)
    return (w1.astype(jnp.bfloat16),
            w2.astype(jnp.bfloat16),
            w3.astype(jnp.bfloat16),
            bcat,
            d_out)


def _batch_tile(B):
    if B <= 64:
        # weight-DMA-bound regime; one sublane-rounded step is enough.
        return _round_up(B, 8)
    # >= 2 grid steps (keeps both v7x TensorCores busy under "parallel"),
    # capped at 256 rows (fills the 256-wide MXU M pass on v6e/v7x).
    return min(256, _round_up(pl.cdiv(B, 2), 8))


def reconstruction_net_forward(x, packed, input_size=(1, 28, 28),
                               out_dtype=jnp.float32):
    """x: (B, num_capsules*num_classes) f32. Returns (B, *input_size).

    out_dtype=jnp.bfloat16 halves output writeback (recommended on v6e/v7x,
    where bf16 EUP/VPU make the bf16 sigmoid free); default f32 keeps a fully
    f32 epilogue everywhere (v5e-safe)."""
    global _BUFFERED_OK
    w1, w2, w3, bcat, d_out = packed
    assert d_out == int(np.prod(input_size))
    B, d_in = x.shape

    tb = _batch_tile(B)
    b_pad = _round_up(B, tb)
    x_p = x if b_pad == B else jnp.pad(x, ((0, b_pad - B), (0, 0)))

    const = lambda i: (0, 0)       # weights/bias: same block every grid step
    batch = lambda i: (i, 0)       # activations: stream over batch tiles

    cost = pl.CostEstimate(
        flops=2 * b_pad * (d_in * D1 + D1 * D2 + D2 * d_out),
        transcendentals=b_pad * d_out,  # sigmoid
        bytes_accessed=(x_p.size * 4 + w1.size * 2 + w2.size * 2 + w3.size * 2
                        + bcat.size * 4
                        + b_pad * d_out * np.dtype(out_dtype).itemsize),
    )

    def call(single_buffer_weights):
        # Constant-index weight blocks never get re-fetched; a single buffer
        # halves their VMEM footprint.  Fall back to default double-buffering
        # if this jax build does not accept pipeline_mode on BlockSpec.
        wkw = ({"pipeline_mode": pl.Buffered(1)}
               if single_buffer_weights else {})
        return pl.pallas_call(
            _mlp_kernel,
            out_shape=jax.ShapeDtypeStruct((b_pad, d_out), out_dtype),
            grid=(b_pad // tb,),
            in_specs=[
                pl.BlockSpec((tb, d_in), batch),
                pl.BlockSpec((d_in, D1), const, **wkw),
                pl.BlockSpec((D1, D2), const, **wkw),
                pl.BlockSpec((D2, d_out), const, **wkw),
                pl.BlockSpec((1, D1 + D2 + d_out), const, **wkw),
            ],
            out_specs=pl.BlockSpec((tb, d_out), batch),
            compiler_params=pltpu.CompilerParams(
                dimension_semantics=("parallel",),   # megacore sharding (v7x)
                vmem_limit_bytes=32 * 1024 * 1024,   # fits v7x's 64 MiB VMEM
            ),
            cost_estimate=cost,
        )(x_p, w1, w2, w3, bcat)

    if _BUFFERED_OK is None:
        try:
            flat = call(True)
            _BUFFERED_OK = True
        except Exception:
            _BUFFERED_OK = False
            flat = call(False)
    else:
        flat = call(_BUFFERED_OK)

    out2d = flat if b_pad == B else flat[:B]
    return out2d.reshape(B, *input_size)


def init_params(key, input_size=(1, 28, 28), num_classes=10, num_capsules=16):
    """Matches the PyTorch module's reset_parameters(): fc1/fc2 kaiming normal
    (relu, fan_in), fc3 xavier normal, biases uniform(+-1/sqrt(fan_in)).
    Weights are stored transposed as (in_features, out_features)."""
    d_in = num_capsules * num_classes
    d_out = int(np.prod(input_size))
    ks = jax.random.split(key, 6)

    def kaiming(k, fan_in, fan_out):
        std = np.sqrt(2.0 / fan_in)
        return jax.random.normal(k, (fan_in, fan_out), jnp.float32) * std

    def xavier(k, fan_in, fan_out):
        std = np.sqrt(2.0 / (fan_in + fan_out))
        return jax.random.normal(k, (fan_in, fan_out), jnp.float32) * std

    def bias(k, fan_in, fan_out):
        bound = 1.0 / np.sqrt(fan_in)
        return jax.random.uniform(k, (1, fan_out), jnp.float32, -bound, bound)

    w1 = kaiming(ks[0], d_in, D1)
    b1 = bias(ks[1], d_in, D1)
    w2 = kaiming(ks[2], D1, D2)
    b2 = bias(ks[3], D1, D2)
    w3 = xavier(ks[4], D2, d_out)
    b3 = bias(ks[5], D2, d_out)
    return (w1, b1, w2, b2, w3, b3)


if __name__ == "__main__":
    input_size = (1, 28, 28)
    num_classes = 10
    num_capsules = 16
    B = 2

    key = jax.random.PRNGKey(0)
    k_param, k_x = jax.random.split(key)
    params = init_params(k_param, input_size, num_classes, num_capsules)
    packed = pack_params(params)
    x = jax.random.normal(k_x, (B, num_capsules * num_classes), jnp.float32)

    out = jax.block_until_ready(
        reconstruction_net_forward(x, packed, input_size))

    # sanity: shape and sigmoid range
    assert out.shape == (B, *input_size), out.shape
    assert bool(jnp.all(out >= 0.0)) and bool(jnp.all(out <= 1.0))

    # precision-matched pure-JAX reference (bf16 weights, f32 accumulation)
    w1, b1, w2, b2, w3, b3 = params
    h1 = jnp.maximum(
        jnp.dot(x.astype(jnp.bfloat16), w1.astype(jnp.bfloat16),
                preferred_element_type=jnp.float32) + b1, 0.0)
    h2 = jnp.maximum(
        jnp.dot(h1.astype(jnp.bfloat16), w2.astype(jnp.bfloat16),
                preferred_element_type=jnp.float32) + b2, 0.0)
    ref = jax.nn.sigmoid(
        jnp.dot(h2.astype(jnp.bfloat16), w3.astype(jnp.bfloat16),
                preferred_element_type=jnp.float32) + b3)
    ref = ref.reshape(B, *input_size)
    np.testing.assert_allclose(np.asarray(out), np.asarray(ref),
                               atol=2e-3, rtol=2e-3)

    # loose check against full-f32 math (bounds the bf16 weight quantization)
    h1f = jnp.maximum(x @ w1 + b1, 0.0)
    h2f = jnp.maximum(h1f @ w2 + b2, 0.0)
    reff = jax.nn.sigmoid(h2f @ w3 + b3).reshape(B, *input_size)
    np.testing.assert_allclose(np.asarray(out), np.asarray(reff),
                               atol=5e-2, rtol=0)

    # exercise the multi-tile path once (B > 64 -> >= 2 parallel grid steps)
    xb = jax.random.normal(jax.random.PRNGKey(1),
                           (96, num_capsules * num_classes), jnp.float32)
    outb = jax.block_until_ready(
        reconstruction_net_forward(xb, packed, input_size))
    assert outb.shape == (96, *input_size), outb.shape

    print("KERNEL_OK")
</pallas_src>

<mosaic_0001>
module attributes {stable_mosaic.version = 11 : i64} {
  func.func @_mlp_kernel(%arg0: i32, %arg1: memref<8x160xf32, #tpu.memory_space<vmem>>, %arg2: memref<160x512xbf16, #tpu.memory_space<vmem>>, %arg3: memref<512x1024xbf16, #tpu.memory_space<vmem>>, %arg4: memref<1024x784xbf16, #tpu.memory_space<vmem>>, %arg5: memref<1x2320xf32, #tpu.memory_space<vmem>>, %arg6: memref<8x784xf32, #tpu.memory_space<vmem>>) attributes {dimension_semantics = [#tpu.dimension_semantics<parallel>], iteration_bounds = array<i64: 1>, scalar_prefetch = 0 : i64, scratch_operands = 0 : i64, tpu.core_type = #tpu.core_type<tc>, window_params = [{transform_indices = @transform_0, window_bounds = array<i64: 8, 160>}, {pipeline_mode = #tpu.pipeline_mode<synchronous>, transform_indices = @transform_1, window_bounds = array<i64: 160, 512>}, {pipeline_mode = #tpu.pipeline_mode<synchronous>, transform_indices = @transform_2, window_bounds = array<i64: 512, 1024>}, {pipeline_mode = #tpu.pipeline_mode<synchronous>, transform_indices = @transform_3, window_bounds = array<i64: 1024, 784>}, {pipeline_mode = #tpu.pipeline_mode<synchronous>, transform_indices = @transform_4, window_bounds = array<i64: 1, 2320>}, {transform_indices = @transform_5, window_bounds = array<i64: 8, 784>}]} {
    %c0 = arith.constant 0 : index
    %c0_0 = arith.constant 0 : index
    %0 = vector.load %arg1[%c0, %c0_0] : memref<8x160xf32, #tpu.memory_space<vmem>>, vector<8x160xf32>
    %1 = arith.truncf %0 : vector<8x160xf32> to vector<8x160xbf16>
    %c0_1 = arith.constant 0 : index
    %c0_2 = arith.constant 0 : index
    %2 = vector.load %arg5[%c0_1, %c0_2] : memref<1x2320xf32, #tpu.memory_space<vmem>>, vector<1x512xf32>
    %c0_3 = arith.constant 0 : index
    %c512 = arith.constant 512 : index
    %3 = vector.load %arg5[%c0_3, %c512] : memref<1x2320xf32, #tpu.memory_space<vmem>>, vector<1x1024xf32>
    %c0_4 = arith.constant 0 : index
    %c1536 = arith.constant 1536 : index
    %4 = vector.load %arg5[%c0_4, %c1536] : memref<1x2320xf32, #tpu.memory_space<vmem>>, vector<1x784xf32>
    %c0_5 = arith.constant 0 : index
    %c0_6 = arith.constant 0 : index
    %5 = vector.load %arg2[%c0_5, %c0_6] : memref<160x512xbf16, #tpu.memory_space<vmem>>, vector<160x512xbf16>
    %cst = arith.constant dense<0.000000e+00> : vector<8x512xf32>
    %6 = tpu.matmul %1, %5, %cst {dimension_numbers = #tpu.dot_dimension_numbers<[1], [0], [0], [1], [0, 0, 1, 1], [], []>} : vector<8x160xbf16>, vector<160x512xbf16>, vector<8x512xf32> -> vector<8x512xf32>
    %7 = vector.broadcast %2 : vector<1x512xf32> to vector<8x512xf32>
    %8 = arith.addf %6, %7 : vector<8x512xf32>
    %cst_7 = arith.constant 0.000000e+00 : f32
    %9 = vector.broadcast %cst_7 : f32 to vector<8x512xf32>
    %10 = arith.maximumf %8, %9 : vector<8x512xf32>
    %11 = arith.truncf %10 : vector<8x512xf32> to vector<8x512xbf16>
    %c0_8 = arith.constant 0 : index
    %c0_9 = arith.constant 0 : index
    %12 = vector.load %arg3[%c0_8, %c0_9] : memref<512x1024xbf16, #tpu.memory_space<vmem>>, vector<512x1024xbf16>
    %cst_10 = arith.constant dense<0.000000e+00> : vector<8x1024xf32>
    %13 = tpu.matmul %11, %12, %cst_10 {dimension_numbers = #tpu.dot_dimension_numbers<[1], [0], [0], [1], [0, 0, 1, 1], [], []>} : vector<8x512xbf16>, vector<512x1024xbf16>, vector<8x1024xf32> -> vector<8x1024xf32>
    %14 = vector.broadcast %3 : vector<1x1024xf32> to vector<8x1024xf32>
    %15 = arith.addf %13, %14 : vector<8x1024xf32>
    %cst_11 = arith.constant 0.000000e+00 : f32
    %16 = vector.broadcast %cst_11 : f32 to vector<8x1024xf32>
    %17 = arith.maximumf %15, %16 : vector<8x1024xf32>
    %18 = arith.truncf %17 : vector<8x1024xf32> to vector<8x1024xbf16>
    %c0_12 = arith.constant 0 : index
    %c0_13 = arith.constant 0 : index
    %19 = vector.load %arg4[%c0_12, %c0_13] : memref<1024x784xbf16, #tpu.memory_space<vmem>>, vector<1024x784xbf16>
    %cst_14 = arith.constant dense<0.000000e+00> : vector<8x784xf32>
    %20 = tpu.matmul %18, %19, %cst_14 {dimension_numbers = #tpu.dot_dimension_numbers<[1], [0], [0], [1], [0, 0, 1, 1], [], []>} : vector<8x1024xbf16>, vector<1024x784xbf16>, vector<8x784xf32> -> vector<8x784xf32>
    %21 = vector.broadcast %4 : vector<1x784xf32> to vector<8x784xf32>
    %22 = arith.addf %20, %21 : vector<8x784xf32>
    %23 = arith.negf %22 : vector<8x784xf32>
    %24 = math.exp %23 : vector<8x784xf32>
    %cst_15 = arith.constant 1.000000e+00 : f32
    %25 = vector.broadcast %cst_15 : f32 to vector<8x784xf32>
    %26 = arith.addf %25, %24 : vector<8x784xf32>
    %27 = arith.divf %25, %26 : vector<8x784xf32>
    %c0_16 = arith.constant 0 : index
    %c0_17 = arith.constant 0 : index
    %28 = vector.load %arg6[%c0_16, %c0_17] : memref<8x784xf32, #tpu.memory_space<vmem>>, vector<8x784xf32>
    tpu.vector_store %arg6[%c0_16, %c0_17], %27 {strides = array<i32>} : memref<8x784xf32, #tpu.memory_space<vmem>>, vector<8x784xf32>,
    return
  }
  func.func @transform_0(%arg0: i32) -> (i32, i32) {
    %c0_i32 = arith.constant 0 : i32
    %c0_i32_0 = arith.constant 0 : i32
    return %arg0, %c0_i32 : i32, i32
  }
  func.func @transform_1(%arg0: i32) -> (i32, i32) {
    %c0_i32 = arith.constant 0 : i32
    %c0_i32_0 = arith.constant 0 : i32
    %c0_i32_1 = arith.constant 0 : i32
    return %c0_i32, %c0_i32_0 : i32, i32
  }
  func.func @transform_2(%arg0: i32) -> (i32, i32) {
    %c0_i32 = arith.constant 0 : i32
    %c0_i32_0 = arith.constant 0 : i32
    %c0_i32_1 = arith.constant 0 : i32
    return %c0_i32, %c0_i32_0 : i32, i32
  }
  func.func @transform_3(%arg0: i32) -> (i32, i32) {
    %c0_i32 = arith.constant 0 : i32
    %c0_i32_0 = arith.constant 0 : i32
    %c0_i32_1 = arith.constant 0 : i32
    return %c0_i32, %c0_i32_0 : i32, i32
  }
  func.func @transform_4(%arg0: i32) -> (i32, i32) {
    %c0_i32 = arith.constant 0 : i32
    %c0_i32_0 = arith.constant 0 : i32
    %c0_i32_1 = arith.constant 0 : i32
    return %c0_i32, %c0_i32_0 : i32, i32
  }
  func.func @transform_5(%arg0: i32) -> (i32, i32) {
    %c0_i32 = arith.constant 0 : i32
    %c0_i32_0 = arith.constant 0 : i32
    return %arg0, %c0_i32 : i32, i32
  }
}

module attributes {stable_mosaic.version = 11 : i64} {
  func.func @_mlp_kernel(%arg0: i32, %arg1: memref<8x160xf32, #tpu.memory_space<vmem>>, %arg2: memref<160x512xbf16, #tpu.memory_space<vmem>>, %arg3: memref<512x1024xbf16, #tpu.memory_space<vmem>>, %arg4: memref<1024x784xbf16, #tpu.memory_space<vmem>>, %arg5: memref<1x2320xf32, #tpu.memory_space<vmem>>, %arg6: memref<8x784xf32, #tpu.memory_space<vmem>>) attributes {dimension_semantics = [#tpu.dimension_semantics<parallel>], iteration_bounds = array<i64: 1>, scalar_prefetch = 0 : i64, scratch_operands = 0 : i64, tpu.core_type = #tpu.core_type<tc>, window_params = [{transform_indices = @transform_0, window_bounds = array<i64: 8, 160>}, {pipeline_mode = #tpu.pipeline_mode<synchronous>, transform_indices = @transform_1, window_bounds = array<i64: 160, 512>}, {pipeline_mode = #tpu.pipeline_mode<synchronous>, transform_indices = @transform_2, window_bounds = array<i64: 512, 1024>}, {pipeline_mode = #tpu.pipeline_mode<synchronous>, transform_indices = @transform_3, window_bounds = array<i64: 1024, 784>}, {pipeline_mode = #tpu.pipeline_mode<synchronous>, transform_indices = @transform_4, window_bounds = array<i64: 1, 2320>}, {transform_indices = @transform_5, window_bounds = array<i64: 8, 784>}]} {
    %c0 = arith.constant 0 : index
    %c0_0 = arith.constant 0 : index
    %0 = vector.load %arg1[%c0, %c0_0] : memref<8x160xf32, #tpu.memory_space<vmem>>, vector<8x160xf32>
    %1 = arith.truncf %0 : vector<8x160xf32> to vector<8x160xbf16>
    %c0_1 = arith.constant 0 : index
    %c0_2 = arith.constant 0 : index
    %2 = vector.load %arg5[%c0_1, %c0_2] : memref<1x2320xf32, #tpu.memory_space<vmem>>, vector<1x512xf32>
    %c0_3 = arith.constant 0 : index
    %c512 = arith.constant 512 : index
    %3 = vector.load %arg5[%c0_3, %c512] : memref<1x2320xf32, #tpu.memory_space<vmem>>, vector<1x1024xf32>
    %c0_4 = arith.constant 0 : index
    %c1536 = arith.constant 1536 : index
    %4 = vector.load %arg5[%c0_4, %c1536] : memref<1x2320xf32, #tpu.memory_space<vmem>>, vector<1x784xf32>
    %c0_5 = arith.constant 0 : index
    %c0_6 = arith.constant 0 : index
    %5 = vector.load %arg2[%c0_5, %c0_6] : memref<160x512xbf16, #tpu.memory_space<vmem>>, vector<160x512xbf16>
    %cst = arith.constant dense<0.000000e+00> : vector<8x512xf32>
    %6 = tpu.matmul %1, %5, %cst {dimension_numbers = #tpu.dot_dimension_numbers<[1], [0], [0], [1], [0, 0, 1, 1], [], []>} : vector<8x160xbf16>, vector<160x512xbf16>, vector<8x512xf32> -> vector<8x512xf32>
    %7 = vector.broadcast %2 : vector<1x512xf32> to vector<8x512xf32>
    %8 = arith.addf %6, %7 : vector<8x512xf32>
    %cst_7 = arith.constant 0.000000e+00 : f32
    %9 = vector.broadcast %cst_7 : f32 to vector<8x512xf32>
    %10 = arith.maximumf %8, %9 : vector<8x512xf32>
    %11 = arith.truncf %10 : vector<8x512xf32> to vector<8x512xbf16>
    %c0_8 = arith.constant 0 : index
    %c0_9 = arith.constant 0 : index
    %12 = vector.load %arg3[%c0_8, %c0_9] : memref<512x1024xbf16, #tpu.memory_space<vmem>>, vector<512x1024xbf16>
    %cst_10 = arith.constant dense<0.000000e+00> : vector<8x1024xf32>
    %13 = tpu.matmul %11, %12, %cst_10 {dimension_numbers = #tpu.dot_dimension_numbers<[1], [0], [0], [1], [0, 0, 1, 1], [], []>} : vector<8x512xbf16>, vector<512x1024xbf16>, vector<8x1024xf32> -> vector<8x1024xf32>
    %14 = vector.broadcast %3 : vector<1x1024xf32> to vector<8x1024xf32>
    %15 = arith.addf %13, %14 : vector<8x1024xf32>
    %cst_11 = arith.constant 0.000000e+00 : f32
    %16 = vector.broadcast %cst_11 : f32 to vector<8x1024xf32>
    %17 = arith.maximumf %15, %16 : vector<8x1024xf32>
    %18 = arith.truncf %17 : vector<8x1024xf32> to vector<8x1024xbf16>
    %c0_12 = arith.constant 0 : index
    %c0_13 = arith.constant 0 : index
    %19 = vector.load %arg4[%c0_12, %c0_13] : memref<1024x784xbf16, #tpu.memory_space<vmem>>, vector<1024x784xbf16>
    %cst_14 = arith.constant dense<0.000000e+00> : vector<8x784xf32>
    %20 = tpu.matmul %18, %19, %cst_14 {dimension_numbers = #tpu.dot_dimension_numbers<[1], [0], [0], [1], [0, 0, 1, 1], [], []>} : vector<8x1024xbf16>, vector<1024x784xbf16>, vector<8x784xf32> -> vector<8x784xf32>
    %21 = vector.broadcast %4 : vector<1x784xf32> to vector<8x784xf32>
    %22 = arith.addf %20, %21 : vector<8x784xf32>
    %23 = arith.negf %22 : vector<8x784xf32>
    %24 = math.exp %23 : vector<8x784xf32>
    %cst_15 = arith.constant 1.000000e+00 : f32
    %25 = vector.broadcast %cst_15 : f32 to vector<8x784xf32>
    %26 = arith.addf %25, %24 : vector<8x784xf32>
    %27 = arith.divf %25, %26 : vector<8x784xf32>
    %c0_16 = arith.constant 0 : index
    %c0_17 = arith.constant 0 : index
    %28 = vector.load %arg6[%c0_16, %c0_17] : memref<8x784xf32, #tpu.memory_space<vmem>>, vector<8x784xf32>
    tpu.vector_store %arg6[%c0_16, %c0_17], %27 {strides = array<i32>} : memref<8x784xf32, #tpu.memory_space<vmem>>, vector<8x784xf32>,
    return
  }
  func.func @transform_0(%arg0: i32) -> (i32, i32) {
    %c0_i32 = arith.constant 0 : i32
    %c0_i32_0 = arith.constant 0 : i32
    return %arg0, %c0_i32 : i32, i32
  }
  func.func @transform_1(%arg0: i32) -> (i32, i32) {
    %c0_i32 = arith.constant 0 : i32
    %c0_i32_0 = arith.constant 0 : i32
    %c0_i32_1 = arith.constant 0 : i32
    return %c0_i32, %c0_i32_0 : i32, i32
  }
  func.func @transform_2(%arg0: i32) -> (i32, i32) {
    %c0_i32 = arith.constant 0 : i32
    %c0_i32_0 = arith.constant 0 : i32
    %c0_i32_1 = arith.constant 0 : i32
    return %c0_i32, %c0_i32_0 : i32, i32
  }
  func.func @transform_3(%arg0: i32) -> (i32, i32) {
    %c0_i32 = arith.constant 0 : i32
    %c0_i32_0 = arith.constant 0 : i32
    %c0_i32_1 = arith.constant 0 : i32
    return %c0_i32, %c0_i32_0 : i32, i32
  }
  func.func @transform_4(%arg0: i32) -> (i32, i32) {
    %c0_i32 = arith.constant 0 : i32
    %c0_i32_0 = arith.constant 0 : i32
    %c0_i32_1 = arith.constant 0 : i32
    return %c0_i32, %c0_i32_0 : i32, i32
  }
  func.func @transform_5(%arg0: i32) -> (i32, i32) {
    %c0_i32 = arith.constant 0 : i32
    %c0_i32_0 = arith.constant 0 : i32
    return %arg0, %c0_i32 : i32, i32
  }
}

</mosaic_0001>

<llo_original>
// kernel: tpu_custom_call.1
$region0: #{tpu_custom_call.1}
  #allocation0 [shape = 'u32[]', space=smem, size = 0x4, offset = 0x4, fixed_abs, tag = 'smem constant byte address 0x4 - core index']
  #allocation1 [shape = 'u32[144,128]{1,0:T(1,128)}', space=vmem, size = 0x12000, scoped, tag = 'internal scratch']
  %s0 = inlined_call_operand.vmem [shape: f32[8,160], index: 0, kind: input, shape index: {}]
  %s1 = inlined_call_operand.vmem [shape: bf16[160,512], index: 1, kind: input, shape index: {}]
  %s2 = inlined_call_operand.vmem [shape: bf16[512,1024], index: 2, kind: input, shape index: {}]
  %s3 = inlined_call_operand.vmem [shape: bf16[1024,784], index: 3, kind: input, shape index: {}]
  %s4 = inlined_call_operand.vmem [shape: f32[1,2320], index: 4, kind: input, shape index: {}]
  %s5 = inlined_call_operand.hbm [shape: f32[8,784], index: 5, kind: output, shape index: {}]
  %s6 = sld [smem:[#allocation0]]
  $region30: #{tpu_custom_call.1} parent=0
    _
  %s8 = ssub.s32 1, %s6
  %s9 = scalar_select 0, %s8, %s6
  $region1: #{tpu_custom_call.1} parent=0
    #allocation2 [shape = 'u8[28672]{0}', space=vmem, size = 0x7000, scoped, tag = 'output window, operand 0, single buffered']
    #allocation3 [shape = 's32[1]{0}', space=sflag, size = 0x4, scoped, tag = 'scoped memory for tpu_custom_call.1']
    %10 = vsyncpa [#allocation3], 0
    // Predicated region
    $region2: #{tpu_custom_call.1} parent=1 // pred_check
      _
    $region3: #{tpu_custom_call.1} parent=1 // pred_check_branch
      %12 = sbr.rel (0) target = $region5
    $region4: #{tpu_custom_call.1} parent=1 // pred_region
      _
    $region5: #{tpu_custom_call.1} parent=1 // pred_fallthru
      _
    // Predicated region
    $region6: #{tpu_custom_call.1} parent=1 // pred_check
      _
    $region7: #{tpu_custom_call.1} parent=1 // pred_check_branch
      %14 = sbr.rel (0) target = $region9
    $region8: #{tpu_custom_call.1} parent=1 // pred_region
      _
    $region9: #{tpu_custom_call.1} parent=1 // pred_fallthru
      _
    // Predicated region
    $region10: #{tpu_custom_call.1} parent=1 // pred_check
      _
    $region11: #{tpu_custom_call.1} parent=1 // pred_check_branch
      %16 = sbr.rel (0) target = $region13
    $region12: #{tpu_custom_call.1} parent=1 // pred_region
      _
    $region13: #{tpu_custom_call.1} parent=1 // pred_fallthru
      _
    // Predicated region
    $region14: #{tpu_custom_call.1} parent=1 // pred_check
      _
    $region15: #{tpu_custom_call.1} parent=1 // pred_check_branch
      %18 = sbr.rel (0) target = $region17
    $region16: #{tpu_custom_call.1} parent=1 // pred_region
      _
    $region17: #{tpu_custom_call.1} parent=1 // pred_fallthru
      _
    // Predicated region
    $region18: #{tpu_custom_call.1} parent=1 // pred_check
      _
    $region19: #{tpu_custom_call.1} parent=1 // pred_check_branch
      %20 = sbr.rel (0) target = $region21
    $region20: #{tpu_custom_call.1} parent=1 // pred_region
      _
    $region21: #{tpu_custom_call.1} parent=1 // pred_fallthru
      _
    %v22 = vld [vmem:[%s0] sm:$0xff]
    %v23 = vld [vmem:[%s0 + $0x8] sm:$0xff]
    %v24 = vpack.c.bf16 %v22, %v22
    %v25 = vpack.c.bf16 %v23, %v23
    %v26 = vld [vmem:[%s4] sm:$0xf]
    %v27 = vld [vmem:[%s4 + $0x4] sm:$0xff]
    %v28 = vld [vmem:[%s4 + $0xc] sm:$0x7f]
    %v29 = vld [vmem:[%s1] sm:$0xff]
    %v30 = vld [vmem:[%s1 + $0x8] sm:$0xff]
    %v31 = vld [vmem:[%s1 + $0x10] sm:$0xff]
    %v32 = vld [vmem:[%s1 + $0x18] sm:$0xff]
    %v33 = vld [vmem:[%s1 + $0x20] sm:$0xff]
    %v34 = vld [vmem:[%s1 + $0x28] sm:$0xff]
    %v35 = vld [vmem:[%s1 + $0x30] sm:$0xff]
    %v36 = vld [vmem:[%s1 + $0x38] sm:$0xff]
    %v37 = vld [vmem:[%s1 + $0x40] sm:$0xff]
    %v38 = vld [vmem:[%s1 + $0x48] sm:$0xff]
    %v39 = vld [vmem:[%s1 + $0x50] sm:$0xff]
    %v40 = vld [vmem:[%s1 + $0x58] sm:$0xff]
    %v41 = vld [vmem:[%s1 + $0x60] sm:$0xff]
    %v42 = vld [vmem:[%s1 + $0x68] sm:$0xff]
    %v43 = vld [vmem:[%s1 + $0x70] sm:$0xff]
    %v44 = vld [vmem:[%s1 + $0x78] sm:$0xff]
    %v45 = vld [vmem:[%s1 + $0x80] sm:$0xff]
    %v46 = vld [vmem:[%s1 + $0x88] sm:$0xff]
    %v47 = vld [vmem:[%s1 + $0x90] sm:$0xff]
    %v48 = vld [vmem:[%s1 + $0x98] sm:$0xff]
    %v49 = vld [vmem:[%s1 + $0xa0] sm:$0xff]
    %v50 = vld [vmem:[%s1 + $0xa8] sm:$0xff]
    %v51 = vld [vmem:[%s1 + $0xb0] sm:$0xff]
    %v52 = vld [vmem:[%s1 + $0xb8] sm:$0xff]
    %v53 = vld [vmem:[%s1 + $0xc0] sm:$0xff]
    %v54 = vld [vmem:[%s1 + $0xc8] sm:$0xff]
    %v55 = vld [vmem:[%s1 + $0xd0] sm:$0xff]
    %v56 = vld [vmem:[%s1 + $0xd8] sm:$0xff]
    %v57 = vld [vmem:[%s1 + $0xe0] sm:$0xff]
    %v58 = vld [vmem:[%s1 + $0xe8] sm:$0xff]
    %v59 = vld [vmem:[%s1 + $0xf0] sm:$0xff]
    %v60 = vld [vmem:[%s1 + $0xf8] sm:$0xff]
    %v61 = vld [vmem:[%s1 + $0x100] sm:$0xff]
    %v62 = vld [vmem:[%s1 + $0x108] sm:$0xff]
    %v63 = vld [vmem:[%s1 + $0x110] sm:$0xff]
    %v64 = vld [vmem:[%s1 + $0x118] sm:$0xff]
    %v65 = vld [vmem:[%s1 + $0x120] sm:$0xff]
    %v66 = vld [vmem:[%s1 + $0x128] sm:$0xff]
    %v67 = vld [vmem:[%s1 + $0x130] sm:$0xff]
    %v68 = vld [vmem:[%s1 + $0x138] sm:$0xff]
    %v70 = vlaneseq
    %v71 = vshrl.u32 %v70, 7
    %v72 = vsub.s32 0, %v71
    %v73 = vrot.slane %v26, %v72
    %v74 = vlaneseq
    %v75 = vshrl.u32 %v74, 7
    %v76 = vsub.s32 1, %v75
    %v77 = vrot.slane %v26, %v76
    %v78 = vlaneseq
    %v79 = vshrl.u32 %v78, 7
    %v80 = vsub.s32 2, %v79
    %v81 = vrot.slane %v26, %v80
    %v82 = vlaneseq
    %v83 = vshrl.u32 %v82, 7
    %v84 = vsub.s32 3, %v83
    %v85 = vrot.slane %v26, %v84
    %v130 = vunpack.c.l.b16 %v29
    %v131 = vunpack.c.h.b16 %v29
    %v132 = vunpack.c.l.b16 %v30
    %v133 = vunpack.c.h.b16 %v30
    %v134 = vunpack.c.l.b16 %v31
    %v135 = vunpack.c.h.b16 %v31
    %v136 = vunpack.c.l.b16 %v32
    %v137 = vunpack.c.h.b16 %v32
    %v138 = vunpack.c.l.b16 %v33
    %v139 = vunpack.c.h.b16 %v33
    %v140 = vunpack.c.l.b16 %v34
    %v141 = vunpack.c.h.b16 %v34
    %v142 = vunpack.c.l.b16 %v35
    %v143 = vunpack.c.h.b16 %v35
    %v144 = vunpack.c.l.b16 %v36
    %v145 = vunpack.c.h.b16 %v36
    %v146 = vunpack.c.l.b16 %v37
    %v147 = vunpack.c.h.b16 %v37
    %v148 = vunpack.c.l.b16 %v38
    %v149 = vunpack.c.h.b16 %v38
    %v150 = vunpack.c.l.b16 %v39
    %v151 = vunpack.c.h.b16 %v39
    %v152 = vunpack.c.l.b16 %v40
    %v153 = vunpack.c.h.b16 %v40
    %v154 = vunpack.c.l.b16 %v41
    %v155 = vunpack.c.h.b16 %v41
    %v156 = vunpack.c.l.b16 %v42
    %v157 = vunpack.c.h.b16 %v42
    %v158 = vunpack.c.l.b16 %v43
    %v159 = vunpack.c.h.b16 %v43
    %v160 = vunpack.c.l.b16 %v44
    %v161 = vunpack.c.h.b16 %v44
    %v162 = vunpack.c.l.b16 %v45
    %v163 = vunpack.c.h.b16 %v45
    %v164 = vunpack.c.l.b16 %v46
    %v165 = vunpack.c.h.b16 %v46
    %v166 = vunpack.c.l.b16 %v47
    %v167 = vunpack.c.h.b16 %v47
    %v168 = vunpack.c.l.b16 %v48
    %v169 = vunpack.c.h.b16 %v48
    %v170 = vunpack.c.l.b16 %v49
    %v171 = vunpack.c.h.b16 %v49
    %v172 = vunpack.c.l.b16 %v50
    %v173 = vunpack.c.h.b16 %v50
    %v174 = vunpack.c.l.b16 %v51
    %v175 = vunpack.c.h.b16 %v51
    %v176 = vunpack.c.l.b16 %v52
    %v177 = vunpack.c.h.b16 %v52
    %v178 = vunpack.c.l.b16 %v53
    %v179 = vunpack.c.h.b16 %v53
    %v180 = vunpack.c.l.b16 %v54
    %v181 = vunpack.c.h.b16 %v54
    %v182 = vunpack.c.l.b16 %v55
    %v183 = vunpack.c.h.b16 %v55
    %v184 = vunpack.c.l.b16 %v56
    %v185 = vunpack.c.h.b16 %v56
    %v186 = vunpack.c.l.b16 %v57
    %v187 = vunpack.c.h.b16 %v57
    %v188 = vunpack.c.l.b16 %v58
    %v189 = vunpack.c.h.b16 %v58
    %v190 = vunpack.c.l.b16 %v59
    %v191 = vunpack.c.h.b16 %v59
    %v192 = vunpack.c.l.b16 %v60
    %v193 = vunpack.c.h.b16 %v60
    %v194 = vunpack.c.l.b16 %v61
    %v195 = vunpack.c.h.b16 %v61
    %v196 = vunpack.c.l.b16 %v62
    %v197 = vunpack.c.h.b16 %v62
    %v198 = vunpack.c.l.b16 %v63
    %v199 = vunpack.c.h.b16 %v63
    %v200 = vunpack.c.l.b16 %v64
    %v201 = vunpack.c.h.b16 %v64
    %v202 = vunpack.c.l.b16 %v65
    %v203 = vunpack.c.h.b16 %v65
    %v204 = vunpack.c.l.b16 %v66
    %v205 = vunpack.c.h.b16 %v66
    %v206 = vunpack.c.l.b16 %v67
    %v207 = vunpack.c.h.b16 %v67
    %v208 = vunpack.c.l.b16 %v68
    %v209 = vunpack.c.h.b16 %v68
    %v210 = vpack.c.b16 %v134, %v130
    %v211 = vpack.c.b16 %v135, %v131
    %v212 = vpack.c.b16 %v136, %v132
    %v213 = vpack.c.b16 %v137, %v133
    %v214 = vpack.c.b16 %v142, %v138
    %v215 = vpack.c.b16 %v143, %v139
    %v216 = vpack.c.b16 %v144, %v140
    %v217 = vpack.c.b16 %v145, %v141
    %v218 = vpack.c.b16 %v150, %v146
    %v219 = vpack.c.b16 %v151, %v147
    %v220 = vpack.c.b16 %v152, %v148
    %v221 = vpack.c.b16 %v153, %v149
    %v222 = vpack.c.b16 %v158, %v154
    %v223 = vpack.c.b16 %v159, %v155
    %v224 = vpack.c.b16 %v160, %v156
    %v225 = vpack.c.b16 %v161, %v157
    %v226 = vpack.c.b16 %v166, %v162
    %v227 = vpack.c.b16 %v167, %v163
    %v228 = vpack.c.b16 %v168, %v164
    %v229 = vpack.c.b16 %v169, %v165
    %v230 = vpack.c.b16 %v174, %v170
    %v231 = vpack.c.b16 %v175, %v171
    %v232 = vpack.c.b16 %v176, %v172
    %v233 = vpack.c.b16 %v177, %v173
    %v234 = vpack.c.b16 %v182, %v178
    %v235 = vpack.c.b16 %v183, %v179
    %v236 = vpack.c.b16 %v184, %v180
    %v237 = vpack.c.b16 %v185, %v181
    %v238 = vpack.c.b16 %v190, %v186
    %v239 = vpack.c.b16 %v191, %v187
    %v240 = vpack.c.b16 %v192, %v188
    %v241 = vpack.c.b16 %v193, %v189
    %v242 = vpack.c.b16 %v198, %v194
    %v243 = vpack.c.b16 %v199, %v195
    %v244 = vpack.c.b16 %v200, %v196
    %v245 = vpack.c.b16 %v201, %v197
    %v246 = vpack.c.b16 %v206, %v202
    %v247 = vpack.c.b16 %v207, %v203
    %v248 = vpack.c.b16 %v208, %v204
    %v249 = vpack.c.b16 %v209, %v205
    %vm290 = vcmask 261120
    %v292 = vsel %vm290, %v25, 0
    %294 = vmatprep.subr.bf16.mxu0 %v239
    %295 = vmatpush1.bf16.msra.mxu0 %v238
    %296 = vmatprep.subr.bf16.mxu0 %v235
    %297 = vmatpush1.bf16.msra.mxu0 %v234
    %298 = vmatprep.subr.bf16.mxu0 %v231
    %299 = vmatpush1.bf16.msra.mxu0 %v230
    %300 = vmatprep.subr.bf16.mxu0 %v227
    %301 = vmatpush1.bf16.msra.mxu0 %v226
    %302 = vmatprep.subr.bf16.mxu0 %v223
    %303 = vmatpush1.bf16.msra.mxu0 %v222
    %304 = vmatprep.subr.bf16.mxu0 %v219
    %305 = vmatpush1.bf16.msra.mxu0 %v218
    %306 = vmatprep.subr.bf16.mxu0 %v215
    %307 = vmatpush1.bf16.msra.mxu0 %v214
    %308 = vmatprep.subr.bf16.mxu0 %v211
    %309 = vmatpush1.bf16.msra.mxu0 %v210
    %310 = vmatprep.subr.bf16.mxu0 0
    %311 = vmatpush2.bf16.msra.mxu0 0
    %312 = vmatprep.subr.bf16.mxu0 0
    %313 = vmatpush2.bf16.msra.mxu0 0
    %314 = vmatprep.subr.bf16.mxu0 0
    %315 = vmatpush2.bf16.msra.mxu0 0
    %316 = vmatprep.subr.bf16.mxu0 0
    %317 = vmatpush2.bf16.msra.mxu0 0
    %318 = vmatprep.subr.bf16.mxu0 0
    %319 = vmatpush2.bf16.msra.mxu0 0
    %320 = vmatprep.subr.bf16.mxu0 0
    %321 = vmatpush2.bf16.msra.mxu0 0
    %322 = vmatprep.subr.bf16.mxu0 %v247
    %323 = vmatpush2.bf16.msra.mxu0 %v246
    %324 = vmatprep.subr.bf16.mxu0 %v243
    %325 = vmatpush2.bf16.msra.mxu0 %v242
    %326 = vmatprep.mubr.bf16.mxu0 %v292
    %327 = vmatmul.mubr.bf16.gmra.mxu0 %v24
    %v328 = vpop.f32.mrf.mxu0
    %v329 = vadd.f32 %v73, %v328
    %v330 = vpop.f32.mrf.mxu0
    %v331 = vadd.f32 %v77, %v330
    %v332 = vpop.f32.mrf.mxu0
    %v333 = vpop.f32.mrf.mxu0
    %334 = vdwg.mxu0
    %335 = vmatprep.subr.bf16.mxu0 %v241
    %336 = vmatpush1.bf16.msra.mxu0 %v240
    %337 = vmatprep.subr.bf16.mxu0 %v237
    %338 = vmatpush1.bf16.msra.mxu0 %v236
    %339 = vmatprep.subr.bf16.mxu0 %v233
    %340 = vmatpush1.bf16.msra.mxu0 %v232
    %341 = vmatprep.subr.bf16.mxu0 %v229
    %342 = vmatpush1.bf16.msra.mxu0 %v228
    %343 = vmatprep.subr.bf16.mxu0 %v225
    %344 = vmatpush1.bf16.msra.mxu0 %v224
    %345 = vmatprep.subr.bf16.mxu0 %v221
    %346 = vmatpush1.bf16.msra.mxu0 %v220
    %347 = vmatprep.subr.bf16.mxu0 %v217
    %348 = vmatpush1.bf16.msra.mxu0 %v216
    %349 = vmatprep.subr.bf16.mxu0 %v213
    %350 = vmatpush1.bf16.msra.mxu0 %v212
    %351 = vmatprep.subr.bf16.mxu0 0
    %352 = vmatpush2.bf16.msra.mxu0 0
    %353 = vmatprep.subr.bf16.mxu0 0
    %354 = vmatpush2.bf16.msra.mxu0 0
    %355 = vmatprep.subr.bf16.mxu0 0
    %356 = vmatpush2.bf16.msra.mxu0 0
    %357 = vmatprep.subr.bf16.mxu0 0
    %358 = vmatpush2.bf16.msra.mxu0 0
    %359 = vmatprep.subr.bf16.mxu0 0
    %360 = vmatpush2.bf16.msra.mxu0 0
    %361 = vmatprep.subr.bf16.mxu0 0
    %362 = vmatpush2.bf16.msra.mxu0 0
    %363 = vmatprep.subr.bf16.mxu0 %v249
    %364 = vmatpush2.bf16.msra.mxu0 %v248
    %365 = vmatprep.subr.bf16.mxu0 %v245
    %366 = vmatpush2.bf16.msra.mxu0 %v244
    %367 = vmatprep.mubr.bf16.mxu0 %v292
    %368 = vmatmul.mubr.bf16.gmra.mxu0 %v24
    %v369 = vpop.f32.mrf.mxu0
    %v370 = vadd.f32 %v81, %v369
    %v371 = vpop.f32.mrf.mxu0
    %v372 = vadd.f32 %v85, %v371
    %v373 = vpop.f32.mrf.mxu0
    %v374 = vpop.f32.mrf.mxu0
    %375 = vdwg.mxu0
    %v376 = vmax.f32 %v329, 0.0
    %v377 = vmax.f32 %v331, 0.0
    %v378 = vmax.f32 %v370, 0.0
    %v379 = vmax.f32 %v372, 0.0
    %v380 = vpack.c.bf16 %v376, %v376
    %v381 = vpack.c.bf16 %v377, %v377
    %v382 = vpack.c.bf16 %v378, %v378
    %v383 = vpack.c.bf16 %v379, %v379
    %v384 = vld [vmem:[%s2] sm:$0xff]
    %v385 = vld [vmem:[%s2 + $0x8] sm:$0xff]
    %v386 = vld [vmem:[%s2 + $0x10] sm:$0xff]
    %v387 = vld [vmem:[%s2 + $0x18] sm:$0xff]
    %v388 = vld [vmem:[%s2 + $0x20] sm:$0xff]
    %v389 = vld [vmem:[%s2 + $0x28] sm:$0xff]
    %v390 = vld [vmem:[%s2 + $0x30] sm:$0xff]
    %v391 = vld [vmem:[%s2 + $0x38] sm:$0xff]
    %v392 = vld [vmem:[%s2 + $0x40] sm:$0xff]
    %v393 = vld [vmem:[%s2 + $0x48] sm:$0xff]
    %v394 = vld [vmem:[%s2 + $0x50] sm:$0xff]
    %v395 = vld [vmem:[%s2 + $0x58] sm:$0xff]
    %v396 = vld [vmem:[%s2 + $0x60] sm:$0xff]
    %v397 = vld [vmem:[%s2 + $0x68] sm:$0xff]
    %v398 = vld [vmem:[%s2 + $0x70] sm:$0xff]
    %v399 = vld [vmem:[%s2 + $0x78] sm:$0xff]
    %v400 = vld [vmem:[%s2 + $0x80] sm:$0xff]
    %v401 = vld [vmem:[%s2 + $0x88] sm:$0xff]
    %v402 = vld [vmem:[%s2 + $0x90] sm:$0xff]
    %v403 = vld [vmem:[%s2 + $0x98] sm:$0xff]
    %v404 = vld [vmem:[%s2 + $0xa0] sm:$0xff]
    %v405 = vld [vmem:[%s2 + $0xa8] sm:$0xff]
    %v406 = vld [vmem:[%s2 + $0xb0] sm:$0xff]
    %v407 = vld [vmem:[%s2 + $0xb8] sm:$0xff]
    %v408 = vld [vmem:[%s2 + $0xc0] sm:$0xff]
    %v409 = vld [vmem:[%s2 + $0xc8] sm:$0xff]
    %v410 = vld [vmem:[%s2 + $0xd0] sm:$0xff]
    %v411 = vld [vmem:[%s2 + $0xd8] sm:$0xff]
    %v412 = vld [vmem:[%s2 + $0xe0] sm:$0xff]
    %v413 = vld [vmem:[%s2 + $0xe8] sm:$0xff]
    %v414 = vld [vmem:[%s2 + $0xf0] sm:$0xff]
    %v415 = vld [vmem:[%s2 + $0xf8] sm:$0xff]
    %v416 = vld [vmem:[%s2 + $0x100] sm:$0xff]
    %v417 = vld [vmem:[%s2 + $0x108] sm:$0xff]
    %v418 = vld [vmem:[%s2 + $0x110] sm:$0xff]
    %v419 = vld [vmem:[%s2 + $0x118] sm:$0xff]
    %v420 = vld [vmem:[%s2 + $0x120] sm:$0xff]
    %v421 = vld [vmem:[%s2 + $0x128] sm:$0xff]
    %v422 = vld [vmem:[%s2 + $0x130] sm:$0xff]
    %v423 = vld [vmem:[%s2 + $0x138] sm:$0xff]
    %v424 = vld [vmem:[%s2 + $0x140] sm:$0xff]
    %v425 = vld [vmem:[%s2 + $0x148] sm:$0xff]
    %v426 = vld [vmem:[%s2 + $0x150] sm:$0xff]
    %v427 = vld [vmem:[%s2 + $0x158] sm:$0xff]
    %v428 = vld [vmem:[%s2 + $0x160] sm:$0xff]
    %v429 = vld [vmem:[%s2 + $0x168] sm:$0xff]
    %v430 = vld [vmem:[%s2 + $0x170] sm:$0xff]
    %v431 = vld [vmem:[%s2 + $0x178] sm:$0xff]
    %v432 = vld [vmem:[%s2 + $0x180] sm:$0xff]
    %v433 = vld [vmem:[%s2 + $0x188] sm:$0xff]
    %v434 = vld [vmem:[%s2 + $0x190] sm:$0xff]
    %v435 = vld [vmem:[%s2 + $0x198] sm:$0xff]
    %v436 = vld [vmem:[%s2 + $0x1a0] sm:$0xff]
    %v437 = vld [vmem:[%s2 + $0x1a8] sm:$0xff]
    %v438 = vld [vmem:[%s2 + $0x1b0] sm:$0xff]
    %v439 = vld [vmem:[%s2 + $0x1b8] sm:$0xff]
    %v440 = vld [vmem:[%s2 + $0x1c0] sm:$0xff]
    %v441 = vld [vmem:[%s2 + $0x1c8] sm:$0xff]
    %v442 = vld [vmem:[%s2 + $0x1d0] sm:$0xff]
    %v443 = vld [vmem:[%s2 + $0x1d8] sm:$0xff]
    %v444 = vld [vmem:[%s2 + $0x1e0] sm:$0xff]
    %v445 = vld [vmem:[%s2 + $0x1e8] sm:$0xff]
    %v446 = vld [vmem:[%s2 + $0x1f0] sm:$0xff]
    %v447 = vld [vmem:[%s2 + $0x1f8] sm:$0xff]
    %v448 = vld [vmem:[%s2 + $0x200] sm:$0xff]
    %v449 = vld [vmem:[%s2 + $0x208] sm:$0xff]
    %v450 = vld [vmem:[%s2 + $0x210] sm:$0xff]
    %v451 = vld [vmem:[%s2 + $0x218] sm:$0xff]
    %v452 = vld [vmem:[%s2 + $0x220] sm:$0xff]
    %v453 = vld [vmem:[%s2 + $0x228] sm:$0xff]
    %v454 = vld [vmem:[%s2 + $0x230] sm:$0xff]
    %v455 = vld [vmem:[%s2 + $0x238] sm:$0xff]
    %v456 = vld [vmem:[%s2 + $0x240] sm:$0xff]
    %v457 = vld [vmem:[%s2 + $0x248] sm:$0xff]
    %v458 = vld [vmem:[%s2 + $0x250] sm:$0xff]
    %v459 = vld [vmem:[%s2 + $0x258] sm:$0xff]
    %v460 = vld [vmem:[%s2 + $0x260] sm:$0xff]
    %v461 = vld [vmem:[%s2 + $0x268] sm:$0xff]
    %v462 = vld [vmem:[%s2 + $0x270] sm:$0xff]
    %v463 = vld [vmem:[%s2 + $0x278] sm:$0xff]
    %v464 = vld [vmem:[%s2 + $0x280] sm:$0xff]
    %v465 = vld [vmem:[%s2 + $0x288] sm:$0xff]
    %v466 = vld [vmem:[%s2 + $0x290] sm:$0xff]
    %v467 = vld [vmem:[%s2 + $0x298] sm:$0xff]
    %v468 = vld [vmem:[%s2 + $0x2a0] sm:$0xff]
    %v469 = vld [vmem:[%s2 + $0x2a8] sm:$0xff]
    %v470 = vld [vmem:[%s2 + $0x2b0] sm:$0xff]
    %v471 = vld [vmem:[%s2 + $0x2b8] sm:$0xff]
    %v472 = vld [vmem:[%s2 + $0x2c0] sm:$0xff]
    %v473 = vld [vmem:[%s2 + $0x2c8] sm:$0xff]
    %v474 = vld [vmem:[%s2 + $0x2d0] sm:$0xff]
    %v475 = vld [vmem:[%s2 + $0x2d8] sm:$0xff]
    %v476 = vld [vmem:[%s2 + $0x2e0] sm:$0xff]
    %v477 = vld [vmem:[%s2 + $0x2e8] sm:$0xff]
    %v478 = vld [vmem:[%s2 + $0x2f0] sm:$0xff]
    %v479 = vld [vmem:[%s2 + $0x2f8] sm:$0xff]
    %v480 = vld [vmem:[%s2 + $0x300] sm:$0xff]
    %v481 = vld [vmem:[%s2 + $0x308] sm:$0xff]
    %v482 = vld [vmem:[%s2 + $0x310] sm:$0xff]
    %v483 = vld [vmem:[%s2 + $0x318] sm:$0xff]
    %v484 = vld [vmem:[%s2 + $0x320] sm:$0xff]
    %v485 = vld [vmem:[%s2 + $0x328] sm:$0xff]
    %v486 = vld [vmem:[%s2 + $0x330] sm:$0xff]
    %v487 = vld [vmem:[%s2 + $0x338] sm:$0xff]
    %v488 = vld [vmem:[%s2 + $0x340] sm:$0xff]
    %v489 = vld [vmem:[%s2 + $0x348] sm:$0xff]
    %v490 = vld [vmem:[%s2 + $0x350] sm:$0xff]
    %v491 = vld [vmem:[%s2 + $0x358] sm:$0xff]
    %v492 = vld [vmem:[%s2 + $0x360] sm:$0xff]
    %v493 = vld [vmem:[%s2 + $0x368] sm:$0xff]
    %v494 = vld [vmem:[%s2 + $0x370] sm:$0xff]
    %v495 = vld [vmem:[%s2 + $0x378] sm:$0xff]
    %v496 = vld [vmem:[%s2 + $0x380] sm:$0xff]
    %v497 = vld [vmem:[%s2 + $0x388] sm:$0xff]
    %v498 = vld [vmem:[%s2 + $0x390] sm:$0xff]
    %v499 = vld [vmem:[%s2 + $0x398] sm:$0xff]
    %v500 = vld [vmem:[%s2 + $0x3a0] sm:$0xff]
    %v501 = vld [vmem:[%s2 + $0x3a8] sm:$0xff]
    %v502 = vld [vmem:[%s2 + $0x3b0] sm:$0xff]
    %v503 = vld [vmem:[%s2 + $0x3b8] sm:$0xff]
    %v504 = vld [vmem:[%s2 + $0x3c0] sm:$0xff]
    %v505 = vld [vmem:[%s2 + $0x3c8] sm:$0xff]
    %v506 = vld [vmem:[%s2 + $0x3d0] sm:$0xff]
    %v507 = vld [vmem:[%s2 + $0x3d8] sm:$0xff]
    %v508 = vld [vmem:[%s2 + $0x3e0] sm:$0xff]
    %v509 = vld [vmem:[%s2 + $0x3e8] sm:$0xff]
    %v510 = vld [vmem:[%s2 + $0x3f0] sm:$0xff]
    %v511 = vld [vmem:[%s2 + $0x3f8] sm:$0xff]
    %v512 = vld [vmem:[%s2 + $0x400] sm:$0xff]
    %v513 = vld [vmem:[%s2 + $0x408] sm:$0xff]
    %v514 = vld [vmem:[%s2 + $0x410] sm:$0xff]
    %v515 = vld [vmem:[%s2 + $0x418] sm:$0xff]
    %v516 = vld [vmem:[%s2 + $0x420] sm:$0xff]
    %v517 = vld [vmem:[%s2 + $0x428] sm:$0xff]
    %v518 = vld [vmem:[%s2 + $0x430] sm:$0xff]
    %v519 = vld [vmem:[%s2 + $0x438] sm:$0xff]
    %v520 = vld [vmem:[%s2 + $0x440] sm:$0xff]
    %v521 = vld [vmem:[%s2 + $0x448] sm:$0xff]
    %v522 = vld [vmem:[%s2 + $0x450] sm:$0xff]
    %v523 = vld [vmem:[%s2 + $0x458] sm:$0xff]
    %v524 = vld [vmem:[%s2 + $0x460] sm:$0xff]
    %v525 = vld [vmem:[%s2 + $0x468] sm:$0xff]
    %v526 = vld [vmem:[%s2 + $0x470] sm:$0xff]
    %v527 = vld [vmem:[%s2 + $0x478] sm:$0xff]
    %v528 = vld [vmem:[%s2 + $0x480] sm:$0xff]
    %v529 = vld [vmem:[%s2 + $0x488] sm:$0xff]
    %v530 = vld [vmem:[%s2 + $0x490] sm:$0xff]
    %v531 = vld [vmem:[%s2 + $0x498] sm:$0xff]
    %v532 = vld [vmem:[%s2 + $0x4a0] sm:$0xff]
    %v533 = vld [vmem:[%s2 + $0x4a8] sm:$0xff]
    %v534 = vld [vmem:[%s2 + $0x4b0] sm:$0xff]
    %v535 = vld [vmem:[%s2 + $0x4b8] sm:$0xff]
    %v536 = vld [vmem:[%s2 + $0x4c0] sm:$0xff]
    %v537 = vld [vmem:[%s2 + $0x4c8] sm:$0xff]
    %v538 = vld [vmem:[%s2 + $0x4d0] sm:$0xff]
    %v539 = vld [vmem:[%s2 + $0x4d8] sm:$0xff]
    %v540 = vld [vmem:[%s2 + $0x4e0] sm:$0xff]
    %v541 = vld [vmem:[%s2 + $0x4e8] sm:$0xff]
    %v542 = vld [vmem:[%s2 + $0x4f0] sm:$0xff]
    %v543 = vld [vmem:[%s2 + $0x4f8] sm:$0xff]
    %v544 = vld [vmem:[%s2 + $0x500] sm:$0xff]
    %v545 = vld [vmem:[%s2 + $0x508] sm:$0xff]
    %v546 = vld [vmem:[%s2 + $0x510] sm:$0xff]
    %v547 = vld [vmem:[%s2 + $0x518] sm:$0xff]
    %v548 = vld [vmem:[%s2 + $0x520] sm:$0xff]
    %v549 = vld [vmem:[%s2 + $0x528] sm:$0xff]
    %v550 = vld [vmem:[%s2 + $0x530] sm:$0xff]
    %v551 = vld [vmem:[%s2 + $0x538] sm:$0xff]
    %v552 = vld [vmem:[%s2 + $0x540] sm:$0xff]
    %v553 = vld [vmem:[%s2 + $0x548] sm:$0xff]
    %v554 = vld [vmem:[%s2 + $0x550] sm:$0xff]
    %v555 = vld [vmem:[%s2 + $0x558] sm:$0xff]
    %v556 = vld [vmem:[%s2 + $0x560] sm:$0xff]
    %v557 = vld [vmem:[%s2 + $0x568] sm:$0xff]
    %v558 = vld [vmem:[%s2 + $0x570] sm:$0xff]
    %v559 = vld [vmem:[%s2 + $0x578] sm:$0xff]
    %v560 = vld [vmem:[%s2 + $0x580] sm:$0xff]
    %v561 = vld [vmem:[%s2 + $0x588] sm:$0xff]
    %v562 = vld [vmem:[%s2 + $0x590] sm:$0xff]
    %v563 = vld [vmem:[%s2 + $0x598] sm:$0xff]
    %v564 = vld [vmem:[%s2 + $0x5a0] sm:$0xff]
    %v565 = vld [vmem:[%s2 + $0x5a8] sm:$0xff]
    %v566 = vld [vmem:[%s2 + $0x5b0] sm:$0xff]
    %v567 = vld [vmem:[%s2 + $0x5b8] sm:$0xff]
    %v568 = vld [vmem:[%s2 + $0x5c0] sm:$0xff]
    %v569 = vld [vmem:[%s2 + $0x5c8] sm:$0xff]
    %v570 = vld [vmem:[%s2 + $0x5d0] sm:$0xff]
    %v571 = vld [vmem:[%s2 + $0x5d8] sm:$0xff]
    %v572 = vld [vmem:[%s2 + $0x5e0] sm:$0xff]
    %v573 = vld [vmem:[%s2 + $0x5e8] sm:$0xff]
    %v574 = vld [vmem:[%s2 + $0x5f0] sm:$0xff]
    %v575 = vld [vmem:[%s2 + $0x5f8] sm:$0xff]
    %v576 = vld [vmem:[%s2 + $0x600] sm:$0xff]
    %v577 = vld [vmem:[%s2 + $0x608] sm:$0xff]
    %v578 = vld [vmem:[%s2 + $0x610] sm:$0xff]
    %v579 = vld [vmem:[%s2 + $0x618] sm:$0xff]
    %v580 = vld [vmem:[%s2 + $0x620] sm:$0xff]
    %v581 = vld [vmem:[%s2 + $0x628] sm:$0xff]
    %v582 = vld [vmem:[%s2 + $0x630] sm:$0xff]
    %v583 = vld [vmem:[%s2 + $0x638] sm:$0xff]
    %v584 = vld [vmem:[%s2 + $0x640] sm:$0xff]
    %v585 = vld [vmem:[%s2 + $0x648] sm:$0xff]
    %v586 = vld [vmem:[%s2 + $0x650] sm:$0xff]
    %v587 = vld [vmem:[%s2 + $0x658] sm:$0xff]
    %v588 = vld [vmem:[%s2 + $0x660] sm:$0xff]
    %v589 = vld [vmem:[%s2 + $0x668] sm:$0xff]
    %v590 = vld [vmem:[%s2 + $0x670] sm:$0xff]
    %v591 = vld [vmem:[%s2 + $0x678] sm:$0xff]
    %v592 = vld [vmem:[%s2 + $0x680] sm:$0xff]
    %v593 = vld [vmem:[%s2 + $0x688] sm:$0xff]
    %v594 = vld [vmem:[%s2 + $0x690] sm:$0xff]
    %v595 = vld [vmem:[%s2 + $0x698] sm:$0xff]
    %v596 = vld [vmem:[%s2 + $0x6a0] sm:$0xff]
    %v597 = vld [vmem:[%s2 + $0x6a8] sm:$0xff]
    %v598 = vld [vmem:[%s2 + $0x6b0] sm:$0xff]
    %v599 = vld [vmem:[%s2 + $0x6b8] sm:$0xff]
    %v600 = vld [vmem:[%s2 + $0x6c0] sm:$0xff]
    %v601 = vld [vmem:[%s2 + $0x6c8] sm:$0xff]
    %v602 = vld [vmem:[%s2 + $0x6d0] sm:$0xff]
    %v603 = vld [vmem:[%s2 + $0x6d8] sm:$0xff]
    %v604 = vld [vmem:[%s2 + $0x6e0] sm:$0xff]
    %v605 = vld [vmem:[%s2 + $0x6e8] sm:$0xff]
    %v606 = vld [vmem:[%s2 + $0x6f0] sm:$0xff]
    %v607 = vld [vmem:[%s2 + $0x6f8] sm:$0xff]
    %v608 = vld [vmem:[%s2 + $0x700] sm:$0xff]
    %v609 = vld [vmem:[%s2 + $0x708] sm:$0xff]
    %v610 = vld [vmem:[%s2 + $0x710] sm:$0xff]
    %v611 = vld [vmem:[%s2 + $0x718] sm:$0xff]
    %v612 = vld [vmem:[%s2 + $0x720] sm:$0xff]
    %v613 = vld [vmem:[%s2 + $0x728] sm:$0xff]
    %v614 = vld [vmem:[%s2 + $0x730] sm:$0xff]
    %v615 = vld [vmem:[%s2 + $0x738] sm:$0xff]
    %v616 = vld [vmem:[%s2 + $0x740] sm:$0xff]
    %v617 = vld [vmem:[%s2 + $0x748] sm:$0xff]
    %v618 = vld [vmem:[%s2 + $0x750] sm:$0xff]
    %v619 = vld [vmem:[%s2 + $0x758] sm:$0xff]
    %v620 = vld [vmem:[%s2 + $0x760] sm:$0xff]
    %v621 = vld [vmem:[%s2 + $0x768] sm:$0xff]
    %v622 = vld [vmem:[%s2 + $0x770] sm:$0xff]
    %v623 = vld [vmem:[%s2 + $0x778] sm:$0xff]
    %v624 = vld [vmem:[%s2 + $0x780] sm:$0xff]
    %v625 = vld [vmem:[%s2 + $0x788] sm:$0xff]
    %v626 = vld [vmem:[%s2 + $0x790] sm:$0xff]
    %v627 = vld [vmem:[%s2 + $0x798] sm:$0xff]
    %v628 = vld [vmem:[%s2 + $0x7a0] sm:$0xff]
    %v629 = vld [vmem:[%s2 + $0x7a8] sm:$0xff]
    %v630 = vld [vmem:[%s2 + $0x7b0] sm:$0xff]
    %v631 = vld [vmem:[%s2 + $0x7b8] sm:$0xff]
    %v632 = vld [vmem:[%s2 + $0x7c0] sm:$0xff]
    %v633 = vld [vmem:[%s2 + $0x7c8] sm:$0xff]
    %v634 = vld [vmem:[%s2 + $0x7d0] sm:$0xff]
    %v635 = vld [vmem:[%s2 + $0x7d8] sm:$0xff]
    %v636 = vld [vmem:[%s2 + $0x7e0] sm:$0xff]
    %v637 = vld [vmem:[%s2 + $0x7e8] sm:$0xff]
    %v638 = vld [vmem:[%s2 + $0x7f0] sm:$0xff]
    %v639 = vld [vmem:[%s2 + $0x7f8] sm:$0xff]
    %v641 = vlaneseq
    %v642 = vshrl.u32 %v641, 7
    %v643 = vsub.s32 0, %v642
    %v644 = vrot.slane %v27, %v643
    %v645 = vlaneseq
    %v646 = vshrl.u32 %v645, 7
    %v647 = vsub.s32 1, %v646
    %v648 = vrot.slane %v27, %v647
    %v649 = vlaneseq
    %v650 = vshrl.u32 %v649, 7
    %v651 = vsub.s32 2, %v650
    %v652 = vrot.slane %v27, %v651
    %v653 = vlaneseq
    %v654 = vshrl.u32 %v653, 7
    %v655 = vsub.s32 3, %v654
    %v656 = vrot.slane %v27, %v655
    %v657 = vlaneseq
    %v658 = vshrl.u32 %v657, 7
    %v659 = vsub.s32 4, %v658
    %v660 = vrot.slane %v27, %v659
    %v661 = vlaneseq
    %v662 = vshrl.u32 %v661, 7
    %v663 = vsub.s32 5, %v662
    %v664 = vrot.slane %v27, %v663
    %v665 = vlaneseq
    %v666 = vshrl.u32 %v665, 7
    %v667 = vsub.s32 6, %v666
    %v668 = vrot.slane %v27, %v667
    %v669 = vlaneseq
    %v670 = vshrl.u32 %v669, 7
    %v671 = vsub.s32 7, %v670
    %v672 = vrot.slane %v27, %v671
    %v937 = vunpack.c.l.b16 %v384
    %v938 = vunpack.c.h.b16 %v384
    %v939 = vunpack.c.l.b16 %v385
    %v940 = vunpack.c.h.b16 %v385
    %v941 = vunpack.c.l.b16 %v386
    %v942 = vunpack.c.h.b16 %v386
    %v943 = vunpack.c.l.b16 %v387
    %v944 = vunpack.c.h.b16 %v387
    %v945 = vunpack.c.l.b16 %v388
    %v946 = vunpack.c.h.b16 %v388
    %v947 = vunpack.c.l.b16 %v389
    %v948 = vunpack.c.h.b16 %v389
    %v949 = vunpack.c.l.b16 %v390
    %v950 = vunpack.c.h.b16 %v390
    %v951 = vunpack.c.l.b16 %v391
    %v952 = vunpack.c.h.b16 %v391
    %v953 = vunpack.c.l.b16 %v392
    %v954 = vunpack.c.h.b16 %v392
    %v955 = vunpack.c.l.b16 %v393
    %v956 = vunpack.c.h.b16 %v393
    %v957 = vunpack.c.l.b16 %v394
    %v958 = vunpack.c.h.b16 %v394
    %v959 = vunpack.c.l.b16 %v395
    %v960 = vunpack.c.h.b16 %v395
    %v961 = vunpack.c.l.b16 %v396
    %v962 = vunpack.c.h.b16 %v396
    %v963 = vunpack.c.l.b16 %v397
    %v964 = vunpack.c.h.b16 %v397
    %v965 = vunpack.c.l.b16 %v398
    %v966 = vunpack.c.h.b16 %v398
    %v967 = vunpack.c.l.b16 %v399
    %v968 = vunpack.c.h.b16 %v399
    %v969 = vunpack.c.l.b16 %v400
    %v970 = vunpack.c.h.b16 %v400
    %v971 = vunpack.c.l.b16 %v401
    %v972 = vunpack.c.h.b16 %v401
    %v973 = vunpack.c.l.b16 %v402
    %v974 = vunpack.c.h.b16 %v402
    %v975 = vunpack.c.l.b16 %v403
    %v976 = vunpack.c.h.b16 %v403
    %v977 = vunpack.c.l.b16 %v404
    %v978 = vunpack.c.h.b16 %v404
    %v979 = vunpack.c.l.b16 %v405
    %v980 = vunpack.c.h.b16 %v405
    %v981 = vunpack.c.l.b16 %v406
    %v982 = vunpack.c.h.b16 %v406
    %v983 = vunpack.c.l.b16 %v407
    %v984 = vunpack.c.h.b16 %v407
    %v985 = vunpack.c.l.b16 %v408
    %v986 = vunpack.c.h.b16 %v408
    %v987 = vunpack.c.l.b16 %v409
    %v988 = vunpack.c.h.b16 %v409
    %v989 = vunpack.c.l.b16 %v410
    %v990 = vunpack.c.h.b16 %v410
    %v991 = vunpack.c.l.b16 %v411
    %v992 = vunpack.c.h.b16 %v411
    %v993 = vunpack.c.l.b16 %v412
    %v994 = vunpack.c.h.b16 %v412
    %v995 = vunpack.c.l.b16 %v413
    %v996 = vunpack.c.h.b16 %v413
    %v997 = vunpack.c.l.b16 %v414
    %v998 = vunpack.c.h.b16 %v414
    %v999 = vunpack.c.l.b16 %v415
    %v1000 = vunpack.c.h.b16 %v415
    %v1001 = vunpack.c.l.b16 %v416
    %v1002 = vunpack.c.h.b16 %v416
    %v1003 = vunpack.c.l.b16 %v417
    %v1004 = vunpack.c.h.b16 %v417
    %v1005 = vunpack.c.l.b16 %v418
    %v1006 = vunpack.c.h.b16 %v418
    %v1007 = vunpack.c.l.b16 %v419
    %v1008 = vunpack.c.h.b16 %v419
    %v1009 = vunpack.c.l.b16 %v420
    %v1010 = vunpack.c.h.b16 %v420
    %v1011 = vunpack.c.l.b16 %v421
    %v1012 = vunpack.c.h.b16 %v421
    %v1013 = vunpack.c.l.b16 %v422
    %v1014 = vunpack.c.h.b16 %v422
    %v1015 = vunpack.c.l.b16 %v423
    %v1016 = vunpack.c.h.b16 %v423
    %v1017 = vunpack.c.l.b16 %v424
    %v1018 = vunpack.c.h.b16 %v424
    %v1019 = vunpack.c.l.b16 %v425
    %v1020 = vunpack.c.h.b16 %v425
    %v1021 = vunpack.c.l.b16 %v426
    %v1022 = vunpack.c.h.b16 %v426
    %v1023 = vunpack.c.l.b16 %v427
    %v1024 = vunpack.c.h.b16 %v427
    %v1025 = vunpack.c.l.b16 %v428
    %v1026 = vunpack.c.h.b16 %v428
    %v1027 = vunpack.c.l.b16 %v429
    %v1028 = vunpack.c.h.b16 %v429
    %v1029 = vunpack.c.l.b16 %v430
    %v1030 = vunpack.c.h.b16 %v430
    %v1031 = vunpack.c.l.b16 %v431
    %v1032 = vunpack.c.h.b16 %v431
    %v1033 = vunpack.c.l.b16 %v432
    %v1034 = vunpack.c.h.b16 %v432
    %v1035 = vunpack.c.l.b16 %v433
    %v1036 = vunpack.c.h.b16 %v433
    %v1037 = vunpack.c.l.b16 %v434
    %v1038 = vunpack.c.h.b16 %v434
    %v1039 = vunpack.c.l.b16 %v435
    %v1040 = vunpack.c.h.b16 %v435
    %v1041 = vunpack.c.l.b16 %v436
    %v1042 = vunpack.c.h.b16 %v436
    %v1043 = vunpack.c.l.b16 %v437
    %v1044 = vunpack.c.h.b16 %v437
    %v1045 = vunpack.c.l.b16 %v438
    %v1046 = vunpack.c.h.b16 %v438
    %v1047 = vunpack.c.l.b16 %v439
    %v1048 = vunpack.c.h.b16 %v439
    %v1049 = vunpack.c.l.b16 %v440
    %v1050 = vunpack.c.h.b16 %v440
    %v1051 = vunpack.c.l.b16 %v441
    %v1052 = vunpack.c.h.b16 %v441
    %v1053 = vunpack.c.l.b16 %v442
    %v1054 = vunpack.c.h.b16 %v442
    %v1055 = vunpack.c.l.b16 %v443
    %v1056 = vunpack.c.h.b16 %v443
    %v1057 = vunpack.c.l.b16 %v444
    %v1058 = vunpack.c.h.b16 %v444
    %v1059 = vunpack.c.l.b16 %v445
    %v1060 = vunpack.c.h.b16 %v445
    %v1061 = vunpack.c.l.b16 %v446
    %v1062 = vunpack.c.h.b16 %v446
    %v1063 = vunpack.c.l.b16 %v447
    %v1064 = vunpack.c.h.b16 %v447
    %v1065 = vunpack.c.l.b16 %v448
    %v1066 = vunpack.c.h.b16 %v448
    %v1067 = vunpack.c.l.b16 %v449
    %v1068 = vunpack.c.h.b16 %v449
    %v1069 = vunpack.c.l.b16 %v450
    %v1070 = vunpack.c.h.b16 %v450
    %v1071 = vunpack.c.l.b16 %v451
    %v1072 = vunpack.c.h.b16 %v451
    %v1073 = vunpack.c.l.b16 %v452
    %v1074 = vunpack.c.h.b16 %v452
    %v1075 = vunpack.c.l.b16 %v453
    %v1076 = vunpack.c.h.b16 %v453
    %v1077 = vunpack.c.l.b16 %v454
    %v1078 = vunpack.c.h.b16 %v454
    %v1079 = vunpack.c.l.b16 %v455
    %v1080 = vunpack.c.h.b16 %v455
    %v1081 = vunpack.c.l.b16 %v456
    %v1082 = vunpack.c.h.b16 %v456
    %v1083 = vunpack.c.l.b16 %v457
    %v1084 = vunpack.c.h.b16 %v457
    %v1085 = vunpack.c.l.b16 %v458
    %v1086 = vunpack.c.h.b16 %v458
    %v1087 = vunpack.c.l.b16 %v459
    %v1088 = vunpack.c.h.b16 %v459
    %v1089 = vunpack.c.l.b16 %v460
    %v1090 = vunpack.c.h.b16 %v460
    %v1091 = vunpack.c.l.b16 %v461
    %v1092 = vunpack.c.h.b16 %v461
    %v1093 = vunpack.c.l.b16 %v462
    %v1094 = vunpack.c.h.b16 %v462
    %v1095 = vunpack.c.l.b16 %v463
    %v1096 = vunpack.c.h.b16 %v463
    %v1097 = vunpack.c.l.b16 %v464
    %v1098 = vunpack.c.h.b16 %v464
    %v1099 = vunpack.c.l.b16 %v465
    %v1100 = vunpack.c.h.b16 %v465
    %v1101 = vunpack.c.l.b16 %v466
    %v1102 = vunpack.c.h.b16 %v466
    %v1103 = vunpack.c.l.b16 %v467
    %v1104 = vunpack.c.h.b16 %v467
    %v1105 = vunpack.c.l.b16 %v468
    %v1106 = vunpack.c.h.b16 %v468
    %v1107 = vunpack.c.l.b16 %v469
    %v1108 = vunpack.c.h.b16 %v469
    %v1109 = vunpack.c.l.b16 %v470
    %v1110 = vunpack.c.h.b16 %v470
    %v1111 = vunpack.c.l.b16 %v471
    %v1112 = vunpack.c.h.b16 %v471
    %v1113 = vunpack.c.l.b16 %v472
    %v1114 = vunpack.c.h.b16 %v472
    %v1115 = vunpack.c.l.b16 %v473
    %v1116 = vunpack.c.h.b16 %v473
    %v1117 = vunpack.c.l.b16 %v474
    %v1118 = vunpack.c.h.b16 %v474
    %v1119 = vunpack.c.l.b16 %v475
    %v1120 = vunpack.c.h.b16 %v475
    %v1121 = vunpack.c.l.b16 %v476
    %v1122 = vunpack.c.h.b16 %v476
    %v1123 = vunpack.c.l.b16 %v477
    %v1124 = vunpack.c.h.b16 %v477
    %v1125 = vunpack.c.l.b16 %v478
    %v1126 = vunpack.c.h.b16 %v478
    %v1127 = vunpack.c.l.b16 %v479
    %v1128 = vunpack.c.h.b16 %v479
    %v1129 = vunpack.c.l.b16 %v480
    %v1130 = vunpack.c.h.b16 %v480
    %v1131 = vunpack.c.l.b16 %v481
    %v1132 = vunpack.c.h.b16 %v481
    %v1133 = vunpack.c.l.b16 %v482
    %v1134 = vunpack.c.h.b16 %v482
    %v1135 = vunpack.c.l.b16 %v483
    %v1136 = vunpack.c.h.b16 %v483
    %v1137 = vunpack.c.l.b16 %v484
    %v1138 = vunpack.c.h.b16 %v484
    %v1139 = vunpack.c.l.b16 %v485
    %v1140 = vunpack.c.h.b16 %v485
    %v1141 = vunpack.c.l.b16 %v486
    %v1142 = vunpack.c.h.b16 %v486
    %v1143 = vunpack.c.l.b16 %v487
    %v1144 = vunpack.c.h.b16 %v487
    %v1145 = vunpack.c.l.b16 %v488
    %v1146 = vunpack.c.h.b16 %v488
    %v1147 = vunpack.c.l.b16 %v489
    %v1148 = vunpack.c.h.b16 %v489
    %v1149 = vunpack.c.l.b16 %v490
    %v1150 = vunpack.c.h.b16 %v490
    %v1151 = vunpack.c.l.b16 %v491
    %v1152 = vunpack.c.h.b16 %v491
    %v1153 = vunpack.c.l.b16 %v492
    %v1154 = vunpack.c.h.b16 %v492
    %v1155 = vunpack.c.l.b16 %v493
    %v1156 = vunpack.c.h.b16 %v493
    %v1157 = vunpack.c.l.b16 %v494
    %v1158 = vunpack.c.h.b16 %v494
    %v1159 = vunpack.c.l.b16 %v495
    %v1160 = vunpack.c.h.b16 %v495
    %v1161 = vunpack.c.l.b16 %v496
    %v1162 = vunpack.c.h.b16 %v496
    %v1163 = vunpack.c.l.b16 %v497
    %v1164 = vunpack.c.h.b16 %v497
    %v1165 = vunpack.c.l.b16 %v498
    %v1166 = vunpack.c.h.b16 %v498
    %v1167 = vunpack.c.l.b16 %v499
    %v1168 = vunpack.c.h.b16 %v499
    %v1169 = vunpack.c.l.b16 %v500
    %v1170 = vunpack.c.h.b16 %v500
    %v1171 = vunpack.c.l.b16 %v501
    %v1172 = vunpack.c.h.b16 %v501
    %v1173 = vunpack.c.l.b16 %v502
    %v1174 = vunpack.c.h.b16 %v502
    %v1175 = vunpack.c.l.b16 %v503
    %v1176 = vunpack.c.h.b16 %v503
    %v1177 = vunpack.c.l.b16 %v504
    %v1178 = vunpack.c.h.b16 %v504
    %v1179 = vunpack.c.l.b16 %v505
    %v1180 = vunpack.c.h.b16 %v505
    %v1181 = vunpack.c.l.b16 %v506
    %v1182 = vunpack.c.h.b16 %v506
    %v1183 = vunpack.c.l.b16 %v507
    %v1184 = vunpack.c.h.b16 %v507
    %v1185 = vunpack.c.l.b16 %v508
    %v1186 = vunpack.c.h.b16 %v508
    %v1187 = vunpack.c.l.b16 %v509
    %v1188 = vunpack.c.h.b16 %v509
    %v1189 = vunpack.c.l.b16 %v510
    %v1190 = vunpack.c.h.b16 %v510
    %v1191 = vunpack.c.l.b16 %v511
    %v1192 = vunpack.c.h.b16 %v511
    %v1193 = vunpack.c.l.b16 %v512
    %v1194 = vunpack.c.h.b16 %v512
    %v1195 = vunpack.c.l.b16 %v513
    %v1196 = vunpack.c.h.b16 %v513
    %v1197 = vunpack.c.l.b16 %v514
    %v1198 = vunpack.c.h.b16 %v514
    %v1199 = vunpack.c.l.b16 %v515
    %v1200 = vunpack.c.h.b16 %v515
    %v1201 = vunpack.c.l.b16 %v516
    %v1202 = vunpack.c.h.b16 %v516
    %v1203 = vunpack.c.l.b16 %v517
    %v1204 = vunpack.c.h.b16 %v517
    %v1205 = vunpack.c.l.b16 %v518
    %v1206 = vunpack.c.h.b16 %v518
    %v1207 = vunpack.c.l.b16 %v519
    %v1208 = vunpack.c.h.b16 %v519
    %v1209 = vunpack.c.l.b16 %v520
    %v1210 = vunpack.c.h.b16 %v520
    %v1211 = vunpack.c.l.b16 %v521
    %v1212 = vunpack.c.h.b16 %v521
    %v1213 = vunpack.c.l.b16 %v522
    %v1214 = vunpack.c.h.b16 %v522
    %v1215 = vunpack.c.l.b16 %v523
    %v1216 = vunpack.c.h.b16 %v523
    %v1217 = vunpack.c.l.b16 %v524
    %v1218 = vunpack.c.h.b16 %v524
    %v1219 = vunpack.c.l.b16 %v525
    %v1220 = vunpack.c.h.b16 %v525
    %v1221 = vunpack.c.l.b16 %v526
    %v1222 = vunpack.c.h.b16 %v526
    %v1223 = vunpack.c.l.b16 %v527
    %v1224 = vunpack.c.h.b16 %v527
    %v1225 = vunpack.c.l.b16 %v528
    %v1226 = vunpack.c.h.b16 %v528
    %v1227 = vunpack.c.l.b16 %v529
    %v1228 = vunpack.c.h.b16 %v529
    %v1229 = vunpack.c.l.b16 %v530
    %v1230 = vunpack.c.h.b16 %v530
    %v1231 = vunpack.c.l.b16 %v531
    %v1232 = vunpack.c.h.b16 %v531
    %v1233 = vunpack.c.l.b16 %v532
    %v1234 = vunpack.c.h.b16 %v532
    %v1235 = vunpack.c.l.b16 %v533
    %v1236 = vunpack.c.h.b16 %v533
    %v1237 = vunpack.c.l.b16 %v534
    %v1238 = vunpack.c.h.b16 %v534
    %v1239 = vunpack.c.l.b16 %v535
    %v1240 = vunpack.c.h.b16 %v535
    %v1241 = vunpack.c.l.b16 %v536
    %v1242 = vunpack.c.h.b16 %v536
    %v1243 = vunpack.c.l.b16 %v537
    %v1244 = vunpack.c.h.b16 %v537
    %v1245 = vunpack.c.l.b16 %v538
    %v1246 = vunpack.c.h.b16 %v538
    %v1247 = vunpack.c.l.b16 %v539
    %v1248 = vunpack.c.h.b16 %v539
    %v1249 = vunpack.c.l.b16 %v540
    %v1250 = vunpack.c.h.b16 %v540
    %v1251 = vunpack.c.l.b16 %v541
    %v1252 = vunpack.c.h.b16 %v541
    %v1253 = vunpack.c.l.b16 %v542
    %v1254 = vunpack.c.h.b16 %v542
    %v1255 = vunpack.c.l.b16 %v543
    %v1256 = vunpack.c.h.b16 %v543
    %v1257 = vunpack.c.l.b16 %v544
    %v1258 = vunpack.c.h.b16 %v544
    %v1259 = vunpack.c.l.b16 %v545
    %v1260 = vunpack.c.h.b16 %v545
    %v1261 = vunpack.c.l.b16 %v546
    %v1262 = vunpack.c.h.b16 %v546
    %v1263 = vunpack.c.l.b16 %v547
    %v1264 = vunpack.c.h.b16 %v547
    %v1265 = vunpack.c.l.b16 %v548
    %v1266 = vunpack.c.h.b16 %v548
    %v1267 = vunpack.c.l.b16 %v549
    %v1268 = vunpack.c.h.b16 %v549
    %v1269 = vunpack.c.l.b16 %v550
    %v1270 = vunpack.c.h.b16 %v550
    %v1271 = vunpack.c.l.b16 %v551
    %v1272 = vunpack.c.h.b16 %v551
    %v1273 = vunpack.c.l.b16 %v552
    %v1274 = vunpack.c.h.b16 %v552
    %v1275 = vunpack.c.l.b16 %v553
    %v1276 = vunpack.c.h.b16 %v553
    %v1277 = vunpack.c.l.b16 %v554
    %v1278 = vunpack.c.h.b16 %v554
    %v1279 = vunpack.c.l.b16 %v555
    %v1280 = vunpack.c.h.b16 %v555
    %v1281 = vunpack.c.l.b16 %v556
    %v1282 = vunpack.c.h.b16 %v556
    %v1283 = vunpack.c.l.b16 %v557
    %v1284 = vunpack.c.h.b16 %v557
    %v1285 = vunpack.c.l.b16 %v558
    %v1286 = vunpack.c.h.b16 %v558
    %v1287 = vunpack.c.l.b16 %v559
    %v1288 = vunpack.c.h.b16 %v559
    %v1289 = vunpack.c.l.b16 %v560
    %v1290 = vunpack.c.h.b16 %v560
    %v1291 = vunpack.c.l.b16 %v561
    %v1292 = vunpack.c.h.b16 %v561
    %v1293 = vunpack.c.l.b16 %v562
    %v1294 = vunpack.c.h.b16 %v562
    %v1295 = vunpack.c.l.b16 %v563
    %v1296 = vunpack.c.h.b16 %v563
    %v1297 = vunpack.c.l.b16 %v564
    %v1298 = vunpack.c.h.b16 %v564
    %v1299 = vunpack.c.l.b16 %v565
    %v1300 = vunpack.c.h.b16 %v565
    %v1301 = vunpack.c.l.b16 %v566
    %v1302 = vunpack.c.h.b16 %v566
    %v1303 = vunpack.c.l.b16 %v567
    %v1304 = vunpack.c.h.b16 %v567
    %v1305 = vunpack.c.l.b16 %v568
    %v1306 = vunpack.c.h.b16 %v568
    %v1307 = vunpack.c.l.b16 %v569
    %v1308 = vunpack.c.h.b16 %v569
    %v1309 = vunpack.c.l.b16 %v570
    %v1310 = vunpack.c.h.b16 %v570
    %v1311 = vunpack.c.l.b16 %v571
    %v1312 = vunpack.c.h.b16 %v571
    %v1313 = vunpack.c.l.b16 %v572
    %v1314 = vunpack.c.h.b16 %v572
    %v1315 = vunpack.c.l.b16 %v573
    %v1316 = vunpack.c.h.b16 %v573
    %v1317 = vunpack.c.l.b16 %v574
    %v1318 = vunpack.c.h.b16 %v574
    %v1319 = vunpack.c.l.b16 %v575
    %v1320 = vunpack.c.h.b16 %v575
    %v1321 = vunpack.c.l.b16 %v576
    %v1322 = vunpack.c.h.b16 %v576
    %v1323 = vunpack.c.l.b16 %v577
    %v1324 = vunpack.c.h.b16 %v577
    %v1325 = vunpack.c.l.b16 %v578
    %v1326 = vunpack.c.h.b16 %v578
    %v1327 = vunpack.c.l.b16 %v579
    %v1328 = vunpack.c.h.b16 %v579
    %v1329 = vunpack.c.l.b16 %v580
    %v1330 = vunpack.c.h.b16 %v580
    %v1331 = vunpack.c.l.b16 %v581
    %v1332 = vunpack.c.h.b16 %v581
    %v1333 = vunpack.c.l.b16 %v582
    %v1334 = vunpack.c.h.b16 %v582
    %v1335 = vunpack.c.l.b16 %v583
    %v1336 = vunpack.c.h.b16 %v583
    %v1337 = vunpack.c.l.b16 %v584
    %v1338 = vunpack.c.h.b16 %v584
    %v1339 = vunpack.c.l.b16 %v585
    %v1340 = vunpack.c.h.b16 %v585
    %v1341 = vunpack.c.l.b16 %v586
    %v1342 = vunpack.c.h.b16 %v586
    %v1343 = vunpack.c.l.b16 %v587
    %v1344 = vunpack.c.h.b16 %v587
    %v1345 = vunpack.c.l.b16 %v588
    %v1346 = vunpack.c.h.b16 %v588
    %v1347 = vunpack.c.l.b16 %v589
    %v1348 = vunpack.c.h.b16 %v589
    %v1349 = vunpack.c.l.b16 %v590
    %v1350 = vunpack.c.h.b16 %v590
    %v1351 = vunpack.c.l.b16 %v591
    %v1352 = vunpack.c.h.b16 %v591
    %v1353 = vunpack.c.l.b16 %v592
    %v1354 = vunpack.c.h.b16 %v592
    %v1355 = vunpack.c.l.b16 %v593
    %v1356 = vunpack.c.h.b16 %v593
    %v1357 = vunpack.c.l.b16 %v594
    %v1358 = vunpack.c.h.b16 %v594
    %v1359 = vunpack.c.l.b16 %v595
    %v1360 = vunpack.c.h.b16 %v595
    %v1361 = vunpack.c.l.b16 %v596
    %v1362 = vunpack.c.h.b16 %v596
    %v1363 = vunpack.c.l.b16 %v597
    %v1364 = vunpack.c.h.b16 %v597
    %v1365 = vunpack.c.l.b16 %v598
    %v1366 = vunpack.c.h.b16 %v598
    %v1367 = vunpack.c.l.b16 %v599
    %v1368 = vunpack.c.h.b16 %v599
    %v1369 = vunpack.c.l.b16 %v600
    %v1370 = vunpack.c.h.b16 %v600
    %v1371 = vunpack.c.l.b16 %v601
    %v1372 = vunpack.c.h.b16 %v601
    %v1373 = vunpack.c.l.b16 %v602
    %v1374 = vunpack.c.h.b16 %v602
    %v1375 = vunpack.c.l.b16 %v603
    %v1376 = vunpack.c.h.b16 %v603
    %v1377 = vunpack.c.l.b16 %v604
    %v1378 = vunpack.c.h.b16 %v604
    %v1379 = vunpack.c.l.b16 %v605
    %v1380 = vunpack.c.h.b16 %v605
    %v1381 = vunpack.c.l.b16 %v606
    %v1382 = vunpack.c.h.b16 %v606
    %v1383 = vunpack.c.l.b16 %v607
    %v1384 = vunpack.c.h.b16 %v607
    %v1385 = vunpack.c.l.b16 %v608
    %v1386 = vunpack.c.h.b16 %v608
    %v1387 = vunpack.c.l.b16 %v609
    %v1388 = vunpack.c.h.b16 %v609
    %v1389 = vunpack.c.l.b16 %v610
    %v1390 = vunpack.c.h.b16 %v610
    %v1391 = vunpack.c.l.b16 %v611
    %v1392 = vunpack.c.h.b16 %v611
    %v1393 = vunpack.c.l.b16 %v612
    %v1394 = vunpack.c.h.b16 %v612
    %v1395 = vunpack.c.l.b16 %v613
    %v1396 = vunpack.c.h.b16 %v613
    %v1397 = vunpack.c.l.b16 %v614
    %v1398 = vunpack.c.h.b16 %v614
    %v1399 = vunpack.c.l.b16 %v615
    %v1400 = vunpack.c.h.b16 %v615
    %v1401 = vunpack.c.l.b16 %v616
    %v1402 = vunpack.c.h.b16 %v616
    %v1403 = vunpack.c.l.b16 %v617
    %v1404 = vunpack.c.h.b16 %v617
    %v1405 = vunpack.c.l.b16 %v618
    %v1406 = vunpack.c.h.b16 %v618
    %v1407 = vunpack.c.l.b16 %v619
    %v1408 = vunpack.c.h.b16 %v619
    %v1409 = vunpack.c.l.b16 %v620
    %v1410 = vunpack.c.h.b16 %v620
    %v1411 = vunpack.c.l.b16 %v621
    %v1412 = vunpack.c.h.b16 %v621
    %v1413 = vunpack.c.l.b16 %v622
    %v1414 = vunpack.c.h.b16 %v622
    %v1415 = vunpack.c.l.b16 %v623
    %v1416 = vunpack.c.h.b16 %v623
    %v1417 = vunpack.c.l.b16 %v624
    %v1418 = vunpack.c.h.b16 %v624
    %v1419 = vunpack.c.l.b16 %v625
    %v1420 = vunpack.c.h.b16 %v625
    %v1421 = vunpack.c.l.b16 %v626
    %v1422 = vunpack.c.h.b16 %v626
    %v1423 = vunpack.c.l.b16 %v627
    %v1424 = vunpack.c.h.b16 %v627
    %v1425 = vunpack.c.l.b16 %v628
    %v1426 = vunpack.c.h.b16 %v628
    %v1427 = vunpack.c.l.b16 %v629
    %v1428 = vunpack.c.h.b16 %v629
    %v1429 = vunpack.c.l.b16 %v630
    %v1430 = vunpack.c.h.b16 %v630
    %v1431 = vunpack.c.l.b16 %v631
    %v1432 = vunpack.c.h.b16 %v631
    %v1433 = vunpack.c.l.b16 %v632
    %v1434 = vunpack.c.h.b16 %v632
    %v1435 = vunpack.c.l.b16 %v633
    %v1436 = vunpack.c.h.b16 %v633
    %v1437 = vunpack.c.l.b16 %v634
    %v1438 = vunpack.c.h.b16 %v634
    %v1439 = vunpack.c.l.b16 %v635
    %v1440 = vunpack.c.h.b16 %v635
    %v1441 = vunpack.c.l.b16 %v636
    %v1442 = vunpack.c.h.b16 %v636
    %v1443 = vunpack.c.l.b16 %v637
    %v1444 = vunpack.c.h.b16 %v637
    %v1445 = vunpack.c.l.b16 %v638
    %v1446 = vunpack.c.h.b16 %v638
    %v1447 = vunpack.c.l.b16 %v639
    %v1448 = vunpack.c.h.b16 %v639
    %v1449 = vpack.c.b16 %v945, %v937
    %v1450 = vpack.c.b16 %v946, %v938
    %v1451 = vpack.c.b16 %v947, %v939
    %v1452 = vpack.c.b16 %v948, %v940
    %v1453 = vpack.c.b16 %v949, %v941
    %v1454 = vpack.c.b16 %v950, %v942
    %v1455 = vpack.c.b16 %v951, %v943
    %v1456 = vpack.c.b16 %v952, %v944
    %v1457 = vpack.c.b16 %v961, %v953
    %v1458 = vpack.c.b16 %v962, %v954
    %v1459 = vpack.c.b16 %v963, %v955
    %v1460 = vpack.c.b16 %v964, %v956
    %v1461 = vpack.c.b16 %v965, %v957
    %v1462 = vpack.c.b16 %v966, %v958
    %v1463 = vpack.c.b16 %v967, %v959
    %v1464 = vpack.c.b16 %v968, %v960
    %v1465 = vpack.c.b16 %v977, %v969
    %v1466 = vpack.c.b16 %v978, %v970
    %v1467 = vpack.c.b16 %v979, %v971
    %v1468 = vpack.c.b16 %v980, %v972
    %v1469 = vpack.c.b16 %v981, %v973
    %v1470 = vpack.c.b16 %v982, %v974
    %v1471 = vpack.c.b16 %v983, %v975
    %v1472 = vpack.c.b16 %v984, %v976
    %v1473 = vpack.c.b16 %v993, %v985
    %v1474 = vpack.c.b16 %v994, %v986
    %v1475 = vpack.c.b16 %v995, %v987
    %v1476 = vpack.c.b16 %v996, %v988
    %v1477 = vpack.c.b16 %v997, %v989
    %v1478 = vpack.c.b16 %v998, %v990
    %v1479 = vpack.c.b16 %v999, %v991
    %v1480 = vpack.c.b16 %v1000, %v992
    %v1481 = vpack.c.b16 %v1009, %v1001
    %v1482 = vpack.c.b16 %v1010, %v1002
    %v1483 = vpack.c.b16 %v1011, %v1003
    %v1484 = vpack.c.b16 %v1012, %v1004
    %v1485 = vpack.c.b16 %v1013, %v1005
    %v1486 = vpack.c.b16 %v1014, %v1006
    %v1487 = vpack.c.b16 %v1015, %v1007
    %v1488 = vpack.c.b16 %v1016, %v1008
    %v1489 = vpack.c.b16 %v1025, %v1017
    %v1490 = vpack.c.b16 %v1026, %v1018
    %v1491 = vpack.c.b16 %v1027, %v1019
    %v1492 = vpack.c.b16 %v1028, %v1020
    %v1493 = vpack.c.b16 %v1029, %v1021
    %v1494 = vpack.c.b16 %v1030, %v1022
    %v1495 = vpack.c.b16 %v1031, %v1023
    %v1496 = vpack.c.b16 %v1032, %v1024
    %v1497 = vpack.c.b16 %v1041, %v1033
    %v1498 = vpack.c.b16 %v1042, %v1034
    %v1499 = vpack.c.b16 %v1043, %v1035
    %v1500 = vpack.c.b16 %v1044, %v1036
    %v1501 = vpack.c.b16 %v1045, %v1037
    %v1502 = vpack.c.b16 %v1046, %v1038
    %v1503 = vpack.c.b16 %v1047, %v1039
    %v1504 = vpack.c.b16 %v1048, %v1040
    %v1505 = vpack.c.b16 %v1057, %v1049
    %v1506 = vpack.c.b16 %v1058, %v1050
    %v1507 = vpack.c.b16 %v1059, %v1051
    %v1508 = vpack.c.b16 %v1060, %v1052
    %v1509 = vpack.c.b16 %v1061, %v1053
    %v1510 = vpack.c.b16 %v1062, %v1054
    %v1511 = vpack.c.b16 %v1063, %v1055
    %v1512 = vpack.c.b16 %v1064, %v1056
    %v1513 = vpack.c.b16 %v1073, %v1065
    %v1514 = vpack.c.b16 %v1074, %v1066
    %v1515 = vpack.c.b16 %v1075, %v1067
    %v1516 = vpack.c.b16 %v1076, %v1068
    %v1517 = vpack.c.b16 %v1077, %v1069
    %v1518 = vpack.c.b16 %v1078, %v1070
    %v1519 = vpack.c.b16 %v1079, %v1071
    %v1520 = vpack.c.b16 %v1080, %v1072
    %v1521 = vpack.c.b16 %v1089, %v1081
    %v1522 = vpack.c.b16 %v1090, %v1082
    %v1523 = vpack.c.b16 %v1091, %v1083
    %v1524 = vpack.c.b16 %v1092, %v1084
    %v1525 = vpack.c.b16 %v1093, %v1085
    %v1526 = vpack.c.b16 %v1094, %v1086
    %v1527 = vpack.c.b16 %v1095, %v1087
    %v1528 = vpack.c.b16 %v1096, %v1088
    %v1529 = vpack.c.b16 %v1105, %v1097
    %v1530 = vpack.c.b16 %v1106, %v1098
    %v1531 = vpack.c.b16 %v1107, %v1099
    %v1532 = vpack.c.b16 %v1108, %v1100
    %v1533 = vpack.c.b16 %v1109, %v1101
    %v1534 = vpack.c.b16 %v1110, %v1102
    %v1535 = vpack.c.b16 %v1111, %v1103
    %v1536 = vpack.c.b16 %v1112, %v1104
    %v1537 = vpack.c.b16 %v1121, %v1113
    %v1538 = vpack.c.b16 %v1122, %v1114
    %v1539 = vpack.c.b16 %v1123, %v1115
    %v1540 = vpack.c.b16 %v1124, %v1116
    %v1541 = vpack.c.b16 %v1125, %v1117
    %v1542 = vpack.c.b16 %v1126, %v1118
    %v1543 = vpack.c.b16 %v1127, %v1119
    %v1544 = vpack.c.b16 %v1128, %v1120
    %v1545 = vpack.c.b16 %v1137, %v1129
    %v1546 = vpack.c.b16 %v1138, %v1130
    %v1547 = vpack.c.b16 %v1139, %v1131
    %v1548 = vpack.c.b16 %v1140, %v1132
    %v1549 = vpack.c.b16 %v1141, %v1133
    %v1550 = vpack.c.b16 %v1142, %v1134
    %v1551 = vpack.c.b16 %v1143, %v1135
    %v1552 = vpack.c.b16 %v1144, %v1136
    %v1553 = vpack.c.b16 %v1153, %v1145
    %v1554 = vpack.c.b16 %v1154, %v1146
    %v1555 = vpack.c.b16 %v1155, %v1147
    %v1556 = vpack.c.b16 %v1156, %v1148
    %v1557 = vpack.c.b16 %v1157, %v1149
    %v1558 = vpack.c.b16 %v1158, %v1150
    %v1559 = vpack.c.b16 %v1159, %v1151
    %v1560 = vpack.c.b16 %v1160, %v1152
    %v1561 = vpack.c.b16 %v1169, %v1161
    %v1562 = vpack.c.b16 %v1170, %v1162
    %v1563 = vpack.c.b16 %v1171, %v1163
    %v1564 = vpack.c.b16 %v1172, %v1164
    %v1565 = vpack.c.b16 %v1173, %v1165
    %v1566 = vpack.c.b16 %v1174, %v1166
    %v1567 = vpack.c.b16 %v1175, %v1167
    %v1568 = vpack.c.b16 %v1176, %v1168
    %v1569 = vpack.c.b16 %v1185, %v1177
    %v1570 = vpack.c.b16 %v1186, %v1178
    %v1571 = vpack.c.b16 %v1187, %v1179
    %v1572 = vpack.c.b16 %v1188, %v1180
    %v1573 = vpack.c.b16 %v1189, %v1181
    %v1574 = vpack.c.b16 %v1190, %v1182
    %v1575 = vpack.c.b16 %v1191, %v1183
    %v1576 = vpack.c.b16 %v1192, %v1184
    %v1577 = vpack.c.b16 %v1201, %v1193
    %v1578 = vpack.c.b16 %v1202, %v1194
    %v1579 = vpack.c.b16 %v1203, %v1195
    %v1580 = vpack.c.b16 %v1204, %v1196
    %v1581 = vpack.c.b16 %v1205, %v1197
    %v1582 = vpack.c.b16 %v1206, %v1198
    %v1583 = vpack.c.b16 %v1207, %v1199
    %v1584 = vpack.c.b16 %v1208, %v1200
    %v1585 = vpack.c.b16 %v1217, %v1209
    %v1586 = vpack.c.b16 %v1218, %v1210
    %v1587 = vpack.c.b16 %v1219, %v1211
    %v1588 = vpack.c.b16 %v1220, %v1212
    %v1589 = vpack.c.b16 %v1221, %v1213
    %v1590 = vpack.c.b16 %v1222, %v1214
    %v1591 = vpack.c.b16 %v1223, %v1215
    %v1592 = vpack.c.b16 %v1224, %v1216
    %v1593 = vpack.c.b16 %v1233, %v1225
    %v1594 = vpack.c.b16 %v1234, %v1226
    %v1595 = vpack.c.b16 %v1235, %v1227
    %v1596 = vpack.c.b16 %v1236, %v1228
    %v1597 = vpack.c.b16 %v1237, %v1229
    %v1598 = vpack.c.b16 %v1238, %v1230
    %v1599 = vpack.c.b16 %v1239, %v1231
    %v1600 = vpack.c.b16 %v1240, %v1232
    %v1601 = vpack.c.b16 %v1249, %v1241
    %v1602 = vpack.c.b16 %v1250, %v1242
    %v1603 = vpack.c.b16 %v1251, %v1243
    %v1604 = vpack.c.b16 %v1252, %v1244
    %v1605 = vpack.c.b16 %v1253, %v1245
    %v1606 = vpack.c.b16 %v1254, %v1246
    %v1607 = vpack.c.b16 %v1255, %v1247
    %v1608 = vpack.c.b16 %v1256, %v1248
    %v1609 = vpack.c.b16 %v1265, %v1257
    %v1610 = vpack.c.b16 %v1266, %v1258
    %v1611 = vpack.c.b16 %v1267, %v1259
    %v1612 = vpack.c.b16 %v1268, %v1260
    %v1613 = vpack.c.b16 %v1269, %v1261
    %v1614 = vpack.c.b16 %v1270, %v1262
    %v1615 = vpack.c.b16 %v1271, %v1263
    %v1616 = vpack.c.b16 %v1272, %v1264
    %v1617 = vpack.c.b16 %v1281, %v1273
    %v1618 = vpack.c.b16 %v1282, %v1274
    %v1619 = vpack.c.b16 %v1283, %v1275
    %v1620 = vpack.c.b16 %v1284, %v1276
    %v1621 = vpack.c.b16 %v1285, %v1277
    %v1622 = vpack.c.b16 %v1286, %v1278
    %v1623 = vpack.c.b16 %v1287, %v1279
    %v1624 = vpack.c.b16 %v1288, %v1280
    %v1625 = vpack.c.b16 %v1297, %v1289
    %v1626 = vpack.c.b16 %v1298, %v1290
    %v1627 = vpack.c.b16 %v1299, %v1291
    %v1628 = vpack.c.b16 %v1300, %v1292
    %v1629 = vpack.c.b16 %v1301, %v1293
    %v1630 = vpack.c.b16 %v1302, %v1294
    %v1631 = vpack.c.b16 %v1303, %v1295
    %v1632 = vpack.c.b16 %v1304, %v1296
    %v1633 = vpack.c.b16 %v1313, %v1305
    %v1634 = vpack.c.b16 %v1314, %v1306
    %v1635 = vpack.c.b16 %v1315, %v1307
    %v1636 = vpack.c.b16 %v1316, %v1308
    %v1637 = vpack.c.b16 %v1317, %v1309
    %v1638 = vpack.c.b16 %v1318, %v1310
    %v1639 = vpack.c.b16 %v1319, %v1311
    %v1640 = vpack.c.b16 %v1320, %v1312
    %v1641 = vpack.c.b16 %v1329, %v1321
    %v1642 = vpack.c.b16 %v1330, %v1322
    %v1643 = vpack.c.b16 %v1331, %v1323
    %v1644 = vpack.c.b16 %v1332, %v1324
    %v1645 = vpack.c.b16 %v1333, %v1325
    %v1646 = vpack.c.b16 %v1334, %v1326
    %v1647 = vpack.c.b16 %v1335, %v1327
    %v1648 = vpack.c.b16 %v1336, %v1328
    %v1649 = vpack.c.b16 %v1345, %v1337
    %v1650 = vpack.c.b16 %v1346, %v1338
    %v1651 = vpack.c.b16 %v1347, %v1339
    %v1652 = vpack.c.b16 %v1348, %v1340
    %v1653 = vpack.c.b16 %v1349, %v1341
    %v1654 = vpack.c.b16 %v1350, %v1342
    %v1655 = vpack.c.b16 %v1351, %v1343
    %v1656 = vpack.c.b16 %v1352, %v1344
    %v1657 = vpack.c.b16 %v1361, %v1353
    %v1658 = vpack.c.b16 %v1362, %v1354
    %v1659 = vpack.c.b16 %v1363, %v1355
    %v1660 = vpack.c.b16 %v1364, %v1356
    %v1661 = vpack.c.b16 %v1365, %v1357
    %v1662 = vpack.c.b16 %v1366, %v1358
    %v1663 = vpack.c.b16 %v1367, %v1359
    %v1664 = vpack.c.b16 %v1368, %v1360
    %v1665 = vpack.c.b16 %v1377, %v1369
    %v1666 = vpack.c.b16 %v1378, %v1370
    %v1667 = vpack.c.b16 %v1379, %v1371
    %v1668 = vpack.c.b16 %v1380, %v1372
    %v1669 = vpack.c.b16 %v1381, %v1373
    %v1670 = vpack.c.b16 %v1382, %v1374
    %v1671 = vpack.c.b16 %v1383, %v1375
    %v1672 = vpack.c.b16 %v1384, %v1376
    %v1673 = vpack.c.b16 %v1393, %v1385
    %v1674 = vpack.c.b16 %v1394, %v1386
    %v1675 = vpack.c.b16 %v1395, %v1387
    %v1676 = vpack.c.b16 %v1396, %v1388
    %v1677 = vpack.c.b16 %v1397, %v1389
    %v1678 = vpack.c.b16 %v1398, %v1390
    %v1679 = vpack.c.b16 %v1399, %v1391
    %v1680 = vpack.c.b16 %v1400, %v1392
    %v1681 = vpack.c.b16 %v1409, %v1401
    %v1682 = vpack.c.b16 %v1410, %v1402
    %v1683 = vpack.c.b16 %v1411, %v1403
    %v1684 = vpack.c.b16 %v1412, %v1404
    %v1685 = vpack.c.b16 %v1413, %v1405
    %v1686 = vpack.c.b16 %v1414, %v1406
    %v1687 = vpack.c.b16 %v1415, %v1407
    %v1688 = vpack.c.b16 %v1416, %v1408
    %v1689 = vpack.c.b16 %v1425, %v1417
    %v1690 = vpack.c.b16 %v1426, %v1418
    %v1691 = vpack.c.b16 %v1427, %v1419
    %v1692 = vpack.c.b16 %v1428, %v1420
    %v1693 = vpack.c.b16 %v1429, %v1421
    %v1694 = vpack.c.b16 %v1430, %v1422
    %v1695 = vpack.c.b16 %v1431, %v1423
    %v1696 = vpack.c.b16 %v1432, %v1424
    %v1697 = vpack.c.b16 %v1441, %v1433
    %v1698 = vpack.c.b16 %v1442, %v1434
    %v1699 = vpack.c.b16 %v1443, %v1435
    %v1700 = vpack.c.b16 %v1444, %v1436
    %v1701 = vpack.c.b16 %v1445, %v1437
    %v1702 = vpack.c.b16 %v1446, %v1438
    %v1703 = vpack.c.b16 %v1447, %v1439
    %v1704 = vpack.c.b16 %v1448, %v1440
    %1961 = vmatprep.subr.bf16.mxu0 %v1506
    %1962 = vmatpush1.bf16.msra.mxu0 %v1505
    %1963 = vmatprep.subr.bf16.mxu0 %v1498
    %1964 = vmatpush1.bf16.msra.mxu0 %v1497
    %1965 = vmatprep.subr.bf16.mxu0 %v1490
    %1966 = vmatpush1.bf16.msra.mxu0 %v1489
    %1967 = vmatprep.subr.bf16.mxu0 %v1482
    %1968 = vmatpush1.bf16.msra.mxu0 %v1481
    %1969 = vmatprep.subr.bf16.mxu0 %v1474
    %1970 = vmatpush1.bf16.msra.mxu0 %v1473
    %1971 = vmatprep.subr.bf16.mxu0 %v1466
    %1972 = vmatpush1.bf16.msra.mxu0 %v1465
    %1973 = vmatprep.subr.bf16.mxu0 %v1458
    %1974 = vmatpush1.bf16.msra.mxu0 %v1457
    %1975 = vmatprep.subr.bf16.mxu0 %v1450
    %1976 = vmatpush1.bf16.msra.mxu0 %v1449
    %1977 = vmatprep.subr.bf16.mxu0 %v1570
    %1978 = vmatpush2.bf16.msra.mxu0 %v1569
    %1979 = vmatprep.subr.bf16.mxu0 %v1562
    %1980 = vmatpush2.bf16.msra.mxu0 %v1561
    %1981 = vmatprep.subr.bf16.mxu0 %v1554
    %1982 = vmatpush2.bf16.msra.mxu0 %v1553
    %1983 = vmatprep.subr.bf16.mxu0 %v1546
    %1984 = vmatpush2.bf16.msra.mxu0 %v1545
    %1985 = vmatprep.subr.bf16.mxu0 %v1538
    %1986 = vmatpush2.bf16.msra.mxu0 %v1537
    %1987 = vmatprep.subr.bf16.mxu0 %v1530
    %1988 = vmatpush2.bf16.msra.mxu0 %v1529
    %1989 = vmatprep.subr.bf16.mxu0 %v1522
    %1990 = vmatpush2.bf16.msra.mxu0 %v1521
    %1991 = vmatprep.subr.bf16.mxu0 %v1514
    %1992 = vmatpush2.bf16.msra.mxu0 %v1513
    %1993 = vmatprep.mubr.bf16.mxu0 %v381
    %1994 = vmatmul.mubr.bf16.gmra.mxu0 %v380
    %v1995 = vpop.f32.mrf.mxu0
    %v1996 = vadd.f32 %v644, %v1995
    %v1997 = vpop.f32.mrf.mxu0
    %v1998 = vadd.f32 %v648, %v1997
    %v1999 = vpop.f32.mrf.mxu0
    %v2000 = vpop.f32.mrf.mxu0
    %2001 = vdwg.mxu0
    %2002 = vmatprep.subr.bf16.mxu0 %v1634
    %2003 = vmatpush1.bf16.msra.mxu0 %v1633
    %2004 = vmatprep.subr.bf16.mxu0 %v1626
    %2005 = vmatpush1.bf16.msra.mxu0 %v1625
    %2006 = vmatprep.subr.bf16.mxu0 %v1618
    %2007 = vmatpush1.bf16.msra.mxu0 %v1617
    %2008 = vmatprep.subr.bf16.mxu0 %v1610
    %2009 = vmatpush1.bf16.msra.mxu0 %v1609
    %2010 = vmatprep.subr.bf16.mxu0 %v1602
    %2011 = vmatpush1.bf16.msra.mxu0 %v1601
    %2012 = vmatprep.subr.bf16.mxu0 %v1594
    %2013 = vmatpush1.bf16.msra.mxu0 %v1593
    %2014 = vmatprep.subr.bf16.mxu0 %v1586
    %2015 = vmatpush1.bf16.msra.mxu0 %v1585
    %2016 = vmatprep.subr.bf16.mxu0 %v1578
    %2017 = vmatpush1.bf16.msra.mxu0 %v1577
    %2018 = vmatprep.subr.bf16.mxu0 %v1698
    %2019 = vmatpush2.bf16.msra.mxu0 %v1697
    %2020 = vmatprep.subr.bf16.mxu0 %v1690
    %2021 = vmatpush2.bf16.msra.mxu0 %v1689
    %2022 = vmatprep.subr.bf16.mxu0 %v1682
    %2023 = vmatpush2.bf16.msra.mxu0 %v1681
    %2024 = vmatprep.subr.bf16.mxu0 %v1674
    %2025 = vmatpush2.bf16.msra.mxu0 %v1673
    %2026 = vmatprep.subr.bf16.mxu0 %v1666
    %2027 = vmatpush2.bf16.msra.mxu0 %v1665
    %2028 = vmatprep.subr.bf16.mxu0 %v1658
    %2029 = vmatpush2.bf16.msra.mxu0 %v1657
    %2030 = vmatprep.subr.bf16.mxu0 %v1650
    %2031 = vmatpush2.bf16.msra.mxu0 %v1649
    %2032 = vmatprep.subr.bf16.mxu0 %v1642
    %2033 = vmatpush2.bf16.msra.mxu0 %v1641
    %2034 = vmatprep.mubr.bf16.mxu0 %v383
    %2035 = vmatmul.mubr.bf16.gmra.mxu0 %v382
    %v2036 = vpop.f32.mrf.mxu0
    %v2037 = vadd.f32 %v1996, %v2036
    %v2038 = vpop.f32.mrf.mxu0
    %v2039 = vadd.f32 %v1998, %v2038
    %v2040 = vpop.f32.mrf.mxu0
    %v2041 = vpop.f32.mrf.mxu0
    %2042 = vdwg.mxu0
    %2043 = vmatprep.subr.bf16.mxu0 %v1508
    %2044 = vmatpush1.bf16.msra.mxu0 %v1507
    %2045 = vmatprep.subr.bf16.mxu0 %v1500
    %2046 = vmatpush1.bf16.msra.mxu0 %v1499
    %2047 = vmatprep.subr.bf16.mxu0 %v1492
    %2048 = vmatpush1.bf16.msra.mxu0 %v1491
    %2049 = vmatprep.subr.bf16.mxu0 %v1484
    %2050 = vmatpush1.bf16.msra.mxu0 %v1483
    %2051 = vmatprep.subr.bf16.mxu0 %v1476
    %2052 = vmatpush1.bf16.msra.mxu0 %v1475
    %2053 = vmatprep.subr.bf16.mxu0 %v1468
    %2054 = vmatpush1.bf16.msra.mxu0 %v1467
    %2055 = vmatprep.subr.bf16.mxu0 %v1460
    %2056 = vmatpush1.bf16.msra.mxu0 %v1459
    %2057 = vmatprep.subr.bf16.mxu0 %v1452
    %2058 = vmatpush1.bf16.msra.mxu0 %v1451
    %2059 = vmatprep.subr.bf16.mxu0 %v1572
    %2060 = vmatpush2.bf16.msra.mxu0 %v1571
    %2061 = vmatprep.subr.bf16.mxu0 %v1564
    %2062 = vmatpush2.bf16.msra.mxu0 %v1563
    %2063 = vmatprep.subr.bf16.mxu0 %v1556
    %2064 = vmatpush2.bf16.msra.mxu0 %v1555
    %2065 = vmatprep.subr.bf16.mxu0 %v1548
    %2066 = vmatpush2.bf16.msra.mxu0 %v1547
    %2067 = vmatprep.subr.bf16.mxu0 %v1540
    %2068 = vmatpush2.bf16.msra.mxu0 %v1539
    %2069 = vmatprep.subr.bf16.mxu0 %v1532
    %2070 = vmatpush2.bf16.msra.mxu0 %v1531
    %2071 = vmatprep.subr.bf16.mxu0 %v1524
    %2072 = vmatpush2.bf16.msra.mxu0 %v1523
    %2073 = vmatprep.subr.bf16.mxu0 %v1516
    %2074 = vmatpush2.bf16.msra.mxu0 %v1515
    %2075 = vmatprep.mubr.bf16.mxu0 %v381
    %2076 = vmatmul.mubr.bf16.gmra.mxu0 %v380
    %v2077 = vpop.f32.mrf.mxu0
    %v2078 = vadd.f32 %v652, %v2077
    %v2079 = vpop.f32.mrf.mxu0
    %v2080 = vadd.f32 %v656, %v2079
    %v2081 = vpop.f32.mrf.mxu0
    %v2082 = vpop.f32.mrf.mxu0
    %2083 = vdwg.mxu0
    %2084 = vmatprep.subr.bf16.mxu0 %v1636
    %2085 = vmatpush1.bf16.msra.mxu0 %v1635
    %2086 = vmatprep.subr.bf16.mxu0 %v1628
    %2087 = vmatpush1.bf16.msra.mxu0 %v1627
    %2088 = vmatprep.subr.bf16.mxu0 %v1620
    %2089 = vmatpush1.bf16.msra.mxu0 %v1619
    %2090 = vmatprep.subr.bf16.mxu0 %v1612
    %2091 = vmatpush1.bf16.msra.mxu0 %v1611
    %2092 = vmatprep.subr.bf16.mxu0 %v1604
    %2093 = vmatpush1.bf16.msra.mxu0 %v1603
    %2094 = vmatprep.subr.bf16.mxu0 %v1596
    %2095 = vmatpush1.bf16.msra.mxu0 %v1595
    %2096 = vmatprep.subr.bf16.mxu0 %v1588
    %2097 = vmatpush1.bf16.msra.mxu0 %v1587
    %2098 = vmatprep.subr.bf16.mxu0 %v1580
    %2099 = vmatpush1.bf16.msra.mxu0 %v1579
    %2100 = vmatprep.subr.bf16.mxu0 %v1700
    %2101 = vmatpush2.bf16.msra.mxu0 %v1699
    %2102 = vmatprep.subr.bf16.mxu0 %v1692
    %2103 = vmatpush2.bf16.msra.mxu0 %v1691
    %2104 = vmatprep.subr.bf16.mxu0 %v1684
    %2105 = vmatpush2.bf16.msra.mxu0 %v1683
    %2106 = vmatprep.subr.bf16.mxu0 %v1676
    %2107 = vmatpush2.bf16.msra.mxu0 %v1675
    %2108 = vmatprep.subr.bf16.mxu0 %v1668
    %2109 = vmatpush2.bf16.msra.mxu0 %v1667
    %2110 = vmatprep.subr.bf16.mxu0 %v1660
    %2111 = vmatpush2.bf16.msra.mxu0 %v1659
    %2112 = vmatprep.subr.bf16.mxu0 %v1652
    %2113 = vmatpush2.bf16.msra.mxu0 %v1651
    %2114 = vmatprep.subr.bf16.mxu0 %v1644
    %2115 = vmatpush2.bf16.msra.mxu0 %v1643
    %2116 = vmatprep.mubr.bf16.mxu0 %v383
    %2117 = vmatmul.mubr.bf16.gmra.mxu0 %v382
    %v2118 = vpop.f32.mrf.mxu0
    %v2119 = vadd.f32 %v2078, %v2118
    %v2120 = vpop.f32.mrf.mxu0
    %v2121 = vadd.f32 %v2080, %v2120
    %v2122 = vpop.f32.mrf.mxu0
    %v2123 = vpop.f32.mrf.mxu0
    %2124 = vdwg.mxu0
    %2125 = vmatprep.subr.bf16.mxu0 %v1510
    %2126 = vmatpush1.bf16.msra.mxu0 %v1509
    %2127 = vmatprep.subr.bf16.mxu0 %v1502
    %2128 = vmatpush1.bf16.msra.mxu0 %v1501
    %2129 = vmatprep.subr.bf16.mxu0 %v1494
    %2130 = vmatpush1.bf16.msra.mxu0 %v1493
    %2131 = vmatprep.subr.bf16.mxu0 %v1486
    %2132 = vmatpush1.bf16.msra.mxu0 %v1485
    %2133 = vmatprep.subr.bf16.mxu0 %v1478
    %2134 = vmatpush1.bf16.msra.mxu0 %v1477
    %2135 = vmatprep.subr.bf16.mxu0 %v1470
    %2136 = vmatpush1.bf16.msra.mxu0 %v1469
    %2137 = vmatprep.subr.bf16.mxu0 %v1462
    %2138 = vmatpush1.bf16.msra.mxu0 %v1461
    %2139 = vmatprep.subr.bf16.mxu0 %v1454
    %2140 = vmatpush1.bf16.msra.mxu0 %v1453
    %2141 = vmatprep.subr.bf16.mxu0 %v1574
    %2142 = vmatpush2.bf16.msra.mxu0 %v1573
    %2143 = vmatprep.subr.bf16.mxu0 %v1566
    %2144 = vmatpush2.bf16.msra.mxu0 %v1565
    %2145 = vmatprep.subr.bf16.mxu0 %v1558
    %2146 = vmatpush2.bf16.msra.mxu0 %v1557
    %2147 = vmatprep.subr.bf16.mxu0 %v1550
    %2148 = vmatpush2.bf16.msra.mxu0 %v1549
    %2149 = vmatprep.subr.bf16.mxu0 %v1542
    %2150 = vmatpush2.bf16.msra.mxu0 %v1541
    %2151 = vmatprep.subr.bf16.mxu0 %v1534
    %2152 = vmatpush2.bf16.msra.mxu0 %v1533
    %2153 = vmatprep.subr.bf16.mxu0 %v1526
    %2154 = vmatpush2.bf16.msra.mxu0 %v1525
    %2155 = vmatprep.subr.bf16.mxu0 %v1518
    %2156 = vmatpush2.bf16.msra.mxu0 %v1517
    %2157 = vmatprep.mubr.bf16.mxu0 %v381
    %2158 = vmatmul.mubr.bf16.gmra.mxu0 %v380
    %v2159 = vpop.f32.mrf.mxu0
    %v2160 = vadd.f32 %v660, %v2159
    %v2161 = vpop.f32.mrf.mxu0
    %v2162 = vadd.f32 %v664, %v2161
    %v2163 = vpop.f32.mrf.mxu0
    %v2164 = vpop.f32.mrf.mxu0
    %2165 = vdwg.mxu0
    %2166 = vmatprep.subr.bf16.mxu0 %v1638
    %2167 = vmatpush1.bf16.msra.mxu0 %v1637
    %2168 = vmatprep.subr.bf16.mxu0 %v1630
    %2169 = vmatpush1.bf16.msra.mxu0 %v1629
    %2170 = vmatprep.subr.bf16.mxu0 %v1622
    %2171 = vmatpush1.bf16.msra.mxu0 %v1621
    %2172 = vmatprep.subr.bf16.mxu0 %v1614
    %2173 = vmatpush1.bf16.msra.mxu0 %v1613
    %2174 = vmatprep.subr.bf16.mxu0 %v1606
    %2175 = vmatpush1.bf16.msra.mxu0 %v1605
    %2176 = vmatprep.subr.bf16.mxu0 %v1598
    %2177 = vmatpush1.bf16.msra.mxu0 %v1597
    %2178 = vmatprep.subr.bf16.mxu0 %v1590
    %2179 = vmatpush1.bf16.msra.mxu0 %v1589
    %2180 = vmatprep.subr.bf16.mxu0 %v1582
    %2181 = vmatpush1.bf16.msra.mxu0 %v1581
    %2182 = vmatprep.subr.bf16.mxu0 %v1702
    %2183 = vmatpush2.bf16.msra.mxu0 %v1701
    %2184 = vmatprep.subr.bf16.mxu0 %v1694
    %2185 = vmatpush2.bf16.msra.mxu0 %v1693
    %2186 = vmatprep.subr.bf16.mxu0 %v1686
    %2187 = vmatpush2.bf16.msra.mxu0 %v1685
    %2188 = vmatprep.subr.bf16.mxu0 %v1678
    %2189 = vmatpush2.bf16.msra.mxu0 %v1677
    %2190 = vmatprep.subr.bf16.mxu0 %v1670
    %2191 = vmatpush2.bf16.msra.mxu0 %v1669
    %2192 = vmatprep.subr.bf16.mxu0 %v1662
    %2193 = vmatpush2.bf16.msra.mxu0 %v1661
    %2194 = vmatprep.subr.bf16.mxu0 %v1654
    %2195 = vmatpush2.bf16.msra.mxu0 %v1653
    %2196 = vmatprep.subr.bf16.mxu0 %v1646
    %2197 = vmatpush2.bf16.msra.mxu0 %v1645
    %2198 = vmatprep.mubr.bf16.mxu0 %v383
    %2199 = vmatmul.mubr.bf16.gmra.mxu0 %v382
    %v2200 = vpop.f32.mrf.mxu0
    %v2201 = vadd.f32 %v2160, %v2200
    %v2202 = vpop.f32.mrf.mxu0
    %v2203 = vadd.f32 %v2162, %v2202
    %v2204 = vpop.f32.mrf.mxu0
    %v2205 = vpop.f32.mrf.mxu0
    %2206 = vdwg.mxu0
    %2207 = vmatprep.subr.bf16.mxu0 %v1512
    %2208 = vmatpush1.bf16.msra.mxu0 %v1511
    %2209 = vmatprep.subr.bf16.mxu0 %v1504
    %2210 = vmatpush1.bf16.msra.mxu0 %v1503
    %2211 = vmatprep.subr.bf16.mxu0 %v1496
    %2212 = vmatpush1.bf16.msra.mxu0 %v1495
    %2213 = vmatprep.subr.bf16.mxu0 %v1488
    %2214 = vmatpush1.bf16.msra.mxu0 %v1487
    %2215 = vmatprep.subr.bf16.mxu0 %v1480
    %2216 = vmatpush1.bf16.msra.mxu0 %v1479
    %2217 = vmatprep.subr.bf16.mxu0 %v1472
    %2218 = vmatpush1.bf16.msra.mxu0 %v1471
    %2219 = vmatprep.subr.bf16.mxu0 %v1464
    %2220 = vmatpush1.bf16.msra.mxu0 %v1463
    %2221 = vmatprep.subr.bf16.mxu0 %v1456
    %2222 = vmatpush1.bf16.msra.mxu0 %v1455
    %2223 = vmatprep.subr.bf16.mxu0 %v1576
    %2224 = vmatpush2.bf16.msra.mxu0 %v1575
    %2225 = vmatprep.subr.bf16.mxu0 %v1568
    %2226 = vmatpush2.bf16.msra.mxu0 %v1567
    %2227 = vmatprep.subr.bf16.mxu0 %v1560
    %2228 = vmatpush2.bf16.msra.mxu0 %v1559
    %2229 = vmatprep.subr.bf16.mxu0 %v1552
    %2230 = vmatpush2.bf16.msra.mxu0 %v1551
    %2231 = vmatprep.subr.bf16.mxu0 %v1544
    %2232 = vmatpush2.bf16.msra.mxu0 %v1543
    %2233 = vmatprep.subr.bf16.mxu0 %v1536
    %2234 = vmatpush2.bf16.msra.mxu0 %v1535
    %2235 = vmatprep.subr.bf16.mxu0 %v1528
    %2236 = vmatpush2.bf16.msra.mxu0 %v1527
    %2237 = vmatprep.subr.bf16.mxu0 %v1520
    %2238 = vmatpush2.bf16.msra.mxu0 %v1519
    %2239 = vmatprep.mubr.bf16.mxu0 %v381
    %2240 = vmatmul.mubr.bf16.gmra.mxu0 %v380
    %v2241 = vpop.f32.mrf.mxu0
    %v2242 = vadd.f32 %v668, %v2241
    %v2243 = vpop.f32.mrf.mxu0
    %v2244 = vadd.f32 %v672, %v2243
    %v2245 = vpop.f32.mrf.mxu0
    %v2246 = vpop.f32.mrf.mxu0
    %2247 = vdwg.mxu0
    %2248 = vmatprep.subr.bf16.mxu0 %v1640
    %2249 = vmatpush1.bf16.msra.mxu0 %v1639
    %2250 = vmatprep.subr.bf16.mxu0 %v1632
    %2251 = vmatpush1.bf16.msra.mxu0 %v1631
    %2252 = vmatprep.subr.bf16.mxu0 %v1624
    %2253 = vmatpush1.bf16.msra.mxu0 %v1623
    %2254 = vmatprep.subr.bf16.mxu0 %v1616
    %2255 = vmatpush1.bf16.msra.mxu0 %v1615
    %2256 = vmatprep.subr.bf16.mxu0 %v1608
    %2257 = vmatpush1.bf16.msra.mxu0 %v1607
    %2258 = vmatprep.subr.bf16.mxu0 %v1600
    %2259 = vmatpush1.bf16.msra.mxu0 %v1599
    %2260 = vmatprep.subr.bf16.mxu0 %v1592
    %2261 = vmatpush1.bf16.msra.mxu0 %v1591
    %2262 = vmatprep.subr.bf16.mxu0 %v1584
    %2263 = vmatpush1.bf16.msra.mxu0 %v1583
    %2264 = vmatprep.subr.bf16.mxu0 %v1704
    %2265 = vmatpush2.bf16.msra.mxu0 %v1703
    %2266 = vmatprep.subr.bf16.mxu0 %v1696
    %2267 = vmatpush2.bf16.msra.mxu0 %v1695
    %2268 = vmatprep.subr.bf16.mxu0 %v1688
    %2269 = vmatpush2.bf16.msra.mxu0 %v1687
    %2270 = vmatprep.subr.bf16.mxu0 %v1680
    %2271 = vmatpush2.bf16.msra.mxu0 %v1679
    %2272 = vmatprep.subr.bf16.mxu0 %v1672
    %2273 = vmatpush2.bf16.msra.mxu0 %v1671
    %2274 = vmatprep.subr.bf16.mxu0 %v1664
    %2275 = vmatpush2.bf16.msra.mxu0 %v1663
    %2276 = vmatprep.subr.bf16.mxu0 %v1656
    %2277 = vmatpush2.bf16.msra.mxu0 %v1655
    %2278 = vmatprep.subr.bf16.mxu0 %v1648
    %2279 = vmatpush2.bf16.msra.mxu0 %v1647
    %2280 = vmatprep.mubr.bf16.mxu0 %v383
    %2281 = vmatmul.mubr.bf16.gmra.mxu0 %v382
    %v2282 = vpop.f32.mrf.mxu0
    %v2283 = vadd.f32 %v2242, %v2282
    %v2284 = vpop.f32.mrf.mxu0
    %v2285 = vadd.f32 %v2244, %v2284
    %v2286 = vpop.f32.mrf.mxu0
    %v2287 = vpop.f32.mrf.mxu0
    %2288 = vdwg.mxu0
    %v2289 = vmax.f32 %v2037, 0.0
    %v2290 = vmax.f32 %v2039, 0.0
    %v2291 = vmax.f32 %v2119, 0.0
    %v2292 = vmax.f32 %v2121, 0.0
    %v2293 = vmax.f32 %v2201, 0.0
    %v2294 = vmax.f32 %v2203, 0.0
    %v2295 = vmax.f32 %v2283, 0.0
    %v2296 = vmax.f32 %v2285, 0.0
    %v2297 = vpack.c.bf16 %v2289, %v2289
    %v2298 = vpack.c.bf16 %v2290, %v2290
    %v2299 = vpack.c.bf16 %v2291, %v2291
    %v2300 = vpack.c.bf16 %v2292, %v2292
    %v2301 = vpack.c.bf16 %v2293, %v2293
    %v2302 = vpack.c.bf16 %v2294, %v2294
    %v2303 = vpack.c.bf16 %v2295, %v2295
    %v2304 = vpack.c.bf16 %v2296, %v2296
    %v2305 = vld [vmem:[%s3] sm:$0xff]
    %v2306 = vld [vmem:[%s3 + $0x8] sm:$0xff]
    %v2307 = vld [vmem:[%s3 + $0x10] sm:$0xff]
    %v2308 = vld [vmem:[%s3 + $0x18] sm:$0xf]
    %v2309 = vld [vmem:[%s3 + $0x1c] sm:$0xff]
    %v2310 = vld [vmem:[%s3 + $0x24] sm:$0xff]
    %v2311 = vld [vmem:[%s3 + $0x2c] sm:$0xff]
    %v2312 = vld [vmem:[%s3 + $0x34] sm:$0xf]
    %v2313 = vld [vmem:[%s3 + $0x38] sm:$0xff]
    %v2314 = vld [vmem:[%s3 + $0x40] sm:$0xff]
    %v2315 = vld [vmem:[%s3 + $0x48] sm:$0xff]
    %v2316 = vld [vmem:[%s3 + $0x50] sm:$0xf]
    %v2317 = vld [vmem:[%s3 + $0x54] sm:$0xff]
    %v2318 = vld [vmem:[%s3 + $0x5c] sm:$0xff]
    %v2319 = vld [vmem:[%s3 + $0x64] sm:$0xff]
    %v2320 = vld [vmem:[%s3 + $0x6c] sm:$0xf]
    %v2321 = vld [vmem:[%s3 + $0x70] sm:$0xff]
    %v2322 = vld [vmem:[%s3 + $0x78] sm:$0xff]
    %v2323 = vld [vmem:[%s3 + $0x80] sm:$0xff]
    %v2324 = vld [vmem:[%s3 + $0x88] sm:$0xf]
    %v2325 = vld [vmem:[%s3 + $0x8c] sm:$0xff]
    %v2326 = vld [vmem:[%s3 + $0x94] sm:$0xff]
    %v2327 = vld [vmem:[%s3 + $0x9c] sm:$0xff]
    %v2328 = vld [vmem:[%s3 + $0xa4] sm:$0xf]
    %v2329 = vld [vmem:[%s3 + $0xa8] sm:$0xff]
    %v2330 = vld [vmem:[%s3 + $0xb0] sm:$0xff]
    %v2331 = vld [vmem:[%s3 + $0xb8] sm:$0xff]
    %v2332 = vld [vmem:[%s3 + $0xc0] sm:$0xf]
    %v2333 = vld [vmem:[%s3 + $0xc4] sm:$0xff]
    %v2334 = vld [vmem:[%s3 + $0xcc] sm:$0xff]
    %v2335 = vld [vmem:[%s3 + $0xd4] sm:$0xff]
    %v2336 = vld [vmem:[%s3 + $0xdc] sm:$0xf]
    %v2337 = vld [vmem:[%s3 + $0xe0] sm:$0xff]
    %v2338 = vld [vmem:[%s3 + $0xe8] sm:$0xff]
    %v2339 = vld [vmem:[%s3 + $0xf0] sm:$0xff]
    %v2340 = vld [vmem:[%s3 + $0xf8] sm:$0xf]
    %v2341 = vld [vmem:[%s3 + $0xfc] sm:$0xff]
    %v2342 = vld [vmem:[%s3 + $0x104] sm:$0xff]
    %v2343 = vld [vmem:[%s3 + $0x10c] sm:$0xff]
    %v2344 = vld [vmem:[%s3 + $0x114] sm:$0xf]
    %v2345 = vld [vmem:[%s3 + $0x118] sm:$0xff]
    %v2346 = vld [vmem:[%s3 + $0x120] sm:$0xff]
    %v2347 = vld [vmem:[%s3 + $0x128] sm:$0xff]
    %v2348 = vld [vmem:[%s3 + $0x130] sm:$0xf]
    %v2349 = vld [vmem:[%s3 + $0x134] sm:$0xff]
    %v2350 = vld [vmem:[%s3 + $0x13c] sm:$0xff]
    %v2351 = vld [vmem:[%s3 + $0x144] sm:$0xff]
    %v2352 = vld [vmem:[%s3 + $0x14c] sm:$0xf]
    %v2353 = vld [vmem:[%s3 + $0x150] sm:$0xff]
    %v2354 = vld [vmem:[%s3 + $0x158] sm:$0xff]
    %v2355 = vld [vmem:[%s3 + $0x160] sm:$0xff]
    %v2356 = vld [vmem:[%s3 + $0x168] sm:$0xf]
    %v2357 = vld [vmem:[%s3 + $0x16c] sm:$0xff]
    %v2358 = vld [vmem:[%s3 + $0x174] sm:$0xff]
    %v2359 = vld [vmem:[%s3 + $0x17c] sm:$0xff]
    %v2360 = vld [vmem:[%s3 + $0x184] sm:$0xf]
    %v2361 = vld [vmem:[%s3 + $0x188] sm:$0xff]
    %v2362 = vld [vmem:[%s3 + $0x190] sm:$0xff]
    %v2363 = vld [vmem:[%s3 + $0x198] sm:$0xff]
    %v2364 = vld [vmem:[%s3 + $0x1a0] sm:$0xf]
    %v2365 = vld [vmem:[%s3 + $0x1a4] sm:$0xff]
    %v2366 = vld [vmem:[%s3 + $0x1ac] sm:$0xff]
    %v2367 = vld [vmem:[%s3 + $0x1b4] sm:$0xff]
    %v2368 = vld [vmem:[%s3 + $0x1bc] sm:$0xf]
    %v2369 = vld [vmem:[%s3 + $0x1c0] sm:$0xff]
    %v2370 = vld [vmem:[%s3 + $0x1c8] sm:$0xff]
    %v2371 = vld [vmem:[%s3 + $0x1d0] sm:$0xff]
    %v2372 = vld [vmem:[%s3 + $0x1d8] sm:$0xf]
    %v2373 = vld [vmem:[%s3 + $0x1dc] sm:$0xff]
    %v2374 = vld [vmem:[%s3 + $0x1e4] sm:$0xff]
    %v2375 = vld [vmem:[%s3 + $0x1ec] sm:$0xff]
    %v2376 = vld [vmem:[%s3 + $0x1f4] sm:$0xf]
    %v2377 = vld [vmem:[%s3 + $0x1f8] sm:$0xff]
    %v2378 = vld [vmem:[%s3 + $0x200] sm:$0xff]
    %v2379 = vld [vmem:[%s3 + $0x208] sm:$0xff]
    %v2380 = vld [vmem:[%s3 + $0x210] sm:$0xf]
    %v2381 = vld [vmem:[%s3 + $0x214] sm:$0xff]
    %v2382 = vld [vmem:[%s3 + $0x21c] sm:$0xff]
    %v2383 = vld [vmem:[%s3 + $0x224] sm:$0xff]
    %v2384 = vld [vmem:[%s3 + $0x22c] sm:$0xf]
    %v2385 = vld [vmem:[%s3 + $0x230] sm:$0xff]
    %v2386 = vld [vmem:[%s3 + $0x238] sm:$0xff]
    %v2387 = vld [vmem:[%s3 + $0x240] sm:$0xff]
    %v2388 = vld [vmem:[%s3 + $0x248] sm:$0xf]
    %v2389 = vld [vmem:[%s3 + $0x24c] sm:$0xff]
    %v2390 = vld [vmem:[%s3 + $0x254] sm:$0xff]
    %v2391 = vld [vmem:[%s3 + $0x25c] sm:$0xff]
    %v2392 = vld [vmem:[%s3 + $0x264] sm:$0xf]
    %v2393 = vld [vmem:[%s3 + $0x268] sm:$0xff]
    %v2394 = vld [vmem:[%s3 + $0x270] sm:$0xff]
    %v2395 = vld [vmem:[%s3 + $0x278] sm:$0xff]
    %v2396 = vld [vmem:[%s3 + $0x280] sm:$0xf]
    %v2397 = vld [vmem:[%s3 + $0x284] sm:$0xff]
    %v2398 = vld [vmem:[%s3 + $0x28c] sm:$0xff]
    %v2399 = vld [vmem:[%s3 + $0x294] sm:$0xff]
    %v2400 = vld [vmem:[%s3 + $0x29c] sm:$0xf]
    %v2401 = vld [vmem:[%s3 + $0x2a0] sm:$0xff]
    %v2402 = vld [vmem:[%s3 + $0x2a8] sm:$0xff]
    %v2403 = vld [vmem:[%s3 + $0x2b0] sm:$0xff]
    %v2404 = vld [vmem:[%s3 + $0x2b8] sm:$0xf]
    %v2405 = vld [vmem:[%s3 + $0x2bc] sm:$0xff]
    %v2406 = vld [vmem:[%s3 + $0x2c4] sm:$0xff]
    %v2407 = vld [vmem:[%s3 + $0x2cc] sm:$0xff]
    %v2408 = vld [vmem:[%s3 + $0x2d4] sm:$0xf]
    %v2409 = vld [vmem:[%s3 + $0x2d8] sm:$0xff]
    %v2410 = vld [vmem:[%s3 + $0x2e0] sm:$0xff]
    %v2411 = vld [vmem:[%s3 + $0x2e8] sm:$0xff]
    %v2412 = vld [vmem:[%s3 + $0x2f0] sm:$0xf]
    %v2413 = vld [vmem:[%s3 + $0x2f4] sm:$0xff]
    %v2414 = vld [vmem:[%s3 + $0x2fc] sm:$0xff]
    %v2415 = vld [vmem:[%s3 + $0x304] sm:$0xff]
    %v2416 = vld [vmem:[%s3 + $0x30c] sm:$0xf]
    %v2417 = vld [vmem:[%s3 + $0x310] sm:$0xff]
    %v2418 = vld [vmem:[%s3 + $0x318] sm:$0xff]
    %v2419 = vld [vmem:[%s3 + $0x320] sm:$0xff]
    %v2420 = vld [vmem:[%s3 + $0x328] sm:$0xf]
    %v2421 = vld [vmem:[%s3 + $0x32c] sm:$0xff]
    %v2422 = vld [vmem:[%s3 + $0x334] sm:$0xff]
    %v2423 = vld [vmem:[%s3 + $0x33c] sm:$0xff]
    %v2424 = vld [vmem:[%s3 + $0x344] sm:$0xf]
    %v2425 = vld [vmem:[%s3 + $0x348] sm:$0xff]
    %v2426 = vld [vmem:[%s3 + $0x350] sm:$0xff]
    %v2427 = vld [vmem:[%s3 + $0x358] sm:$0xff]
    %v2428 = vld [vmem:[%s3 + $0x360] sm:$0xf]
    %v2429 = vld [vmem:[%s3 + $0x364] sm:$0xff]
    %v2430 = vld [vmem:[%s3 + $0x36c] sm:$0xff]
    %v2431 = vld [vmem:[%s3 + $0x374] sm:$0xff]
    %v2432 = vld [vmem:[%s3 + $0x37c] sm:$0xf]
    %v2433 = vld [vmem:[%s3 + $0x380] sm:$0xff]
    %v2434 = vld [vmem:[%s3 + $0x388] sm:$0xff]
    %v2435 = vld [vmem:[%s3 + $0x390] sm:$0xff]
    %v2436 = vld [vmem:[%s3 + $0x398] sm:$0xf]
    %v2437 = vld [vmem:[%s3 + $0x39c] sm:$0xff]
    %v2438 = vld [vmem:[%s3 + $0x3a4] sm:$0xff]
    %v2439 = vld [vmem:[%s3 + $0x3ac] sm:$0xff]
    %v2440 = vld [vmem:[%s3 + $0x3b4] sm:$0xf]
    %v2441 = vld [vmem:[%s3 + $0x3b8] sm:$0xff]
    %v2442 = vld [vmem:[%s3 + $0x3c0] sm:$0xff]
    %v2443 = vld [vmem:[%s3 + $0x3c8] sm:$0xff]
    %v2444 = vld [vmem:[%s3 + $0x3d0] sm:$0xf]
    %v2445 = vld [vmem:[%s3 + $0x3d4] sm:$0xff]
    %v2446 = vld [vmem:[%s3 + $0x3dc] sm:$0xff]
    %v2447 = vld [vmem:[%s3 + $0x3e4] sm:$0xff]
    %v2448 = vld [vmem:[%s3 + $0x3ec] sm:$0xf]
    %v2449 = vld [vmem:[%s3 + $0x3f0] sm:$0xff]
    %v2450 = vld [vmem:[%s3 + $0x3f8] sm:$0xff]
    %v2451 = vld [vmem:[%s3 + $0x400] sm:$0xff]
    %v2452 = vld [vmem:[%s3 + $0x408] sm:$0xf]
    %v2453 = vld [vmem:[%s3 + $0x40c] sm:$0xff]
    %v2454 = vld [vmem:[%s3 + $0x414] sm:$0xff]
    %v2455 = vld [vmem:[%s3 + $0x41c] sm:$0xff]
    %v2456 = vld [vmem:[%s3 + $0x424] sm:$0xf]
    %v2457 = vld [vmem:[%s3 + $0x428] sm:$0xff]
    %v2458 = vld [vmem:[%s3 + $0x430] sm:$0xff]
    %v2459 = vld [vmem:[%s3 + $0x438] sm:$0xff]
    %v2460 = vld [vmem:[%s3 + $0x440] sm:$0xf]
    %v2461 = vld [vmem:[%s3 + $0x444] sm:$0xff]
    %v2462 = vld [vmem:[%s3 + $0x44c] sm:$0xff]
    %v2463 = vld [vmem:[%s3 + $0x454] sm:$0xff]
    %v2464 = vld [vmem:[%s3 + $0x45c] sm:$0xf]
    %v2465 = vld [vmem:[%s3 + $0x460] sm:$0xff]
    %v2466 = vld [vmem:[%s3 + $0x468] sm:$0xff]
    %v2467 = vld [vmem:[%s3 + $0x470] sm:$0xff]
    %v2468 = vld [vmem:[%s3 + $0x478] sm:$0xf]
    %v2469 = vld [vmem:[%s3 + $0x47c] sm:$0xff]
    %v2470 = vld [vmem:[%s3 + $0x484] sm:$0xff]
    %v2471 = vld [vmem:[%s3 + $0x48c] sm:$0xff]
    %v2472 = vld [vmem:[%s3 + $0x494] sm:$0xf]
    %v2473 = vld [vmem:[%s3 + $0x498] sm:$0xff]
    %v2474 = vld [vmem:[%s3 + $0x4a0] sm:$0xff]
    %v2475 = vld [vmem:[%s3 + $0x4a8] sm:$0xff]
    %v2476 = vld [vmem:[%s3 + $0x4b0] sm:$0xf]
    %v2477 = vld [vmem:[%s3 + $0x4b4] sm:$0xff]
    %v2478 = vld [vmem:[%s3 + $0x4bc] sm:$0xff]
    %v2479 = vld [vmem:[%s3 + $0x4c4] sm:$0xff]
    %v2480 = vld [vmem:[%s3 + $0x4cc] sm:$0xf]
    %v2481 = vld [vmem:[%s3 + $0x4d0] sm:$0xff]
    %v2482 = vld [vmem:[%s3 + $0x4d8] sm:$0xff]
    %v2483 = vld [vmem:[%s3 + $0x4e0] sm:$0xff]
    %v2484 = vld [vmem:[%s3 + $0x4e8] sm:$0xf]
    %v2485 = vld [vmem:[%s3 + $0x4ec] sm:$0xff]
    %v2486 = vld [vmem:[%s3 + $0x4f4] sm:$0xff]
    %v2487 = vld [vmem:[%s3 + $0x4fc] sm:$0xff]
    %v2488 = vld [vmem:[%s3 + $0x504] sm:$0xf]
    %v2489 = vld [vmem:[%s3 + $0x508] sm:$0xff]
    %v2490 = vld [vmem:[%s3 + $0x510] sm:$0xff]
    %v2491 = vld [vmem:[%s3 + $0x518] sm:$0xff]
    %v2492 = vld [vmem:[%s3 + $0x520] sm:$0xf]
    %v2493 = vld [vmem:[%s3 + $0x524] sm:$0xff]
    %v2494 = vld [vmem:[%s3 + $0x52c] sm:$0xff]
    %v2495 = vld [vmem:[%s3 + $0x534] sm:$0xff]
    %v2496 = vld [vmem:[%s3 + $0x53c] sm:$0xf]
    %v2497 = vld [vmem:[%s3 + $0x540] sm:$0xff]
    %v2498 = vld [vmem:[%s3 + $0x548] sm:$0xff]
    %v2499 = vld [vmem:[%s3 + $0x550] sm:$0xff]
    %v2500 = vld [vmem:[%s3 + $0x558] sm:$0xf]
    %v2501 = vld [vmem:[%s3 + $0x55c] sm:$0xff]
    %v2502 = vld [vmem:[%s3 + $0x564] sm:$0xff]
    %v2503 = vld [vmem:[%s3 + $0x56c] sm:$0xff]
    %v2504 = vld [vmem:[%s3 + $0x574] sm:$0xf]
    %v2505 = vld [vmem:[%s3 + $0x578] sm:$0xff]
    %v2506 = vld [vmem:[%s3 + $0x580] sm:$0xff]
    %v2507 = vld [vmem:[%s3 + $0x588] sm:$0xff]
    %v2508 = vld [vmem:[%s3 + $0x590] sm:$0xf]
    %v2509 = vld [vmem:[%s3 + $0x594] sm:$0xff]
    %v2510 = vld [vmem:[%s3 + $0x59c] sm:$0xff]
    %v2511 = vld [vmem:[%s3 + $0x5a4] sm:$0xff]
    %v2512 = vld [vmem:[%s3 + $0x5ac] sm:$0xf]
    %v2513 = vld [vmem:[%s3 + $0x5b0] sm:$0xff]
    %v2514 = vld [vmem:[%s3 + $0x5b8] sm:$0xff]
    %v2515 = vld [vmem:[%s3 + $0x5c0] sm:$0xff]
    %v2516 = vld [vmem:[%s3 + $0x5c8] sm:$0xf]
    %v2517 = vld [vmem:[%s3 + $0x5cc] sm:$0xff]
    %v2518 = vld [vmem:[%s3 + $0x5d4] sm:$0xff]
    %v2519 = vld [vmem:[%s3 + $0x5dc] sm:$0xff]
    %v2520 = vld [vmem:[%s3 + $0x5e4] sm:$0xf]
    %v2521 = vld [vmem:[%s3 + $0x5e8] sm:$0xff]
    %v2522 = vld [vmem:[%s3 + $0x5f0] sm:$0xff]
    %v2523 = vld [vmem:[%s3 + $0x5f8] sm:$0xff]
    %v2524 = vld [vmem:[%s3 + $0x600] sm:$0xf]
    %v2525 = vld [vmem:[%s3 + $0x604] sm:$0xff]
    %v2526 = vld [vmem:[%s3 + $0x60c] sm:$0xff]
    %v2527 = vld [vmem:[%s3 + $0x614] sm:$0xff]
    %v2528 = vld [vmem:[%s3 + $0x61c] sm:$0xf]
    %v2529 = vld [vmem:[%s3 + $0x620] sm:$0xff]
    %v2530 = vld [vmem:[%s3 + $0x628] sm:$0xff]
    %v2531 = vld [vmem:[%s3 + $0x630] sm:$0xff]
    %v2532 = vld [vmem:[%s3 + $0x638] sm:$0xf]
    %v2533 = vld [vmem:[%s3 + $0x63c] sm:$0xff]
    %v2534 = vld [vmem:[%s3 + $0x644] sm:$0xff]
    %v2535 = vld [vmem:[%s3 + $0x64c] sm:$0xff]
    %v2536 = vld [vmem:[%s3 + $0x654] sm:$0xf]
    %v2537 = vld [vmem:[%s3 + $0x658] sm:$0xff]
    %v2538 = vld [vmem:[%s3 + $0x660] sm:$0xff]
    %v2539 = vld [vmem:[%s3 + $0x668] sm:$0xff]
    %v2540 = vld [vmem:[%s3 + $0x670] sm:$0xf]
    %v2541 = vld [vmem:[%s3 + $0x674] sm:$0xff]
    %v2542 = vld [vmem:[%s3 + $0x67c] sm:$0xff]
    %v2543 = vld [vmem:[%s3 + $0x684] sm:$0xff]
    %v2544 = vld [vmem:[%s3 + $0x68c] sm:$0xf]
    %v2545 = vld [vmem:[%s3 + $0x690] sm:$0xff]
    %v2546 = vld [vmem:[%s3 + $0x698] sm:$0xff]
    %v2547 = vld [vmem:[%s3 + $0x6a0] sm:$0xff]
    %v2548 = vld [vmem:[%s3 + $0x6a8] sm:$0xf]
    %v2549 = vld [vmem:[%s3 + $0x6ac] sm:$0xff]
    %v2550 = vld [vmem:[%s3 + $0x6b4] sm:$0xff]
    %v2551 = vld [vmem:[%s3 + $0x6bc] sm:$0xff]
    %v2552 = vld [vmem:[%s3 + $0x6c4] sm:$0xf]
    %v2553 = vld [vmem:[%s3 + $0x6c8] sm:$0xff]
    %v2554 = vld [vmem:[%s3 + $0x6d0] sm:$0xff]
    %v2555 = vld [vmem:[%s3 + $0x6d8] sm:$0xff]
    %v2556 = vld [vmem:[%s3 + $0x6e0] sm:$0xf]
    %v2557 = vld [vmem:[%s3 + $0x6e4] sm:$0xff]
    %v2558 = vld [vmem:[%s3 + $0x6ec] sm:$0xff]
    %v2559 = vld [vmem:[%s3 + $0x6f4] sm:$0xff]
    %v2560 = vld [vmem:[%s3 + $0x6fc] sm:$0xf]
    %v2561 = vld [vmem:[%s3 + $0x700] sm:$0xff]
    %v2562 = vld [vmem:[%s3 + $0x708] sm:$0xff]
    %v2563 = vld [vmem:[%s3 + $0x710] sm:$0xff]
    %v2564 = vld [vmem:[%s3 + $0x718] sm:$0xf]
    %v2565 = vld [vmem:[%s3 + $0x71c] sm:$0xff]
    %v2566 = vld [vmem:[%s3 + $0x724] sm:$0xff]
    %v2567 = vld [vmem:[%s3 + $0x72c] sm:$0xff]
    %v2568 = vld [vmem:[%s3 + $0x734] sm:$0xf]
    %v2569 = vld [vmem:[%s3 + $0x738] sm:$0xff]
    %v2570 = vld [vmem:[%s3 + $0x740] sm:$0xff]
    %v2571 = vld [vmem:[%s3 + $0x748] sm:$0xff]
    %v2572 = vld [vmem:[%s3 + $0x750] sm:$0xf]
    %v2573 = vld [vmem:[%s3 + $0x754] sm:$0xff]
    %v2574 = vld [vmem:[%s3 + $0x75c] sm:$0xff]
    %v2575 = vld [vmem:[%s3 + $0x764] sm:$0xff]
    %v2576 = vld [vmem:[%s3 + $0x76c] sm:$0xf]
    %v2577 = vld [vmem:[%s3 + $0x770] sm:$0xff]
    %v2578 = vld [vmem:[%s3 + $0x778] sm:$0xff]
    %v2579 = vld [vmem:[%s3 + $0x780] sm:$0xff]
    %v2580 = vld [vmem:[%s3 + $0x788] sm:$0xf]
    %v2581 = vld [vmem:[%s3 + $0x78c] sm:$0xff]
    %v2582 = vld [vmem:[%s3 + $0x794] sm:$0xff]
    %v2583 = vld [vmem:[%s3 + $0x79c] sm:$0xff]
    %v2584 = vld [vmem:[%s3 + $0x7a4] sm:$0xf]
    %v2585 = vld [vmem:[%s3 + $0x7a8] sm:$0xff]
    %v2586 = vld [vmem:[%s3 + $0x7b0] sm:$0xff]
    %v2587 = vld [vmem:[%s3 + $0x7b8] sm:$0xff]
    %v2588 = vld [vmem:[%s3 + $0x7c0] sm:$0xf]
    %v2589 = vld [vmem:[%s3 + $0x7c4] sm:$0xff]
    %v2590 = vld [vmem:[%s3 + $0x7cc] sm:$0xff]
    %v2591 = vld [vmem:[%s3 + $0x7d4] sm:$0xff]
    %v2592 = vld [vmem:[%s3 + $0x7dc] sm:$0xf]
    %v2593 = vld [vmem:[%s3 + $0x7e0] sm:$0xff]
    %v2594 = vld [vmem:[%s3 + $0x7e8] sm:$0xff]
    %v2595 = vld [vmem:[%s3 + $0x7f0] sm:$0xff]
    %v2596 = vld [vmem:[%s3 + $0x7f8] sm:$0xf]
    %v2597 = vld [vmem:[%s3 + $0x7fc] sm:$0xff]
    %v2598 = vld [vmem:[%s3 + $0x804] sm:$0xff]
    %v2599 = vld [vmem:[%s3 + $0x80c] sm:$0xff]
    %v2600 = vld [vmem:[%s3 + $0x814] sm:$0xf]
    %v2601 = vld [vmem:[%s3 + $0x818] sm:$0xff]
    %v2602 = vld [vmem:[%s3 + $0x820] sm:$0xff]
    %v2603 = vld [vmem:[%s3 + $0x828] sm:$0xff]
    %v2604 = vld [vmem:[%s3 + $0x830] sm:$0xf]
    %v2605 = vld [vmem:[%s3 + $0x834] sm:$0xff]
    %v2606 = vld [vmem:[%s3 + $0x83c] sm:$0xff]
    %v2607 = vld [vmem:[%s3 + $0x844] sm:$0xff]
    %v2608 = vld [vmem:[%s3 + $0x84c] sm:$0xf]
    %v2609 = vld [vmem:[%s3 + $0x850] sm:$0xff]
    %v2610 = vld [vmem:[%s3 + $0x858] sm:$0xff]
    %v2611 = vld [vmem:[%s3 + $0x860] sm:$0xff]
    %v2612 = vld [vmem:[%s3 + $0x868] sm:$0xf]
    %v2613 = vld [vmem:[%s3 + $0x86c] sm:$0xff]
    %v2614 = vld [vmem:[%s3 + $0x874] sm:$0xff]
    %v2615 = vld [vmem:[%s3 + $0x87c] sm:$0xff]
    %v2616 = vld [vmem:[%s3 + $0x884] sm:$0xf]
    %v2617 = vld [vmem:[%s3 + $0x888] sm:$0xff]
    %v2618 = vld [vmem:[%s3 + $0x890] sm:$0xff]
    %v2619 = vld [vmem:[%s3 + $0x898] sm:$0xff]
    %v2620 = vld [vmem:[%s3 + $0x8a0] sm:$0xf]
    %v2621 = vld [vmem:[%s3 + $0x8a4] sm:$0xff]
    %v2622 = vld [vmem:[%s3 + $0x8ac] sm:$0xff]
    %v2623 = vld [vmem:[%s3 + $0x8b4] sm:$0xff]
    %v2624 = vld [vmem:[%s3 + $0x8bc] sm:$0xf]
    %v2625 = vld [vmem:[%s3 + $0x8c0] sm:$0xff]
    %v2626 = vld [vmem:[%s3 + $0x8c8] sm:$0xff]
    %v2627 = vld [vmem:[%s3 + $0x8d0] sm:$0xff]
    %v2628 = vld [vmem:[%s3 + $0x8d8] sm:$0xf]
    %v2629 = vld [vmem:[%s3 + $0x8dc] sm:$0xff]
    %v2630 = vld [vmem:[%s3 + $0x8e4] sm:$0xff]
    %v2631 = vld [vmem:[%s3 + $0x8ec] sm:$0xff]
    %v2632 = vld [vmem:[%s3 + $0x8f4] sm:$0xf]
    %v2633 = vld [vmem:[%s3 + $0x8f8] sm:$0xff]
    %v2634 = vld [vmem:[%s3 + $0x900] sm:$0xff]
    %v2635 = vld [vmem:[%s3 + $0x908] sm:$0xff]
    %v2636 = vld [vmem:[%s3 + $0x910] sm:$0xf]
    %v2637 = vld [vmem:[%s3 + $0x914] sm:$0xff]
    %v2638 = vld [vmem:[%s3 + $0x91c] sm:$0xff]
    %v2639 = vld [vmem:[%s3 + $0x924] sm:$0xff]
    %v2640 = vld [vmem:[%s3 + $0x92c] sm:$0xf]
    %v2641 = vld [vmem:[%s3 + $0x930] sm:$0xff]
    %v2642 = vld [vmem:[%s3 + $0x938] sm:$0xff]
    %v2643 = vld [vmem:[%s3 + $0x940] sm:$0xff]
    %v2644 = vld [vmem:[%s3 + $0x948] sm:$0xf]
    %v2645 = vld [vmem:[%s3 + $0x94c] sm:$0xff]
    %v2646 = vld [vmem:[%s3 + $0x954] sm:$0xff]
    %v2647 = vld [vmem:[%s3 + $0x95c] sm:$0xff]
    %v2648 = vld [vmem:[%s3 + $0x964] sm:$0xf]
    %v2649 = vld [vmem:[%s3 + $0x968] sm:$0xff]
    %v2650 = vld [vmem:[%s3 + $0x970] sm:$0xff]
    %v2651 = vld [vmem:[%s3 + $0x978] sm:$0xff]
    %v2652 = vld [vmem:[%s3 + $0x980] sm:$0xf]
    %v2653 = vld [vmem:[%s3 + $0x984] sm:$0xff]
    %v2654 = vld [vmem:[%s3 + $0x98c] sm:$0xff]
    %v2655 = vld [vmem:[%s3 + $0x994] sm:$0xff]
    %v2656 = vld [vmem:[%s3 + $0x99c] sm:$0xf]
    %v2657 = vld [vmem:[%s3 + $0x9a0] sm:$0xff]
    %v2658 = vld [vmem:[%s3 + $0x9a8] sm:$0xff]
    %v2659 = vld [vmem:[%s3 + $0x9b0] sm:$0xff]
    %v2660 = vld [vmem:[%s3 + $0x9b8] sm:$0xf]
    %v2661 = vld [vmem:[%s3 + $0x9bc] sm:$0xff]
    %v2662 = vld [vmem:[%s3 + $0x9c4] sm:$0xff]
    %v2663 = vld [vmem:[%s3 + $0x9cc] sm:$0xff]
    %v2664 = vld [vmem:[%s3 + $0x9d4] sm:$0xf]
    %v2665 = vld [vmem:[%s3 + $0x9d8] sm:$0xff]
    %v2666 = vld [vmem:[%s3 + $0x9e0] sm:$0xff]
    %v2667 = vld [vmem:[%s3 + $0x9e8] sm:$0xff]
    %v2668 = vld [vmem:[%s3 + $0x9f0] sm:$0xf]
    %v2669 = vld [vmem:[%s3 + $0x9f4] sm:$0xff]
    %v2670 = vld [vmem:[%s3 + $0x9fc] sm:$0xff]
    %v2671 = vld [vmem:[%s3 + $0xa04] sm:$0xff]
    %v2672 = vld [vmem:[%s3 + $0xa0c] sm:$0xf]
    %v2673 = vld [vmem:[%s3 + $0xa10] sm:$0xff]
    %v2674 = vld [vmem:[%s3 + $0xa18] sm:$0xff]
    %v2675 = vld [vmem:[%s3 + $0xa20] sm:$0xff]
    %v2676 = vld [vmem:[%s3 + $0xa28] sm:$0xf]
    %v2677 = vld [vmem:[%s3 + $0xa2c] sm:$0xff]
    %v2678 = vld [vmem:[%s3 + $0xa34] sm:$0xff]
    %v2679 = vld [vmem:[%s3 + $0xa3c] sm:$0xff]
    %v2680 = vld [vmem:[%s3 + $0xa44] sm:$0xf]
    %v2681 = vld [vmem:[%s3 + $0xa48] sm:$0xff]
    %v2682 = vld [vmem:[%s3 + $0xa50] sm:$0xff]
    %v2683 = vld [vmem:[%s3 + $0xa58] sm:$0xff]
    %v2684 = vld [vmem:[%s3 + $0xa60] sm:$0xf]
    %v2685 = vld [vmem:[%s3 + $0xa64] sm:$0xff]
    %v2686 = vld [vmem:[%s3 + $0xa6c] sm:$0xff]
    %v2687 = vld [vmem:[%s3 + $0xa74] sm:$0xff]
    %v2688 = vld [vmem:[%s3 + $0xa7c] sm:$0xf]
    %v2689 = vld [vmem:[%s3 + $0xa80] sm:$0xff]
    %v2690 = vld [vmem:[%s3 + $0xa88] sm:$0xff]
    %v2691 = vld [vmem:[%s3 + $0xa90] sm:$0xff]
    %v2692 = vld [vmem:[%s3 + $0xa98] sm:$0xf]
    %v2693 = vld [vmem:[%s3 + $0xa9c] sm:$0xff]
    %v2694 = vld [vmem:[%s3 + $0xaa4] sm:$0xff]
    %v2695 = vld [vmem:[%s3 + $0xaac] sm:$0xff]
    %v2696 = vld [vmem:[%s3 + $0xab4] sm:$0xf]
    %v2697 = vld [vmem:[%s3 + $0xab8] sm:$0xff]
    %v2698 = vld [vmem:[%s3 + $0xac0] sm:$0xff]
    %v2699 = vld [vmem:[%s3 + $0xac8] sm:$0xff]
    %v2700 = vld [vmem:[%s3 + $0xad0] sm:$0xf]
    %v2701 = vld [vmem:[%s3 + $0xad4] sm:$0xff]
    %v2702 = vld [vmem:[%s3 + $0xadc] sm:$0xff]
    %v2703 = vld [vmem:[%s3 + $0xae4] sm:$0xff]
    %v2704 = vld [vmem:[%s3 + $0xaec] sm:$0xf]
    %v2705 = vld [vmem:[%s3 + $0xaf0] sm:$0xff]
    %v2706 = vld [vmem:[%s3 + $0xaf8] sm:$0xff]
    %v2707 = vld [vmem:[%s3 + $0xb00] sm:$0xff]
    %v2708 = vld [vmem:[%s3 + $0xb08] sm:$0xf]
    %v2709 = vld [vmem:[%s3 + $0xb0c] sm:$0xff]
    %v2710 = vld [vmem:[%s3 + $0xb14] sm:$0xff]
    %v2711 = vld [vmem:[%s3 + $0xb1c] sm:$0xff]
    %v2712 = vld [vmem:[%s3 + $0xb24] sm:$0xf]
    %v2713 = vld [vmem:[%s3 + $0xb28] sm:$0xff]
    %v2714 = vld [vmem:[%s3 + $0xb30] sm:$0xff]
    %v2715 = vld [vmem:[%s3 + $0xb38] sm:$0xff]
    %v2716 = vld [vmem:[%s3 + $0xb40] sm:$0xf]
    %v2717 = vld [vmem:[%s3 + $0xb44] sm:$0xff]
    %v2718 = vld [vmem:[%s3 + $0xb4c] sm:$0xff]
    %v2719 = vld [vmem:[%s3 + $0xb54] sm:$0xff]
    %v2720 = vld [vmem:[%s3 + $0xb5c] sm:$0xf]
    %v2721 = vld [vmem:[%s3 + $0xb60] sm:$0xff]
    %v2722 = vld [vmem:[%s3 + $0xb68] sm:$0xff]
    %v2723 = vld [vmem:[%s3 + $0xb70] sm:$0xff]
    %v2724 = vld [vmem:[%s3 + $0xb78] sm:$0xf]
    %v2725 = vld [vmem:[%s3 + $0xb7c] sm:$0xff]
    %v2726 = vld [vmem:[%s3 + $0xb84] sm:$0xff]
    %v2727 = vld [vmem:[%s3 + $0xb8c] sm:$0xff]
    %v2728 = vld [vmem:[%s3 + $0xb94] sm:$0xf]
    %v2729 = vld [vmem:[%s3 + $0xb98] sm:$0xff]
    %v2730 = vld [vmem:[%s3 + $0xba0] sm:$0xff]
    %v2731 = vld [vmem:[%s3 + $0xba8] sm:$0xff]
    %v2732 = vld [vmem:[%s3 + $0xbb0] sm:$0xf]
    %v2733 = vld [vmem:[%s3 + $0xbb4] sm:$0xff]
    %v2734 = vld [vmem:[%s3 + $0xbbc] sm:$0xff]
    %v2735 = vld [vmem:[%s3 + $0xbc4] sm:$0xff]
    %v2736 = vld [vmem:[%s3 + $0xbcc] sm:$0xf]
    %v2737 = vld [vmem:[%s3 + $0xbd0] sm:$0xff]
    %v2738 = vld [vmem:[%s3 + $0xbd8] sm:$0xff]
    %v2739 = vld [vmem:[%s3 + $0xbe0] sm:$0xff]
    %v2740 = vld [vmem:[%s3 + $0xbe8] sm:$0xf]
    %v2741 = vld [vmem:[%s3 + $0xbec] sm:$0xff]
    %v2742 = vld [vmem:[%s3 + $0xbf4] sm:$0xff]
    %v2743 = vld [vmem:[%s3 + $0xbfc] sm:$0xff]
    %v2744 = vld [vmem:[%s3 + $0xc04] sm:$0xf]
    %v2745 = vld [vmem:[%s3 + $0xc08] sm:$0xff]
    %v2746 = vld [vmem:[%s3 + $0xc10] sm:$0xff]
    %v2747 = vld [vmem:[%s3 + $0xc18] sm:$0xff]
    %v2748 = vld [vmem:[%s3 + $0xc20] sm:$0xf]
    %v2749 = vld [vmem:[%s3 + $0xc24] sm:$0xff]
    %v2750 = vld [vmem:[%s3 + $0xc2c] sm:$0xff]
    %v2751 = vld [vmem:[%s3 + $0xc34] sm:$0xff]
    %v2752 = vld [vmem:[%s3 + $0xc3c] sm:$0xf]
    %v2753 = vld [vmem:[%s3 + $0xc40] sm:$0xff]
    %v2754 = vld [vmem:[%s3 + $0xc48] sm:$0xff]
    %v2755 = vld [vmem:[%s3 + $0xc50] sm:$0xff]
    %v2756 = vld [vmem:[%s3 + $0xc58] sm:$0xf]
    %v2757 = vld [vmem:[%s3 + $0xc5c] sm:$0xff]
    %v2758 = vld [vmem:[%s3 + $0xc64] sm:$0xff]
    %v2759 = vld [vmem:[%s3 + $0xc6c] sm:$0xff]
    %v2760 = vld [vmem:[%s3 + $0xc74] sm:$0xf]
    %v2761 = vld [vmem:[%s3 + $0xc78] sm:$0xff]
    %v2762 = vld [vmem:[%s3 + $0xc80] sm:$0xff]
    %v2763 = vld [vmem:[%s3 + $0xc88] sm:$0xff]
    %v2764 = vld [vmem:[%s3 + $0xc90] sm:$0xf]
    %v2765 = vld [vmem:[%s3 + $0xc94] sm:$0xff]
    %v2766 = vld [vmem:[%s3 + $0xc9c] sm:$0xff]
    %v2767 = vld [vmem:[%s3 + $0xca4] sm:$0xff]
    %v2768 = vld [vmem:[%s3 + $0xcac] sm:$0xf]
    %v2769 = vld [vmem:[%s3 + $0xcb0] sm:$0xff]
    %v2770 = vld [vmem:[%s3 + $0xcb8] sm:$0xff]
    %v2771 = vld [vmem:[%s3 + $0xcc0] sm:$0xff]
    %v2772 = vld [vmem:[%s3 + $0xcc8] sm:$0xf]
    %v2773 = vld [vmem:[%s3 + $0xccc] sm:$0xff]
    %v2774 = vld [vmem:[%s3 + $0xcd4] sm:$0xff]
    %v2775 = vld [vmem:[%s3 + $0xcdc] sm:$0xff]
    %v2776 = vld [vmem:[%s3 + $0xce4] sm:$0xf]
    %v2777 = vld [vmem:[%s3 + $0xce8] sm:$0xff]
    %v2778 = vld [vmem:[%s3 + $0xcf0] sm:$0xff]
    %v2779 = vld [vmem:[%s3 + $0xcf8] sm:$0xff]
    %v2780 = vld [vmem:[%s3 + $0xd00] sm:$0xf]
    %v2781 = vld [vmem:[%s3 + $0xd04] sm:$0xff]
    %v2782 = vld [vmem:[%s3 + $0xd0c] sm:$0xff]
    %v2783 = vld [vmem:[%s3 + $0xd14] sm:$0xff]
    %v2784 = vld [vmem:[%s3 + $0xd1c] sm:$0xf]
    %v2785 = vld [vmem:[%s3 + $0xd20] sm:$0xff]
    %v2786 = vld [vmem:[%s3 + $0xd28] sm:$0xff]
    %v2787 = vld [vmem:[%s3 + $0xd30] sm:$0xff]
    %v2788 = vld [vmem:[%s3 + $0xd38] sm:$0xf]
    %v2789 = vld [vmem:[%s3 + $0xd3c] sm:$0xff]
    %v2790 = vld [vmem:[%s3 + $0xd44] sm:$0xff]
    %v2791 = vld [vmem:[%s3 + $0xd4c] sm:$0xff]
    %v2792 = vld [vmem:[%s3 + $0xd54] sm:$0xf]
    %v2793 = vld [vmem:[%s3 + $0xd58] sm:$0xff]
    %v2794 = vld [vmem:[%s3 + $0xd60] sm:$0xff]
    %v2795 = vld [vmem:[%s3 + $0xd68] sm:$0xff]
    %v2796 = vld [vmem:[%s3 + $0xd70] sm:$0xf]
    %v2797 = vld [vmem:[%s3 + $0xd74] sm:$0xff]
    %v2798 = vld [vmem:[%s3 + $0xd7c] sm:$0xff]
    %v2799 = vld [vmem:[%s3 + $0xd84] sm:$0xff]
    %v2800 = vld [vmem:[%s3 + $0xd8c] sm:$0xf]
    %v2801 = vld [vmem:[%s3 + $0xd90] sm:$0xff]
    %v2802 = vld [vmem:[%s3 + $0xd98] sm:$0xff]
    %v2803 = vld [vmem:[%s3 + $0xda0] sm:$0xff]
    %v2804 = vld [vmem:[%s3 + $0xda8] sm:$0xf]
    %v2805 = vld [vmem:[%s3 + $0xdac] sm:$0xff]
    %v2806 = vld [vmem:[%s3 + $0xdb4] sm:$0xff]
    %v2807 = vld [vmem:[%s3 + $0xdbc] sm:$0xff]
    %v2808 = vld [vmem:[%s3 + $0xdc4] sm:$0xf]
    %v2809 = vld [vmem:[%s3 + $0xdc8] sm:$0xff]
    %v2810 = vld [vmem:[%s3 + $0xdd0] sm:$0xff]
    %v2811 = vld [vmem:[%s3 + $0xdd8] sm:$0xff]
    %v2812 = vld [vmem:[%s3 + $0xde0] sm:$0xf]
    %v2813 = vld [vmem:[%s3 + $0xde4] sm:$0xff]
    %v2814 = vld [vmem:[%s3 + $0xdec] sm:$0xff]
    %v2815 = vld [vmem:[%s3 + $0xdf4] sm:$0xff]
    %v2816 = vld [vmem:[%s3 + $0xdfc] sm:$0xf]
    %v2818 = vlaneseq
    %v2819 = vshrl.u32 %v2818, 7
    %v2820 = vsub.s32 0, %v2819
    %v2821 = vrot.slane %v28, %v2820
    %v2822 = vlaneseq
    %v2823 = vshrl.u32 %v2822, 7
    %v2824 = vsub.s32 1, %v2823
    %v2825 = vrot.slane %v28, %v2824
    %v2826 = vlaneseq
    %v2827 = vshrl.u32 %v2826, 7
    %v2828 = vsub.s32 2, %v2827
    %v2829 = vrot.slane %v28, %v2828
    %v2830 = vlaneseq
    %v2831 = vshrl.u32 %v2830, 7
    %v2832 = vsub.s32 3, %v2831
    %v2833 = vrot.slane %v28, %v2832
    %v2834 = vlaneseq
    %v2835 = vshrl.u32 %v2834, 7
    %v2836 = vsub.s32 4, %v2835
    %v2837 = vrot.slane %v28, %v2836
    %v2838 = vlaneseq
    %v2839 = vshrl.u32 %v2838, 7
    %v2840 = vsub.s32 5, %v2839
    %v2841 = vrot.slane %v28, %v2840
    %v2842 = vlaneseq
    %v2843 = vshrl.u32 %v2842, 7
    %v2844 = vsub.s32 6, %v2843
    %v2845 = vrot.slane %v28, %v2844
    %v3365 = vunpack.c.l.b16 %v2305
    %v3366 = vunpack.c.h.b16 %v2305
    %v3367 = vunpack.c.l.b16 %v2306
    %v3368 = vunpack.c.h.b16 %v2306
    %v3369 = vunpack.c.l.b16 %v2307
    %v3370 = vunpack.c.h.b16 %v2307
    %v3371 = vunpack.c.l.b16 %v2308
    %v3372 = vunpack.c.l.b16 %v2309
    %v3373 = vunpack.c.h.b16 %v2309
    %v3374 = vunpack.c.l.b16 %v2310
    %v3375 = vunpack.c.h.b16 %v2310
    %v3376 = vunpack.c.l.b16 %v2311
    %v3377 = vunpack.c.h.b16 %v2311
    %v3378 = vunpack.c.l.b16 %v2312
    %v3379 = vunpack.c.l.b16 %v2313
    %v3380 = vunpack.c.h.b16 %v2313
    %v3381 = vunpack.c.l.b16 %v2314
    %v3382 = vunpack.c.h.b16 %v2314
    %v3383 = vunpack.c.l.b16 %v2315
    %v3384 = vunpack.c.h.b16 %v2315
    %v3385 = vunpack.c.l.b16 %v2316
    %v3386 = vunpack.c.l.b16 %v2317
    %v3387 = vunpack.c.h.b16 %v2317
    %v3388 = vunpack.c.l.b16 %v2318
    %v3389 = vunpack.c.h.b16 %v2318
    %v3390 = vunpack.c.l.b16 %v2319
    %v3391 = vunpack.c.h.b16 %v2319
    %v3392 = vunpack.c.l.b16 %v2320
    %v3393 = vunpack.c.l.b16 %v2321
    %v3394 = vunpack.c.h.b16 %v2321
    %v3395 = vunpack.c.l.b16 %v2322
    %v3396 = vunpack.c.h.b16 %v2322
    %v3397 = vunpack.c.l.b16 %v2323
    %v3398 = vunpack.c.h.b16 %v2323
    %v3399 = vunpack.c.l.b16 %v2324
    %v3400 = vunpack.c.l.b16 %v2325
    %v3401 = vunpack.c.h.b16 %v2325
    %v3402 = vunpack.c.l.b16 %v2326
    %v3403 = vunpack.c.h.b16 %v2326
    %v3404 = vunpack.c.l.b16 %v2327
    %v3405 = vunpack.c.h.b16 %v2327
    %v3406 = vunpack.c.l.b16 %v2328
    %v3407 = vunpack.c.l.b16 %v2329
    %v3408 = vunpack.c.h.b16 %v2329
    %v3409 = vunpack.c.l.b16 %v2330
    %v3410 = vunpack.c.h.b16 %v2330
    %v3411 = vunpack.c.l.b16 %v2331
    %v3412 = vunpack.c.h.b16 %v2331
    %v3413 = vunpack.c.l.b16 %v2332
    %v3414 = vunpack.c.l.b16 %v2333
    %v3415 = vunpack.c.h.b16 %v2333
    %v3416 = vunpack.c.l.b16 %v2334
    %v3417 = vunpack.c.h.b16 %v2334
    %v3418 = vunpack.c.l.b16 %v2335
    %v3419 = vunpack.c.h.b16 %v2335
    %v3420 = vunpack.c.l.b16 %v2336
    %v3421 = vunpack.c.l.b16 %v2337
    %v3422 = vunpack.c.h.b16 %v2337
    %v3423 = vunpack.c.l.b16 %v2338
    %v3424 = vunpack.c.h.b16 %v2338
    %v3425 = vunpack.c.l.b16 %v2339
    %v3426 = vunpack.c.h.b16 %v2339
    %v3427 = vunpack.c.l.b16 %v2340
    %v3428 = vunpack.c.l.b16 %v2341
    %v3429 = vunpack.c.h.b16 %v2341
    %v3430 = vunpack.c.l.b16 %v2342
    %v3431 = vunpack.c.h.b16 %v2342
    %v3432 = vunpack.c.l.b16 %v2343
    %v3433 = vunpack.c.h.b16 %v2343
    %v3434 = vunpack.c.l.b16 %v2344
    %v3435 = vunpack.c.l.b16 %v2345
    %v3436 = vunpack.c.h.b16 %v2345
    %v3437 = vunpack.c.l.b16 %v2346
    %v3438 = vunpack.c.h.b16 %v2346
    %v3439 = vunpack.c.l.b16 %v2347
    %v3440 = vunpack.c.h.b16 %v2347
    %v3441 = vunpack.c.l.b16 %v2348
    %v3442 = vunpack.c.l.b16 %v2349
    %v3443 = vunpack.c.h.b16 %v2349
    %v3444 = vunpack.c.l.b16 %v2350
    %v3445 = vunpack.c.h.b16 %v2350
    %v3446 = vunpack.c.l.b16 %v2351
    %v3447 = vunpack.c.h.b16 %v2351
    %v3448 = vunpack.c.l.b16 %v2352
    %v3449 = vunpack.c.l.b16 %v2353
    %v3450 = vunpack.c.h.b16 %v2353
    %v3451 = vunpack.c.l.b16 %v2354
    %v3452 = vunpack.c.h.b16 %v2354
    %v3453 = vunpack.c.l.b16 %v2355
    %v3454 = vunpack.c.h.b16 %v2355
    %v3455 = vunpack.c.l.b16 %v2356
    %v3456 = vunpack.c.l.b16 %v2357
    %v3457 = vunpack.c.h.b16 %v2357
    %v3458 = vunpack.c.l.b16 %v2358
    %v3459 = vunpack.c.h.b16 %v2358
    %v3460 = vunpack.c.l.b16 %v2359
    %v3461 = vunpack.c.h.b16 %v2359
    %v3462 = vunpack.c.l.b16 %v2360
    %v3463 = vunpack.c.l.b16 %v2361
    %v3464 = vunpack.c.h.b16 %v2361
    %v3465 = vunpack.c.l.b16 %v2362
    %v3466 = vunpack.c.h.b16 %v2362
    %v3467 = vunpack.c.l.b16 %v2363
    %v3468 = vunpack.c.h.b16 %v2363
    %v3469 = vunpack.c.l.b16 %v2364
    %v3470 = vunpack.c.l.b16 %v2365
    %v3471 = vunpack.c.h.b16 %v2365
    %v3472 = vunpack.c.l.b16 %v2366
    %v3473 = vunpack.c.h.b16 %v2366
    %v3474 = vunpack.c.l.b16 %v2367
    %v3475 = vunpack.c.h.b16 %v2367
    %v3476 = vunpack.c.l.b16 %v2368
    %v3477 = vunpack.c.l.b16 %v2369
    %v3478 = vunpack.c.h.b16 %v2369
    %v3479 = vunpack.c.l.b16 %v2370
    %v3480 = vunpack.c.h.b16 %v2370
    %v3481 = vunpack.c.l.b16 %v2371
    %v3482 = vunpack.c.h.b16 %v2371
    %v3483 = vunpack.c.l.b16 %v2372
    %v3484 = vunpack.c.l.b16 %v2373
    %v3485 = vunpack.c.h.b16 %v2373
    %v3486 = vunpack.c.l.b16 %v2374
    %v3487 = vunpack.c.h.b16 %v2374
    %v3488 = vunpack.c.l.b16 %v2375
    %v3489 = vunpack.c.h.b16 %v2375
    %v3490 = vunpack.c.l.b16 %v2376
    %v3491 = vunpack.c.l.b16 %v2377
    %v3492 = vunpack.c.h.b16 %v2377
    %v3493 = vunpack.c.l.b16 %v2378
    %v3494 = vunpack.c.h.b16 %v2378
    %v3495 = vunpack.c.l.b16 %v2379
    %v3496 = vunpack.c.h.b16 %v2379
    %v3497 = vunpack.c.l.b16 %v2380
    %v3498 = vunpack.c.l.b16 %v2381
    %v3499 = vunpack.c.h.b16 %v2381
    %v3500 = vunpack.c.l.b16 %v2382
    %v3501 = vunpack.c.h.b16 %v2382
    %v3502 = vunpack.c.l.b16 %v2383
    %v3503 = vunpack.c.h.b16 %v2383
    %v3504 = vunpack.c.l.b16 %v2384
    %v3505 = vunpack.c.l.b16 %v2385
    %v3506 = vunpack.c.h.b16 %v2385
    %v3507 = vunpack.c.l.b16 %v2386
    %v3508 = vunpack.c.h.b16 %v2386
    %v3509 = vunpack.c.l.b16 %v2387
    %v3510 = vunpack.c.h.b16 %v2387
    %v3511 = vunpack.c.l.b16 %v2388
    %v3512 = vunpack.c.l.b16 %v2389
    %v3513 = vunpack.c.h.b16 %v2389
    %v3514 = vunpack.c.l.b16 %v2390
    %v3515 = vunpack.c.h.b16 %v2390
    %v3516 = vunpack.c.l.b16 %v2391
    %v3517 = vunpack.c.h.b16 %v2391
    %v3518 = vunpack.c.l.b16 %v2392
    %v3519 = vunpack.c.l.b16 %v2393
    %v3520 = vunpack.c.h.b16 %v2393
    %v3521 = vunpack.c.l.b16 %v2394
    %v3522 = vunpack.c.h.b16 %v2394
    %v3523 = vunpack.c.l.b16 %v2395
    %v3524 = vunpack.c.h.b16 %v2395
    %v3525 = vunpack.c.l.b16 %v2396
    %v3526 = vunpack.c.l.b16 %v2397
    %v3527 = vunpack.c.h.b16 %v2397
    %v3528 = vunpack.c.l.b16 %v2398
    %v3529 = vunpack.c.h.b16 %v2398
    %v3530 = vunpack.c.l.b16 %v2399
    %v3531 = vunpack.c.h.b16 %v2399
    %v3532 = vunpack.c.l.b16 %v2400
    %v3533 = vunpack.c.l.b16 %v2401
    %v3534 = vunpack.c.h.b16 %v2401
    %v3535 = vunpack.c.l.b16 %v2402
    %v3536 = vunpack.c.h.b16 %v2402
    %v3537 = vunpack.c.l.b16 %v2403
    %v3538 = vunpack.c.h.b16 %v2403
    %v3539 = vunpack.c.l.b16 %v2404
    %v3540 = vunpack.c.l.b16 %v2405
    %v3541 = vunpack.c.h.b16 %v2405
    %v3542 = vunpack.c.l.b16 %v2406
    %v3543 = vunpack.c.h.b16 %v2406
    %v3544 = vunpack.c.l.b16 %v2407
    %v3545 = vunpack.c.h.b16 %v2407
    %v3546 = vunpack.c.l.b16 %v2408
    %v3547 = vunpack.c.l.b16 %v2409
    %v3548 = vunpack.c.h.b16 %v2409
    %v3549 = vunpack.c.l.b16 %v2410
    %v3550 = vunpack.c.h.b16 %v2410
    %v3551 = vunpack.c.l.b16 %v2411
    %v3552 = vunpack.c.h.b16 %v2411
    %v3553 = vunpack.c.l.b16 %v2412
    %v3554 = vunpack.c.l.b16 %v2413
    %v3555 = vunpack.c.h.b16 %v2413
    %v3556 = vunpack.c.l.b16 %v2414
    %v3557 = vunpack.c.h.b16 %v2414
    %v3558 = vunpack.c.l.b16 %v2415
    %v3559 = vunpack.c.h.b16 %v2415
    %v3560 = vunpack.c.l.b16 %v2416
    %v3561 = vunpack.c.l.b16 %v2417
    %v3562 = vunpack.c.h.b16 %v2417
    %v3563 = vunpack.c.l.b16 %v2418
    %v3564 = vunpack.c.h.b16 %v2418
    %v3565 = vunpack.c.l.b16 %v2419
    %v3566 = vunpack.c.h.b16 %v2419
    %v3567 = vunpack.c.l.b16 %v2420
    %v3568 = vunpack.c.l.b16 %v2421
    %v3569 = vunpack.c.h.b16 %v2421
    %v3570 = vunpack.c.l.b16 %v2422
    %v3571 = vunpack.c.h.b16 %v2422
    %v3572 = vunpack.c.l.b16 %v2423
    %v3573 = vunpack.c.h.b16 %v2423
    %v3574 = vunpack.c.l.b16 %v2424
    %v3575 = vunpack.c.l.b16 %v2425
    %v3576 = vunpack.c.h.b16 %v2425
    %v3577 = vunpack.c.l.b16 %v2426
    %v3578 = vunpack.c.h.b16 %v2426
    %v3579 = vunpack.c.l.b16 %v2427
    %v3580 = vunpack.c.h.b16 %v2427
    %v3581 = vunpack.c.l.b16 %v2428
    %v3582 = vunpack.c.l.b16 %v2429
    %v3583 = vunpack.c.h.b16 %v2429
    %v3584 = vunpack.c.l.b16 %v2430
    %v3585 = vunpack.c.h.b16 %v2430
    %v3586 = vunpack.c.l.b16 %v2431
    %v3587 = vunpack.c.h.b16 %v2431
    %v3588 = vunpack.c.l.b16 %v2432
    %v3589 = vunpack.c.l.b16 %v2433
    %v3590 = vunpack.c.h.b16 %v2433
    %v3591 = vunpack.c.l.b16 %v2434
    %v3592 = vunpack.c.h.b16 %v2434
    %v3593 = vunpack.c.l.b16 %v2435
    %v3594 = vunpack.c.h.b16 %v2435
    %v3595 = vunpack.c.l.b16 %v2436
    %v3596 = vunpack.c.l.b16 %v2437
    %v3597 = vunpack.c.h.b16 %v2437
    %v3598 = vunpack.c.l.b16 %v2438
    %v3599 = vunpack.c.h.b16 %v2438
    %v3600 = vunpack.c.l.b16 %v2439
    %v3601 = vunpack.c.h.b16 %v2439
    %v3602 = vunpack.c.l.b16 %v2440
    %v3603 = vunpack.c.l.b16 %v2441
    %v3604 = vunpack.c.h.b16 %v2441
    %v3605 = vunpack.c.l.b16 %v2442
    %v3606 = vunpack.c.h.b16 %v2442
    %v3607 = vunpack.c.l.b16 %v2443
    %v3608 = vunpack.c.h.b16 %v2443
    %v3609 = vunpack.c.l.b16 %v2444
    %v3610 = vunpack.c.l.b16 %v2445
    %v3611 = vunpack.c.h.b16 %v2445
    %v3612 = vunpack.c.l.b16 %v2446
    %v3613 = vunpack.c.h.b16 %v2446
    %v3614 = vunpack.c.l.b16 %v2447
    %v3615 = vunpack.c.h.b16 %v2447
    %v3616 = vunpack.c.l.b16 %v2448
    %v3617 = vunpack.c.l.b16 %v2449
    %v3618 = vunpack.c.h.b16 %v2449
    %v3619 = vunpack.c.l.b16 %v2450
    %v3620 = vunpack.c.h.b16 %v2450
    %v3621 = vunpack.c.l.b16 %v2451
    %v3622 = vunpack.c.h.b16 %v2451
    %v3623 = vunpack.c.l.b16 %v2452
    %v3624 = vunpack.c.l.b16 %v2453
    %v3625 = vunpack.c.h.b16 %v2453
    %v3626 = vunpack.c.l.b16 %v2454
    %v3627 = vunpack.c.h.b16 %v2454
    %v3628 = vunpack.c.l.b16 %v2455
    %v3629 = vunpack.c.h.b16 %v2455
    %v3630 = vunpack.c.l.b16 %v2456
    %v3631 = vunpack.c.l.b16 %v2457
    %v3632 = vunpack.c.h.b16 %v2457
    %v3633 = vunpack.c.l.b16 %v2458
    %v3634 = vunpack.c.h.b16 %v2458
    %v3635 = vunpack.c.l.b16 %v2459
    %v3636 = vunpack.c.h.b16 %v2459
    %v3637 = vunpack.c.l.b16 %v2460
    %v3638 = vunpack.c.l.b16 %v2461
    %v3639 = vunpack.c.h.b16 %v2461
    %v3640 = vunpack.c.l.b16 %v2462
    %v3641 = vunpack.c.h.b16 %v2462
    %v3642 = vunpack.c.l.b16 %v2463
    %v3643 = vunpack.c.h.b16 %v2463
    %v3644 = vunpack.c.l.b16 %v2464
    %v3645 = vunpack.c.l.b16 %v2465
    %v3646 = vunpack.c.h.b16 %v2465
    %v3647 = vunpack.c.l.b16 %v2466
    %v3648 = vunpack.c.h.b16 %v2466
    %v3649 = vunpack.c.l.b16 %v2467
    %v3650 = vunpack.c.h.b16 %v2467
    %v3651 = vunpack.c.l.b16 %v2468
    %v3652 = vunpack.c.l.b16 %v2469
    %v3653 = vunpack.c.h.b16 %v2469
    %v3654 = vunpack.c.l.b16 %v2470
    %v3655 = vunpack.c.h.b16 %v2470
    %v3656 = vunpack.c.l.b16 %v2471
    %v3657 = vunpack.c.h.b16 %v2471
    %v3658 = vunpack.c.l.b16 %v2472
    %v3659 = vunpack.c.l.b16 %v2473
    %v3660 = vunpack.c.h.b16 %v2473
    %v3661 = vunpack.c.l.b16 %v2474
    %v3662 = vunpack.c.h.b16 %v2474
    %v3663 = vunpack.c.l.b16 %v2475
    %v3664 = vunpack.c.h.b16 %v2475
    %v3665 = vunpack.c.l.b16 %v2476
    %v3666 = vunpack.c.l.b16 %v2477
    %v3667 = vunpack.c.h.b16 %v2477
    %v3668 = vunpack.c.l.b16 %v2478
    %v3669 = vunpack.c.h.b16 %v2478
    %v3670 = vunpack.c.l.b16 %v2479
    %v3671 = vunpack.c.h.b16 %v2479
    %v3672 = vunpack.c.l.b16 %v2480
    %v3673 = vunpack.c.l.b16 %v2481
    %v3674 = vunpack.c.h.b16 %v2481
    %v3675 = vunpack.c.l.b16 %v2482
    %v3676 = vunpack.c.h.b16 %v2482
    %v3677 = vunpack.c.l.b16 %v2483
    %v3678 = vunpack.c.h.b16 %v2483
    %v3679 = vunpack.c.l.b16 %v2484
    %v3680 = vunpack.c.l.b16 %v2485
    %v3681 = vunpack.c.h.b16 %v2485
    %v3682 = vunpack.c.l.b16 %v2486
    %v3683 = vunpack.c.h.b16 %v2486
    %v3684 = vunpack.c.l.b16 %v2487
    %v3685 = vunpack.c.h.b16 %v2487
    %v3686 = vunpack.c.l.b16 %v2488
    %v3687 = vunpack.c.l.b16 %v2489
    %v3688 = vunpack.c.h.b16 %v2489
    %v3689 = vunpack.c.l.b16 %v2490
    %v3690 = vunpack.c.h.b16 %v2490
    %v3691 = vunpack.c.l.b16 %v2491
    %v3692 = vunpack.c.h.b16 %v2491
    %v3693 = vunpack.c.l.b16 %v2492
    %v3694 = vunpack.c.l.b16 %v2493
    %v3695 = vunpack.c.h.b16 %v2493
    %v3696 = vunpack.c.l.b16 %v2494
    %v3697 = vunpack.c.h.b16 %v2494
    %v3698 = vunpack.c.l.b16 %v2495
    %v3699 = vunpack.c.h.b16 %v2495
    %v3700 = vunpack.c.l.b16 %v2496
    %v3701 = vunpack.c.l.b16 %v2497
    %v3702 = vunpack.c.h.b16 %v2497
    %v3703 = vunpack.c.l.b16 %v2498
    %v3704 = vunpack.c.h.b16 %v2498
    %v3705 = vunpack.c.l.b16 %v2499
    %v3706 = vunpack.c.h.b16 %v2499
    %v3707 = vunpack.c.l.b16 %v2500
    %v3708 = vunpack.c.l.b16 %v2501
    %v3709 = vunpack.c.h.b16 %v2501
    %v3710 = vunpack.c.l.b16 %v2502
    %v3711 = vunpack.c.h.b16 %v2502
    %v3712 = vunpack.c.l.b16 %v2503
    %v3713 = vunpack.c.h.b16 %v2503
    %v3714 = vunpack.c.l.b16 %v2504
    %v3715 = vunpack.c.l.b16 %v2505
    %v3716 = vunpack.c.h.b16 %v2505
    %v3717 = vunpack.c.l.b16 %v2506
    %v3718 = vunpack.c.h.b16 %v2506
    %v3719 = vunpack.c.l.b16 %v2507
    %v3720 = vunpack.c.h.b16 %v2507
    %v3721 = vunpack.c.l.b16 %v2508
    %v3722 = vunpack.c.l.b16 %v2509
    %v3723 = vunpack.c.h.b16 %v2509
    %v3724 = vunpack.c.l.b16 %v2510
    %v3725 = vunpack.c.h.b16 %v2510
    %v3726 = vunpack.c.l.b16 %v2511
    %v3727 = vunpack.c.h.b16 %v2511
    %v3728 = vunpack.c.l.b16 %v2512
    %v3729 = vunpack.c.l.b16 %v2513
    %v3730 = vunpack.c.h.b16 %v2513
    %v3731 = vunpack.c.l.b16 %v2514
    %v3732 = vunpack.c.h.b16 %v2514
    %v3733 = vunpack.c.l.b16 %v2515
    %v3734 = vunpack.c.h.b16 %v2515
    %v3735 = vunpack.c.l.b16 %v2516
    %v3736 = vunpack.c.l.b16 %v2517
    %v3737 = vunpack.c.h.b16 %v2517
    %v3738 = vunpack.c.l.b16 %v2518
    %v3739 = vunpack.c.h.b16 %v2518
    %v3740 = vunpack.c.l.b16 %v2519
    %v3741 = vunpack.c.h.b16 %v2519
    %v3742 = vunpack.c.l.b16 %v2520
    %v3743 = vunpack.c.l.b16 %v2521
    %v3744 = vunpack.c.h.b16 %v2521
    %v3745 = vunpack.c.l.b16 %v2522
    %v3746 = vunpack.c.h.b16 %v2522
    %v3747 = vunpack.c.l.b16 %v2523
    %v3748 = vunpack.c.h.b16 %v2523
    %v3749 = vunpack.c.l.b16 %v2524
    %v3750 = vunpack.c.l.b16 %v2525
    %v3751 = vunpack.c.h.b16 %v2525
    %v3752 = vunpack.c.l.b16 %v2526
    %v3753 = vunpack.c.h.b16 %v2526
    %v3754 = vunpack.c.l.b16 %v2527
    %v3755 = vunpack.c.h.b16 %v2527
    %v3756 = vunpack.c.l.b16 %v2528
    %v3757 = vunpack.c.l.b16 %v2529
    %v3758 = vunpack.c.h.b16 %v2529
    %v3759 = vunpack.c.l.b16 %v2530
    %v3760 = vunpack.c.h.b16 %v2530
    %v3761 = vunpack.c.l.b16 %v2531
    %v3762 = vunpack.c.h.b16 %v2531
    %v3763 = vunpack.c.l.b16 %v2532
    %v3764 = vunpack.c.l.b16 %v2533
    %v3765 = vunpack.c.h.b16 %v2533
    %v3766 = vunpack.c.l.b16 %v2534
    %v3767 = vunpack.c.h.b16 %v2534
    %v3768 = vunpack.c.l.b16 %v2535
    %v3769 = vunpack.c.h.b16 %v2535
    %v3770 = vunpack.c.l.b16 %v2536
    %v3771 = vunpack.c.l.b16 %v2537
    %v3772 = vunpack.c.h.b16 %v2537
    %v3773 = vunpack.c.l.b16 %v2538
    %v3774 = vunpack.c.h.b16 %v2538
    %v3775 = vunpack.c.l.b16 %v2539
    %v3776 = vunpack.c.h.b16 %v2539
    %v3777 = vunpack.c.l.b16 %v2540
    %v3778 = vunpack.c.l.b16 %v2541
    %v3779 = vunpack.c.h.b16 %v2541
    %v3780 = vunpack.c.l.b16 %v2542
    %v3781 = vunpack.c.h.b16 %v2542
    %v3782 = vunpack.c.l.b16 %v2543
    %v3783 = vunpack.c.h.b16 %v2543
    %v3784 = vunpack.c.l.b16 %v2544
    %v3785 = vunpack.c.l.b16 %v2545
    %v3786 = vunpack.c.h.b16 %v2545
    %v3787 = vunpack.c.l.b16 %v2546
    %v3788 = vunpack.c.h.b16 %v2546
    %v3789 = vunpack.c.l.b16 %v2547
    %v3790 = vunpack.c.h.b16 %v2547
    %v3791 = vunpack.c.l.b16 %v2548
    %v3792 = vunpack.c.l.b16 %v2549
    %v3793 = vunpack.c.h.b16 %v2549
    %v3794 = vunpack.c.l.b16 %v2550
    %v3795 = vunpack.c.h.b16 %v2550
    %v3796 = vunpack.c.l.b16 %v2551
    %v3797 = vunpack.c.h.b16 %v2551
    %v3798 = vunpack.c.l.b16 %v2552
    %v3799 = vunpack.c.l.b16 %v2553
    %v3800 = vunpack.c.h.b16 %v2553
    %v3801 = vunpack.c.l.b16 %v2554
    %v3802 = vunpack.c.h.b16 %v2554
    %v3803 = vunpack.c.l.b16 %v2555
    %v3804 = vunpack.c.h.b16 %v2555
    %v3805 = vunpack.c.l.b16 %v2556
    %v3806 = vunpack.c.l.b16 %v2557
    %v3807 = vunpack.c.h.b16 %v2557
    %v3808 = vunpack.c.l.b16 %v2558
    %v3809 = vunpack.c.h.b16 %v2558
    %v3810 = vunpack.c.l.b16 %v2559
    %v3811 = vunpack.c.h.b16 %v2559
    %v3812 = vunpack.c.l.b16 %v2560
    %v3813 = vunpack.c.l.b16 %v2561
    %v3814 = vunpack.c.h.b16 %v2561
    %v3815 = vunpack.c.l.b16 %v2562
    %v3816 = vunpack.c.h.b16 %v2562
    %v3817 = vunpack.c.l.b16 %v2563
    %v3818 = vunpack.c.h.b16 %v2563
    %v3819 = vunpack.c.l.b16 %v2564
    %v3820 = vunpack.c.l.b16 %v2565
    %v3821 = vunpack.c.h.b16 %v2565
    %v3822 = vunpack.c.l.b16 %v2566
    %v3823 = vunpack.c.h.b16 %v2566
    %v3824 = vunpack.c.l.b16 %v2567
    %v3825 = vunpack.c.h.b16 %v2567
    %v3826 = vunpack.c.l.b16 %v2568
    %v3827 = vunpack.c.l.b16 %v2569
    %v3828 = vunpack.c.h.b16 %v2569
    %v3829 = vunpack.c.l.b16 %v2570
    %v3830 = vunpack.c.h.b16 %v2570
    %v3831 = vunpack.c.l.b16 %v2571
    %v3832 = vunpack.c.h.b16 %v2571
    %v3833 = vunpack.c.l.b16 %v2572
    %v3834 = vunpack.c.l.b16 %v2573
    %v3835 = vunpack.c.h.b16 %v2573
    %v3836 = vunpack.c.l.b16 %v2574
    %v3837 = vunpack.c.h.b16 %v2574
    %v3838 = vunpack.c.l.b16 %v2575
    %v3839 = vunpack.c.h.b16 %v2575
    %v3840 = vunpack.c.l.b16 %v2576
    %v3841 = vunpack.c.l.b16 %v2577
    %v3842 = vunpack.c.h.b16 %v2577
    %v3843 = vunpack.c.l.b16 %v2578
    %v3844 = vunpack.c.h.b16 %v2578
    %v3845 = vunpack.c.l.b16 %v2579
    %v3846 = vunpack.c.h.b16 %v2579
    %v3847 = vunpack.c.l.b16 %v2580
    %v3848 = vunpack.c.l.b16 %v2581
    %v3849 = vunpack.c.h.b16 %v2581
    %v3850 = vunpack.c.l.b16 %v2582
    %v3851 = vunpack.c.h.b16 %v2582
    %v3852 = vunpack.c.l.b16 %v2583
    %v3853 = vunpack.c.h.b16 %v2583
    %v3854 = vunpack.c.l.b16 %v2584
    %v3855 = vunpack.c.l.b16 %v2585
    %v3856 = vunpack.c.h.b16 %v2585
    %v3857 = vunpack.c.l.b16 %v2586
    %v3858 = vunpack.c.h.b16 %v2586
    %v3859 = vunpack.c.l.b16 %v2587
    %v3860 = vunpack.c.h.b16 %v2587
    %v3861 = vunpack.c.l.b16 %v2588
    %v3862 = vunpack.c.l.b16 %v2589
    %v3863 = vunpack.c.h.b16 %v2589
    %v3864 = vunpack.c.l.b16 %v2590
    %v3865 = vunpack.c.h.b16 %v2590
    %v3866 = vunpack.c.l.b16 %v2591
    %v3867 = vunpack.c.h.b16 %v2591
    %v3868 = vunpack.c.l.b16 %v2592
    %v3869 = vunpack.c.l.b16 %v2593
    %v3870 = vunpack.c.h.b16 %v2593
    %v3871 = vunpack.c.l.b16 %v2594
    %v3872 = vunpack.c.h.b16 %v2594
    %v3873 = vunpack.c.l.b16 %v2595
    %v3874 = vunpack.c.h.b16 %v2595
    %v3875 = vunpack.c.l.b16 %v2596
    %v3876 = vunpack.c.l.b16 %v2597
    %v3877 = vunpack.c.h.b16 %v2597
    %v3878 = vunpack.c.l.b16 %v2598
    %v3879 = vunpack.c.h.b16 %v2598
    %v3880 = vunpack.c.l.b16 %v2599
    %v3881 = vunpack.c.h.b16 %v2599
    %v3882 = vunpack.c.l.b16 %v2600
    %v3883 = vunpack.c.l.b16 %v2601
    %v3884 = vunpack.c.h.b16 %v2601
    %v3885 = vunpack.c.l.b16 %v2602
    %v3886 = vunpack.c.h.b16 %v2602
    %v3887 = vunpack.c.l.b16 %v2603
    %v3888 = vunpack.c.h.b16 %v2603
    %v3889 = vunpack.c.l.b16 %v2604
    %v3890 = vunpack.c.l.b16 %v2605
    %v3891 = vunpack.c.h.b16 %v2605
    %v3892 = vunpack.c.l.b16 %v2606
    %v3893 = vunpack.c.h.b16 %v2606
    %v3894 = vunpack.c.l.b16 %v2607
    %v3895 = vunpack.c.h.b16 %v2607
    %v3896 = vunpack.c.l.b16 %v2608
    %v3897 = vunpack.c.l.b16 %v2609
    %v3898 = vunpack.c.h.b16 %v2609
    %v3899 = vunpack.c.l.b16 %v2610
    %v3900 = vunpack.c.h.b16 %v2610
    %v3901 = vunpack.c.l.b16 %v2611
    %v3902 = vunpack.c.h.b16 %v2611
    %v3903 = vunpack.c.l.b16 %v2612
    %v3904 = vunpack.c.l.b16 %v2613
    %v3905 = vunpack.c.h.b16 %v2613
    %v3906 = vunpack.c.l.b16 %v2614
    %v3907 = vunpack.c.h.b16 %v2614
    %v3908 = vunpack.c.l.b16 %v2615
    %v3909 = vunpack.c.h.b16 %v2615
    %v3910 = vunpack.c.l.b16 %v2616
    %v3911 = vunpack.c.l.b16 %v2617
    %v3912 = vunpack.c.h.b16 %v2617
    %v3913 = vunpack.c.l.b16 %v2618
    %v3914 = vunpack.c.h.b16 %v2618
    %v3915 = vunpack.c.l.b16 %v2619
    %v3916 = vunpack.c.h.b16 %v2619
    %v3917 = vunpack.c.l.b16 %v2620
    %v3918 = vunpack.c.l.b16 %v2621
    %v3919 = vunpack.c.h.b16 %v2621
    %v3920 = vunpack.c.l.b16 %v2622
    %v3921 = vunpack.c.h.b16 %v2622
    %v3922 = vunpack.c.l.b16 %v2623
    %v3923 = vunpack.c.h.b16 %v2623
    %v3924 = vunpack.c.l.b16 %v2624
    %v3925 = vunpack.c.l.b16 %v2625
    %v3926 = vunpack.c.h.b16 %v2625
    %v3927 = vunpack.c.l.b16 %v2626
    %v3928 = vunpack.c.h.b16 %v2626
    %v3929 = vunpack.c.l.b16 %v2627
    %v3930 = vunpack.c.h.b16 %v2627
    %v3931 = vunpack.c.l.b16 %v2628
    %v3932 = vunpack.c.l.b16 %v2629
    %v3933 = vunpack.c.h.b16 %v2629
    %v3934 = vunpack.c.l.b16 %v2630
    %v3935 = vunpack.c.h.b16 %v2630
    %v3936 = vunpack.c.l.b16 %v2631
    %v3937 = vunpack.c.h.b16 %v2631
    %v3938 = vunpack.c.l.b16 %v2632
    %v3939 = vunpack.c.l.b16 %v2633
    %v3940 = vunpack.c.h.b16 %v2633
    %v3941 = vunpack.c.l.b16 %v2634
    %v3942 = vunpack.c.h.b16 %v2634
    %v3943 = vunpack.c.l.b16 %v2635
    %v3944 = vunpack.c.h.b16 %v2635
    %v3945 = vunpack.c.l.b16 %v2636
    %v3946 = vunpack.c.l.b16 %v2637
    %v3947 = vunpack.c.h.b16 %v2637
    %v3948 = vunpack.c.l.b16 %v2638
    %v3949 = vunpack.c.h.b16 %v2638
    %v3950 = vunpack.c.l.b16 %v2639
    %v3951 = vunpack.c.h.b16 %v2639
    %v3952 = vunpack.c.l.b16 %v2640
    %v3953 = vunpack.c.l.b16 %v2641
    %v3954 = vunpack.c.h.b16 %v2641
    %v3955 = vunpack.c.l.b16 %v2642
    %v3956 = vunpack.c.h.b16 %v2642
    %v3957 = vunpack.c.l.b16 %v2643
    %v3958 = vunpack.c.h.b16 %v2643
    %v3959 = vunpack.c.l.b16 %v2644
    %v3960 = vunpack.c.l.b16 %v2645
    %v3961 = vunpack.c.h.b16 %v2645
    %v3962 = vunpack.c.l.b16 %v2646
    %v3963 = vunpack.c.h.b16 %v2646
    %v3964 = vunpack.c.l.b16 %v2647
    %v3965 = vunpack.c.h.b16 %v2647
    %v3966 = vunpack.c.l.b16 %v2648
    %v3967 = vunpack.c.l.b16 %v2649
    %v3968 = vunpack.c.h.b16 %v2649
    %v3969 = vunpack.c.l.b16 %v2650
    %v3970 = vunpack.c.h.b16 %v2650
    %v3971 = vunpack.c.l.b16 %v2651
    %v3972 = vunpack.c.h.b16 %v2651
    %v3973 = vunpack.c.l.b16 %v2652
    %v3974 = vunpack.c.l.b16 %v2653
    %v3975 = vunpack.c.h.b16 %v2653
    %v3976 = vunpack.c.l.b16 %v2654
    %v3977 = vunpack.c.h.b16 %v2654
    %v3978 = vunpack.c.l.b16 %v2655
    %v3979 = vunpack.c.h.b16 %v2655
    %v3980 = vunpack.c.l.b16 %v2656
    %v3981 = vunpack.c.l.b16 %v2657
    %v3982 = vunpack.c.h.b16 %v2657
    %v3983 = vunpack.c.l.b16 %v2658
    %v3984 = vunpack.c.h.b16 %v2658
    %v3985 = vunpack.c.l.b16 %v2659
    %v3986 = vunpack.c.h.b16 %v2659
    %v3987 = vunpack.c.l.b16 %v2660
    %v3988 = vunpack.c.l.b16 %v2661
    %v3989 = vunpack.c.h.b16 %v2661
    %v3990 = vunpack.c.l.b16 %v2662
    %v3991 = vunpack.c.h.b16 %v2662
    %v3992 = vunpack.c.l.b16 %v2663
    %v3993 = vunpack.c.h.b16 %v2663
    %v3994 = vunpack.c.l.b16 %v2664
    %v3995 = vunpack.c.l.b16 %v2665
    %v3996 = vunpack.c.h.b16 %v2665
    %v3997 = vunpack.c.l.b16 %v2666
    %v3998 = vunpack.c.h.b16 %v2666
    %v3999 = vunpack.c.l.b16 %v2667
    %v4000 = vunpack.c.h.b16 %v2667
    %v4001 = vunpack.c.l.b16 %v2668
    %v4002 = vunpack.c.l.b16 %v2669
    %v4003 = vunpack.c.h.b16 %v2669
    %v4004 = vunpack.c.l.b16 %v2670
    %v4005 = vunpack.c.h.b16 %v2670
    %v4006 = vunpack.c.l.b16 %v2671
    %v4007 = vunpack.c.h.b16 %v2671
    %v4008 = vunpack.c.l.b16 %v2672
    %v4009 = vunpack.c.l.b16 %v2673
    %v4010 = vunpack.c.h.b16 %v2673
    %v4011 = vunpack.c.l.b16 %v2674
    %v4012 = vunpack.c.h.b16 %v2674
    %v4013 = vunpack.c.l.b16 %v2675
    %v4014 = vunpack.c.h.b16 %v2675
    %v4015 = vunpack.c.l.b16 %v2676
    %v4016 = vunpack.c.l.b16 %v2677
    %v4017 = vunpack.c.h.b16 %v2677
    %v4018 = vunpack.c.l.b16 %v2678
    %v4019 = vunpack.c.h.b16 %v2678
    %v4020 = vunpack.c.l.b16 %v2679
    %v4021 = vunpack.c.h.b16 %v2679
    %v4022 = vunpack.c.l.b16 %v2680
    %v4023 = vunpack.c.l.b16 %v2681
    %v4024 = vunpack.c.h.b16 %v2681
    %v4025 = vunpack.c.l.b16 %v2682
    %v4026 = vunpack.c.h.b16 %v2682
    %v4027 = vunpack.c.l.b16 %v2683
    %v4028 = vunpack.c.h.b16 %v2683
    %v4029 = vunpack.c.l.b16 %v2684
    %v4030 = vunpack.c.l.b16 %v2685
    %v4031 = vunpack.c.h.b16 %v2685
    %v4032 = vunpack.c.l.b16 %v2686
    %v4033 = vunpack.c.h.b16 %v2686
    %v4034 = vunpack.c.l.b16 %v2687
    %v4035 = vunpack.c.h.b16 %v2687
    %v4036 = vunpack.c.l.b16 %v2688
    %v4037 = vunpack.c.l.b16 %v2689
    %v4038 = vunpack.c.h.b16 %v2689
    %v4039 = vunpack.c.l.b16 %v2690
    %v4040 = vunpack.c.h.b16 %v2690
    %v4041 = vunpack.c.l.b16 %v2691
    %v4042 = vunpack.c.h.b16 %v2691
    %v4043 = vunpack.c.l.b16 %v2692
    %v4044 = vunpack.c.l.b16 %v2693
    %v4045 = vunpack.c.h.b16 %v2693
    %v4046 = vunpack.c.l.b16 %v2694
    %v4047 = vunpack.c.h.b16 %v2694
    %v4048 = vunpack.c.l.b16 %v2695
    %v4049 = vunpack.c.h.b16 %v2695
    %v4050 = vunpack.c.l.b16 %v2696
    %v4051 = vunpack.c.l.b16 %v2697
    %v4052 = vunpack.c.h.b16 %v2697
    %v4053 = vunpack.c.l.b16 %v2698
    %v4054 = vunpack.c.h.b16 %v2698
    %v4055 = vunpack.c.l.b16 %v2699
    %v4056 = vunpack.c.h.b16 %v2699
    %v4057 = vunpack.c.l.b16 %v2700
    %v4058 = vunpack.c.l.b16 %v2701
    %v4059 = vunpack.c.h.b16 %v2701
    %v4060 = vunpack.c.l.b16 %v2702
    %v4061 = vunpack.c.h.b16 %v2702
    %v4062 = vunpack.c.l.b16 %v2703
    %v4063 = vunpack.c.h.b16 %v2703
    %v4064 = vunpack.c.l.b16 %v2704
    %v4065 = vunpack.c.l.b16 %v2705
    %v4066 = vunpack.c.h.b16 %v2705
    %v4067 = vunpack.c.l.b16 %v2706
    %v4068 = vunpack.c.h.b16 %v2706
    %v4069 = vunpack.c.l.b16 %v2707
    %v4070 = vunpack.c.h.b16 %v2707
    %v4071 = vunpack.c.l.b16 %v2708
    %v4072 = vunpack.c.l.b16 %v2709
    %v4073 = vunpack.c.h.b16 %v2709
    %v4074 = vunpack.c.l.b16 %v2710
    %v4075 = vunpack.c.h.b16 %v2710
    %v4076 = vunpack.c.l.b16 %v2711
    %v4077 = vunpack.c.h.b16 %v2711
    %v4078 = vunpack.c.l.b16 %v2712
    %v4079 = vunpack.c.l.b16 %v2713
    %v4080 = vunpack.c.h.b16 %v2713
    %v4081 = vunpack.c.l.b16 %v2714
    %v4082 = vunpack.c.h.b16 %v2714
    %v4083 = vunpack.c.l.b16 %v2715
    %v4084 = vunpack.c.h.b16 %v2715
    %v4085 = vunpack.c.l.b16 %v2716
    %v4086 = vunpack.c.l.b16 %v2717
    %v4087 = vunpack.c.h.b16 %v2717
    %v4088 = vunpack.c.l.b16 %v2718
    %v4089 = vunpack.c.h.b16 %v2718
    %v4090 = vunpack.c.l.b16 %v2719
    %v4091 = vunpack.c.h.b16 %v2719
    %v4092 = vunpack.c.l.b16 %v2720
    %v4093 = vunpack.c.l.b16 %v2721
    %v4094 = vunpack.c.h.b16 %v2721
    %v4095 = vunpack.c.l.b16 %v2722
    %v4096 = vunpack.c.h.b16 %v2722
    %v4097 = vunpack.c.l.b16 %v2723
    %v4098 = vunpack.c.h.b16 %v2723
    %v4099 = vunpack.c.l.b16 %v2724
    %v4100 = vunpack.c.l.b16 %v2725
    %v4101 = vunpack.c.h.b16 %v2725
    %v4102 = vunpack.c.l.b16 %v2726
    %v4103 = vunpack.c.h.b16 %v2726
    %v4104 = vunpack.c.l.b16 %v2727
    %v4105 = vunpack.c.h.b16 %v2727
    %v4106 = vunpack.c.l.b16 %v2728
    %v4107 = vunpack.c.l.b16 %v2729
    %v4108 = vunpack.c.h.b16 %v2729
    %v4109 = vunpack.c.l.b16 %v2730
    %v4110 = vunpack.c.h.b16 %v2730
    %v4111 = vunpack.c.l.b16 %v2731
    %v4112 = vunpack.c.h.b16 %v2731
    %v4113 = vunpack.c.l.b16 %v2732
    %v4114 = vunpack.c.l.b16 %v2733
    %v4115 = vunpack.c.h.b16 %v2733
    %v4116 = vunpack.c.l.b16 %v2734
    %v4117 = vunpack.c.h.b16 %v2734
    %v4118 = vunpack.c.l.b16 %v2735
    %v4119 = vunpack.c.h.b16 %v2735
    %v4120 = vunpack.c.l.b16 %v2736
    %v4121 = vunpack.c.l.b16 %v2737
    %v4122 = vunpack.c.h.b16 %v2737
    %v4123 = vunpack.c.l.b16 %v2738
    %v4124 = vunpack.c.h.b16 %v2738
    %v4125 = vunpack.c.l.b16 %v2739
    %v4126 = vunpack.c.h.b16 %v2739
    %v4127 = vunpack.c.l.b16 %v2740
    %v4128 = vunpack.c.l.b16 %v2741
    %v4129 = vunpack.c.h.b16 %v2741
    %v4130 = vunpack.c.l.b16 %v2742
    %v4131 = vunpack.c.h.b16 %v2742
    %v4132 = vunpack.c.l.b16 %v2743
    %v4133 = vunpack.c.h.b16 %v2743
    %v4134 = vunpack.c.l.b16 %v2744
    %v4135 = vunpack.c.l.b16 %v2745
    %v4136 = vunpack.c.h.b16 %v2745
    %v4137 = vunpack.c.l.b16 %v2746
    %v4138 = vunpack.c.h.b16 %v2746
    %v4139 = vunpack.c.l.b16 %v2747
    %v4140 = vunpack.c.h.b16 %v2747
    %v4141 = vunpack.c.l.b16 %v2748
    %v4142 = vunpack.c.l.b16 %v2749
    %v4143 = vunpack.c.h.b16 %v2749
    %v4144 = vunpack.c.l.b16 %v2750
    %v4145 = vunpack.c.h.b16 %v2750
    %v4146 = vunpack.c.l.b16 %v2751
    %v4147 = vunpack.c.h.b16 %v2751
    %v4148 = vunpack.c.l.b16 %v2752
    %v4149 = vunpack.c.l.b16 %v2753
    %v4150 = vunpack.c.h.b16 %v2753
    %v4151 = vunpack.c.l.b16 %v2754
    %v4152 = vunpack.c.h.b16 %v2754
    %v4153 = vunpack.c.l.b16 %v2755
    %v4154 = vunpack.c.h.b16 %v2755
    %v4155 = vunpack.c.l.b16 %v2756
    %v4156 = vunpack.c.l.b16 %v2757
    %v4157 = vunpack.c.h.b16 %v2757
    %v4158 = vunpack.c.l.b16 %v2758
    %v4159 = vunpack.c.h.b16 %v2758
    %v4160 = vunpack.c.l.b16 %v2759
    %v4161 = vunpack.c.h.b16 %v2759
    %v4162 = vunpack.c.l.b16 %v2760
    %v4163 = vunpack.c.l.b16 %v2761
    %v4164 = vunpack.c.h.b16 %v2761
    %v4165 = vunpack.c.l.b16 %v2762
    %v4166 = vunpack.c.h.b16 %v2762
    %v4167 = vunpack.c.l.b16 %v2763
    %v4168 = vunpack.c.h.b16 %v2763
    %v4169 = vunpack.c.l.b16 %v2764
    %v4170 = vunpack.c.l.b16 %v2765
    %v4171 = vunpack.c.h.b16 %v2765
    %v4172 = vunpack.c.l.b16 %v2766
    %v4173 = vunpack.c.h.b16 %v2766
    %v4174 = vunpack.c.l.b16 %v2767
    %v4175 = vunpack.c.h.b16 %v2767
    %v4176 = vunpack.c.l.b16 %v2768
    %v4177 = vunpack.c.l.b16 %v2769
    %v4178 = vunpack.c.h.b16 %v2769
    %v4179 = vunpack.c.l.b16 %v2770
    %v4180 = vunpack.c.h.b16 %v2770
    %v4181 = vunpack.c.l.b16 %v2771
    %v4182 = vunpack.c.h.b16 %v2771
    %v4183 = vunpack.c.l.b16 %v2772
    %v4184 = vunpack.c.l.b16 %v2773
    %v4185 = vunpack.c.h.b16 %v2773
    %v4186 = vunpack.c.l.b16 %v2774
    %v4187 = vunpack.c.h.b16 %v2774
    %v4188 = vunpack.c.l.b16 %v2775
    %v4189 = vunpack.c.h.b16 %v2775
    %v4190 = vunpack.c.l.b16 %v2776
    %v4191 = vunpack.c.l.b16 %v2777
    %v4192 = vunpack.c.h.b16 %v2777
    %v4193 = vunpack.c.l.b16 %v2778
    %v4194 = vunpack.c.h.b16 %v2778
    %v4195 = vunpack.c.l.b16 %v2779
    %v4196 = vunpack.c.h.b16 %v2779
    %v4197 = vunpack.c.l.b16 %v2780
    %v4198 = vunpack.c.l.b16 %v2781
    %v4199 = vunpack.c.h.b16 %v2781
    %v4200 = vunpack.c.l.b16 %v2782
    %v4201 = vunpack.c.h.b16 %v2782
    %v4202 = vunpack.c.l.b16 %v2783
    %v4203 = vunpack.c.h.b16 %v2783
    %v4204 = vunpack.c.l.b16 %v2784
    %v4205 = vunpack.c.l.b16 %v2785
    %v4206 = vunpack.c.h.b16 %v2785
    %v4207 = vunpack.c.l.b16 %v2786
    %v4208 = vunpack.c.h.b16 %v2786
    %v4209 = vunpack.c.l.b16 %v2787
    %v4210 = vunpack.c.h.b16 %v2787
    %v4211 = vunpack.c.l.b16 %v2788
    %v4212 = vunpack.c.l.b16 %v2789
    %v4213 = vunpack.c.h.b16 %v2789
    %v4214 = vunpack.c.l.b16 %v2790
    %v4215 = vunpack.c.h.b16 %v2790
    %v4216 = vunpack.c.l.b16 %v2791
    %v4217 = vunpack.c.h.b16 %v2791
    %v4218 = vunpack.c.l.b16 %v2792
    %v4219 = vunpack.c.l.b16 %v2793
    %v4220 = vunpack.c.h.b16 %v2793
    %v4221 = vunpack.c.l.b16 %v2794
    %v4222 = vunpack.c.h.b16 %v2794
    %v4223 = vunpack.c.l.b16 %v2795
    %v4224 = vunpack.c.h.b16 %v2795
    %v4225 = vunpack.c.l.b16 %v2796
    %v4226 = vunpack.c.l.b16 %v2797
    %v4227 = vunpack.c.h.b16 %v2797
    %v4228 = vunpack.c.l.b16 %v2798
    %v4229 = vunpack.c.h.b16 %v2798
    %v4230 = vunpack.c.l.b16 %v2799
    %v4231 = vunpack.c.h.b16 %v2799
    %v4232 = vunpack.c.l.b16 %v2800
    %v4233 = vunpack.c.l.b16 %v2801
    %v4234 = vunpack.c.h.b16 %v2801
    %v4235 = vunpack.c.l.b16 %v2802
    %v4236 = vunpack.c.h.b16 %v2802
    %v4237 = vunpack.c.l.b16 %v2803
    %v4238 = vunpack.c.h.b16 %v2803
    %v4239 = vunpack.c.l.b16 %v2804
    %v4240 = vunpack.c.l.b16 %v2805
    %v4241 = vunpack.c.h.b16 %v2805
    %v4242 = vunpack.c.l.b16 %v2806
    %v4243 = vunpack.c.h.b16 %v2806
    %v4244 = vunpack.c.l.b16 %v2807
    %v4245 = vunpack.c.h.b16 %v2807
    %v4246 = vunpack.c.l.b16 %v2808
    %v4247 = vunpack.c.l.b16 %v2809
    %v4248 = vunpack.c.h.b16 %v2809
    %v4249 = vunpack.c.l.b16 %v2810
    %v4250 = vunpack.c.h.b16 %v2810
    %v4251 = vunpack.c.l.b16 %v2811
    %v4252 = vunpack.c.h.b16 %v2811
    %v4253 = vunpack.c.l.b16 %v2812
    %v4254 = vunpack.c.l.b16 %v2813
    %v4255 = vunpack.c.h.b16 %v2813
    %v4256 = vunpack.c.l.b16 %v2814
    %v4257 = vunpack.c.h.b16 %v2814
    %v4258 = vunpack.c.l.b16 %v2815
    %v4259 = vunpack.c.h.b16 %v2815
    %v4260 = vunpack.c.l.b16 %v2816
    %v4261 = vpack.c.b16 %v3372, %v3365
    %v4262 = vpack.c.b16 %v3373, %v3366
    %v4263 = vpack.c.b16 %v3374, %v3367
    %v4264 = vpack.c.b16 %v3375, %v3368
    %v4265 = vpack.c.b16 %v3376, %v3369
    %v4266 = vpack.c.b16 %v3377, %v3370
    %v4267 = vpack.c.b16 %v3378, %v3371
    %v4268 = vpack.c.b16 %v3386, %v3379
    %v4269 = vpack.c.b16 %v3387, %v3380
    %v4270 = vpack.c.b16 %v3388, %v3381
    %v4271 = vpack.c.b16 %v3389, %v3382
    %v4272 = vpack.c.b16 %v3390, %v3383
    %v4273 = vpack.c.b16 %v3391, %v3384
    %v4274 = vpack.c.b16 %v3392, %v3385
    %v4275 = vpack.c.b16 %v3400, %v3393
    %v4276 = vpack.c.b16 %v3401, %v3394
    %v4277 = vpack.c.b16 %v3402, %v3395
    %v4278 = vpack.c.b16 %v3403, %v3396
    %v4279 = vpack.c.b16 %v3404, %v3397
    %v4280 = vpack.c.b16 %v3405, %v3398
    %v4281 = vpack.c.b16 %v3406, %v3399
    %v4282 = vpack.c.b16 %v3414, %v3407
    %v4283 = vpack.c.b16 %v3415, %v3408
    %v4284 = vpack.c.b16 %v3416, %v3409
    %v4285 = vpack.c.b16 %v3417, %v3410
    %v4286 = vpack.c.b16 %v3418, %v3411
    %v4287 = vpack.c.b16 %v3419, %v3412
    %v4288 = vpack.c.b16 %v3420, %v3413
    %v4289 = vpack.c.b16 %v3428, %v3421
    %v4290 = vpack.c.b16 %v3429, %v3422
    %v4291 = vpack.c.b16 %v3430, %v3423
    %v4292 = vpack.c.b16 %v3431, %v3424
    %v4293 = vpack.c.b16 %v3432, %v3425
    %v4294 = vpack.c.b16 %v3433, %v3426
    %v4295 = vpack.c.b16 %v3434, %v3427
    %v4296 = vpack.c.b16 %v3442, %v3435
    %v4297 = vpack.c.b16 %v3443, %v3436
    %v4298 = vpack.c.b16 %v3444, %v3437
    %v4299 = vpack.c.b16 %v3445, %v3438
    %v4300 = vpack.c.b16 %v3446, %v3439
    %v4301 = vpack.c.b16 %v3447, %v3440
    %v4302 = vpack.c.b16 %v3448, %v3441
    %v4303 = vpack.c.b16 %v3456, %v3449
    %v4304 = vpack.c.b16 %v3457, %v3450
    %v4305 = vpack.c.b16 %v3458, %v3451
    %v4306 = vpack.c.b16 %v3459, %v3452
    %v4307 = vpack.c.b16 %v3460, %v3453
    %v4308 = vpack.c.b16 %v3461, %v3454
    %v4309 = vpack.c.b16 %v3462, %v3455
    %v4310 = vpack.c.b16 %v3470, %v3463
    %v4311 = vpack.c.b16 %v3471, %v3464
    %v4312 = vpack.c.b16 %v3472, %v3465
    %v4313 = vpack.c.b16 %v3473, %v3466
    %v4314 = vpack.c.b16 %v3474, %v3467
    %v4315 = vpack.c.b16 %v3475, %v3468
    %v4316 = vpack.c.b16 %v3476, %v3469
    %v4317 = vpack.c.b16 %v3484, %v3477
    %v4318 = vpack.c.b16 %v3485, %v3478
    %v4319 = vpack.c.b16 %v3486, %v3479
    %v4320 = vpack.c.b16 %v3487, %v3480
    %v4321 = vpack.c.b16 %v3488, %v3481
    %v4322 = vpack.c.b16 %v3489, %v3482
    %v4323 = vpack.c.b16 %v3490, %v3483
    %v4324 = vpack.c.b16 %v3498, %v3491
    %v4325 = vpack.c.b16 %v3499, %v3492
    %v4326 = vpack.c.b16 %v3500, %v3493
    %v4327 = vpack.c.b16 %v3501, %v3494
    %v4328 = vpack.c.b16 %v3502, %v3495
    %v4329 = vpack.c.b16 %v3503, %v3496
    %v4330 = vpack.c.b16 %v3504, %v3497
    %v4331 = vpack.c.b16 %v3512, %v3505
    %v4332 = vpack.c.b16 %v3513, %v3506
    %v4333 = vpack.c.b16 %v3514, %v3507
    %v4334 = vpack.c.b16 %v3515, %v3508
    %v4335 = vpack.c.b16 %v3516, %v3509
    %v4336 = vpack.c.b16 %v3517, %v3510
    %v4337 = vpack.c.b16 %v3518, %v3511
    %v4338 = vpack.c.b16 %v3526, %v3519
    %v4339 = vpack.c.b16 %v3527, %v3520
    %v4340 = vpack.c.b16 %v3528, %v3521
    %v4341 = vpack.c.b16 %v3529, %v3522
    %v4342 = vpack.c.b16 %v3530, %v3523
    %v4343 = vpack.c.b16 %v3531, %v3524
    %v4344 = vpack.c.b16 %v3532, %v3525
    %v4345 = vpack.c.b16 %v3540, %v3533
    %v4346 = vpack.c.b16 %v3541, %v3534
    %v4347 = vpack.c.b16 %v3542, %v3535
    %v4348 = vpack.c.b16 %v3543, %v3536
    %v4349 = vpack.c.b16 %v3544, %v3537
    %v4350 = vpack.c.b16 %v3545, %v3538
    %v4351 = vpack.c.b16 %v3546, %v3539
    %v4352 = vpack.c.b16 %v3554, %v3547
    %v4353 = vpack.c.b16 %v3555, %v3548
    %v4354 = vpack.c.b16 %v3556, %v3549
    %v4355 = vpack.c.b16 %v3557, %v3550
    %v4356 = vpack.c.b16 %v3558, %v3551
    %v4357 = vpack.c.b16 %v3559, %v3552
    %v4358 = vpack.c.b16 %v3560, %v3553
    %v4359 = vpack.c.b16 %v3568, %v3561
    %v4360 = vpack.c.b16 %v3569, %v3562
    %v4361 = vpack.c.b16 %v3570, %v3563
    %v4362 = vpack.c.b16 %v3571, %v3564
    %v4363 = vpack.c.b16 %v3572, %v3565
    %v4364 = vpack.c.b16 %v3573, %v3566
    %v4365 = vpack.c.b16 %v3574, %v3567
    %v4366 = vpack.c.b16 %v3582, %v3575
    %v4367 = vpack.c.b16 %v3583, %v3576
    %v4368 = vpack.c.b16 %v3584, %v3577
    %v4369 = vpack.c.b16 %v3585, %v3578
    %v4370 = vpack.c.b16 %v3586, %v3579
    %v4371 = vpack.c.b16 %v3587, %v3580
    %v4372 = vpack.c.b16 %v3588, %v3581
    %v4373 = vpack.c.b16 %v3596, %v3589
    %v4374 = vpack.c.b16 %v3597, %v3590
    %v4375 = vpack.c.b16 %v3598, %v3591
    %v4376 = vpack.c.b16 %v3599, %v3592
    %v4377 = vpack.c.b16 %v3600, %v3593
    %v4378 = vpack.c.b16 %v3601, %v3594
    %v4379 = vpack.c.b16 %v3602, %v3595
    %v4380 = vpack.c.b16 %v3610, %v3603
    %v4381 = vpack.c.b16 %v3611, %v3604
    %v4382 = vpack.c.b16 %v3612, %v3605
    %v4383 = vpack.c.b16 %v3613, %v3606
    %v4384 = vpack.c.b16 %v3614, %v3607
    %v4385 = vpack.c.b16 %v3615, %v3608
    %v4386 = vpack.c.b16 %v3616, %v3609
    %v4387 = vpack.c.b16 %v3624, %v3617
    %v4388 = vpack.c.b16 %v3625, %v3618
    %v4389 = vpack.c.b16 %v3626, %v3619
    %v4390 = vpack.c.b16 %v3627, %v3620
    %v4391 = vpack.c.b16 %v3628, %v3621
    %v4392 = vpack.c.b16 %v3629, %v3622
    %v4393 = vpack.c.b16 %v3630, %v3623
    %v4394 = vpack.c.b16 %v3638, %v3631
    %v4395 = vpack.c.b16 %v3639, %v3632
    %v4396 = vpack.c.b16 %v3640, %v3633
    %v4397 = vpack.c.b16 %v3641, %v3634
    %v4398 = vpack.c.b16 %v3642, %v3635
    %v4399 = vpack.c.b16 %v3643, %v3636
    %v4400 = vpack.c.b16 %v3644, %v3637
    %v4401 = vpack.c.b16 %v3652, %v3645
    %v4402 = vpack.c.b16 %v3653, %v3646
    %v4403 = vpack.c.b16 %v3654, %v3647
    %v4404 = vpack.c.b16 %v3655, %v3648
    %v4405 = vpack.c.b16 %v3656, %v3649
    %v4406 = vpack.c.b16 %v3657, %v3650
    %v4407 = vpack.c.b16 %v3658, %v3651
    %v4408 = vpack.c.b16 %v3666, %v3659
    %v4409 = vpack.c.b16 %v3667, %v3660
    %v4410 = vpack.c.b16 %v3668, %v3661
    %v4411 = vpack.c.b16 %v3669, %v3662
    %v4412 = vpack.c.b16 %v3670, %v3663
    %v4413 = vpack.c.b16 %v3671, %v3664
    %v4414 = vpack.c.b16 %v3672, %v3665
    %v4415 = vpack.c.b16 %v3680, %v3673
    %v4416 = vpack.c.b16 %v3681, %v3674
    %v4417 = vpack.c.b16 %v3682, %v3675
    %v4418 = vpack.c.b16 %v3683, %v3676
    %v4419 = vpack.c.b16 %v3684, %v3677
    %v4420 = vpack.c.b16 %v3685, %v3678
    %v4421 = vpack.c.b16 %v3686, %v3679
    %v4422 = vpack.c.b16 %v3694, %v3687
    %v4423 = vpack.c.b16 %v3695, %v3688
    %v4424 = vpack.c.b16 %v3696, %v3689
    %v4425 = vpack.c.b16 %v3697, %v3690
    %v4426 = vpack.c.b16 %v3698, %v3691
    %v4427 = vpack.c.b16 %v3699, %v3692
    %v4428 = vpack.c.b16 %v3700, %v3693
    %v4429 = vpack.c.b16 %v3708, %v3701
    %v4430 = vpack.c.b16 %v3709, %v3702
    %v4431 = vpack.c.b16 %v3710, %v3703
    %v4432 = vpack.c.b16 %v3711, %v3704
    %v4433 = vpack.c.b16 %v3712, %v3705
    %v4434 = vpack.c.b16 %v3713, %v3706
    %v4435 = vpack.c.b16 %v3714, %v3707
    %v4436 = vpack.c.b16 %v3722, %v3715
    %v4437 = vpack.c.b16 %v3723, %v3716
    %v4438 = vpack.c.b16 %v3724, %v3717
    %v4439 = vpack.c.b16 %v3725, %v3718
    %v4440 = vpack.c.b16 %v3726, %v3719
    %v4441 = vpack.c.b16 %v3727, %v3720
    %v4442 = vpack.c.b16 %v3728, %v3721
    %v4443 = vpack.c.b16 %v3736, %v3729
    %v4444 = vpack.c.b16 %v3737, %v3730
    %v4445 = vpack.c.b16 %v3738, %v3731
    %v4446 = vpack.c.b16 %v3739, %v3732
    %v4447 = vpack.c.b16 %v3740, %v3733
    %v4448 = vpack.c.b16 %v3741, %v3734
    %v4449 = vpack.c.b16 %v3742, %v3735
    %v4450 = vpack.c.b16 %v3750, %v3743
    %v4451 = vpack.c.b16 %v3751, %v3744
    %v4452 = vpack.c.b16 %v3752, %v3745
    %v4453 = vpack.c.b16 %v3753, %v3746
    %v4454 = vpack.c.b16 %v3754, %v3747
    %v4455 = vpack.c.b16 %v3755, %v3748
    %v4456 = vpack.c.b16 %v3756, %v3749
    %v4457 = vpack.c.b16 %v3764, %v3757
    %v4458 = vpack.c.b16 %v3765, %v3758
    %v4459 = vpack.c.b16 %v3766, %v3759
    %v4460 = vpack.c.b16 %v3767, %v3760
    %v4461 = vpack.c.b16 %v3768, %v3761
    %v4462 = vpack.c.b16 %v3769, %v3762
    %v4463 = vpack.c.b16 %v3770, %v3763
    %v4464 = vpack.c.b16 %v3778, %v3771
    %v4465 = vpack.c.b16 %v3779, %v3772
    %v4466 = vpack.c.b16 %v3780, %v3773
    %v4467 = vpack.c.b16 %v3781, %v3774
    %v4468 = vpack.c.b16 %v3782, %v3775
    %v4469 = vpack.c.b16 %v3783, %v3776
    %v4470 = vpack.c.b16 %v3784, %v3777
    %v4471 = vpack.c.b16 %v3792, %v3785
    %v4472 = vpack.c.b16 %v3793, %v3786
    %v4473 = vpack.c.b16 %v3794, %v3787
    %v4474 = vpack.c.b16 %v3795, %v3788
    %v4475 = vpack.c.b16 %v3796, %v3789
    %v4476 = vpack.c.b16 %v3797, %v3790
    %v4477 = vpack.c.b16 %v3798, %v3791
    %v4478 = vpack.c.b16 %v3806, %v3799
    %v4479 = vpack.c.b16 %v3807, %v3800
    %v4480 = vpack.c.b16 %v3808, %v3801
    %v4481 = vpack.c.b16 %v3809, %v3802
    %v4482 = vpack.c.b16 %v3810, %v3803
    %v4483 = vpack.c.b16 %v3811, %v3804
    %v4484 = vpack.c.b16 %v3812, %v3805
    %v4485 = vpack.c.b16 %v3820, %v3813
    %v4486 = vpack.c.b16 %v3821, %v3814
    %v4487 = vpack.c.b16 %v3822, %v3815
    %v4488 = vpack.c.b16 %v3823, %v3816
    %v4489 = vpack.c.b16 %v3824, %v3817
    %v4490 = vpack.c.b16 %v3825, %v3818
    %v4491 = vpack.c.b16 %v3826, %v3819
    %v4492 = vpack.c.b16 %v3834, %v3827
    %v4493 = vpack.c.b16 %v3835, %v3828
    %v4494 = vpack.c.b16 %v3836, %v3829
    %v4495 = vpack.c.b16 %v3837, %v3830
    %v4496 = vpack.c.b16 %v3838, %v3831
    %v4497 = vpack.c.b16 %v3839, %v3832
    %v4498 = vpack.c.b16 %v3840, %v3833
    %v4499 = vpack.c.b16 %v3848, %v3841
    %v4500 = vpack.c.b16 %v3849, %v3842
    %v4501 = vpack.c.b16 %v3850, %v3843
    %v4502 = vpack.c.b16 %v3851, %v3844
    %v4503 = vpack.c.b16 %v3852, %v3845
    %v4504 = vpack.c.b16 %v3853, %v3846
    %v4505 = vpack.c.b16 %v3854, %v3847
    %v4506 = vpack.c.b16 %v3862, %v3855
    %v4507 = vpack.c.b16 %v3863, %v3856
    %v4508 = vpack.c.b16 %v3864, %v3857
    %v4509 = vpack.c.b16 %v3865, %v3858
    %v4510 = vpack.c.b16 %v3866, %v3859
    %v4511 = vpack.c.b16 %v3867, %v3860
    %v4512 = vpack.c.b16 %v3868, %v3861
    %v4513 = vpack.c.b16 %v3876, %v3869
    %v4514 = vpack.c.b16 %v3877, %v3870
    %v4515 = vpack.c.b16 %v3878, %v3871
    %v4516 = vpack.c.b16 %v3879, %v3872
    %v4517 = vpack.c.b16 %v3880, %v3873
    %v4518 = vpack.c.b16 %v3881, %v3874
    %v4519 = vpack.c.b16 %v3882, %v3875
    %v4520 = vpack.c.b16 %v3890, %v3883
    %v4521 = vpack.c.b16 %v3891, %v3884
    %v4522 = vpack.c.b16 %v3892, %v3885
    %v4523 = vpack.c.b16 %v3893, %v3886
    %v4524 = vpack.c.b16 %v3894, %v3887
    %v4525 = vpack.c.b16 %v3895, %v3888
    %v4526 = vpack.c.b16 %v3896, %v3889
    %v4527 = vpack.c.b16 %v3904, %v3897
    %v4528 = vpack.c.b16 %v3905, %v3898
    %v4529 = vpack.c.b16 %v3906, %v3899
    %v4530 = vpack.c.b16 %v3907, %v3900
    %v4531 = vpack.c.b16 %v3908, %v3901
    %v4532 = vpack.c.b16 %v3909, %v3902
    %v4533 = vpack.c.b16 %v3910, %v3903
    %v4534 = vpack.c.b16 %v3918, %v3911
    %v4535 = vpack.c.b16 %v3919, %v3912
    %v4536 = vpack.c.b16 %v3920, %v3913
    %v4537 = vpack.c.b16 %v3921, %v3914
    %v4538 = vpack.c.b16 %v3922, %v3915
    %v4539 = vpack.c.b16 %v3923, %v3916
    %v4540 = vpack.c.b16 %v3924, %v3917
    %v4541 = vpack.c.b16 %v3932, %v3925
    %v4542 = vpack.c.b16 %v3933, %v3926
    %v4543 = vpack.c.b16 %v3934, %v3927
    %v4544 = vpack.c.b16 %v3935, %v3928
    %v4545 = vpack.c.b16 %v3936, %v3929
    %v4546 = vpack.c.b16 %v3937, %v3930
    %v4547 = vpack.c.b16 %v3938, %v3931
    %v4548 = vpack.c.b16 %v3946, %v3939
    %v4549 = vpack.c.b16 %v3947, %v3940
    %v4550 = vpack.c.b16 %v3948, %v3941
    %v4551 = vpack.c.b16 %v3949, %v3942
    %v4552 = vpack.c.b16 %v3950, %v3943
    %v4553 = vpack.c.b16 %v3951, %v3944
    %v4554 = vpack.c.b16 %v3952, %v3945
    %v4555 = vpack.c.b16 %v3960, %v3953
    %v4556 = vpack.c.b16 %v3961, %v3954
    %v4557 = vpack.c.b16 %v3962, %v3955
    %v4558 = vpack.c.b16 %v3963, %v3956
    %v4559 = vpack.c.b16 %v3964, %v3957
    %v4560 = vpack.c.b16 %v3965, %v3958
    %v4561 = vpack.c.b16 %v3966, %v3959
    %v4562 = vpack.c.b16 %v3974, %v3967
    %v4563 = vpack.c.b16 %v3975, %v3968
    %v4564 = vpack.c.b16 %v3976, %v3969
    %v4565 = vpack.c.b16 %v3977, %v3970
    %v4566 = vpack.c.b16 %v3978, %v3971
    %v4567 = vpack.c.b16 %v3979, %v3972
    %v4568 = vpack.c.b16 %v3980, %v3973
    %v4569 = vpack.c.b16 %v3988, %v3981
    %v4570 = vpack.c.b16 %v3989, %v3982
    %v4571 = vpack.c.b16 %v3990, %v3983
    %v4572 = vpack.c.b16 %v3991, %v3984
    %v4573 = vpack.c.b16 %v3992, %v3985
    %v4574 = vpack.c.b16 %v3993, %v3986
    %v4575 = vpack.c.b16 %v3994, %v3987
    %v4576 = vpack.c.b16 %v4002, %v3995
    %v4577 = vpack.c.b16 %v4003, %v3996
    %v4578 = vpack.c.b16 %v4004, %v3997
    %v4579 = vpack.c.b16 %v4005, %v3998
    %v4580 = vpack.c.b16 %v4006, %v3999
    %v4581 = vpack.c.b16 %v4007, %v4000
    %v4582 = vpack.c.b16 %v4008, %v4001
    %v4583 = vpack.c.b16 %v4016, %v4009
    %v4584 = vpack.c.b16 %v4017, %v4010
    %v4585 = vpack.c.b16 %v4018, %v4011
    %v4586 = vpack.c.b16 %v4019, %v4012
    %v4587 = vpack.c.b16 %v4020, %v4013
    %v4588 = vpack.c.b16 %v4021, %v4014
    %v4589 = vpack.c.b16 %v4022, %v4015
    %v4590 = vpack.c.b16 %v4030, %v4023
    %v4591 = vpack.c.b16 %v4031, %v4024
    %v4592 = vpack.c.b16 %v4032, %v4025
    %v4593 = vpack.c.b16 %v4033, %v4026
    %v4594 = vpack.c.b16 %v4034, %v4027
    %v4595 = vpack.c.b16 %v4035, %v4028
    %v4596 = vpack.c.b16 %v4036, %v4029
    %v4597 = vpack.c.b16 %v4044, %v4037
    %v4598 = vpack.c.b16 %v4045, %v4038
    %v4599 = vpack.c.b16 %v4046, %v4039
    %v4600 = vpack.c.b16 %v4047, %v4040
    %v4601 = vpack.c.b16 %v4048, %v4041
    %v4602 = vpack.c.b16 %v4049, %v4042
    %v4603 = vpack.c.b16 %v4050, %v4043
    %v4604 = vpack.c.b16 %v4058, %v4051
    %v4605 = vpack.c.b16 %v4059, %v4052
    %v4606 = vpack.c.b16 %v4060, %v4053
    %v4607 = vpack.c.b16 %v4061, %v4054
    %v4608 = vpack.c.b16 %v4062, %v4055
    %v4609 = vpack.c.b16 %v4063, %v4056
    %v4610 = vpack.c.b16 %v4064, %v4057
    %v4611 = vpack.c.b16 %v4072, %v4065
    %v4612 = vpack.c.b16 %v4073, %v4066
    %v4613 = vpack.c.b16 %v4074, %v4067
    %v4614 = vpack.c.b16 %v4075, %v4068
    %v4615 = vpack.c.b16 %v4076, %v4069
    %v4616 = vpack.c.b16 %v4077, %v4070
    %v4617 = vpack.c.b16 %v4078, %v4071
    %v4618 = vpack.c.b16 %v4086, %v4079
    %v4619 = vpack.c.b16 %v4087, %v4080
    %v4620 = vpack.c.b16 %v4088, %v4081
    %v4621 = vpack.c.b16 %v4089, %v4082
    %v4622 = vpack.c.b16 %v4090, %v4083
    %v4623 = vpack.c.b16 %v4091, %v4084
    %v4624 = vpack.c.b16 %v4092, %v4085
    %v4625 = vpack.c.b16 %v4100, %v4093
    %v4626 = vpack.c.b16 %v4101, %v4094
    %v4627 = vpack.c.b16 %v4102, %v4095
    %v4628 = vpack.c.b16 %v4103, %v4096
    %v4629 = vpack.c.b16 %v4104, %v4097
    %v4630 = vpack.c.b16 %v4105, %v4098
    %v4631 = vpack.c.b16 %v4106, %v4099
    %v4632 = vpack.c.b16 %v4114, %v4107
    %v4633 = vpack.c.b16 %v4115, %v4108
    %v4634 = vpack.c.b16 %v4116, %v4109
    %v4635 = vpack.c.b16 %v4117, %v4110
    %v4636 = vpack.c.b16 %v4118, %v4111
    %v4637 = vpack.c.b16 %v4119, %v4112
    %v4638 = vpack.c.b16 %v4120, %v4113
    %v4639 = vpack.c.b16 %v4128, %v4121
    %v4640 = vpack.c.b16 %v4129, %v4122
    %v4641 = vpack.c.b16 %v4130, %v4123
    %v4642 = vpack.c.b16 %v4131, %v4124
    %v4643 = vpack.c.b16 %v4132, %v4125
    %v4644 = vpack.c.b16 %v4133, %v4126
    %v4645 = vpack.c.b16 %v4134, %v4127
    %v4646 = vpack.c.b16 %v4142, %v4135
    %v4647 = vpack.c.b16 %v4143, %v4136
    %v4648 = vpack.c.b16 %v4144, %v4137
    %v4649 = vpack.c.b16 %v4145, %v4138
    %v4650 = vpack.c.b16 %v4146, %v4139
    %v4651 = vpack.c.b16 %v4147, %v4140
    %v4652 = vpack.c.b16 %v4148, %v4141
    %v4653 = vpack.c.b16 %v4156, %v4149
    %v4654 = vpack.c.b16 %v4157, %v4150
    %v4655 = vpack.c.b16 %v4158, %v4151
    %v4656 = vpack.c.b16 %v4159, %v4152
    %v4657 = vpack.c.b16 %v4160, %v4153
    %v4658 = vpack.c.b16 %v4161, %v4154
    %v4659 = vpack.c.b16 %v4162, %v4155
    %v4660 = vpack.c.b16 %v4170, %v4163
    %v4661 = vpack.c.b16 %v4171, %v4164
    %v4662 = vpack.c.b16 %v4172, %v4165
    %v4663 = vpack.c.b16 %v4173, %v4166
    %v4664 = vpack.c.b16 %v4174, %v4167
    %v4665 = vpack.c.b16 %v4175, %v4168
    %v4666 = vpack.c.b16 %v4176, %v4169
    %v4667 = vpack.c.b16 %v4184, %v4177
    %v4668 = vpack.c.b16 %v4185, %v4178
    %v4669 = vpack.c.b16 %v4186, %v4179
    %v4670 = vpack.c.b16 %v4187, %v4180
    %v4671 = vpack.c.b16 %v4188, %v4181
    %v4672 = vpack.c.b16 %v4189, %v4182
    %v4673 = vpack.c.b16 %v4190, %v4183
    %v4674 = vpack.c.b16 %v4198, %v4191
    %v4675 = vpack.c.b16 %v4199, %v4192
    %v4676 = vpack.c.b16 %v4200, %v4193
    %v4677 = vpack.c.b16 %v4201, %v4194
    %v4678 = vpack.c.b16 %v4202, %v4195
    %v4679 = vpack.c.b16 %v4203, %v4196
    %v4680 = vpack.c.b16 %v4204, %v4197
    %v4681 = vpack.c.b16 %v4212, %v4205
    %v4682 = vpack.c.b16 %v4213, %v4206
    %v4683 = vpack.c.b16 %v4214, %v4207
    %v4684 = vpack.c.b16 %v4215, %v4208
    %v4685 = vpack.c.b16 %v4216, %v4209
    %v4686 = vpack.c.b16 %v4217, %v4210
    %v4687 = vpack.c.b16 %v4218, %v4211
    %v4688 = vpack.c.b16 %v4226, %v4219
    %v4689 = vpack.c.b16 %v4227, %v4220
    %v4690 = vpack.c.b16 %v4228, %v4221
    %v4691 = vpack.c.b16 %v4229, %v4222
    %v4692 = vpack.c.b16 %v4230, %v4223
    %v4693 = vpack.c.b16 %v4231, %v4224
    %v4694 = vpack.c.b16 %v4232, %v4225
    %v4695 = vpack.c.b16 %v4240, %v4233
    %v4696 = vpack.c.b16 %v4241, %v4234
    %v4697 = vpack.c.b16 %v4242, %v4235
    %v4698 = vpack.c.b16 %v4243, %v4236
    %v4699 = vpack.c.b16 %v4244, %v4237
    %v4700 = vpack.c.b16 %v4245, %v4238
    %v4701 = vpack.c.b16 %v4246, %v4239
    %v4702 = vpack.c.b16 %v4254, %v4247
    %v4703 = vpack.c.b16 %v4255, %v4248
    %v4704 = vpack.c.b16 %v4256, %v4249
    %v4705 = vpack.c.b16 %v4257, %v4250
    %v4706 = vpack.c.b16 %v4258, %v4251
    %v4707 = vpack.c.b16 %v4259, %v4252
    %v4708 = vpack.c.b16 %v4260, %v4253
    %5157 = vmatprep.subr.bf16.mxu0 %v4311
    %5158 = vmatpush1.bf16.msra.mxu0 %v4310
    %5159 = vmatprep.subr.bf16.mxu0 %v4304
    %5160 = vmatpush1.bf16.msra.mxu0 %v4303
    %5161 = vmatprep.subr.bf16.mxu0 %v4297
    %5162 = vmatpush1.bf16.msra.mxu0 %v4296
    %5163 = vmatprep.subr.bf16.mxu0 %v4290
    %5164 = vmatpush1.bf16.msra.mxu0 %v4289
    %5165 = vmatprep.subr.bf16.mxu0 %v4283
    %5166 = vmatpush1.bf16.msra.mxu0 %v4282
    %5167 = vmatprep.subr.bf16.mxu0 %v4276
    %5168 = vmatpush1.bf16.msra.mxu0 %v4275
    %5169 = vmatprep.subr.bf16.mxu0 %v4269
    %5170 = vmatpush1.bf16.msra.mxu0 %v4268
    %5171 = vmatprep.subr.bf16.mxu0 %v4262
    %5172 = vmatpush1.bf16.msra.mxu0 %v4261
    %5173 = vmatprep.subr.bf16.mxu0 %v4367
    %5174 = vmatpush2.bf16.msra.mxu0 %v4366
    %5175 = vmatprep.subr.bf16.mxu0 %v4360
    %5176 = vmatpush2.bf16.msra.mxu0 %v4359
    %5177 = vmatprep.subr.bf16.mxu0 %v4353
    %5178 = vmatpush2.bf16.msra.mxu0 %v4352
    %5179 = vmatprep.subr.bf16.mxu0 %v4346
    %5180 = vmatpush2.bf16.msra.mxu0 %v4345
    %5181 = vmatprep.subr.bf16.mxu0 %v4339
    %5182 = vmatpush2.bf16.msra.mxu0 %v4338
    %5183 = vmatprep.subr.bf16.mxu0 %v4332
    %5184 = vmatpush2.bf16.msra.mxu0 %v4331
    %5185 = vmatprep.subr.bf16.mxu0 %v4325
    %5186 = vmatpush2.bf16.msra.mxu0 %v4324
    %5187 = vmatprep.subr.bf16.mxu0 %v4318
    %5188 = vmatpush2.bf16.msra.mxu0 %v4317
    %5189 = vmatprep.mubr.bf16.mxu0 %v2298
    %5190 = vmatmul.mubr.bf16.gmra.mxu0 %v2297
    %v5191 = vpop.f32.mrf.mxu0
    %v5192 = vadd.f32 %v2821, %v5191
    %v5193 = vpop.f32.mrf.mxu0
    %v5194 = vadd.f32 %v2825, %v5193
    %v5195 = vpop.f32.mrf.mxu0
    %v5196 = vpop.f32.mrf.mxu0
    %5197 = vdwg.mxu0
    %5198 = vmatprep.subr.bf16.mxu0 %v4423
    %5199 = vmatpush1.bf16.msra.mxu0 %v4422
    %5200 = vmatprep.subr.bf16.mxu0 %v4416
    %5201 = vmatpush1.bf16.msra.mxu0 %v4415
    %5202 = vmatprep.subr.bf16.mxu0 %v4409
    %5203 = vmatpush1.bf16.msra.mxu0 %v4408
    %5204 = vmatprep.subr.bf16.mxu0 %v4402
    %5205 = vmatpush1.bf16.msra.mxu0 %v4401
    %5206 = vmatprep.subr.bf16.mxu0 %v4395
    %5207 = vmatpush1.bf16.msra.mxu0 %v4394
    %5208 = vmatprep.subr.bf16.mxu0 %v4388
    %5209 = vmatpush1.bf16.msra.mxu0 %v4387
    %5210 = vmatprep.subr.bf16.mxu0 %v4381
    %5211 = vmatpush1.bf16.msra.mxu0 %v4380
    %5212 = vmatprep.subr.bf16.mxu0 %v4374
    %5213 = vmatpush1.bf16.msra.mxu0 %v4373
    %5214 = vmatprep.subr.bf16.mxu0 %v4479
    %5215 = vmatpush2.bf16.msra.mxu0 %v4478
    %5216 = vmatprep.subr.bf16.mxu0 %v4472
    %5217 = vmatpush2.bf16.msra.mxu0 %v4471
    %5218 = vmatprep.subr.bf16.mxu0 %v4465
    %5219 = vmatpush2.bf16.msra.mxu0 %v4464
    %5220 = vmatprep.subr.bf16.mxu0 %v4458
    %5221 = vmatpush2.bf16.msra.mxu0 %v4457
    %5222 = vmatprep.subr.bf16.mxu0 %v4451
    %5223 = vmatpush2.bf16.msra.mxu0 %v4450
    %5224 = vmatprep.subr.bf16.mxu0 %v4444
    %5225 = vmatpush2.bf16.msra.mxu0 %v4443
    %5226 = vmatprep.subr.bf16.mxu0 %v4437
    %5227 = vmatpush2.bf16.msra.mxu0 %v4436
    %5228 = vmatprep.subr.bf16.mxu0 %v4430
    %5229 = vmatpush2.bf16.msra.mxu0 %v4429
    %5230 = vmatprep.mubr.bf16.mxu0 %v2300
    %5231 = vmatmul.mubr.bf16.gmra.mxu0 %v2299
    %v5232 = vpop.f32.mrf.mxu0
    %v5233 = vadd.f32 %v5192, %v5232
    %v5234 = vpop.f32.mrf.mxu0
    %v5235 = vadd.f32 %v5194, %v5234
    %v5236 = vpop.f32.mrf.mxu0
    %v5237 = vpop.f32.mrf.mxu0
    %5238 = vdwg.mxu0
    %5239 = vmatprep.subr.bf16.mxu0 %v4535
    %5240 = vmatpush1.bf16.msra.mxu0 %v4534
    %5241 = vmatprep.subr.bf16.mxu0 %v4528
    %5242 = vmatpush1.bf16.msra.mxu0 %v4527
    %5243 = vmatprep.subr.bf16.mxu0 %v4521
    %5244 = vmatpush1.bf16.msra.mxu0 %v4520
    %5245 = vmatprep.subr.bf16.mxu0 %v4514
    %5246 = vmatpush1.bf16.msra.mxu0 %v4513
    %5247 = vmatprep.subr.bf16.mxu0 %v4507
    %5248 = vmatpush1.bf16.msra.mxu0 %v4506
    %5249 = vmatprep.subr.bf16.mxu0 %v4500
    %5250 = vmatpush1.bf16.msra.mxu0 %v4499
    %5251 = vmatprep.subr.bf16.mxu0 %v4493
    %5252 = vmatpush1.bf16.msra.mxu0 %v4492
    %5253 = vmatprep.subr.bf16.mxu0 %v4486
    %5254 = vmatpush1.bf16.msra.mxu0 %v4485
    %5255 = vmatprep.subr.bf16.mxu0 %v4591
    %5256 = vmatpush2.bf16.msra.mxu0 %v4590
    %5257 = vmatprep.subr.bf16.mxu0 %v4584
    %5258 = vmatpush2.bf16.msra.mxu0 %v4583
    %5259 = vmatprep.subr.bf16.mxu0 %v4577
    %5260 = vmatpush2.bf16.msra.mxu0 %v4576
    %5261 = vmatprep.subr.bf16.mxu0 %v4570
    %5262 = vmatpush2.bf16.msra.mxu0 %v4569
    %5263 = vmatprep.subr.bf16.mxu0 %v4563
    %5264 = vmatpush2.bf16.msra.mxu0 %v4562
    %5265 = vmatprep.subr.bf16.mxu0 %v4556
    %5266 = vmatpush2.bf16.msra.mxu0 %v4555
    %5267 = vmatprep.subr.bf16.mxu0 %v4549
    %5268 = vmatpush2.bf16.msra.mxu0 %v4548
    %5269 = vmatprep.subr.bf16.mxu0 %v4542
    %5270 = vmatpush2.bf16.msra.mxu0 %v4541
    %5271 = vmatprep.mubr.bf16.mxu0 %v2302
    %5272 = vmatmul.mubr.bf16.gmra.mxu0 %v2301
    %v5273 = vpop.f32.mrf.mxu0
    %v5274 = vadd.f32 %v5233, %v5273
    %v5275 = vpop.f32.mrf.mxu0
    %v5276 = vadd.f32 %v5235, %v5275
    %v5277 = vpop.f32.mrf.mxu0
    %v5278 = vpop.f32.mrf.mxu0
    %5279 = vdwg.mxu0
    %5280 = vmatprep.subr.bf16.mxu0 %v4647
    %5281 = vmatpush1.bf16.msra.mxu0 %v4646
    %5282 = vmatprep.subr.bf16.mxu0 %v4640
    %5283 = vmatpush1.bf16.msra.mxu0 %v4639
    %5284 = vmatprep.subr.bf16.mxu0 %v4633
    %5285 = vmatpush1.bf16.msra.mxu0 %v4632
    %5286 = vmatprep.subr.bf16.mxu0 %v4626
    %5287 = vmatpush1.bf16.msra.mxu0 %v4625
    %5288 = vmatprep.subr.bf16.mxu0 %v4619
    %5289 = vmatpush1.bf16.msra.mxu0 %v4618
    %5290 = vmatprep.subr.bf16.mxu0 %v4612
    %5291 = vmatpush1.bf16.msra.mxu0 %v4611
    %5292 = vmatprep.subr.bf16.mxu0 %v4605
    %5293 = vmatpush1.bf16.msra.mxu0 %v4604
    %5294 = vmatprep.subr.bf16.mxu0 %v4598
    %5295 = vmatpush1.bf16.msra.mxu0 %v4597
    %5296 = vmatprep.subr.bf16.mxu0 %v4703
    %5297 = vmatpush2.bf16.msra.mxu0 %v4702
    %5298 = vmatprep.subr.bf16.mxu0 %v4696
    %5299 = vmatpush2.bf16.msra.mxu0 %v4695
    %5300 = vmatprep.subr.bf16.mxu0 %v4689
    %5301 = vmatpush2.bf16.msra.mxu0 %v4688
    %5302 = vmatprep.subr.bf16.mxu0 %v4682
    %5303 = vmatpush2.bf16.msra.mxu0 %v4681
    %5304 = vmatprep.subr.bf16.mxu0 %v4675
    %5305 = vmatpush2.bf16.msra.mxu0 %v4674
    %5306 = vmatprep.subr.bf16.mxu0 %v4668
    %5307 = vmatpush2.bf16.msra.mxu0 %v4667
    %5308 = vmatprep.subr.bf16.mxu0 %v4661
    %5309 = vmatpush2.bf16.msra.mxu0 %v4660
    %5310 = vmatprep.subr.bf16.mxu0 %v4654
    %5311 = vmatpush2.bf16.msra.mxu0 %v4653
    %5312 = vmatprep.mubr.bf16.mxu0 %v2304
    %5313 = vmatmul.mubr.bf16.gmra.mxu0 %v2303
    %v5314 = vpop.f32.mrf.mxu0
    %v5315 = vadd.f32 %v5274, %v5314
    %v5316 = vpop.f32.mrf.mxu0
    %v5317 = vadd.f32 %v5276, %v5316
    %v5318 = vpop.f32.mrf.mxu0
    %v5319 = vpop.f32.mrf.mxu0
    %5320 = vdwg.mxu0
    %5321 = vmatprep.subr.bf16.mxu0 %v4313
    %5322 = vmatpush1.bf16.msra.mxu0 %v4312
    %5323 = vmatprep.subr.bf16.mxu0 %v4306
    %5324 = vmatpush1.bf16.msra.mxu0 %v4305
    %5325 = vmatprep.subr.bf16.mxu0 %v4299
    %5326 = vmatpush1.bf16.msra.mxu0 %v4298
    %5327 = vmatprep.subr.bf16.mxu0 %v4292
    %5328 = vmatpush1.bf16.msra.mxu0 %v4291
    %5329 = vmatprep.subr.bf16.mxu0 %v4285
    %5330 = vmatpush1.bf16.msra.mxu0 %v4284
    %5331 = vmatprep.subr.bf16.mxu0 %v4278
    %5332 = vmatpush1.bf16.msra.mxu0 %v4277
    %5333 = vmatprep.subr.bf16.mxu0 %v4271
    %5334 = vmatpush1.bf16.msra.mxu0 %v4270
    %5335 = vmatprep.subr.bf16.mxu0 %v4264
    %5336 = vmatpush1.bf16.msra.mxu0 %v4263
    %5337 = vmatprep.subr.bf16.mxu0 %v4369
    %5338 = vmatpush2.bf16.msra.mxu0 %v4368
    %5339 = vmatprep.subr.bf16.mxu0 %v4362
    %5340 = vmatpush2.bf16.msra.mxu0 %v4361
    %5341 = vmatprep.subr.bf16.mxu0 %v4355
    %5342 = vmatpush2.bf16.msra.mxu0 %v4354
    %5343 = vmatprep.subr.bf16.mxu0 %v4348
    %5344 = vmatpush2.bf16.msra.mxu0 %v4347
    %5345 = vmatprep.subr.bf16.mxu0 %v4341
    %5346 = vmatpush2.bf16.msra.mxu0 %v4340
    %5347 = vmatprep.subr.bf16.mxu0 %v4334
    %5348 = vmatpush2.bf16.msra.mxu0 %v4333
    %5349 = vmatprep.subr.bf16.mxu0 %v4327
    %5350 = vmatpush2.bf16.msra.mxu0 %v4326
    %5351 = vmatprep.subr.bf16.mxu0 %v4320
    %5352 = vmatpush2.bf16.msra.mxu0 %v4319
    %5353 = vmatprep.mubr.bf16.mxu0 %v2298
    %5354 = vmatmul.mubr.bf16.gmra.mxu0 %v2297
    %v5355 = vpop.f32.mrf.mxu0
    %v5356 = vadd.f32 %v2829, %v5355
    %v5357 = vpop.f32.mrf.mxu0
    %v5358 = vadd.f32 %v2833, %v5357
    %v5359 = vpop.f32.mrf.mxu0
    %v5360 = vpop.f32.mrf.mxu0
    %5361 = vdwg.mxu0
    %5362 = vmatprep.subr.bf16.mxu0 %v4425
    %5363 = vmatpush1.bf16.msra.mxu0 %v4424
    %5364 = vmatprep.subr.bf16.mxu0 %v4418
    %5365 = vmatpush1.bf16.msra.mxu0 %v4417
    %5366 = vmatprep.subr.bf16.mxu0 %v4411
    %5367 = vmatpush1.bf16.msra.mxu0 %v4410
    %5368 = vmatprep.subr.bf16.mxu0 %v4404
    %5369 = vmatpush1.bf16.msra.mxu0 %v4403
    %5370 = vmatprep.subr.bf16.mxu0 %v4397
    %5371 = vmatpush1.bf16.msra.mxu0 %v4396
    %5372 = vmatprep.subr.bf16.mxu0 %v4390
    %5373 = vmatpush1.bf16.msra.mxu0 %v4389
    %5374 = vmatprep.subr.bf16.mxu0 %v4383
    %5375 = vmatpush1.bf16.msra.mxu0 %v4382
    %5376 = vmatprep.subr.bf16.mxu0 %v4376
    %5377 = vmatpush1.bf16.msra.mxu0 %v4375
    %5378 = vmatprep.subr.bf16.mxu0 %v4481
    %5379 = vmatpush2.bf16.msra.mxu0 %v4480
    %5380 = vmatprep.subr.bf16.mxu0 %v4474
    %5381 = vmatpush2.bf16.msra.mxu0 %v4473
    %5382 = vmatprep.subr.bf16.mxu0 %v4467
    %5383 = vmatpush2.bf16.msra.mxu0 %v4466
    %5384 = vmatprep.subr.bf16.mxu0 %v4460
    %5385 = vmatpush2.bf16.msra.mxu0 %v4459
    %5386 = vmatprep.subr.bf16.mxu0 %v4453
    %5387 = vmatpush2.bf16.msra.mxu0 %v4452
    %5388 = vmatprep.subr.bf16.mxu0 %v4446
    %5389 = vmatpush2.bf16.msra.mxu0 %v4445
    %5390 = vmatprep.subr.bf16.mxu0 %v4439
    %5391 = vmatpush2.bf16.msra.mxu0 %v4438
    %5392 = vmatprep.subr.bf16.mxu0 %v4432
    %5393 = vmatpush2.bf16.msra.mxu0 %v4431
    %5394 = vmatprep.mubr.bf16.mxu0 %v2300
    %5395 = vmatmul.mubr.bf16.gmra.mxu0 %v2299
    %v5396 = vpop.f32.mrf.mxu0
    %v5397 = vadd.f32 %v5356, %v5396
    %v5398 = vpop.f32.mrf.mxu0
    %v5399 = vadd.f32 %v5358, %v5398
    %v5400 = vpop.f32.mrf.mxu0
    %v5401 = vpop.f32.mrf.mxu0
    %5402 = vdwg.mxu0
    %5403 = vmatprep.subr.bf16.mxu0 %v4537
    %5404 = vmatpush1.bf16.msra.mxu0 %v4536
    %5405 = vmatprep.subr.bf16.mxu0 %v4530
    %5406 = vmatpush1.bf16.msra.mxu0 %v4529
    %5407 = vmatprep.subr.bf16.mxu0 %v4523
    %5408 = vmatpush1.bf16.msra.mxu0 %v4522
    %5409 = vmatprep.subr.bf16.mxu0 %v4516
    %5410 = vmatpush1.bf16.msra.mxu0 %v4515
    %5411 = vmatprep.subr.bf16.mxu0 %v4509
    %5412 = vmatpush1.bf16.msra.mxu0 %v4508
    %5413 = vmatprep.subr.bf16.mxu0 %v4502
    %5414 = vmatpush1.bf16.msra.mxu0 %v4501
    %5415 = vmatprep.subr.bf16.mxu0 %v4495
    %5416 = vmatpush1.bf16.msra.mxu0 %v4494
    %5417 = vmatprep.subr.bf16.mxu0 %v4488
    %5418 = vmatpush1.bf16.msra.mxu0 %v4487
    %5419 = vmatprep.subr.bf16.mxu0 %v4593
    %5420 = vmatpush2.bf16.msra.mxu0 %v4592
    %5421 = vmatprep.subr.bf16.mxu0 %v4586
    %5422 = vmatpush2.bf16.msra.mxu0 %v4585
    %5423 = vmatprep.subr.bf16.mxu0 %v4579
    %5424 = vmatpush2.bf16.msra.mxu0 %v4578
    %5425 = vmatprep.subr.bf16.mxu0 %v4572
    %5426 = vmatpush2.bf16.msra.mxu0 %v4571
    %5427 = vmatprep.subr.bf16.mxu0 %v4565
    %5428 = vmatpush2.bf16.msra.mxu0 %v4564
    %5429 = vmatprep.subr.bf16.mxu0 %v4558
    %5430 = vmatpush2.bf16.msra.mxu0 %v4557
    %5431 = vmatprep.subr.bf16.mxu0 %v4551
    %5432 = vmatpush2.bf16.msra.mxu0 %v4550
    %5433 = vmatprep.subr.bf16.mxu0 %v4544
    %5434 = vmatpush2.bf16.msra.mxu0 %v4543
    %5435 = vmatprep.mubr.bf16.mxu0 %v2302
    %5436 = vmatmul.mubr.bf16.gmra.mxu0 %v2301
    %v5437 = vpop.f32.mrf.mxu0
    %v5438 = vadd.f32 %v5397, %v5437
    %v5439 = vpop.f32.mrf.mxu0
    %v5440 = vadd.f32 %v5399, %v5439
    %v5441 = vpop.f32.mrf.mxu0
    %v5442 = vpop.f32.mrf.mxu0
    %5443 = vdwg.mxu0
    %5444 = vmatprep.subr.bf16.mxu0 %v4649
    %5445 = vmatpush1.bf16.msra.mxu0 %v4648
    %5446 = vmatprep.subr.bf16.mxu0 %v4642
    %5447 = vmatpush1.bf16.msra.mxu0 %v4641
    %5448 = vmatprep.subr.bf16.mxu0 %v4635
    %5449 = vmatpush1.bf16.msra.mxu0 %v4634
    %5450 = vmatprep.subr.bf16.mxu0 %v4628
    %5451 = vmatpush1.bf16.msra.mxu0 %v4627
    %5452 = vmatprep.subr.bf16.mxu0 %v4621
    %5453 = vmatpush1.bf16.msra.mxu0 %v4620
    %5454 = vmatprep.subr.bf16.mxu0 %v4614
    %5455 = vmatpush1.bf16.msra.mxu0 %v4613
    %5456 = vmatprep.subr.bf16.mxu0 %v4607
    %5457 = vmatpush1.bf16.msra.mxu0 %v4606
    %5458 = vmatprep.subr.bf16.mxu0 %v4600
    %5459 = vmatpush1.bf16.msra.mxu0 %v4599
    %5460 = vmatprep.subr.bf16.mxu0 %v4705
    %5461 = vmatpush2.bf16.msra.mxu0 %v4704
    %5462 = vmatprep.subr.bf16.mxu0 %v4698
    %5463 = vmatpush2.bf16.msra.mxu0 %v4697
    %5464 = vmatprep.subr.bf16.mxu0 %v4691
    %5465 = vmatpush2.bf16.msra.mxu0 %v4690
    %5466 = vmatprep.subr.bf16.mxu0 %v4684
    %5467 = vmatpush2.bf16.msra.mxu0 %v4683
    %5468 = vmatprep.subr.bf16.mxu0 %v4677
    %5469 = vmatpush2.bf16.msra.mxu0 %v4676
    %5470 = vmatprep.subr.bf16.mxu0 %v4670
    %5471 = vmatpush2.bf16.msra.mxu0 %v4669
    %5472 = vmatprep.subr.bf16.mxu0 %v4663
    %5473 = vmatpush2.bf16.msra.mxu0 %v4662
    %5474 = vmatprep.subr.bf16.mxu0 %v4656
    %5475 = vmatpush2.bf16.msra.mxu0 %v4655
    %5476 = vmatprep.mubr.bf16.mxu0 %v2304
    %5477 = vmatmul.mubr.bf16.gmra.mxu0 %v2303
    %v5478 = vpop.f32.mrf.mxu0
    %v5479 = vadd.f32 %v5438, %v5478
    %v5480 = vpop.f32.mrf.mxu0
    %v5481 = vadd.f32 %v5440, %v5480
    %v5482 = vpop.f32.mrf.mxu0
    %v5483 = vpop.f32.mrf.mxu0
    %5484 = vdwg.mxu0
    %5485 = vmatprep.subr.bf16.mxu0 %v4315
    %5486 = vmatpush1.bf16.msra.mxu0 %v4314
    %5487 = vmatprep.subr.bf16.mxu0 %v4308
    %5488 = vmatpush1.bf16.msra.mxu0 %v4307
    %5489 = vmatprep.subr.bf16.mxu0 %v4301
    %5490 = vmatpush1.bf16.msra.mxu0 %v4300
    %5491 = vmatprep.subr.bf16.mxu0 %v4294
    %5492 = vmatpush1.bf16.msra.mxu0 %v4293
    %5493 = vmatprep.subr.bf16.mxu0 %v4287
    %5494 = vmatpush1.bf16.msra.mxu0 %v4286
    %5495 = vmatprep.subr.bf16.mxu0 %v4280
    %5496 = vmatpush1.bf16.msra.mxu0 %v4279
    %5497 = vmatprep.subr.bf16.mxu0 %v4273
    %5498 = vmatpush1.bf16.msra.mxu0 %v4272
    %5499 = vmatprep.subr.bf16.mxu0 %v4266
    %5500 = vmatpush1.bf16.msra.mxu0 %v4265
    %5501 = vmatprep.subr.bf16.mxu0 %v4371
    %5502 = vmatpush2.bf16.msra.mxu0 %v4370
    %5503 = vmatprep.subr.bf16.mxu0 %v4364
    %5504 = vmatpush2.bf16.msra.mxu0 %v4363
    %5505 = vmatprep.subr.bf16.mxu0 %v4357
    %5506 = vmatpush2.bf16.msra.mxu0 %v4356
    %5507 = vmatprep.subr.bf16.mxu0 %v4350
    %5508 = vmatpush2.bf16.msra.mxu0 %v4349
    %5509 = vmatprep.subr.bf16.mxu0 %v4343
    %5510 = vmatpush2.bf16.msra.mxu0 %v4342
    %5511 = vmatprep.subr.bf16.mxu0 %v4336
    %5512 = vmatpush2.bf16.msra.mxu0 %v4335
    %5513 = vmatprep.subr.bf16.mxu0 %v4329
    %5514 = vmatpush2.bf16.msra.mxu0 %v4328
    %5515 = vmatprep.subr.bf16.mxu0 %v4322
    %5516 = vmatpush2.bf16.msra.mxu0 %v4321
    %5517 = vmatprep.mubr.bf16.mxu0 %v2298
    %5518 = vmatmul.mubr.bf16.gmra.mxu0 %v2297
    %v5519 = vpop.f32.mrf.mxu0
    %v5520 = vadd.f32 %v2837, %v5519
    %v5521 = vpop.f32.mrf.mxu0
    %v5522 = vadd.f32 %v2841, %v5521
    %v5523 = vpop.f32.mrf.mxu0
    %v5524 = vpop.f32.mrf.mxu0
    %5525 = vdwg.mxu0
    %5526 = vmatprep.subr.bf16.mxu0 %v4427
    %5527 = vmatpush1.bf16.msra.mxu0 %v4426
    %5528 = vmatprep.subr.bf16.mxu0 %v4420
    %5529 = vmatpush1.bf16.msra.mxu0 %v4419
    %5530 = vmatprep.subr.bf16.mxu0 %v4413
    %5531 = vmatpush1.bf16.msra.mxu0 %v4412
    %5532 = vmatprep.subr.bf16.mxu0 %v4406
    %5533 = vmatpush1.bf16.msra.mxu0 %v4405
    %5534 = vmatprep.subr.bf16.mxu0 %v4399
    %5535 = vmatpush1.bf16.msra.mxu0 %v4398
    %5536 = vmatprep.subr.bf16.mxu0 %v4392
    %5537 = vmatpush1.bf16.msra.mxu0 %v4391
    %5538 = vmatprep.subr.bf16.mxu0 %v4385
    %5539 = vmatpush1.bf16.msra.mxu0 %v4384
    %5540 = vmatprep.subr.bf16.mxu0 %v4378
    %5541 = vmatpush1.bf16.msra.mxu0 %v4377
    %5542 = vmatprep.subr.bf16.mxu0 %v4483
    %5543 = vmatpush2.bf16.msra.mxu0 %v4482
    %5544 = vmatprep.subr.bf16.mxu0 %v4476
    %5545 = vmatpush2.bf16.msra.mxu0 %v4475
    %5546 = vmatprep.subr.bf16.mxu0 %v4469
    %5547 = vmatpush2.bf16.msra.mxu0 %v4468
    %5548 = vmatprep.subr.bf16.mxu0 %v4462
    %5549 = vmatpush2.bf16.msra.mxu0 %v4461
    %5550 = vmatprep.subr.bf16.mxu0 %v4455
    %5551 = vmatpush2.bf16.msra.mxu0 %v4454
    %5552 = vmatprep.subr.bf16.mxu0 %v4448
    %5553 = vmatpush2.bf16.msra.mxu0 %v4447
    %5554 = vmatprep.subr.bf16.mxu0 %v4441
    %5555 = vmatpush2.bf16.msra.mxu0 %v4440
    %5556 = vmatprep.subr.bf16.mxu0 %v4434
    %5557 = vmatpush2.bf16.msra.mxu0 %v4433
    %5558 = vmatprep.mubr.bf16.mxu0 %v2300
    %5559 = vmatmul.mubr.bf16.gmra.mxu0 %v2299
    %v5560 = vpop.f32.mrf.mxu0
    %v5561 = vadd.f32 %v5520, %v5560
    %v5562 = vpop.f32.mrf.mxu0
    %v5563 = vadd.f32 %v5522, %v5562
    %v5564 = vpop.f32.mrf.mxu0
    %v5565 = vpop.f32.mrf.mxu0
    %5566 = vdwg.mxu0
    %5567 = vmatprep.subr.bf16.mxu0 %v4539
    %5568 = vmatpush1.bf16.msra.mxu0 %v4538
    %5569 = vmatprep.subr.bf16.mxu0 %v4532
    %5570 = vmatpush1.bf16.msra.mxu0 %v4531
    %5571 = vmatprep.subr.bf16.mxu0 %v4525
    %5572 = vmatpush1.bf16.msra.mxu0 %v4524
    %5573 = vmatprep.subr.bf16.mxu0 %v4518
    %5574 = vmatpush1.bf16.msra.mxu0 %v4517
    %5575 = vmatprep.subr.bf16.mxu0 %v4511
    %5576 = vmatpush1.bf16.msra.mxu0 %v4510
    %5577 = vmatprep.subr.bf16.mxu0 %v4504
    %5578 = vmatpush1.bf16.msra.mxu0 %v4503
    %5579 = vmatprep.subr.bf16.mxu0 %v4497
    %5580 = vmatpush1.bf16.msra.mxu0 %v4496
    %5581 = vmatprep.subr.bf16.mxu0 %v4490
    %5582 = vmatpush1.bf16.msra.mxu0 %v4489
    %5583 = vmatprep.subr.bf16.mxu0 %v4595
    %5584 = vmatpush2.bf16.msra.mxu0 %v4594
    %5585 = vmatprep.subr.bf16.mxu0 %v4588
    %5586 = vmatpush2.bf16.msra.mxu0 %v4587
    %5587 = vmatprep.subr.bf16.mxu0 %v4581
    %5588 = vmatpush2.bf16.msra.mxu0 %v4580
    %5589 = vmatprep.subr.bf16.mxu0 %v4574
    %5590 = vmatpush2.bf16.msra.mxu0 %v4573
    %5591 = vmatprep.subr.bf16.mxu0 %v4567
    %5592 = vmatpush2.bf16.msra.mxu0 %v4566
    %5593 = vmatprep.subr.bf16.mxu0 %v4560
    %5594 = vmatpush2.bf16.msra.mxu0 %v4559
    %5595 = vmatprep.subr.bf16.mxu0 %v4553
    %5596 = vmatpush2.bf16.msra.mxu0 %v4552
    %5597 = vmatprep.subr.bf16.mxu0 %v4546
    %5598 = vmatpush2.bf16.msra.mxu0 %v4545
    %5599 = vmatprep.mubr.bf16.mxu0 %v2302
    %5600 = vmatmul.mubr.bf16.gmra.mxu0 %v2301
    %v5601 = vpop.f32.mrf.mxu0
    %v5602 = vadd.f32 %v5561, %v5601
    %v5603 = vpop.f32.mrf.mxu0
    %v5604 = vadd.f32 %v5563, %v5603
    %v5605 = vpop.f32.mrf.mxu0
    %v5606 = vpop.f32.mrf.mxu0
    %5607 = vdwg.mxu0
    %5608 = vmatprep.subr.bf16.mxu0 %v4651
    %5609 = vmatpush1.bf16.msra.mxu0 %v4650
    %5610 = vmatprep.subr.bf16.mxu0 %v4644
    %5611 = vmatpush1.bf16.msra.mxu0 %v4643
    %5612 = vmatprep.subr.bf16.mxu0 %v4637
    %5613 = vmatpush1.bf16.msra.mxu0 %v4636
    %5614 = vmatprep.subr.bf16.mxu0 %v4630
    %5615 = vmatpush1.bf16.msra.mxu0 %v4629
    %5616 = vmatprep.subr.bf16.mxu0 %v4623
    %5617 = vmatpush1.bf16.msra.mxu0 %v4622
    %5618 = vmatprep.subr.bf16.mxu0 %v4616
    %5619 = vmatpush1.bf16.msra.mxu0 %v4615
    %5620 = vmatprep.subr.bf16.mxu0 %v4609
    %5621 = vmatpush1.bf16.msra.mxu0 %v4608
    %5622 = vmatprep.subr.bf16.mxu0 %v4602
    %5623 = vmatpush1.bf16.msra.mxu0 %v4601
    %5624 = vmatprep.subr.bf16.mxu0 %v4707
    %5625 = vmatpush2.bf16.msra.mxu0 %v4706
    %5626 = vmatprep.subr.bf16.mxu0 %v4700
    %5627 = vmatpush2.bf16.msra.mxu0 %v4699
    %5628 = vmatprep.subr.bf16.mxu0 %v4693
    %5629 = vmatpush2.bf16.msra.mxu0 %v4692
    %5630 = vmatprep.subr.bf16.mxu0 %v4686
    %5631 = vmatpush2.bf16.msra.mxu0 %v4685
    %5632 = vmatprep.subr.bf16.mxu0 %v4679
    %5633 = vmatpush2.bf16.msra.mxu0 %v4678
    %5634 = vmatprep.subr.bf16.mxu0 %v4672
    %5635 = vmatpush2.bf16.msra.mxu0 %v4671
    %5636 = vmatprep.subr.bf16.mxu0 %v4665
    %5637 = vmatpush2.bf16.msra.mxu0 %v4664
    %5638 = vmatprep.subr.bf16.mxu0 %v4658
    %5639 = vmatpush2.bf16.msra.mxu0 %v4657
    %5640 = vmatprep.mubr.bf16.mxu0 %v2304
    %5641 = vmatmul.mubr.bf16.gmra.mxu0 %v2303
    %v5642 = vpop.f32.mrf.mxu0
    %v5643 = vadd.f32 %v5602, %v5642
    %v5644 = vpop.f32.mrf.mxu0
    %v5645 = vadd.f32 %v5604, %v5644
    %v5646 = vpop.f32.mrf.mxu0
    %v5647 = vpop.f32.mrf.mxu0
    %5648 = vdwg.mxu0
    %5649 = vmatprep.subr.bf16.mxu0 0
    %5650 = vmatpush1.bf16.msra.mxu0 %v4316
    %5651 = vmatprep.subr.bf16.mxu0 0
    %5652 = vmatpush1.bf16.msra.mxu0 %v4309
    %5653 = vmatprep.subr.bf16.mxu0 0
    %5654 = vmatpush1.bf16.msra.mxu0 %v4302
    %5655 = vmatprep.subr.bf16.mxu0 0
    %5656 = vmatpush1.bf16.msra.mxu0 %v4295
    %5657 = vmatprep.subr.bf16.mxu0 0
    %5658 = vmatpush1.bf16.msra.mxu0 %v4288
    %5659 = vmatprep.subr.bf16.mxu0 0
    %5660 = vmatpush1.bf16.msra.mxu0 %v4281
    %5661 = vmatprep.subr.bf16.mxu0 0
    %5662 = vmatpush1.bf16.msra.mxu0 %v4274
    %5663 = vmatprep.subr.bf16.mxu0 0
    %5664 = vmatpush1.bf16.msra.mxu0 %v4267
    %5665 = vmatprep.subr.bf16.mxu0 0
    %5666 = vmatpush2.bf16.msra.mxu0 %v4372
    %5667 = vmatprep.subr.bf16.mxu0 0
    %5668 = vmatpush2.bf16.msra.mxu0 %v4365
    %5669 = vmatprep.subr.bf16.mxu0 0
    %5670 = vmatpush2.bf16.msra.mxu0 %v4358
    %5671 = vmatprep.subr.bf16.mxu0 0
    %5672 = vmatpush2.bf16.msra.mxu0 %v4351
    %5673 = vmatprep.subr.bf16.mxu0 0
    %5674 = vmatpush2.bf16.msra.mxu0 %v4344
    %5675 = vmatprep.subr.bf16.mxu0 0
    %5676 = vmatpush2.bf16.msra.mxu0 %v4337
    %5677 = vmatprep.subr.bf16.mxu0 0
    %5678 = vmatpush2.bf16.msra.mxu0 %v4330
    %5679 = vmatprep.subr.bf16.mxu0 0
    %5680 = vmatpush2.bf16.msra.mxu0 %v4323
    %5681 = vmatprep.mubr.bf16.mxu0 %v2298
    %5682 = vmatmul.mubr.bf16.gmra.mxu0 %v2297
    %v5683 = vpop.f32.mrf.mxu0
    %v5684 = vadd.f32 %v2845, %v5683
    %v5685 = vpop.f32.mrf.mxu0
    %v5686 = vpop.f32.mrf.mxu0
    %v5687 = vpop.f32.mrf.mxu0
    %5688 = vdwg.mxu0
    %5689 = vmatprep.subr.bf16.mxu0 0
    %5690 = vmatpush1.bf16.msra.mxu0 %v4428
    %5691 = vmatprep.subr.bf16.mxu0 0
    %5692 = vmatpush1.bf16.msra.mxu0 %v4421
    %5693 = vmatprep.subr.bf16.mxu0 0
    %5694 = vmatpush1.bf16.msra.mxu0 %v4414
    %5695 = vmatprep.subr.bf16.mxu0 0
    %5696 = vmatpush1.bf16.msra.mxu0 %v4407
    %5697 = vmatprep.subr.bf16.mxu0 0
    %5698 = vmatpush1.bf16.msra.mxu0 %v4400
    %5699 = vmatprep.subr.bf16.mxu0 0
    %5700 = vmatpush1.bf16.msra.mxu0 %v4393
    %5701 = vmatprep.subr.bf16.mxu0 0
    %5702 = vmatpush1.bf16.msra.mxu0 %v4386
    %5703 = vmatprep.subr.bf16.mxu0 0
    %5704 = vmatpush1.bf16.msra.mxu0 %v4379
    %5705 = vmatprep.subr.bf16.mxu0 0
    %5706 = vmatpush2.bf16.msra.mxu0 %v4484
    %5707 = vmatprep.subr.bf16.mxu0 0
    %5708 = vmatpush2.bf16.msra.mxu0 %v4477
    %5709 = vmatprep.subr.bf16.mxu0 0
    %5710 = vmatpush2.bf16.msra.mxu0 %v4470
    %5711 = vmatprep.subr.bf16.mxu0 0
    %5712 = vmatpush2.bf16.msra.mxu0 %v4463
    %5713 = vmatprep.subr.bf16.mxu0 0
    %5714 = vmatpush2.bf16.msra.mxu0 %v4456
    %5715 = vmatprep.subr.bf16.mxu0 0
    %5716 = vmatpush2.bf16.msra.mxu0 %v4449
    %5717 = vmatprep.subr.bf16.mxu0 0
    %5718 = vmatpush2.bf16.msra.mxu0 %v4442
    %5719 = vmatprep.subr.bf16.mxu0 0
    %5720 = vmatpush2.bf16.msra.mxu0 %v4435
    %5721 = vmatprep.mubr.bf16.mxu0 %v2300
    %5722 = vmatmul.mubr.bf16.gmra.mxu0 %v2299
    %v5723 = vpop.f32.mrf.mxu0
    %v5724 = vadd.f32 %v5684, %v5723
    %v5725 = vpop.f32.mrf.mxu0
    %v5726 = vpop.f32.mrf.mxu0
    %v5727 = vpop.f32.mrf.mxu0
    %5728 = vdwg.mxu0
    %5729 = vmatprep.subr.bf16.mxu0 0
    %5730 = vmatpush1.bf16.msra.mxu0 %v4540
    %5731 = vmatprep.subr.bf16.mxu0 0
    %5732 = vmatpush1.bf16.msra.mxu0 %v4533
    %5733 = vmatprep.subr.bf16.mxu0 0
    %5734 = vmatpush1.bf16.msra.mxu0 %v4526
    %5735 = vmatprep.subr.bf16.mxu0 0
    %5736 = vmatpush1.bf16.msra.mxu0 %v4519
    %5737 = vmatprep.subr.bf16.mxu0 0
    %5738 = vmatpush1.bf16.msra.mxu0 %v4512
    %5739 = vmatprep.subr.bf16.mxu0 0
    %5740 = vmatpush1.bf16.msra.mxu0 %v4505
    %5741 = vmatprep.subr.bf16.mxu0 0
    %5742 = vmatpush1.bf16.msra.mxu0 %v4498
    %5743 = vmatprep.subr.bf16.mxu0 0
    %5744 = vmatpush1.bf16.msra.mxu0 %v4491
    %5745 = vmatprep.subr.bf16.mxu0 0
    %5746 = vmatpush2.bf16.msra.mxu0 %v4596
    %5747 = vmatprep.subr.bf16.mxu0 0
    %5748 = vmatpush2.bf16.msra.mxu0 %v4589
    %5749 = vmatprep.subr.bf16.mxu0 0
    %5750 = vmatpush2.bf16.msra.mxu0 %v4582
    %5751 = vmatprep.subr.bf16.mxu0 0
    %5752 = vmatpush2.bf16.msra.mxu0 %v4575
    %5753 = vmatprep.subr.bf16.mxu0 0
    %5754 = vmatpush2.bf16.msra.mxu0 %v4568
    %5755 = vmatprep.subr.bf16.mxu0 0
    %5756 = vmatpush2.bf16.msra.mxu0 %v4561
    %5757 = vmatprep.subr.bf16.mxu0 0
    %5758 = vmatpush2.bf16.msra.mxu0 %v4554
    %5759 = vmatprep.subr.bf16.mxu0 0
    %5760 = vmatpush2.bf16.msra.mxu0 %v4547
    %5761 = vmatprep.mubr.bf16.mxu0 %v2302
    %5762 = vmatmul.mubr.bf16.gmra.mxu0 %v2301
    %v5763 = vpop.f32.mrf.mxu0
    %v5764 = vadd.f32 %v5724, %v5763
    %v5765 = vpop.f32.mrf.mxu0
    %v5766 = vpop.f32.mrf.mxu0
    %v5767 = vpop.f32.mrf.mxu0
    %5768 = vdwg.mxu0
    %5769 = vmatprep.subr.bf16.mxu0 0
    %5770 = vmatpush1.bf16.msra.mxu0 %v4652
    %5771 = vmatprep.subr.bf16.mxu0 0
    %5772 = vmatpush1.bf16.msra.mxu0 %v4645
    %5773 = vmatprep.subr.bf16.mxu0 0
    %5774 = vmatpush1.bf16.msra.mxu0 %v4638
    %5775 = vmatprep.subr.bf16.mxu0 0
    %5776 = vmatpush1.bf16.msra.mxu0 %v4631
    %5777 = vmatprep.subr.bf16.mxu0 0
    %5778 = vmatpush1.bf16.msra.mxu0 %v4624
    %5779 = vmatprep.subr.bf16.mxu0 0
    %5780 = vmatpush1.bf16.msra.mxu0 %v4617
    %5781 = vmatprep.subr.bf16.mxu0 0
    %5782 = vmatpush1.bf16.msra.mxu0 %v4610
    %5783 = vmatprep.subr.bf16.mxu0 0
    %5784 = vmatpush1.bf16.msra.mxu0 %v4603
    %5785 = vmatprep.subr.bf16.mxu0 0
    %5786 = vmatpush2.bf16.msra.mxu0 %v4708
    %5787 = vmatprep.subr.bf16.mxu0 0
    %5788 = vmatpush2.bf16.msra.mxu0 %v4701
    %5789 = vmatprep.subr.bf16.mxu0 0
    %5790 = vmatpush2.bf16.msra.mxu0 %v4694
    %5791 = vmatprep.subr.bf16.mxu0 0
    %5792 = vmatpush2.bf16.msra.mxu0 %v4687
    %5793 = vmatprep.subr.bf16.mxu0 0
    %5794 = vmatpush2.bf16.msra.mxu0 %v4680
    %5795 = vmatprep.subr.bf16.mxu0 0
    %5796 = vmatpush2.bf16.msra.mxu0 %v4673
    %5797 = vmatprep.subr.bf16.mxu0 0
    %5798 = vmatpush2.bf16.msra.mxu0 %v4666
    %5799 = vmatprep.subr.bf16.mxu0 0
    %5800 = vmatpush2.bf16.msra.mxu0 %v4659
    %5801 = vmatprep.mubr.bf16.mxu0 %v2304
    %5802 = vmatmul.mubr.bf16.gmra.mxu0 %v2303
    %v5803 = vpop.f32.mrf.mxu0
    %v5804 = vadd.f32 %v5764, %v5803
    %v5805 = vpop.f32.mrf.mxu0
    %v5806 = vpop.f32.mrf.mxu0
    %v5807 = vpop.f32.mrf.mxu0
    %5808 = vdwg.mxu0
    %v5809 = vxor.u32 %v5315, 2147483648
    %v5810 = vxor.u32 %v5317, 2147483648
    %v5811 = vxor.u32 %v5479, 2147483648
    %v5812 = vxor.u32 %v5481, 2147483648
    %v5813 = vxor.u32 %v5643, 2147483648
    %v5814 = vxor.u32 %v5645, 2147483648
    %v5815 = vxor.u32 %v5804, 2147483648
    %v5816 = vmul.f32 %v5809, 1.442695
    %v5817 = vpow.pop %v5816
    %v5818 = vmul.f32 %v5810, 1.442695
    %v5819 = vpow.pop %v5818
    %v5820 = vmul.f32 %v5811, 1.442695
    %v5821 = vpow.pop %v5820
    %v5822 = vmul.f32 %v5812, 1.442695
    %v5823 = vpow.pop %v5822
    %v5824 = vmul.f32 %v5813, 1.442695
    %v5825 = vpow.pop %v5824
    %v5826 = vmul.f32 %v5814, 1.442695
    %v5827 = vpow.pop %v5826
    %v5828 = vmul.f32 %v5815, 1.442695
    %v5829 = vpow.pop %v5828
    %v5830 = vadd.f32 %v5817, 1.0
    %v5831 = vadd.f32 %v5819, 1.0
    %v5832 = vadd.f32 %v5821, 1.0
    %v5833 = vadd.f32 %v5823, 1.0
    %v5834 = vadd.f32 %v5825, 1.0
    %v5835 = vadd.f32 %v5827, 1.0
    %v5836 = vadd.f32 %v5829, 1.0
    %v5837 = vrcp.pop %v5830
    %v5838 = vmul.f32 1.0, %v5837
    %v5839 = vrcp.pop %v5831
    %v5840 = vmul.f32 1.0, %v5839
    %v5841 = vrcp.pop %v5832
    %v5842 = vmul.f32 1.0, %v5841
    %v5843 = vrcp.pop %v5833
    %v5844 = vmul.f32 1.0, %v5843
    %v5845 = vrcp.pop %v5834
    %v5846 = vmul.f32 1.0, %v5845
    %v5847 = vrcp.pop %v5835
    %v5848 = vmul.f32 1.0, %v5847
    %v5849 = vrcp.pop %v5836
    %v5850 = vmul.f32 1.0, %v5849
    %5851 = vst [vmem:[#allocation2] sm:$0xff] %v5838
    %5852 = vst [vmem:[#allocation2 + $0x8] sm:$0xff] %v5840
    %5853 = vst [vmem:[#allocation2 + $0x10] sm:$0xff] %v5842
    %5854 = vst [vmem:[#allocation2 + $0x18] sm:$0xff] %v5844
    %5855 = vst [vmem:[#allocation2 + $0x20] sm:$0xff] %v5846
    %5856 = vst [vmem:[#allocation2 + $0x28] sm:$0xff] %v5848
    %vm5857 = vcmask 130048
    %5858 = vst.msk [vmem:[#allocation2 + $0x30] sm:$0xff] %vm5857, %v5850
    // Predicated region
    $region22: #{tpu_custom_call.1} parent=1 // pred_check
      _
    $region23: #{tpu_custom_call.1} parent=1 // pred_check_branch
      %5860 = sbr.rel (0) target = $region25
    $region24: #{tpu_custom_call.1} parent=1 // pred_region
      %s5862 = ssub.s32 896, 896
      %5863 = vsyncadd [#allocation3], %s5862
      %s5865 = sshll.u32 [#allocation2], 4
      %s5866 = int_to_ptr.vmem [resolvable:$true] %s5865
      %5868 = dma.vmem_to_hbm [thread:$0]  %s5866, 896, %s5, [#allocation3]
    $region25: #{tpu_custom_call.1} parent=1 // pred_fallthru
      _
    // Predicated region
    $region26: #{tpu_custom_call.1} parent=1 // pred_check
      _
    $region27: #{tpu_custom_call.1} parent=1 // pred_check_branch
      %5870 = sbr.rel (0) target = $region29
    $region28: #{tpu_custom_call.1} parent=1 // pred_region
      %5871 = dma.done [#allocation3], 896
    $region29: #{tpu_custom_call.1} parent=1 // pred_fallthru
      _
    %5872 = vsyncpa [#allocation3], 1

// kernel: tpu_custom_call.1
$region0: #{tpu_custom_call.1}
  #allocation0 [shape = 'u32[]', space=smem, size = 0x4, offset = 0x4, fixed_abs, tag = 'smem constant byte address 0x4 - core index']
  #allocation1 [shape = 'u32[144,128]{1,0:T(1,128)}', space=vmem, size = 0x12000, scoped, tag = 'internal scratch']
  %s0 = inlined_call_operand.vmem [shape: f32[8,160], index: 0, kind: input, shape index: {}]
  %s1 = inlined_call_operand.vmem [shape: bf16[160,512], index: 1, kind: input, shape index: {}]
  %s2 = inlined_call_operand.vmem [shape: bf16[512,1024], index: 2, kind: input, shape index: {}]
  %s3 = inlined_call_operand.vmem [shape: bf16[1024,784], index: 3, kind: input, shape index: {}]
  %s4 = inlined_call_operand.vmem [shape: f32[1,2320], index: 4, kind: input, shape index: {}]
  %s5 = inlined_call_operand.hbm [shape: f32[8,784], index: 5, kind: output, shape index: {}]
  %s6 = sld [smem:[#allocation0]]
  $region30: #{tpu_custom_call.1} parent=0
    _
  %s8 = ssub.s32 1, %s6
  %s9 = scalar_select 0, %s8, %s6
  $region1: #{tpu_custom_call.1} parent=0
    #allocation2 [shape = 'u8[28672]{0}', space=vmem, size = 0x7000, scoped, tag = 'output window, operand 0, single buffered']
    #allocation3 [shape = 's32[1]{0}', space=sflag, size = 0x4, scoped, tag = 'scoped memory for tpu_custom_call.1']
    %10 = vsyncpa [#allocation3], 0
    // Predicated region
    $region2: #{tpu_custom_call.1} parent=1 // pred_check
      _
    $region3: #{tpu_custom_call.1} parent=1 // pred_check_branch
      %12 = sbr.rel (0) target = $region5
    $region4: #{tpu_custom_call.1} parent=1 // pred_region
      _
    $region5: #{tpu_custom_call.1} parent=1 // pred_fallthru
      _
    // Predicated region
    $region6: #{tpu_custom_call.1} parent=1 // pred_check
      _
    $region7: #{tpu_custom_call.1} parent=1 // pred_check_branch
      %14 = sbr.rel (0) target = $region9
    $region8: #{tpu_custom_call.1} parent=1 // pred_region
      _
    $region9: #{tpu_custom_call.1} parent=1 // pred_fallthru
      _
    // Predicated region
    $region10: #{tpu_custom_call.1} parent=1 // pred_check
      _
    $region11: #{tpu_custom_call.1} parent=1 // pred_check_branch
      %16 = sbr.rel (0) target = $region13
    $region12: #{tpu_custom_call.1} parent=1 // pred_region
      _
    $region13: #{tpu_custom_call.1} parent=1 // pred_fallthru
      _
    // Predicated region
    $region14: #{tpu_custom_call.1} parent=1 // pred_check
      _
    $region15: #{tpu_custom_call.1} parent=1 // pred_check_branch
      %18 = sbr.rel (0) target = $region17
    $region16: #{tpu_custom_call.1} parent=1 // pred_region
      _
    $region17: #{tpu_custom_call.1} parent=1 // pred_fallthru
      _
    // Predicated region
    $region18: #{tpu_custom_call.1} parent=1 // pred_check
      _
    $region19: #{tpu_custom_call.1} parent=1 // pred_check_branch
      %20 = sbr.rel (0) target = $region21
    $region20: #{tpu_custom_call.1} parent=1 // pred_region
      _
    $region21: #{tpu_custom_call.1} parent=1 // pred_fallthru
      _
    %v22 = vld [vmem:[%s0] sm:$0xff]
    %v23 = vld [vmem:[%s0 + $0x8] sm:$0xff]
    %v24 = vpack.c.bf16 %v22, %v22
    %v25 = vpack.c.bf16 %v23, %v23
    %v26 = vld [vmem:[%s4] sm:$0xf]
    %v27 = vld [vmem:[%s4 + $0x4] sm:$0xff]
    %v28 = vld [vmem:[%s4 + $0xc] sm:$0x7f]
    %v29 = vld [vmem:[%s1] sm:$0xff]
    %v30 = vld [vmem:[%s1 + $0x8] sm:$0xff]
    %v31 = vld [vmem:[%s1 + $0x10] sm:$0xff]
    %v32 = vld [vmem:[%s1 + $0x18] sm:$0xff]
    %v33 = vld [vmem:[%s1 + $0x20] sm:$0xff]
    %v34 = vld [vmem:[%s1 + $0x28] sm:$0xff]
    %v35 = vld [vmem:[%s1 + $0x30] sm:$0xff]
    %v36 = vld [vmem:[%s1 + $0x38] sm:$0xff]
    %v37 = vld [vmem:[%s1 + $0x40] sm:$0xff]
    %v38 = vld [vmem:[%s1 + $0x48] sm:$0xff]
    %v39 = vld [vmem:[%s1 + $0x50] sm:$0xff]
    %v40 = vld [vmem:[%s1 + $0x58] sm:$0xff]
    %v41 = vld [vmem:[%s1 + $0x60] sm:$0xff]
    %v42 = vld [vmem:[%s1 + $0x68] sm:$0xff]
    %v43 = vld [vmem:[%s1 + $0x70] sm:$0xff]
    %v44 = vld [vmem:[%s1 + $0x78] sm:$0xff]
    %v45 = vld [vmem:[%s1 + $0x80] sm:$0xff]
    %v46 = vld [vmem:[%s1 + $0x88] sm:$0xff]
    %v47 = vld [vmem:[%s1 + $0x90] sm:$0xff]
    %v48 = vld [vmem:[%s1 + $0x98] sm:$0xff]
    %v49 = vld [vmem:[%s1 + $0xa0] sm:$0xff]
    %v50 = vld [vmem:[%s1 + $0xa8] sm:$0xff]
    %v51 = vld [vmem:[%s1 + $0xb0] sm:$0xff]
    %v52 = vld [vmem:[%s1 + $0xb8] sm:$0xff]
    %v53 = vld [vmem:[%s1 + $0xc0] sm:$0xff]
    %v54 = vld [vmem:[%s1 + $0xc8] sm:$0xff]
    %v55 = vld [vmem:[%s1 + $0xd0] sm:$0xff]
    %v56 = vld [vmem:[%s1 + $0xd8] sm:$0xff]
    %v57 = vld [vmem:[%s1 + $0xe0] sm:$0xff]
    %v58 = vld [vmem:[%s1 + $0xe8] sm:$0xff]
    %v59 = vld [vmem:[%s1 + $0xf0] sm:$0xff]
    %v60 = vld [vmem:[%s1 + $0xf8] sm:$0xff]
    %v61 = vld [vmem:[%s1 + $0x100] sm:$0xff]
    %v62 = vld [vmem:[%s1 + $0x108] sm:$0xff]
    %v63 = vld [vmem:[%s1 + $0x110] sm:$0xff]
    %v64 = vld [vmem:[%s1 + $0x118] sm:$0xff]
    %v65 = vld [vmem:[%s1 + $0x120] sm:$0xff]
    %v66 = vld [vmem:[%s1 + $0x128] sm:$0xff]
    %v67 = vld [vmem:[%s1 + $0x130] sm:$0xff]
    %v68 = vld [vmem:[%s1 + $0x138] sm:$0xff]
    %v70 = vlaneseq
    %v71 = vshrl.u32 %v70, 7
    %v72 = vsub.s32 0, %v71
    %v73 = vrot.slane %v26, %v72
    %v74 = vlaneseq
    %v75 = vshrl.u32 %v74, 7
    %v76 = vsub.s32 1, %v75
    %v77 = vrot.slane %v26, %v76
    %v78 = vlaneseq
    %v79 = vshrl.u32 %v78, 7
    %v80 = vsub.s32 2, %v79
    %v81 = vrot.slane %v26, %v80
    %v82 = vlaneseq
    %v83 = vshrl.u32 %v82, 7
    %v84 = vsub.s32 3, %v83
    %v85 = vrot.slane %v26, %v84
    %v130 = vunpack.c.l.b16 %v29
    %v131 = vunpack.c.h.b16 %v29
    %v132 = vunpack.c.l.b16 %v30
    %v133 = vunpack.c.h.b16 %v30
    %v134 = vunpack.c.l.b16 %v31
    %v135 = vunpack.c.h.b16 %v31
    %v136 = vunpack.c.l.b16 %v32
    %v137 = vunpack.c.h.b16 %v32
    %v138 = vunpack.c.l.b16 %v33
    %v139 = vunpack.c.h.b16 %v33
    %v140 = vunpack.c.l.b16 %v34
    %v141 = vunpack.c.h.b16 %v34
    %v142 = vunpack.c.l.b16 %v35
    %v143 = vunpack.c.h.b16 %v35
    %v144 = vunpack.c.l.b16 %v36
    %v145 = vunpack.c.h.b16 %v36
    %v146 = vunpack.c.l.b16 %v37
    %v147 = vunpack.c.h.b16 %v37
    %v148 = vunpack.c.l.b16 %v38
    %v149 = vunpack.c.h.b16 %v38
    %v150 = vunpack.c.l.b16 %v39
    %v151 = vunpack.c.h.b16 %v39
    %v152 = vunpack.c.l.b16 %v40
    %v153 = vunpack.c.h.b16 %v40
    %v154 = vunpack.c.l.b16 %v41
    %v155 = vunpack.c.h.b16 %v41
    %v156 = vunpack.c.l.b16 %v42
    %v157 = vunpack.c.h.b16 %v42
    %v158 = vunpack.c.l.b16 %v43
    %v159 = vunpack.c.h.b16 %v43
    %v160 = vunpack.c.l.b16 %v44
    %v161 = vunpack.c.h.b16 %v44
    %v162 = vunpack.c.l.b16 %v45
    %v163 = vunpack.c.h.b16 %v45
    %v164 = vunpack.c.l.b16 %v46
    %v165 = vunpack.c.h.b16 %v46
    %v166 = vunpack.c.l.b16 %v47
    %v167 = vunpack.c.h.b16 %v47
    %v168 = vunpack.c.l.b16 %v48
    %v169 = vunpack.c.h.b16 %v48
    %v170 = vunpack.c.l.b16 %v49
    %v171 = vunpack.c.h.b16 %v49
    %v172 = vunpack.c.l.b16 %v50
    %v173 = vunpack.c.h.b16 %v50
    %v174 = vunpack.c.l.b16 %v51
    %v175 = vunpack.c.h.b16 %v51
    %v176 = vunpack.c.l.b16 %v52
    %v177 = vunpack.c.h.b16 %v52
    %v178 = vunpack.c.l.b16 %v53
    %v179 = vunpack.c.h.b16 %v53
    %v180 = vunpack.c.l.b16 %v54
    %v181 = vunpack.c.h.b16 %v54
    %v182 = vunpack.c.l.b16 %v55
    %v183 = vunpack.c.h.b16 %v55
    %v184 = vunpack.c.l.b16 %v56
    %v185 = vunpack.c.h.b16 %v56
    %v186 = vunpack.c.l.b16 %v57
    %v187 = vunpack.c.h.b16 %v57
    %v188 = vunpack.c.l.b16 %v58
    %v189 = vunpack.c.h.b16 %v58
    %v190 = vunpack.c.l.b16 %v59
    %v191 = vunpack.c.h.b16 %v59
    %v192 = vunpack.c.l.b16 %v60
    %v193 = vunpack.c.h.b16 %v60
    %v194 = vunpack.c.l.b16 %v61
    %v195 = vunpack.c.h.b16 %v61
    %v196 = vunpack.c.l.b16 %v62
    %v197 = vunpack.c.h.b16 %v62
    %v198 = vunpack.c.l.b16 %v63
    %v199 = vunpack.c.h.b16 %v63
    %v200 = vunpack.c.l.b16 %v64
    %v201 = vunpack.c.h.b16 %v64
    %v202 = vunpack.c.l.b16 %v65
    %v203 = vunpack.c.h.b16 %v65
    %v204 = vunpack.c.l.b16 %v66
    %v205 = vunpack.c.h.b16 %v66
    %v206 = vunpack.c.l.b16 %v67
    %v207 = vunpack.c.h.b16 %v67
    %v208 = vunpack.c.l.b16 %v68
    %v209 = vunpack.c.h.b16 %v68
    %v210 = vpack.c.b16 %v134, %v130
    %v211 = vpack.c.b16 %v135, %v131
    %v212 = vpack.c.b16 %v136, %v132
    %v213 = vpack.c.b16 %v137, %v133
    %v214 = vpack.c.b16 %v142, %v138
    %v215 = vpack.c.b16 %v143, %v139
    %v216 = vpack.c.b16 %v144, %v140
    %v217 = vpack.c.b16 %v145, %v141
    %v218 = vpack.c.b16 %v150, %v146
    %v219 = vpack.c.b16 %v151, %v147
    %v220 = vpack.c.b16 %v152, %v148
    %v221 = vpack.c.b16 %v153, %v149
    %v222 = vpack.c.b16 %v158, %v154
    %v223 = vpack.c.b16 %v159, %v155
    %v224 = vpack.c.b16 %v160, %v156
    %v225 = vpack.c.b16 %v161, %v157
    %v226 = vpack.c.b16 %v166, %v162
    %v227 = vpack.c.b16 %v167, %v163
    %v228 = vpack.c.b16 %v168, %v164
    %v229 = vpack.c.b16 %v169, %v165
    %v230 = vpack.c.b16 %v174, %v170
    %v231 = vpack.c.b16 %v175, %v171
    %v232 = vpack.c.b16 %v176, %v172
    %v233 = vpack.c.b16 %v177, %v173
    %v234 = vpack.c.b16 %v182, %v178
    %v235 = vpack.c.b16 %v183, %v179
    %v236 = vpack.c.b16 %v184, %v180
    %v237 = vpack.c.b16 %v185, %v181
    %v238 = vpack.c.b16 %v190, %v186
    %v239 = vpack.c.b16 %v191, %v187
    %v240 = vpack.c.b16 %v192, %v188
    %v241 = vpack.c.b16 %v193, %v189
    %v242 = vpack.c.b16 %v198, %v194
    %v243 = vpack.c.b16 %v199, %v195
    %v244 = vpack.c.b16 %v200, %v196
    %v245 = vpack.c.b16 %v201, %v197
    %v246 = vpack.c.b16 %v206, %v202
    %v247 = vpack.c.b16 %v207, %v203
    %v248 = vpack.c.b16 %v208, %v204
    %v249 = vpack.c.b16 %v209, %v205
    %vm290 = vcmask 261120
    %v292 = vsel %vm290, %v25, 0
    %294 = vmatprep.subr.bf16.mxu0 %v239
    %295 = vmatpush1.bf16.msra.mxu0 %v238
    %296 = vmatprep.subr.bf16.mxu0 %v235
    %297 = vmatpush1.bf16.msra.mxu0 %v234
    %298 = vmatprep.subr.bf16.mxu0 %v231
    %299 = vmatpush1.bf16.msra.mxu0 %v230
    %300 = vmatprep.subr.bf16.mxu0 %v227
    %301 = vmatpush1.bf16.msra.mxu0 %v226
    %302 = vmatprep.subr.bf16.mxu0 %v223
    %303 = vmatpush1.bf16.msra.mxu0 %v222
    %304 = vmatprep.subr.bf16.mxu0 %v219
    %305 = vmatpush1.bf16.msra.mxu0 %v218
    %306 = vmatprep.subr.bf16.mxu0 %v215
    %307 = vmatpush1.bf16.msra.mxu0 %v214
    %308 = vmatprep.subr.bf16.mxu0 %v211
    %309 = vmatpush1.bf16.msra.mxu0 %v210
    %310 = vmatprep.subr.bf16.mxu0 0
    %311 = vmatpush2.bf16.msra.mxu0 0
    %312 = vmatprep.subr.bf16.mxu0 0
    %313 = vmatpush2.bf16.msra.mxu0 0
    %314 = vmatprep.subr.bf16.mxu0 0
    %315 = vmatpush2.bf16.msra.mxu0 0
    %316 = vmatprep.subr.bf16.mxu0 0
    %317 = vmatpush2.bf16.msra.mxu0 0
    %318 = vmatprep.subr.bf16.mxu0 0
    %319 = vmatpush2.bf16.msra.mxu0 0
    %320 = vmatprep.subr.bf16.mxu0 0
    %321 = vmatpush2.bf16.msra.mxu0 0
    %322 = vmatprep.subr.bf16.mxu0 %v247
    %323 = vmatpush2.bf16.msra.mxu0 %v246
    %324 = vmatprep.subr.bf16.mxu0 %v243
    %325 = vmatpush2.bf16.msra.mxu0 %v242
    %326 = vmatprep.mubr.bf16.mxu0 %v292
    %327 = vmatmul.mubr.bf16.gmra.mxu0 %v24
    %v328 = vpop.f32.mrf.mxu0
    %v329 = vadd.f32 %v73, %v328
    %v330 = vpop.f32.mrf.mxu0
    %v331 = vadd.f32 %v77, %v330
    %v332 = vpop.f32.mrf.mxu0
    %v333 = vpop.f32.mrf.mxu0
    %334 = vdwg.mxu0
    %335 = vmatprep.subr.bf16.mxu0 %v241
    %336 = vmatpush1.bf16.msra.mxu0 %v240
    %337 = vmatprep.subr.bf16.mxu0 %v237
    %338 = vmatpush1.bf16.msra.mxu0 %v236
    %339 = vmatprep.subr.bf16.mxu0 %v233
    %340 = vmatpush1.bf16.msra.mxu0 %v232
    %341 = vmatprep.subr.bf16.mxu0 %v229
    %342 = vmatpush1.bf16.msra.mxu0 %v228
    %343 = vmatprep.subr.bf16.mxu0 %v225
    %344 = vmatpush1.bf16.msra.mxu0 %v224
    %345 = vmatprep.subr.bf16.mxu0 %v221
    %346 = vmatpush1.bf16.msra.mxu0 %v220
    %347 = vmatprep.subr.bf16.mxu0 %v217
    %348 = vmatpush1.bf16.msra.mxu0 %v216
    %349 = vmatprep.subr.bf16.mxu0 %v213
    %350 = vmatpush1.bf16.msra.mxu0 %v212
    %351 = vmatprep.subr.bf16.mxu0 0
    %352 = vmatpush2.bf16.msra.mxu0 0
    %353 = vmatprep.subr.bf16.mxu0 0
    %354 = vmatpush2.bf16.msra.mxu0 0
    %355 = vmatprep.subr.bf16.mxu0 0
    %356 = vmatpush2.bf16.msra.mxu0 0
    %357 = vmatprep.subr.bf16.mxu0 0
    %358 = vmatpush2.bf16.msra.mxu0 0
    %359 = vmatprep.subr.bf16.mxu0 0
    %360 = vmatpush2.bf16.msra.mxu0 0
    %361 = vmatprep.subr.bf16.mxu0 0
    %362 = vmatpush2.bf16.msra.mxu0 0
    %363 = vmatprep.subr.bf16.mxu0 %v249
    %364 = vmatpush2.bf16.msra.mxu0 %v248
    %365 = vmatprep.subr.bf16.mxu0 %v245
    %366 = vmatpush2.bf16.msra.mxu0 %v244
    %367 = vmatprep.mubr.bf16.mxu0 %v292
    %368 = vmatmul.mubr.bf16.gmra.mxu0 %v24
    %v369 = vpop.f32.mrf.mxu0
    %v370 = vadd.f32 %v81, %v369
    %v371 = vpop.f32.mrf.mxu0
    %v372 = vadd.f32 %v85, %v371
    %v373 = vpop.f32.mrf.mxu0
    %v374 = vpop.f32.mrf.mxu0
    %375 = vdwg.mxu0
    %v376 = vmax.f32 %v329, 0.0
    %v377 = vmax.f32 %v331, 0.0
    %v378 = vmax.f32 %v370, 0.0
    %v379 = vmax.f32 %v372, 0.0
    %v380 = vpack.c.bf16 %v376, %v376
    %v381 = vpack.c.bf16 %v377, %v377
    %v382 = vpack.c.bf16 %v378, %v378
    %v383 = vpack.c.bf16 %v379, %v379
    %v384 = vld [vmem:[%s2] sm:$0xff]
    %v385 = vld [vmem:[%s2 + $0x8] sm:$0xff]
    %v386 = vld [vmem:[%s2 + $0x10] sm:$0xff]
    %v387 = vld [vmem:[%s2 + $0x18] sm:$0xff]
    %v388 = vld [vmem:[%s2 + $0x20] sm:$0xff]
    %v389 = vld [vmem:[%s2 + $0x28] sm:$0xff]
    %v390 = vld [vmem:[%s2 + $0x30] sm:$0xff]
    %v391 = vld [vmem:[%s2 + $0x38] sm:$0xff]
    %v392 = vld [vmem:[%s2 + $0x40] sm:$0xff]
    %v393 = vld [vmem:[%s2 + $0x48] sm:$0xff]
    %v394 = vld [vmem:[%s2 + $0x50] sm:$0xff]
    %v395 = vld [vmem:[%s2 + $0x58] sm:$0xff]
    %v396 = vld [vmem:[%s2 + $0x60] sm:$0xff]
    %v397 = vld [vmem:[%s2 + $0x68] sm:$0xff]
    %v398 = vld [vmem:[%s2 + $0x70] sm:$0xff]
    %v399 = vld [vmem:[%s2 + $0x78] sm:$0xff]
    %v400 = vld [vmem:[%s2 + $0x80] sm:$0xff]
    %v401 = vld [vmem:[%s2 + $0x88] sm:$0xff]
    %v402 = vld [vmem:[%s2 + $0x90] sm:$0xff]
    %v403 = vld [vmem:[%s2 + $0x98] sm:$0xff]
    %v404 = vld [vmem:[%s2 + $0xa0] sm:$0xff]
    %v405 = vld [vmem:[%s2 + $0xa8] sm:$0xff]
    %v406 = vld [vmem:[%s2 + $0xb0] sm:$0xff]
    %v407 = vld [vmem:[%s2 + $0xb8] sm:$0xff]
    %v408 = vld [vmem:[%s2 + $0xc0] sm:$0xff]
    %v409 = vld [vmem:[%s2 + $0xc8] sm:$0xff]
    %v410 = vld [vmem:[%s2 + $0xd0] sm:$0xff]
    %v411 = vld [vmem:[%s2 + $0xd8] sm:$0xff]
    %v412 = vld [vmem:[%s2 + $0xe0] sm:$0xff]
    %v413 = vld [vmem:[%s2 + $0xe8] sm:$0xff]
    %v414 = vld [vmem:[%s2 + $0xf0] sm:$0xff]
    %v415 = vld [vmem:[%s2 + $0xf8] sm:$0xff]
    %v416 = vld [vmem:[%s2 + $0x100] sm:$0xff]
    %v417 = vld [vmem:[%s2 + $0x108] sm:$0xff]
    %v418 = vld [vmem:[%s2 + $0x110] sm:$0xff]
    %v419 = vld [vmem:[%s2 + $0x118] sm:$0xff]
    %v420 = vld [vmem:[%s2 + $0x120] sm:$0xff]
    %v421 = vld [vmem:[%s2 + $0x128] sm:$0xff]
    %v422 = vld [vmem:[%s2 + $0x130] sm:$0xff]
    %v423 = vld [vmem:[%s2 + $0x138] sm:$0xff]
    %v424 = vld [vmem:[%s2 + $0x140] sm:$0xff]
    %v425 = vld [vmem:[%s2 + $0x148] sm:$0xff]
    %v426 = vld [vmem:[%s2 + $0x150] sm:$0xff]
    %v427 = vld [vmem:[%s2 + $0x158] sm:$0xff]
    %v428 = vld [vmem:[%s2 + $0x160] sm:$0xff]
    %v429 = vld [vmem:[%s2 + $0x168] sm:$0xff]
    %v430 = vld [vmem:[%s2 + $0x170] sm:$0xff]
    %v431 = vld [vmem:[%s2 + $0x178] sm:$0xff]
    %v432 = vld [vmem:[%s2 + $0x180] sm:$0xff]
    %v433 = vld [vmem:[%s2 + $0x188] sm:$0xff]
    %v434 = vld [vmem:[%s2 + $0x190] sm:$0xff]
    %v435 = vld [vmem:[%s2 + $0x198] sm:$0xff]
    %v436 = vld [vmem:[%s2 + $0x1a0] sm:$0xff]
    %v437 = vld [vmem:[%s2 + $0x1a8] sm:$0xff]
    %v438 = vld [vmem:[%s2 + $0x1b0] sm:$0xff]
    %v439 = vld [vmem:[%s2 + $0x1b8] sm:$0xff]
    %v440 = vld [vmem:[%s2 + $0x1c0] sm:$0xff]
    %v441 = vld [vmem:[%s2 + $0x1c8] sm:$0xff]
    %v442 = vld [vmem:[%s2 + $0x1d0] sm:$0xff]
    %v443 = vld [vmem:[%s2 + $0x1d8] sm:$0xff]
    %v444 = vld [vmem:[%s2 + $0x1e0] sm:$0xff]
    %v445 = vld [vmem:[%s2 + $0x1e8] sm:$0xff]
    %v446 = vld [vmem:[%s2 + $0x1f0] sm:$0xff]
    %v447 = vld [vmem:[%s2 + $0x1f8] sm:$0xff]
    %v448 = vld [vmem:[%s2 + $0x200] sm:$0xff]
    %v449 = vld [vmem:[%s2 + $0x208] sm:$0xff]
    %v450 = vld [vmem:[%s2 + $0x210] sm:$0xff]
    %v451 = vld [vmem:[%s2 + $0x218] sm:$0xff]
    %v452 = vld [vmem:[%s2 + $0x220] sm:$0xff]
    %v453 = vld [vmem:[%s2 + $0x228] sm:$0xff]
    %v454 = vld [vmem:[%s2 + $0x230] sm:$0xff]
    %v455 = vld [vmem:[%s2 + $0x238] sm:$0xff]
    %v456 = vld [vmem:[%s2 + $0x240] sm:$0xff]
    %v457 = vld [vmem:[%s2 + $0x248] sm:$0xff]
    %v458 = vld [vmem:[%s2 + $0x250] sm:$0xff]
    %v459 = vld [vmem:[%s2 + $0x258] sm:$0xff]
    %v460 = vld [vmem:[%s2 + $0x260] sm:$0xff]
    %v461 = vld [vmem:[%s2 + $0x268] sm:$0xff]
    %v462 = vld [vmem:[%s2 + $0x270] sm:$0xff]
    %v463 = vld [vmem:[%s2 + $0x278] sm:$0xff]
    %v464 = vld [vmem:[%s2 + $0x280] sm:$0xff]
    %v465 = vld [vmem:[%s2 + $0x288] sm:$0xff]
    %v466 = vld [vmem:[%s2 + $0x290] sm:$0xff]
    %v467 = vld [vmem:[%s2 + $0x298] sm:$0xff]
    %v468 = vld [vmem:[%s2 + $0x2a0] sm:$0xff]
    %v469 = vld [vmem:[%s2 + $0x2a8] sm:$0xff]
    %v470 = vld [vmem:[%s2 + $0x2b0] sm:$0xff]
    %v471 = vld [vmem:[%s2 + $0x2b8] sm:$0xff]
    %v472 = vld [vmem:[%s2 + $0x2c0] sm:$0xff]
    %v473 = vld [vmem:[%s2 + $0x2c8] sm:$0xff]
    %v474 = vld [vmem:[%s2 + $0x2d0] sm:$0xff]
    %v475 = vld [vmem:[%s2 + $0x2d8] sm:$0xff]
    %v476 = vld [vmem:[%s2 + $0x2e0] sm:$0xff]
    %v477 = vld [vmem:[%s2 + $0x2e8] sm:$0xff]
    %v478 = vld [vmem:[%s2 + $0x2f0] sm:$0xff]
    %v479 = vld [vmem:[%s2 + $0x2f8] sm:$0xff]
    %v480 = vld [vmem:[%s2 + $0x300] sm:$0xff]
    %v481 = vld [vmem:[%s2 + $0x308] sm:$0xff]
    %v482 = vld [vmem:[%s2 + $0x310] sm:$0xff]
    %v483 = vld [vmem:[%s2 + $0x318] sm:$0xff]
    %v484 = vld [vmem:[%s2 + $0x320] sm:$0xff]
    %v485 = vld [vmem:[%s2 + $0x328] sm:$0xff]
    %v486 = vld [vmem:[%s2 + $0x330] sm:$0xff]
    %v487 = vld [vmem:[%s2 + $0x338] sm:$0xff]
    %v488 = vld [vmem:[%s2 + $0x340] sm:$0xff]
    %v489 = vld [vmem:[%s2 + $0x348] sm:$0xff]
    %v490 = vld [vmem:[%s2 + $0x350] sm:$0xff]
    %v491 = vld [vmem:[%s2 + $0x358] sm:$0xff]
    %v492 = vld [vmem:[%s2 + $0x360] sm:$0xff]
    %v493 = vld [vmem:[%s2 + $0x368] sm:$0xff]
    %v494 = vld [vmem:[%s2 + $0x370] sm:$0xff]
    %v495 = vld [vmem:[%s2 + $0x378] sm:$0xff]
    %v496 = vld [vmem:[%s2 + $0x380] sm:$0xff]
    %v497 = vld [vmem:[%s2 + $0x388] sm:$0xff]
    %v498 = vld [vmem:[%s2 + $0x390] sm:$0xff]
    %v499 = vld [vmem:[%s2 + $0x398] sm:$0xff]
    %v500 = vld [vmem:[%s2 + $0x3a0] sm:$0xff]
    %v501 = vld [vmem:[%s2 + $0x3a8] sm:$0xff]
    %v502 = vld [vmem:[%s2 + $0x3b0] sm:$0xff]
    %v503 = vld [vmem:[%s2 + $0x3b8] sm:$0xff]
    %v504 = vld [vmem:[%s2 + $0x3c0] sm:$0xff]
    %v505 = vld [vmem:[%s2 + $0x3c8] sm:$0xff]
    %v506 = vld [vmem:[%s2 + $0x3d0] sm:$0xff]
    %v507 = vld [vmem:[%s2 + $0x3d8] sm:$0xff]
    %v508 = vld [vmem:[%s2 + $0x3e0] sm:$0xff]
    %v509 = vld [vmem:[%s2 + $0x3e8] sm:$0xff]
    %v510 = vld [vmem:[%s2 + $0x3f0] sm:$0xff]
    %v511 = vld [vmem:[%s2 + $0x3f8] sm:$0xff]
    %v512 = vld [vmem:[%s2 + $0x400] sm:$0xff]
    %v513 = vld [vmem:[%s2 + $0x408] sm:$0xff]
    %v514 = vld [vmem:[%s2 + $0x410] sm:$0xff]
    %v515 = vld [vmem:[%s2 + $0x418] sm:$0xff]
    %v516 = vld [vmem:[%s2 + $0x420] sm:$0xff]
    %v517 = vld [vmem:[%s2 + $0x428] sm:$0xff]
    %v518 = vld [vmem:[%s2 + $0x430] sm:$0xff]
    %v519 = vld [vmem:[%s2 + $0x438] sm:$0xff]
    %v520 = vld [vmem:[%s2 + $0x440] sm:$0xff]
    %v521 = vld [vmem:[%s2 + $0x448] sm:$0xff]
    %v522 = vld [vmem:[%s2 + $0x450] sm:$0xff]
    %v523 = vld [vmem:[%s2 + $0x458] sm:$0xff]
    %v524 = vld [vmem:[%s2 + $0x460] sm:$0xff]
    %v525 = vld [vmem:[%s2 + $0x468] sm:$0xff]
    %v526 = vld [vmem:[%s2 + $0x470] sm:$0xff]
    %v527 = vld [vmem:[%s2 + $0x478] sm:$0xff]
    %v528 = vld [vmem:[%s2 + $0x480] sm:$0xff]
    %v529 = vld [vmem:[%s2 + $0x488] sm:$0xff]
    %v530 = vld [vmem:[%s2 + $0x490] sm:$0xff]
    %v531 = vld [vmem:[%s2 + $0x498] sm:$0xff]
    %v532 = vld [vmem:[%s2 + $0x4a0] sm:$0xff]
    %v533 = vld [vmem:[%s2 + $0x4a8] sm:$0xff]
    %v534 = vld [vmem:[%s2 + $0x4b0] sm:$0xff]
    %v535 = vld [vmem:[%s2 + $0x4b8] sm:$0xff]
    %v536 = vld [vmem:[%s2 + $0x4c0] sm:$0xff]
    %v537 = vld [vmem:[%s2 + $0x4c8] sm:$0xff]
    %v538 = vld [vmem:[%s2 + $0x4d0] sm:$0xff]
    %v539 = vld [vmem:[%s2 + $0x4d8] sm:$0xff]
    %v540 = vld [vmem:[%s2 + $0x4e0] sm:$0xff]
    %v541 = vld [vmem:[%s2 + $0x4e8] sm:$0xff]
    %v542 = vld [vmem:[%s2 + $0x4f0] sm:$0xff]
    %v543 = vld [vmem:[%s2 + $0x4f8] sm:$0xff]
    %v544 = vld [vmem:[%s2 + $0x500] sm:$0xff]
    %v545 = vld [vmem:[%s2 + $0x508] sm:$0xff]
    %v546 = vld [vmem:[%s2 + $0x510] sm:$0xff]
    %v547 = vld [vmem:[%s2 + $0x518] sm:$0xff]
    %v548 = vld [vmem:[%s2 + $0x520] sm:$0xff]
    %v549 = vld [vmem:[%s2 + $0x528] sm:$0xff]
    %v550 = vld [vmem:[%s2 + $0x530] sm:$0xff]
    %v551 = vld [vmem:[%s2 + $0x538] sm:$0xff]
    %v552 = vld [vmem:[%s2 + $0x540] sm:$0xff]
    %v553 = vld [vmem:[%s2 + $0x548] sm:$0xff]
    %v554 = vld [vmem:[%s2 + $0x550] sm:$0xff]
    %v555 = vld [vmem:[%s2 + $0x558] sm:$0xff]
    %v556 = vld [vmem:[%s2 + $0x560] sm:$0xff]
    %v557 = vld [vmem:[%s2 + $0x568] sm:$0xff]
    %v558 = vld [vmem:[%s2 + $0x570] sm:$0xff]
    %v559 = vld [vmem:[%s2 + $0x578] sm:$0xff]
    %v560 = vld [vmem:[%s2 + $0x580] sm:$0xff]
    %v561 = vld [vmem:[%s2 + $0x588] sm:$0xff]
    %v562 = vld [vmem:[%s2 + $0x590] sm:$0xff]
    %v563 = vld [vmem:[%s2 + $0x598] sm:$0xff]
    %v564 = vld [vmem:[%s2 + $0x5a0] sm:$0xff]
    %v565 = vld [vmem:[%s2 + $0x5a8] sm:$0xff]
    %v566 = vld [vmem:[%s2 + $0x5b0] sm:$0xff]
    %v567 = vld [vmem:[%s2 + $0x5b8] sm:$0xff]
    %v568 = vld [vmem:[%s2 + $0x5c0] sm:$0xff]
    %v569 = vld [vmem:[%s2 + $0x5c8] sm:$0xff]
    %v570 = vld [vmem:[%s2 + $0x5d0] sm:$0xff]
    %v571 = vld [vmem:[%s2 + $0x5d8] sm:$0xff]
    %v572 = vld [vmem:[%s2 + $0x5e0] sm:$0xff]
    %v573 = vld [vmem:[%s2 + $0x5e8] sm:$0xff]
    %v574 = vld [vmem:[%s2 + $0x5f0] sm:$0xff]
    %v575 = vld [vmem:[%s2 + $0x5f8] sm:$0xff]
    %v576 = vld [vmem:[%s2 + $0x600] sm:$0xff]
    %v577 = vld [vmem:[%s2 + $0x608] sm:$0xff]
    %v578 = vld [vmem:[%s2 + $0x610] sm:$0xff]
    %v579 = vld [vmem:[%s2 + $0x618] sm:$0xff]
    %v580 = vld [vmem:[%s2 + $0x620] sm:$0xff]
    %v581 = vld [vmem:[%s2 + $0x628] sm:$0xff]
    %v582 = vld [vmem:[%s2 + $0x630] sm:$0xff]
    %v583 = vld [vmem:[%s2 + $0x638] sm:$0xff]
    %v584 = vld [vmem:[%s2 + $0x640] sm:$0xff]
    %v585 = vld [vmem:[%s2 + $0x648] sm:$0xff]
    %v586 = vld [vmem:[%s2 + $0x650] sm:$0xff]
    %v587 = vld [vmem:[%s2 + $0x658] sm:$0xff]
    %v588 = vld [vmem:[%s2 + $0x660] sm:$0xff]
    %v589 = vld [vmem:[%s2 + $0x668] sm:$0xff]
    %v590 = vld [vmem:[%s2 + $0x670] sm:$0xff]
    %v591 = vld [vmem:[%s2 + $0x678] sm:$0xff]
    %v592 = vld [vmem:[%s2 + $0x680] sm:$0xff]
    %v593 = vld [vmem:[%s2 + $0x688] sm:$0xff]
    %v594 = vld [vmem:[%s2 + $0x690] sm:$0xff]
    %v595 = vld [vmem:[%s2 + $0x698] sm:$0xff]
    %v596 = vld [vmem:[%s2 + $0x6a0] sm:$0xff]
    %v597 = vld [vmem:[%s2 + $0x6a8] sm:$0xff]
    %v598 = vld [vmem:[%s2 + $0x6b0] sm:$0xff]
    %v599 = vld [vmem:[%s2 + $0x6b8] sm:$0xff]
    %v600 = vld [vmem:[%s2 + $0x6c0] sm:$0xff]
    %v601 = vld [vmem:[%s2 + $0x6c8] sm:$0xff]
    %v602 = vld [vmem:[%s2 + $0x6d0] sm:$0xff]
    %v603 = vld [vmem:[%s2 + $0x6d8] sm:$0xff]
    %v604 = vld [vmem:[%s2 + $0x6e0] sm:$0xff]
    %v605 = vld [vmem:[%s2 + $0x6e8] sm:$0xff]
    %v606 = vld [vmem:[%s2 + $0x6f0] sm:$0xff]
    %v607 = vld [vmem:[%s2 + $0x6f8] sm:$0xff]
    %v608 = vld [vmem:[%s2 + $0x700] sm:$0xff]
    %v609 = vld [vmem:[%s2 + $0x708] sm:$0xff]
    %v610 = vld [vmem:[%s2 + $0x710] sm:$0xff]
    %v611 = vld [vmem:[%s2 + $0x718] sm:$0xff]
    %v612 = vld [vmem:[%s2 + $0x720] sm:$0xff]
    %v613 = vld [vmem:[%s2 + $0x728] sm:$0xff]
    %v614 = vld [vmem:[%s2 + $0x730] sm:$0xff]
    %v615 = vld [vmem:[%s2 + $0x738] sm:$0xff]
    %v616 = vld [vmem:[%s2 + $0x740] sm:$0xff]
    %v617 = vld [vmem:[%s2 + $0x748] sm:$0xff]
    %v618 = vld [vmem:[%s2 + $0x750] sm:$0xff]
    %v619 = vld [vmem:[%s2 + $0x758] sm:$0xff]
    %v620 = vld [vmem:[%s2 + $0x760] sm:$0xff]
    %v621 = vld [vmem:[%s2 + $0x768] sm:$0xff]
    %v622 = vld [vmem:[%s2 + $0x770] sm:$0xff]
    %v623 = vld [vmem:[%s2 + $0x778] sm:$0xff]
    %v624 = vld [vmem:[%s2 + $0x780] sm:$0xff]
    %v625 = vld [vmem:[%s2 + $0x788] sm:$0xff]
    %v626 = vld [vmem:[%s2 + $0x790] sm:$0xff]
    %v627 = vld [vmem:[%s2 + $0x798] sm:$0xff]
    %v628 = vld [vmem:[%s2 + $0x7a0] sm:$0xff]
    %v629 = vld [vmem:[%s2 + $0x7a8] sm:$0xff]
    %v630 = vld [vmem:[%s2 + $0x7b0] sm:$0xff]
    %v631 = vld [vmem:[%s2 + $0x7b8] sm:$0xff]
    %v632 = vld [vmem:[%s2 + $0x7c0] sm:$0xff]
    %v633 = vld [vmem:[%s2 + $0x7c8] sm:$0xff]
    %v634 = vld [vmem:[%s2 + $0x7d0] sm:$0xff]
    %v635 = vld [vmem:[%s2 + $0x7d8] sm:$0xff]
    %v636 = vld [vmem:[%s2 + $0x7e0] sm:$0xff]
    %v637 = vld [vmem:[%s2 + $0x7e8] sm:$0xff]
    %v638 = vld [vmem:[%s2 + $0x7f0] sm:$0xff]
    %v639 = vld [vmem:[%s2 + $0x7f8] sm:$0xff]
    %v641 = vlaneseq
    %v642 = vshrl.u32 %v641, 7
    %v643 = vsub.s32 0, %v642
    %v644 = vrot.slane %v27, %v643
    %v645 = vlaneseq
    %v646 = vshrl.u32 %v645, 7
    %v647 = vsub.s32 1, %v646
    %v648 = vrot.slane %v27, %v647
    %v649 = vlaneseq
    %v650 = vshrl.u32 %v649, 7
    %v651 = vsub.s32 2, %v650
    %v652 = vrot.slane %v27, %v651
    %v653 = vlaneseq
    %v654 = vshrl.u32 %v653, 7
    %v655 = vsub.s32 3, %v654
    %v656 = vrot.slane %v27, %v655
    %v657 = vlaneseq
    %v658 = vshrl.u32 %v657, 7
    %v659 = vsub.s32 4, %v658
    %v660 = vrot.slane %v27, %v659
    %v661 = vlaneseq
    %v662 = vshrl.u32 %v661, 7
    %v663 = vsub.s32 5, %v662
    %v664 = vrot.slane %v27, %v663
    %v665 = vlaneseq
    %v666 = vshrl.u32 %v665, 7
    %v667 = vsub.s32 6, %v666
    %v668 = vrot.slane %v27, %v667
    %v669 = vlaneseq
    %v670 = vshrl.u32 %v669, 7
    %v671 = vsub.s32 7, %v670
    %v672 = vrot.slane %v27, %v671
    %v937 = vunpack.c.l.b16 %v384
    %v938 = vunpack.c.h.b16 %v384
    %v939 = vunpack.c.l.b16 %v385
    %v940 = vunpack.c.h.b16 %v385
    %v941 = vunpack.c.l.b16 %v386
    %v942 = vunpack.c.h.b16 %v386
    %v943 = vunpack.c.l.b16 %v387
    %v944 = vunpack.c.h.b16 %v387
    %v945 = vunpack.c.l.b16 %v388
    %v946 = vunpack.c.h.b16 %v388
    %v947 = vunpack.c.l.b16 %v389
    %v948 = vunpack.c.h.b16 %v389
    %v949 = vunpack.c.l.b16 %v390
    %v950 = vunpack.c.h.b16 %v390
    %v951 = vunpack.c.l.b16 %v391
    %v952 = vunpack.c.h.b16 %v391
    %v953 = vunpack.c.l.b16 %v392
    %v954 = vunpack.c.h.b16 %v392
    %v955 = vunpack.c.l.b16 %v393
    %v956 = vunpack.c.h.b16 %v393
    %v957 = vunpack.c.l.b16 %v394
    %v958 = vunpack.c.h.b16 %v394
    %v959 = vunpack.c.l.b16 %v395
    %v960 = vunpack.c.h.b16 %v395
    %v961 = vunpack.c.l.b16 %v396
    %v962 = vunpack.c.h.b16 %v396
    %v963 = vunpack.c.l.b16 %v397
    %v964 = vunpack.c.h.b16 %v397
    %v965 = vunpack.c.l.b16 %v398
    %v966 = vunpack.c.h.b16 %v398
    %v967 = vunpack.c.l.b16 %v399
    %v968 = vunpack.c.h.b16 %v399
    %v969 = vunpack.c.l.b16 %v400
    %v970 = vunpack.c.h.b16 %v400
    %v971 = vunpack.c.l.b16 %v401
    %v972 = vunpack.c.h.b16 %v401
    %v973 = vunpack.c.l.b16 %v402
    %v974 = vunpack.c.h.b16 %v402
    %v975 = vunpack.c.l.b16 %v403
    %v976 = vunpack.c.h.b16 %v403
    %v977 = vunpack.c.l.b16 %v404
    %v978 = vunpack.c.h.b16 %v404
    %v979 = vunpack.c.l.b16 %v405
    %v980 = vunpack.c.h.b16 %v405
    %v981 = vunpack.c.l.b16 %v406
    %v982 = vunpack.c.h.b16 %v406
    %v983 = vunpack.c.l.b16 %v407
    %v984 = vunpack.c.h.b16 %v407
    %v985 = vunpack.c.l.b16 %v408
    %v986 = vunpack.c.h.b16 %v408
    %v987 = vunpack.c.l.b16 %v409
    %v988 = vunpack.c.h.b16 %v409
    %v989 = vunpack.c.l.b16 %v410
    %v990 = vunpack.c.h.b16 %v410
    %v991 = vunpack.c.l.b16 %v411
    %v992 = vunpack.c.h.b16 %v411
    %v993 = vunpack.c.l.b16 %v412
    %v994 = vunpack.c.h.b16 %v412
    %v995 = vunpack.c.l.b16 %v413
    %v996 = vunpack.c.h.b16 %v413
    %v997 = vunpack.c.l.b16 %v414
    %v998 = vunpack.c.h.b16 %v414
    %v999 = vunpack.c.l.b16 %v415
    %v1000 = vunpack.c.h.b16 %v415
    %v1001 = vunpack.c.l.b16 %v416
    %v1002 = vunpack.c.h.b16 %v416
    %v1003 = vunpack.c.l.b16 %v417
    %v1004 = vunpack.c.h.b16 %v417
    %v1005 = vunpack.c.l.b16 %v418
    %v1006 = vunpack.c.h.b16 %v418
    %v1007 = vunpack.c.l.b16 %v419
    %v1008 = vunpack.c.h.b16 %v419
    %v1009 = vunpack.c.l.b16 %v420
    %v1010 = vunpack.c.h.b16 %v420
    %v1011 = vunpack.c.l.b16 %v421
    %v1012 = vunpack.c.h.b16 %v421
    %v1013 = vunpack.c.l.b16 %v422
    %v1014 = vunpack.c.h.b16 %v422
    %v1015 = vunpack.c.l.b16 %v423
    %v1016 = vunpack.c.h.b16 %v423
    %v1017 = vunpack.c.l.b16 %v424
    %v1018 = vunpack.c.h.b16 %v424
    %v1019 = vunpack.c.l.b16 %v425
    %v1020 = vunpack.c.h.b16 %v425
    %v1021 = vunpack.c.l.b16 %v426
    %v1022 = vunpack.c.h.b16 %v426
    %v1023 = vunpack.c.l.b16 %v427
    %v1024 = vunpack.c.h.b16 %v427
    %v1025 = vunpack.c.l.b16 %v428
    %v1026 = vunpack.c.h.b16 %v428
    %v1027 = vunpack.c.l.b16 %v429
    %v1028 = vunpack.c.h.b16 %v429
    %v1029 = vunpack.c.l.b16 %v430
    %v1030 = vunpack.c.h.b16 %v430
    %v1031 = vunpack.c.l.b16 %v431
    %v1032 = vunpack.c.h.b16 %v431
    %v1033 = vunpack.c.l.b16 %v432
    %v1034 = vunpack.c.h.b16 %v432
    %v1035 = vunpack.c.l.b16 %v433
    %v1036 = vunpack.c.h.b16 %v433
    %v1037 = vunpack.c.l.b16 %v434
    %v1038 = vunpack.c.h.b16 %v434
    %v1039 = vunpack.c.l.b16 %v435
    %v1040 = vunpack.c.h.b16 %v435
    %v1041 = vunpack.c.l.b16 %v436
    %v1042 = vunpack.c.h.b16 %v436
    %v1043 = vunpack.c.l.b16 %v437
    %v1044 = vunpack.c.h.b16 %v437
    %v1045 = vunpack.c.l.b16 %v438
    %v1046 = vunpack.c.h.b16 %v438
    %v1047 = vunpack.c.l.b16 %v439
    %v1048 = vunpack.c.h.b16 %v439
    %v1049 = vunpack.c.l.b16 %v440
    %v1050 = vunpack.c.h.b16 %v440
    %v1051 = vunpack.c.l.b16 %v441
    %v1052 = vunpack.c.h.b16 %v441
    %v1053 = vunpack.c.l.b16 %v442
    %v1054 = vunpack.c.h.b16 %v442
    %v1055 = vunpack.c.l.b16 %v443
    %v1056 = vunpack.c.h.b16 %v443
    %v1057 = vunpack.c.l.b16 %v444
    %v1058 = vunpack.c.h.b16 %v444
    %v1059 = vunpack.c.l.b16 %v445
    %v1060 = vunpack.c.h.b16 %v445
    %v1061 = vunpack.c.l.b16 %v446
    %v1062 = vunpack.c.h.b16 %v446
    %v1063 = vunpack.c.l.b16 %v447
    %v1064 = vunpack.c.h.b16 %v447
    %v1065 = vunpack.c.l.b16 %v448
    %v1066 = vunpack.c.h.b16 %v448
    %v1067 = vunpack.c.l.b16 %v449
    %v1068 = vunpack.c.h.b16 %v449
    %v1069 = vunpack.c.l.b16 %v450
    %v1070 = vunpack.c.h.b16 %v450
    %v1071 = vunpack.c.l.b16 %v451
    %v1072 = vunpack.c.h.b16 %v451
    %v1073 = vunpack.c.l.b16 %v452
    %v1074 = vunpack.c.h.b16 %v452
    %v1075 = vunpack.c.l.b16 %v453
    %v1076 = vunpack.c.h.b16 %v453
    %v1077 = vunpack.c.l.b16 %v454
    %v1078 = vunpack.c.h.b16 %v454
    %v1079 = vunpack.c.l.b16 %v455
    %v1080 = vunpack.c.h.b16 %v455
    %v1081 = vunpack.c.l.b16 %v456
    %v1082 = vunpack.c.h.b16 %v456
    %v1083 = vunpack.c.l.b16 %v457
    %v1084 = vunpack.c.h.b16 %v457
    %v1085 = vunpack.c.l.b16 %v458
    %v1086 = vunpack.c.h.b16 %v458
    %v1087 = vunpack.c.l.b16 %v459
    %v1088 = vunpack.c.h.b16 %v459
    %v1089 = vunpack.c.l.b16 %v460
    %v1090 = vunpack.c.h.b16 %v460
    %v1091 = vunpack.c.l.b16 %v461
    %v1092 = vunpack.c.h.b16 %v461
    %v1093 = vunpack.c.l.b16 %v462
    %v1094 = vunpack.c.h.b16 %v462
    %v1095 = vunpack.c.l.b16 %v463
    %v1096 = vunpack.c.h.b16 %v463
    %v1097 = vunpack.c.l.b16 %v464
    %v1098 = vunpack.c.h.b16 %v464
    %v1099 = vunpack.c.l.b16 %v465
    %v1100 = vunpack.c.h.b16 %v465
    %v1101 = vunpack.c.l.b16 %v466
    %v1102 = vunpack.c.h.b16 %v466
    %v1103 = vunpack.c.l.b16 %v467
    %v1104 = vunpack.c.h.b16 %v467
    %v1105 = vunpack.c.l.b16 %v468
    %v1106 = vunpack.c.h.b16 %v468
    %v1107 = vunpack.c.l.b16 %v469
    %v1108 = vunpack.c.h.b16 %v469
    %v1109 = vunpack.c.l.b16 %v470
    %v1110 = vunpack.c.h.b16 %v470
    %v1111 = vunpack.c.l.b16 %v471
    %v1112 = vunpack.c.h.b16 %v471
    %v1113 = vunpack.c.l.b16 %v472
    %v1114 = vunpack.c.h.b16 %v472
    %v1115 = vunpack.c.l.b16 %v473
    %v1116 = vunpack.c.h.b16 %v473
    %v1117 = vunpack.c.l.b16 %v474
    %v1118 = vunpack.c.h.b16 %v474
    %v1119 = vunpack.c.l.b16 %v475
    %v1120 = vunpack.c.h.b16 %v475
    %v1121 = vunpack.c.l.b16 %v476
    %v1122 = vunpack.c.h.b16 %v476
    %v1123 = vunpack.c.l.b16 %v477
    %v1124 = vunpack.c.h.b16 %v477
    %v1125 = vunpack.c.l.b16 %v478
    %v1126 = vunpack.c.h.b16 %v478
    %v1127 = vunpack.c.l.b16 %v479
    %v1128 = vunpack.c.h.b16 %v479
    %v1129 = vunpack.c.l.b16 %v480
    %v1130 = vunpack.c.h.b16 %v480
    %v1131 = vunpack.c.l.b16 %v481
    %v1132 = vunpack.c.h.b16 %v481
    %v1133 = vunpack.c.l.b16 %v482
    %v1134 = vunpack.c.h.b16 %v482
    %v1135 = vunpack.c.l.b16 %v483
    %v1136 = vunpack.c.h.b16 %v483
    %v1137 = vunpack.c.l.b16 %v484
    %v1138 = vunpack.c.h.b16 %v484
    %v1139 = vunpack.c.l.b16 %v485
    %v1140 = vunpack.c.h.b16 %v485
    %v1141 = vunpack.c.l.b16 %v486
    %v1142 = vunpack.c.h.b16 %v486
    %v1143 = vunpack.c.l.b16 %v487
    %v1144 = vunpack.c.h.b16 %v487
    %v1145 = vunpack.c.l.b16 %v488
    %v1146 = vunpack.c.h.b16 %v488
    %v1147 = vunpack.c.l.b16 %v489
    %v1148 = vunpack.c.h.b16 %v489
    %v1149 = vunpack.c.l.b16 %v490
    %v1150 = vunpack.c.h.b16 %v490
    %v1151 = vunpack.c.l.b16 %v491
    %v1152 = vunpack.c.h.b16 %v491
    %v1153 = vunpack.c.l.b16 %v492
    %v1154 = vunpack.c.h.b16 %v492
    %v1155 = vunpack.c.l.b16 %v493
    %v1156 = vunpack.c.h.b16 %v493
    %v1157 = vunpack.c.l.b16 %v494
    %v1158 = vunpack.c.h.b16 %v494
    %v1159 = vunpack.c.l.b16 %v495
    %v1160 = vunpack.c.h.b16 %v495
    %v1161 = vunpack.c.l.b16 %v496
    %v1162 = vunpack.c.h.b16 %v496
    %v1163 = vunpack.c.l.b16 %v497
    %v1164 = vunpack.c.h.b16 %v497
    %v1165 = vunpack.c.l.b16 %v498
    %v1166 = vunpack.c.h.b16 %v498
    %v1167 = vunpack.c.l.b16 %v499
    %v1168 = vunpack.c.h.b16 %v499
    %v1169 = vunpack.c.l.b16 %v500
    %v1170 = vunpack.c.h.b16 %v500
    %v1171 = vunpack.c.l.b16 %v501
    %v1172 = vunpack.c.h.b16 %v501
    %v1173 = vunpack.c.l.b16 %v502
    %v1174 = vunpack.c.h.b16 %v502
    %v1175 = vunpack.c.l.b16 %v503
    %v1176 = vunpack.c.h.b16 %v503
    %v1177 = vunpack.c.l.b16 %v504
    %v1178 = vunpack.c.h.b16 %v504
    %v1179 = vunpack.c.l.b16 %v505
    %v1180 = vunpack.c.h.b16 %v505
    %v1181 = vunpack.c.l.b16 %v506
    %v1182 = vunpack.c.h.b16 %v506
    %v1183 = vunpack.c.l.b16 %v507
    %v1184 = vunpack.c.h.b16 %v507
    %v1185 = vunpack.c.l.b16 %v508
    %v1186 = vunpack.c.h.b16 %v508
    %v1187 = vunpack.c.l.b16 %v509
    %v1188 = vunpack.c.h.b16 %v509
    %v1189 = vunpack.c.l.b16 %v510
    %v1190 = vunpack.c.h.b16 %v510
    %v1191 = vunpack.c.l.b16 %v511
    %v1192 = vunpack.c.h.b16 %v511
    %v1193 = vunpack.c.l.b16 %v512
    %v1194 = vunpack.c.h.b16 %v512
    %v1195 = vunpack.c.l.b16 %v513
    %v1196 = vunpack.c.h.b16 %v513
    %v1197 = vunpack.c.l.b16 %v514
    %v1198 = vunpack.c.h.b16 %v514
    %v1199 = vunpack.c.l.b16 %v515
    %v1200 = vunpack.c.h.b16 %v515
    %v1201 = vunpack.c.l.b16 %v516
    %v1202 = vunpack.c.h.b16 %v516
    %v1203 = vunpack.c.l.b16 %v517
    %v1204 = vunpack.c.h.b16 %v517
    %v1205 = vunpack.c.l.b16 %v518
    %v1206 = vunpack.c.h.b16 %v518
    %v1207 = vunpack.c.l.b16 %v519
    %v1208 = vunpack.c.h.b16 %v519
    %v1209 = vunpack.c.l.b16 %v520
    %v1210 = vunpack.c.h.b16 %v520
    %v1211 = vunpack.c.l.b16 %v521
    %v1212 = vunpack.c.h.b16 %v521
    %v1213 = vunpack.c.l.b16 %v522
    %v1214 = vunpack.c.h.b16 %v522
    %v1215 = vunpack.c.l.b16 %v523
    %v1216 = vunpack.c.h.b16 %v523
    %v1217 = vunpack.c.l.b16 %v524
    %v1218 = vunpack.c.h.b16 %v524
    %v1219 = vunpack.c.l.b16 %v525
    %v1220 = vunpack.c.h.b16 %v525
    %v1221 = vunpack.c.l.b16 %v526
    %v1222 = vunpack.c.h.b16 %v526
    %v1223 = vunpack.c.l.b16 %v527
    %v1224 = vunpack.c.h.b16 %v527
    %v1225 = vunpack.c.l.b16 %v528
    %v1226 = vunpack.c.h.b16 %v528
    %v1227 = vunpack.c.l.b16 %v529
    %v1228 = vunpack.c.h.b16 %v529
    %v1229 = vunpack.c.l.b16 %v530
    %v1230 = vunpack.c.h.b16 %v530
    %v1231 = vunpack.c.l.b16 %v531
    %v1232 = vunpack.c.h.b16 %v531
    %v1233 = vunpack.c.l.b16 %v532
    %v1234 = vunpack.c.h.b16 %v532
    %v1235 = vunpack.c.l.b16 %v533
    %v1236 = vunpack.c.h.b16 %v533
    %v1237 = vunpack.c.l.b16 %v534
    %v1238 = vunpack.c.h.b16 %v534
    %v1239 = vunpack.c.l.b16 %v535
    %v1240 = vunpack.c.h.b16 %v535
    %v1241 = vunpack.c.l.b16 %v536
    %v1242 = vunpack.c.h.b16 %v536
    %v1243 = vunpack.c.l.b16 %v537
    %v1244 = vunpack.c.h.b16 %v537
    %v1245 = vunpack.c.l.b16 %v538
    %v1246 = vunpack.c.h.b16 %v538
    %v1247 = vunpack.c.l.b16 %v539
    %v1248 = vunpack.c.h.b16 %v539
    %v1249 = vunpack.c.l.b16 %v540
    %v1250 = vunpack.c.h.b16 %v540
    %v1251 = vunpack.c.l.b16 %v541
    %v1252 = vunpack.c.h.b16 %v541
    %v1253 = vunpack.c.l.b16 %v542
    %v1254 = vunpack.c.h.b16 %v542
    %v1255 = vunpack.c.l.b16 %v543
    %v1256 = vunpack.c.h.b16 %v543
    %v1257 = vunpack.c.l.b16 %v544
    %v1258 = vunpack.c.h.b16 %v544
    %v1259 = vunpack.c.l.b16 %v545
    %v1260 = vunpack.c.h.b16 %v545
    %v1261 = vunpack.c.l.b16 %v546
    %v1262 = vunpack.c.h.b16 %v546
    %v1263 = vunpack.c.l.b16 %v547
    %v1264 = vunpack.c.h.b16 %v547
    %v1265 = vunpack.c.l.b16 %v548
    %v1266 = vunpack.c.h.b16 %v548
    %v1267 = vunpack.c.l.b16 %v549
    %v1268 = vunpack.c.h.b16 %v549
    %v1269 = vunpack.c.l.b16 %v550
    %v1270 = vunpack.c.h.b16 %v550
    %v1271 = vunpack.c.l.b16 %v551
    %v1272 = vunpack.c.h.b16 %v551
    %v1273 = vunpack.c.l.b16 %v552
    %v1274 = vunpack.c.h.b16 %v552
    %v1275 = vunpack.c.l.b16 %v553
    %v1276 = vunpack.c.h.b16 %v553
    %v1277 = vunpack.c.l.b16 %v554
    %v1278 = vunpack.c.h.b16 %v554
    %v1279 = vunpack.c.l.b16 %v555
    %v1280 = vunpack.c.h.b16 %v555
    %v1281 = vunpack.c.l.b16 %v556
    %v1282 = vunpack.c.h.b16 %v556
    %v1283 = vunpack.c.l.b16 %v557
    %v1284 = vunpack.c.h.b16 %v557
    %v1285 = vunpack.c.l.b16 %v558
    %v1286 = vunpack.c.h.b16 %v558
    %v1287 = vunpack.c.l.b16 %v559
    %v1288 = vunpack.c.h.b16 %v559
    %v1289 = vunpack.c.l.b16 %v560
    %v1290 = vunpack.c.h.b16 %v560
    %v1291 = vunpack.c.l.b16 %v561
    %v1292 = vunpack.c.h.b16 %v561
    %v1293 = vunpack.c.l.b16 %v562
    %v1294 = vunpack.c.h.b16 %v562
    %v1295 = vunpack.c.l.b16 %v563
    %v1296 = vunpack.c.h.b16 %v563
    %v1297 = vunpack.c.l.b16 %v564
    %v1298 = vunpack.c.h.b16 %v564
    %v1299 = vunpack.c.l.b16 %v565
    %v1300 = vunpack.c.h.b16 %v565
    %v1301 = vunpack.c.l.b16 %v566
    %v1302 = vunpack.c.h.b16 %v566
    %v1303 = vunpack.c.l.b16 %v567
    %v1304 = vunpack.c.h.b16 %v567
    %v1305 = vunpack.c.l.b16 %v568
    %v1306 = vunpack.c.h.b16 %v568
    %v1307 = vunpack.c.l.b16 %v569
    %v1308 = vunpack.c.h.b16 %v569
    %v1309 = vunpack.c.l.b16 %v570
    %v1310 = vunpack.c.h.b16 %v570
    %v1311 = vunpack.c.l.b16 %v571
    %v1312 = vunpack.c.h.b16 %v571
    %v1313 = vunpack.c.l.b16 %v572
    %v1314 = vunpack.c.h.b16 %v572
    %v1315 = vunpack.c.l.b16 %v573
    %v1316 = vunpack.c.h.b16 %v573
    %v1317 = vunpack.c.l.b16 %v574
    %v1318 = vunpack.c.h.b16 %v574
    %v1319 = vunpack.c.l.b16 %v575
    %v1320 = vunpack.c.h.b16 %v575
    %v1321 = vunpack.c.l.b16 %v576
    %v1322 = vunpack.c.h.b16 %v576
    %v1323 = vunpack.c.l.b16 %v577
    %v1324 = vunpack.c.h.b16 %v577
    %v1325 = vunpack.c.l.b16 %v578
    %v1326 = vunpack.c.h.b16 %v578
    %v1327 = vunpack.c.l.b16 %v579
    %v1328 = vunpack.c.h.b16 %v579
    %v1329 = vunpack.c.l.b16 %v580
    %v1330 = vunpack.c.h.b16 %v580
    %v1331 = vunpack.c.l.b16 %v581
    %v1332 = vunpack.c.h.b16 %v581
    %v1333 = vunpack.c.l.b16 %v582
    %v1334 = vunpack.c.h.b16 %v582
    %v1335 = vunpack.c.l.b16 %v583
    %v1336 = vunpack.c.h.b16 %v583
    %v1337 = vunpack.c.l.b16 %v584
    %v1338 = vunpack.c.h.b16 %v584
    %v1339 = vunpack.c.l.b16 %v585
    %v1340 = vunpack.c.h.b16 %v585
    %v1341 = vunpack.c.l.b16 %v586
    %v1342 = vunpack.c.h.b16 %v586
    %v1343 = vunpack.c.l.b16 %v587
    %v1344 = vunpack.c.h.b16 %v587
    %v1345 = vunpack.c.l.b16 %v588
    %v1346 = vunpack.c.h.b16 %v588
    %v1347 = vunpack.c.l.b16 %v589
    %v1348 = vunpack.c.h.b16 %v589
    %v1349 = vunpack.c.l.b16 %v590
    %v1350 = vunpack.c.h.b16 %v590
    %v1351 = vunpack.c.l.b16 %v591
    %v1352 = vunpack.c.h.b16 %v591
    %v1353 = vunpack.c.l.b16 %v592
    %v1354 = vunpack.c.h.b16 %v592
    %v1355 = vunpack.c.l.b16 %v593
    %v1356 = vunpack.c.h.b16 %v593
    %v1357 = vunpack.c.l.b16 %v594
    %v1358 = vunpack.c.h.b16 %v594
    %v1359 = vunpack.c.l.b16 %v595
    %v1360 = vunpack.c.h.b16 %v595
    %v1361 = vunpack.c.l.b16 %v596
    %v1362 = vunpack.c.h.b16 %v596
    %v1363 = vunpack.c.l.b16 %v597
    %v1364 = vunpack.c.h.b16 %v597
    %v1365 = vunpack.c.l.b16 %v598
    %v1366 = vunpack.c.h.b16 %v598
    %v1367 = vunpack.c.l.b16 %v599
    %v1368 = vunpack.c.h.b16 %v599
    %v1369 = vunpack.c.l.b16 %v600
    %v1370 = vunpack.c.h.b16 %v600
    %v1371 = vunpack.c.l.b16 %v601
    %v1372 = vunpack.c.h.b16 %v601
    %v1373 = vunpack.c.l.b16 %v602
    %v1374 = vunpack.c.h.b16 %v602
    %v1375 = vunpack.c.l.b16 %v603
    %v1376 = vunpack.c.h.b16 %v603
    %v1377 = vunpack.c.l.b16 %v604
    %v1378 = vunpack.c.h.b16 %v604
    %v1379 = vunpack.c.l.b16 %v605
    %v1380 = vunpack.c.h.b16 %v605
    %v1381 = vunpack.c.l.b16 %v606
    %v1382 = vunpack.c.h.b16 %v606
    %v1383 = vunpack.c.l.b16 %v607
    %v1384 = vunpack.c.h.b16 %v607
    %v1385 = vunpack.c.l.b16 %v608
    %v1386 = vunpack.c.h.b16 %v608
    %v1387 = vunpack.c.l.b16 %v609
    %v1388 = vunpack.c.h.b16 %v609
    %v1389 = vunpack.c.l.b16 %v610
    %v1390 = vunpack.c.h.b16 %v610
    %v1391 = vunpack.c.l.b16 %v611
    %v1392 = vunpack.c.h.b16 %v611
    %v1393 = vunpack.c.l.b16 %v612
    %v1394 = vunpack.c.h.b16 %v612
    %v1395 = vunpack.c.l.b16 %v613
    %v1396 = vunpack.c.h.b16 %v613
    %v1397 = vunpack.c.l.b16 %v614
    %v1398 = vunpack.c.h.b16 %v614
    %v1399 = vunpack.c.l.b16 %v615
    %v1400 = vunpack.c.h.b16 %v615
    %v1401 = vunpack.c.l.b16 %v616
    %v1402 = vunpack.c.h.b16 %v616
    %v1403 = vunpack.c.l.b16 %v617
    %v1404 = vunpack.c.h.b16 %v617
    %v1405 = vunpack.c.l.b16 %v618
    %v1406 = vunpack.c.h.b16 %v618
    %v1407 = vunpack.c.l.b16 %v619
    %v1408 = vunpack.c.h.b16 %v619
    %v1409 = vunpack.c.l.b16 %v620
    %v1410 = vunpack.c.h.b16 %v620
    %v1411 = vunpack.c.l.b16 %v621
    %v1412 = vunpack.c.h.b16 %v621
    %v1413 = vunpack.c.l.b16 %v622
    %v1414 = vunpack.c.h.b16 %v622
    %v1415 = vunpack.c.l.b16 %v623
    %v1416 = vunpack.c.h.b16 %v623
    %v1417 = vunpack.c.l.b16 %v624
    %v1418 = vunpack.c.h.b16 %v624
    %v1419 = vunpack.c.l.b16 %v625
    %v1420 = vunpack.c.h.b16 %v625
    %v1421 = vunpack.c.l.b16 %v626
    %v1422 = vunpack.c.h.b16 %v626
    %v1423 = vunpack.c.l.b16 %v627
    %v1424 = vunpack.c.h.b16 %v627
    %v1425 = vunpack.c.l.b16 %v628
    %v1426 = vunpack.c.h.b16 %v628
    %v1427 = vunpack.c.l.b16 %v629
    %v1428 = vunpack.c.h.b16 %v629
    %v1429 = vunpack.c.l.b16 %v630
    %v1430 = vunpack.c.h.b16 %v630
    %v1431 = vunpack.c.l.b16 %v631
    %v1432 = vunpack.c.h.b16 %v631
    %v1433 = vunpack.c.l.b16 %v632
    %v1434 = vunpack.c.h.b16 %v632
    %v1435 = vunpack.c.l.b16 %v633
    %v1436 = vunpack.c.h.b16 %v633
    %v1437 = vunpack.c.l.b16 %v634
    %v1438 = vunpack.c.h.b16 %v634
    %v1439 = vunpack.c.l.b16 %v635
    %v1440 = vunpack.c.h.b16 %v635
    %v1441 = vunpack.c.l.b16 %v636
    %v1442 = vunpack.c.h.b16 %v636
    %v1443 = vunpack.c.l.b16 %v637
    %v1444 = vunpack.c.h.b16 %v637
    %v1445 = vunpack.c.l.b16 %v638
    %v1446 = vunpack.c.h.b16 %v638
    %v1447 = vunpack.c.l.b16 %v639
    %v1448 = vunpack.c.h.b16 %v639
    %v1449 = vpack.c.b16 %v945, %v937
    %v1450 = vpack.c.b16 %v946, %v938
    %v1451 = vpack.c.b16 %v947, %v939
    %v1452 = vpack.c.b16 %v948, %v940
    %v1453 = vpack.c.b16 %v949, %v941
    %v1454 = vpack.c.b16 %v950, %v942
    %v1455 = vpack.c.b16 %v951, %v943
    %v1456 = vpack.c.b16 %v952, %v944
    %v1457 = vpack.c.b16 %v961, %v953
    %v1458 = vpack.c.b16 %v962, %v954
    %v1459 = vpack.c.b16 %v963, %v955
    %v1460 = vpack.c.b16 %v964, %v956
    %v1461 = vpack.c.b16 %v965, %v957
    %v1462 = vpack.c.b16 %v966, %v958
    %v1463 = vpack.c.b16 %v967, %v959
    %v1464 = vpack.c.b16 %v968, %v960
    %v1465 = vpack.c.b16 %v977, %v969
    %v1466 = vpack.c.b16 %v978, %v970
    %v1467 = vpack.c.b16 %v979, %v971
    %v1468 = vpack.c.b16 %v980, %v972
    %v1469 = vpack.c.b16 %v981, %v973
    %v1470 = vpack.c.b16 %v982, %v974
    %v1471 = vpack.c.b16 %v983, %v975
    %v1472 = vpack.c.b16 %v984, %v976
    %v1473 = vpack.c.b16 %v993, %v985
    %v1474 = vpack.c.b16 %v994, %v986
    %v1475 = vpack.c.b16 %v995, %v987
    %v1476 = vpack.c.b16 %v996, %v988
    %v1477 = vpack.c.b16 %v997, %v989
    %v1478 = vpack.c.b16 %v998, %v990
    %v1479 = vpack.c.b16 %v999, %v991
    %v1480 = vpack.c.b16 %v1000, %v992
    %v1481 = vpack.c.b16 %v1009, %v1001
    %v1482 = vpack.c.b16 %v1010, %v1002
    %v1483 = vpack.c.b16 %v1011, %v1003
    %v1484 = vpack.c.b16 %v1012, %v1004
    %v1485 = vpack.c.b16 %v1013, %v1005
    %v1486 = vpack.c.b16 %v1014, %v1006
    %v1487 = vpack.c.b16 %v1015, %v1007
    %v1488 = vpack.c.b16 %v1016, %v1008
    %v1489 = vpack.c.b16 %v1025, %v1017
    %v1490 = vpack.c.b16 %v1026, %v1018
    %v1491 = vpack.c.b16 %v1027, %v1019
    %v1492 = vpack.c.b16 %v1028, %v1020
    %v1493 = vpack.c.b16 %v1029, %v1021
    %v1494 = vpack.c.b16 %v1030, %v1022
    %v1495 = vpack.c.b16 %v1031, %v1023
    %v1496 = vpack.c.b16 %v1032, %v1024
    %v1497 = vpack.c.b16 %v1041, %v1033
    %v1498 = vpack.c.b16 %v1042, %v1034
    %v1499 = vpack.c.b16 %v1043, %v1035
    %v1500 = vpack.c.b16 %v1044, %v1036
    %v1501 = vpack.c.b16 %v1045, %v1037
    %v1502 = vpack.c.b16 %v1046, %v1038
    %v1503 = vpack.c.b16 %v1047, %v1039
    %v1504 = vpack.c.b16 %v1048, %v1040
    %v1505 = vpack.c.b16 %v1057, %v1049
    %v1506 = vpack.c.b16 %v1058, %v1050
    %v1507 = vpack.c.b16 %v1059, %v1051
    %v1508 = vpack.c.b16 %v1060, %v1052
    %v1509 = vpack.c.b16 %v1061, %v1053
    %v1510 = vpack.c.b16 %v1062, %v1054
    %v1511 = vpack.c.b16 %v1063, %v1055
    %v1512 = vpack.c.b16 %v1064, %v1056
    %v1513 = vpack.c.b16 %v1073, %v1065
    %v1514 = vpack.c.b16 %v1074, %v1066
    %v1515 = vpack.c.b16 %v1075, %v1067
    %v1516 = vpack.c.b16 %v1076, %v1068
    %v1517 = vpack.c.b16 %v1077, %v1069
    %v1518 = vpack.c.b16 %v1078, %v1070
    %v1519 = vpack.c.b16 %v1079, %v1071
    %v1520 = vpack.c.b16 %v1080, %v1072
    %v1521 = vpack.c.b16 %v1089, %v1081
    %v1522 = vpack.c.b16 %v1090, %v1082
    %v1523 = vpack.c.b16 %v1091, %v1083
    %v1524 = vpack.c.b16 %v1092, %v1084
    %v1525 = vpack.c.b16 %v1093, %v1085
    %v1526 = vpack.c.b16 %v1094, %v1086
    %v1527 = vpack.c.b16 %v1095, %v1087
    %v1528 = vpack.c.b16 %v1096, %v1088
    %v1529 = vpack.c.b16 %v1105, %v1097
    %v1530 = vpack.c.b16 %v1106, %v1098
    %v1531 = vpack.c.b16 %v1107, %v1099
    %v1532 = vpack.c.b16 %v1108, %v1100
    %v1533 = vpack.c.b16 %v1109, %v1101
    %v1534 = vpack.c.b16 %v1110, %v1102
    %v1535 = vpack.c.b16 %v1111, %v1103
    %v1536 = vpack.c.b16 %v1112, %v1104
    %v1537 = vpack.c.b16 %v1121, %v1113
    %v1538 = vpack.c.b16 %v1122, %v1114
    %v1539 = vpack.c.b16 %v1123, %v1115
    %v1540 = vpack.c.b16 %v1124, %v1116
    %v1541 = vpack.c.b16 %v1125, %v1117
    %v1542 = vpack.c.b16 %v1126, %v1118
    %v1543 = vpack.c.b16 %v1127, %v1119
    %v1544 = vpack.c.b16 %v1128, %v1120
    %v1545 = vpack.c.b16 %v1137, %v1129
    %v1546 = vpack.c.b16 %v1138, %v1130
    %v1547 = vpack.c.b16 %v1139, %v1131
    %v1548 = vpack.c.b16 %v1140, %v1132
    %v1549 = vpack.c.b16 %v1141, %v1133
    %v1550 = vpack.c.b16 %v1142, %v1134
    %v1551 = vpack.c.b16 %v1143, %v1135
    %v1552 = vpack.c.b16 %v1144, %v1136
    %v1553 = vpack.c.b16 %v1153, %v1145
    %v1554 = vpack.c.b16 %v1154, %v1146
    %v1555 = vpack.c.b16 %v1155, %v1147
    %v1556 = vpack.c.b16 %v1156, %v1148
    %v1557 = vpack.c.b16 %v1157, %v1149
    %v1558 = vpack.c.b16 %v1158, %v1150
    %v1559 = vpack.c.b16 %v1159, %v1151
    %v1560 = vpack.c.b16 %v1160, %v1152
    %v1561 = vpack.c.b16 %v1169, %v1161
    %v1562 = vpack.c.b16 %v1170, %v1162
    %v1563 = vpack.c.b16 %v1171, %v1163
    %v1564 = vpack.c.b16 %v1172, %v1164
    %v1565 = vpack.c.b16 %v1173, %v1165
    %v1566 = vpack.c.b16 %v1174, %v1166
    %v1567 = vpack.c.b16 %v1175, %v1167
    %v1568 = vpack.c.b16 %v1176, %v1168
    %v1569 = vpack.c.b16 %v1185, %v1177
    %v1570 = vpack.c.b16 %v1186, %v1178
    %v1571 = vpack.c.b16 %v1187, %v1179
    %v1572 = vpack.c.b16 %v1188, %v1180
    %v1573 = vpack.c.b16 %v1189, %v1181
    %v1574 = vpack.c.b16 %v1190, %v1182
    %v1575 = vpack.c.b16 %v1191, %v1183
    %v1576 = vpack.c.b16 %v1192, %v1184
    %v1577 = vpack.c.b16 %v1201, %v1193
    %v1578 = vpack.c.b16 %v1202, %v1194
    %v1579 = vpack.c.b16 %v1203, %v1195
    %v1580 = vpack.c.b16 %v1204, %v1196
    %v1581 = vpack.c.b16 %v1205, %v1197
    %v1582 = vpack.c.b16 %v1206, %v1198
    %v1583 = vpack.c.b16 %v1207, %v1199
    %v1584 = vpack.c.b16 %v1208, %v1200
    %v1585 = vpack.c.b16 %v1217, %v1209
    %v1586 = vpack.c.b16 %v1218, %v1210
    %v1587 = vpack.c.b16 %v1219, %v1211
    %v1588 = vpack.c.b16 %v1220, %v1212
    %v1589 = vpack.c.b16 %v1221, %v1213
    %v1590 = vpack.c.b16 %v1222, %v1214
    %v1591 = vpack.c.b16 %v1223, %v1215
    %v1592 = vpack.c.b16 %v1224, %v1216
    %v1593 = vpack.c.b16 %v1233, %v1225
    %v1594 = vpack.c.b16 %v1234, %v1226
    %v1595 = vpack.c.b16 %v1235, %v1227
    %v1596 = vpack.c.b16 %v1236, %v1228
    %v1597 = vpack.c.b16 %v1237, %v1229
    %v1598 = vpack.c.b16 %v1238, %v1230
    %v1599 = vpack.c.b16 %v1239, %v1231
    %v1600 = vpack.c.b16 %v1240, %v1232
    %v1601 = vpack.c.b16 %v1249, %v1241
    %v1602 = vpack.c.b16 %v1250, %v1242
    %v1603 = vpack.c.b16 %v1251, %v1243
    %v1604 = vpack.c.b16 %v1252, %v1244
    %v1605 = vpack.c.b16 %v1253, %v1245
    %v1606 = vpack.c.b16 %v1254, %v1246
    %v1607 = vpack.c.b16 %v1255, %v1247
    %v1608 = vpack.c.b16 %v1256, %v1248
    %v1609 = vpack.c.b16 %v1265, %v1257
    %v1610 = vpack.c.b16 %v1266, %v1258
    %v1611 = vpack.c.b16 %v1267, %v1259
    %v1612 = vpack.c.b16 %v1268, %v1260
    %v1613 = vpack.c.b16 %v1269, %v1261
    %v1614 = vpack.c.b16 %v1270, %v1262
    %v1615 = vpack.c.b16 %v1271, %v1263
    %v1616 = vpack.c.b16 %v1272, %v1264
    %v1617 = vpack.c.b16 %v1281, %v1273
    %v1618 = vpack.c.b16 %v1282, %v1274
    %v1619 = vpack.c.b16 %v1283, %v1275
    %v1620 = vpack.c.b16 %v1284, %v1276
    %v1621 = vpack.c.b16 %v1285, %v1277
    %v1622 = vpack.c.b16 %v1286, %v1278
    %v1623 = vpack.c.b16 %v1287, %v1279
    %v1624 = vpack.c.b16 %v1288, %v1280
    %v1625 = vpack.c.b16 %v1297, %v1289
    %v1626 = vpack.c.b16 %v1298, %v1290
    %v1627 = vpack.c.b16 %v1299, %v1291
    %v1628 = vpack.c.b16 %v1300, %v1292
    %v1629 = vpack.c.b16 %v1301, %v1293
    %v1630 = vpack.c.b16 %v1302, %v1294
    %v1631 = vpack.c.b16 %v1303, %v1295
    %v1632 = vpack.c.b16 %v1304, %v1296
    %v1633 = vpack.c.b16 %v1313, %v1305
    %v1634 = vpack.c.b16 %v1314, %v1306
    %v1635 = vpack.c.b16 %v1315, %v1307
    %v1636 = vpack.c.b16 %v1316, %v1308
    %v1637 = vpack.c.b16 %v1317, %v1309
    %v1638 = vpack.c.b16 %v1318, %v1310
    %v1639 = vpack.c.b16 %v1319, %v1311
    %v1640 = vpack.c.b16 %v1320, %v1312
    %v1641 = vpack.c.b16 %v1329, %v1321
    %v1642 = vpack.c.b16 %v1330, %v1322
    %v1643 = vpack.c.b16 %v1331, %v1323
    %v1644 = vpack.c.b16 %v1332, %v1324
    %v1645 = vpack.c.b16 %v1333, %v1325
    %v1646 = vpack.c.b16 %v1334, %v1326
    %v1647 = vpack.c.b16 %v1335, %v1327
    %v1648 = vpack.c.b16 %v1336, %v1328
    %v1649 = vpack.c.b16 %v1345, %v1337
    %v1650 = vpack.c.b16 %v1346, %v1338
    %v1651 = vpack.c.b16 %v1347, %v1339
    %v1652 = vpack.c.b16 %v1348, %v1340
    %v1653 = vpack.c.b16 %v1349, %v1341
    %v1654 = vpack.c.b16 %v1350, %v1342
    %v1655 = vpack.c.b16 %v1351, %v1343
    %v1656 = vpack.c.b16 %v1352, %v1344
    %v1657 = vpack.c.b16 %v1361, %v1353
    %v1658 = vpack.c.b16 %v1362, %v1354
    %v1659 = vpack.c.b16 %v1363, %v1355
    %v1660 = vpack.c.b16 %v1364, %v1356
    %v1661 = vpack.c.b16 %v1365, %v1357
    %v1662 = vpack.c.b16 %v1366, %v1358
    %v1663 = vpack.c.b16 %v1367, %v1359
    %v1664 = vpack.c.b16 %v1368, %v1360
    %v1665 = vpack.c.b16 %v1377, %v1369
    %v1666 = vpack.c.b16 %v1378, %v1370
    %v1667 = vpack.c.b16 %v1379, %v1371
    %v1668 = vpack.c.b16 %v1380, %v1372
    %v1669 = vpack.c.b16 %v1381, %v1373
    %v1670 = vpack.c.b16 %v1382, %v1374
    %v1671 = vpack.c.b16 %v1383, %v1375
    %v1672 = vpack.c.b16 %v1384, %v1376
    %v1673 = vpack.c.b16 %v1393, %v1385
    %v1674 = vpack.c.b16 %v1394, %v1386
    %v1675 = vpack.c.b16 %v1395, %v1387
    %v1676 = vpack.c.b16 %v1396, %v1388
    %v1677 = vpack.c.b16 %v1397, %v1389
    %v1678 = vpack.c.b16 %v1398, %v1390
    %v1679 = vpack.c.b16 %v1399, %v1391
    %v1680 = vpack.c.b16 %v1400, %v1392
    %v1681 = vpack.c.b16 %v1409, %v1401
    %v1682 = vpack.c.b16 %v1410, %v1402
    %v1683 = vpack.c.b16 %v1411, %v1403
    %v1684 = vpack.c.b16 %v1412, %v1404
    %v1685 = vpack.c.b16 %v1413, %v1405
    %v1686 = vpack.c.b16 %v1414, %v1406
    %v1687 = vpack.c.b16 %v1415, %v1407
    %v1688 = vpack.c.b16 %v1416, %v1408
    %v1689 = vpack.c.b16 %v1425, %v1417
    %v1690 = vpack.c.b16 %v1426, %v1418
    %v1691 = vpack.c.b16 %v1427, %v1419
    %v1692 = vpack.c.b16 %v1428, %v1420
    %v1693 = vpack.c.b16 %v1429, %v1421
    %v1694 = vpack.c.b16 %v1430, %v1422
    %v1695 = vpack.c.b16 %v1431, %v1423
    %v1696 = vpack.c.b16 %v1432, %v1424
    %v1697 = vpack.c.b16 %v1441, %v1433
    %v1698 = vpack.c.b16 %v1442, %v1434
    %v1699 = vpack.c.b16 %v1443, %v1435
    %v1700 = vpack.c.b16 %v1444, %v1436
    %v1701 = vpack.c.b16 %v1445, %v1437
    %v1702 = vpack.c.b16 %v1446, %v1438
    %v1703 = vpack.c.b16 %v1447, %v1439
    %v1704 = vpack.c.b16 %v1448, %v1440
    %1961 = vmatprep.subr.bf16.mxu0 %v1506
    %1962 = vmatpush1.bf16.msra.mxu0 %v1505
    %1963 = vmatprep.subr.bf16.mxu0 %v1498
    %1964 = vmatpush1.bf16.msra.mxu0 %v1497
    %1965 = vmatprep.subr.bf16.mxu0 %v1490
    %1966 = vmatpush1.bf16.msra.mxu0 %v1489
    %1967 = vmatprep.subr.bf16.mxu0 %v1482
    %1968 = vmatpush1.bf16.msra.mxu0 %v1481
    %1969 = vmatprep.subr.bf16.mxu0 %v1474
    %1970 = vmatpush1.bf16.msra.mxu0 %v1473
    %1971 = vmatprep.subr.bf16.mxu0 %v1466
    %1972 = vmatpush1.bf16.msra.mxu0 %v1465
    %1973 = vmatprep.subr.bf16.mxu0 %v1458
    %1974 = vmatpush1.bf16.msra.mxu0 %v1457
    %1975 = vmatprep.subr.bf16.mxu0 %v1450
    %1976 = vmatpush1.bf16.msra.mxu0 %v1449
    %1977 = vmatprep.subr.bf16.mxu0 %v1570
    %1978 = vmatpush2.bf16.msra.mxu0 %v1569
    %1979 = vmatprep.subr.bf16.mxu0 %v1562
    %1980 = vmatpush2.bf16.msra.mxu0 %v1561
    %1981 = vmatprep.subr.bf16.mxu0 %v1554
    %1982 = vmatpush2.bf16.msra.mxu0 %v1553
    %1983 = vmatprep.subr.bf16.mxu0 %v1546
    %1984 = vmatpush2.bf16.msra.mxu0 %v1545
    %1985 = vmatprep.subr.bf16.mxu0 %v1538
    %1986 = vmatpush2.bf16.msra.mxu0 %v1537
    %1987 = vmatprep.subr.bf16.mxu0 %v1530
    %1988 = vmatpush2.bf16.msra.mxu0 %v1529
    %1989 = vmatprep.subr.bf16.mxu0 %v1522
    %1990 = vmatpush2.bf16.msra.mxu0 %v1521
    %1991 = vmatprep.subr.bf16.mxu0 %v1514
    %1992 = vmatpush2.bf16.msra.mxu0 %v1513
    %1993 = vmatprep.mubr.bf16.mxu0 %v381
    %1994 = vmatmul.mubr.bf16.gmra.mxu0 %v380
    %v1995 = vpop.f32.mrf.mxu0
    %v1996 = vadd.f32 %v644, %v1995
    %v1997 = vpop.f32.mrf.mxu0
    %v1998 = vadd.f32 %v648, %v1997
    %v1999 = vpop.f32.mrf.mxu0
    %v2000 = vpop.f32.mrf.mxu0
    %2001 = vdwg.mxu0
    %2002 = vmatprep.subr.bf16.mxu0 %v1634
    %2003 = vmatpush1.bf16.msra.mxu0 %v1633
    %2004 = vmatprep.subr.bf16.mxu0 %v1626
    %2005 = vmatpush1.bf16.msra.mxu0 %v1625
    %2006 = vmatprep.subr.bf16.mxu0 %v1618
    %2007 = vmatpush1.bf16.msra.mxu0 %v1617
    %2008 = vmatprep.subr.bf16.mxu0 %v1610
    %2009 = vmatpush1.bf16.msra.mxu0 %v1609
    %2010 = vmatprep.subr.bf16.mxu0 %v1602
    %2011 = vmatpush1.bf16.msra.mxu0 %v1601
    %2012 = vmatprep.subr.bf16.mxu0 %v1594
    %2013 = vmatpush1.bf16.msra.mxu0 %v1593
    %2014 = vmatprep.subr.bf16.mxu0 %v1586
    %2015 = vmatpush1.bf16.msra.mxu0 %v1585
    %2016 = vmatprep.subr.bf16.mxu0 %v1578
    %2017 = vmatpush1.bf16.msra.mxu0 %v1577
    %2018 = vmatprep.subr.bf16.mxu0 %v1698
    %2019 = vmatpush2.bf16.msra.mxu0 %v1697
    %2020 = vmatprep.subr.bf16.mxu0 %v1690
    %2021 = vmatpush2.bf16.msra.mxu0 %v1689
    %2022 = vmatprep.subr.bf16.mxu0 %v1682
    %2023 = vmatpush2.bf16.msra.mxu0 %v1681
    %2024 = vmatprep.subr.bf16.mxu0 %v1674
    %2025 = vmatpush2.bf16.msra.mxu0 %v1673
    %2026 = vmatprep.subr.bf16.mxu0 %v1666
    %2027 = vmatpush2.bf16.msra.mxu0 %v1665
    %2028 = vmatprep.subr.bf16.mxu0 %v1658
    %2029 = vmatpush2.bf16.msra.mxu0 %v1657
    %2030 = vmatprep.subr.bf16.mxu0 %v1650
    %2031 = vmatpush2.bf16.msra.mxu0 %v1649
    %2032 = vmatprep.subr.bf16.mxu0 %v1642
    %2033 = vmatpush2.bf16.msra.mxu0 %v1641
    %2034 = vmatprep.mubr.bf16.mxu0 %v383
    %2035 = vmatmul.mubr.bf16.gmra.mxu0 %v382
    %v2036 = vpop.f32.mrf.mxu0
    %v2037 = vadd.f32 %v1996, %v2036
    %v2038 = vpop.f32.mrf.mxu0
    %v2039 = vadd.f32 %v1998, %v2038
    %v2040 = vpop.f32.mrf.mxu0
    %v2041 = vpop.f32.mrf.mxu0
    %2042 = vdwg.mxu0
    %2043 = vmatprep.subr.bf16.mxu0 %v1508
    %2044 = vmatpush1.bf16.msra.mxu0 %v1507
    %2045 = vmatprep.subr.bf16.mxu0 %v1500
    %2046 = vmatpush1.bf16.msra.mxu0 %v1499
    %2047 = vmatprep.subr.bf16.mxu0 %v1492
    %2048 = vmatpush1.bf16.msra.mxu0 %v1491
    %2049 = vmatprep.subr.bf16.mxu0 %v1484
    %2050 = vmatpush1.bf16.msra.mxu0 %v1483
    %2051 = vmatprep.subr.bf16.mxu0 %v1476
    %2052 = vmatpush1.bf16.msra.mxu0 %v1475
    %2053 = vmatprep.subr.bf16.mxu0 %v1468
    %2054 = vmatpush1.bf16.msra.mxu0 %v1467
    %2055 = vmatprep.subr.bf16.mxu0 %v1460
    %2056 = vmatpush1.bf16.msra.mxu0 %v1459
    %2057 = vmatprep.subr.bf16.mxu0 %v1452
    %2058 = vmatpush1.bf16.msra.mxu0 %v1451
    %2059 = vmatprep.subr.bf16.mxu0 %v1572
    %2060 = vmatpush2.bf16.msra.mxu0 %v1571
    %2061 = vmatprep.subr.bf16.mxu0 %v1564
    %2062 = vmatpush2.bf16.msra.mxu0 %v1563
    %2063 = vmatprep.subr.bf16.mxu0 %v1556
    %2064 = vmatpush2.bf16.msra.mxu0 %v1555
    %2065 = vmatprep.subr.bf16.mxu0 %v1548
    %2066 = vmatpush2.bf16.msra.mxu0 %v1547
    %2067 = vmatprep.subr.bf16.mxu0 %v1540
    %2068 = vmatpush2.bf16.msra.mxu0 %v1539
    %2069 = vmatprep.subr.bf16.mxu0 %v1532
    %2070 = vmatpush2.bf16.msra.mxu0 %v1531
    %2071 = vmatprep.subr.bf16.mxu0 %v1524
    %2072 = vmatpush2.bf16.msra.mxu0 %v1523
    %2073 = vmatprep.subr.bf16.mxu0 %v1516
    %2074 = vmatpush2.bf16.msra.mxu0 %v1515
    %2075 = vmatprep.mubr.bf16.mxu0 %v381
    %2076 = vmatmul.mubr.bf16.gmra.mxu0 %v380
    %v2077 = vpop.f32.mrf.mxu0
    %v2078 = vadd.f32 %v652, %v2077
    %v2079 = vpop.f32.mrf.mxu0
    %v2080 = vadd.f32 %v656, %v2079
    %v2081 = vpop.f32.mrf.mxu0
    %v2082 = vpop.f32.mrf.mxu0
    %2083 = vdwg.mxu0
    %2084 = vmatprep.subr.bf16.mxu0 %v1636
    %2085 = vmatpush1.bf16.msra.mxu0 %v1635
    %2086 = vmatprep.subr.bf16.mxu0 %v1628
    %2087 = vmatpush1.bf16.msra.mxu0 %v1627
    %2088 = vmatprep.subr.bf16.mxu0 %v1620
    %2089 = vmatpush1.bf16.msra.mxu0 %v1619
    %2090 = vmatprep.subr.bf16.mxu0 %v1612
    %2091 = vmatpush1.bf16.msra.mxu0 %v1611
    %2092 = vmatprep.subr.bf16.mxu0 %v1604
    %2093 = vmatpush1.bf16.msra.mxu0 %v1603
    %2094 = vmatprep.subr.bf16.mxu0 %v1596
    %2095 = vmatpush1.bf16.msra.mxu0 %v1595
    %2096 = vmatprep.subr.bf16.mxu0 %v1588
    %2097 = vmatpush1.bf16.msra.mxu0 %v1587
    %2098 = vmatprep.subr.bf16.mxu0 %v1580
    %2099 = vmatpush1.bf16.msra.mxu0 %v1579
    %2100 = vmatprep.subr.bf16.mxu0 %v1700
    %2101 = vmatpush2.bf16.msra.mxu0 %v1699
    %2102 = vmatprep.subr.bf16.mxu0 %v1692
    %2103 = vmatpush2.bf16.msra.mxu0 %v1691
    %2104 = vmatprep.subr.bf16.mxu0 %v1684
    %2105 = vmatpush2.bf16.msra.mxu0 %v1683
    %2106 = vmatprep.subr.bf16.mxu0 %v1676
    %2107 = vmatpush2.bf16.msra.mxu0 %v1675
    %2108 = vmatprep.subr.bf16.mxu0 %v1668
    %2109 = vmatpush2.bf16.msra.mxu0 %v1667
    %2110 = vmatprep.subr.bf16.mxu0 %v1660
    %2111 = vmatpush2.bf16.msra.mxu0 %v1659
    %2112 = vmatprep.subr.bf16.mxu0 %v1652
    %2113 = vmatpush2.bf16.msra.mxu0 %v1651
    %2114 = vmatprep.subr.bf16.mxu0 %v1644
    %2115 = vmatpush2.bf16.msra.mxu0 %v1643
    %2116 = vmatprep.mubr.bf16.mxu0 %v383
    %2117 = vmatmul.mubr.bf16.gmra.mxu0 %v382
    %v2118 = vpop.f32.mrf.mxu0
    %v2119 = vadd.f32 %v2078, %v2118
    %v2120 = vpop.f32.mrf.mxu0
    %v2121 = vadd.f32 %v2080, %v2120
    %v2122 = vpop.f32.mrf.mxu0
    %v2123 = vpop.f32.mrf.mxu0
    %2124 = vdwg.mxu0
    %2125 = vmatprep.subr.bf16.mxu0 %v1510
    %2126 = vmatpush1.bf16.msra.mxu0 %v1509
    %2127 = vmatprep.subr.bf16.mxu0 %v1502
    %2128 = vmatpush1.bf16.msra.mxu0 %v1501
    %2129 = vmatprep.subr.bf16.mxu0 %v1494
    %2130 = vmatpush1.bf16.msra.mxu0 %v1493
    %2131 = vmatprep.subr.bf16.mxu0 %v1486
    %2132 = vmatpush1.bf16.msra.mxu0 %v1485
    %2133 = vmatprep.subr.bf16.mxu0 %v1478
    %2134 = vmatpush1.bf16.msra.mxu0 %v1477
    %2135 = vmatprep.subr.bf16.mxu0 %v1470
    %2136 = vmatpush1.bf16.msra.mxu0 %v1469
    %2137 = vmatprep.subr.bf16.mxu0 %v1462
    %2138 = vmatpush1.bf16.msra.mxu0 %v1461
    %2139 = vmatprep.subr.bf16.mxu0 %v1454
    %2140 = vmatpush1.bf16.msra.mxu0 %v1453
    %2141 = vmatprep.subr.bf16.mxu0 %v1574
    %2142 = vmatpush2.bf16.msra.mxu0 %v1573
    %2143 = vmatprep.subr.bf16.mxu0 %v1566
    %2144 = vmatpush2.bf16.msra.mxu0 %v1565
    %2145 = vmatprep.subr.bf16.mxu0 %v1558
    %2146 = vmatpush2.bf16.msra.mxu0 %v1557
    %2147 = vmatprep.subr.bf16.mxu0 %v1550
    %2148 = vmatpush2.bf16.msra.mxu0 %v1549
    %2149 = vmatprep.subr.bf16.mxu0 %v1542
    %2150 = vmatpush2.bf16.msra.mxu0 %v1541
    %2151 = vmatprep.subr.bf16.mxu0 %v1534
    %2152 = vmatpush2.bf16.msra.mxu0 %v1533
    %2153 = vmatprep.subr.bf16.mxu0 %v1526
    %2154 = vmatpush2.bf16.msra.mxu0 %v1525
    %2155 = vmatprep.subr.bf16.mxu0 %v1518
    %2156 = vmatpush2.bf16.msra.mxu0 %v1517
    %2157 = vmatprep.mubr.bf16.mxu0 %v381
    %2158 = vmatmul.mubr.bf16.gmra.mxu0 %v380
    %v2159 = vpop.f32.mrf.mxu0
    %v2160 = vadd.f32 %v660, %v2159
    %v2161 = vpop.f32.mrf.mxu0
    %v2162 = vadd.f32 %v664, %v2161
    %v2163 = vpop.f32.mrf.mxu0
    %v2164 = vpop.f32.mrf.mxu0
    %2165 = vdwg.mxu0
    %2166 = vmatprep.subr.bf16.mxu0 %v1638
    %2167 = vmatpush1.bf16.msra.mxu0 %v1637
    %2168 = vmatprep.subr.bf16.mxu0 %v1630
    %2169 = vmatpush1.bf16.msra.mxu0 %v1629
    %2170 = vmatprep.subr.bf16.mxu0 %v1622
    %2171 = vmatpush1.bf16.msra.mxu0 %v1621
    %2172 = vmatprep.subr.bf16.mxu0 %v1614
    %2173 = vmatpush1.bf16.msra.mxu0 %v1613
    %2174 = vmatprep.subr.bf16.mxu0 %v1606
    %2175 = vmatpush1.bf16.msra.mxu0 %v1605
    %2176 = vmatprep.subr.bf16.mxu0 %v1598
    %2177 = vmatpush1.bf16.msra.mxu0 %v1597
    %2178 = vmatprep.subr.bf16.mxu0 %v1590
    %2179 = vmatpush1.bf16.msra.mxu0 %v1589
    %2180 = vmatprep.subr.bf16.mxu0 %v1582
    %2181 = vmatpush1.bf16.msra.mxu0 %v1581
    %2182 = vmatprep.subr.bf16.mxu0 %v1702
    %2183 = vmatpush2.bf16.msra.mxu0 %v1701
    %2184 = vmatprep.subr.bf16.mxu0 %v1694
    %2185 = vmatpush2.bf16.msra.mxu0 %v1693
    %2186 = vmatprep.subr.bf16.mxu0 %v1686
    %2187 = vmatpush2.bf16.msra.mxu0 %v1685
    %2188 = vmatprep.subr.bf16.mxu0 %v1678
    %2189 = vmatpush2.bf16.msra.mxu0 %v1677
    %2190 = vmatprep.subr.bf16.mxu0 %v1670
    %2191 = vmatpush2.bf16.msra.mxu0 %v1669
    %2192 = vmatprep.subr.bf16.mxu0 %v1662
    %2193 = vmatpush2.bf16.msra.mxu0 %v1661
    %2194 = vmatprep.subr.bf16.mxu0 %v1654
    %2195 = vmatpush2.bf16.msra.mxu0 %v1653
    %2196 = vmatprep.subr.bf16.mxu0 %v1646
    %2197 = vmatpush2.bf16.msra.mxu0 %v1645
    %2198 = vmatprep.mubr.bf16.mxu0 %v383
    %2199 = vmatmul.mubr.bf16.gmra.mxu0 %v382
    %v2200 = vpop.f32.mrf.mxu0
    %v2201 = vadd.f32 %v2160, %v2200
    %v2202 = vpop.f32.mrf.mxu0
    %v2203 = vadd.f32 %v2162, %v2202
    %v2204 = vpop.f32.mrf.mxu0
    %v2205 = vpop.f32.mrf.mxu0
    %2206 = vdwg.mxu0
    %2207 = vmatprep.subr.bf16.mxu0 %v1512
    %2208 = vmatpush1.bf16.msra.mxu0 %v1511
    %2209 = vmatprep.subr.bf16.mxu0 %v1504
    %2210 = vmatpush1.bf16.msra.mxu0 %v1503
    %2211 = vmatprep.subr.bf16.mxu0 %v1496
    %2212 = vmatpush1.bf16.msra.mxu0 %v1495
    %2213 = vmatprep.subr.bf16.mxu0 %v1488
    %2214 = vmatpush1.bf16.msra.mxu0 %v1487
    %2215 = vmatprep.subr.bf16.mxu0 %v1480
    %2216 = vmatpush1.bf16.msra.mxu0 %v1479
    %2217 = vmatprep.subr.bf16.mxu0 %v1472
    %2218 = vmatpush1.bf16.msra.mxu0 %v1471
    %2219 = vmatprep.subr.bf16.mxu0 %v1464
    %2220 = vmatpush1.bf16.msra.mxu0 %v1463
    %2221 = vmatprep.subr.bf16.mxu0 %v1456
    %2222 = vmatpush1.bf16.msra.mxu0 %v1455
    %2223 = vmatprep.subr.bf16.mxu0 %v1576
    %2224 = vmatpush2.bf16.msra.mxu0 %v1575
    %2225 = vmatprep.subr.bf16.mxu0 %v1568
    %2226 = vmatpush2.bf16.msra.mxu0 %v1567
    %2227 = vmatprep.subr.bf16.mxu0 %v1560
    %2228 = vmatpush2.bf16.msra.mxu0 %v1559
    %2229 = vmatprep.subr.bf16.mxu0 %v1552
    %2230 = vmatpush2.bf16.msra.mxu0 %v1551
    %2231 = vmatprep.subr.bf16.mxu0 %v1544
    %2232 = vmatpush2.bf16.msra.mxu0 %v1543
    %2233 = vmatprep.subr.bf16.mxu0 %v1536
    %2234 = vmatpush2.bf16.msra.mxu0 %v1535
    %2235 = vmatprep.subr.bf16.mxu0 %v1528
    %2236 = vmatpush2.bf16.msra.mxu0 %v1527
    %2237 = vmatprep.subr.bf16.mxu0 %v1520
    %2238 = vmatpush2.bf16.msra.mxu0 %v1519
    %2239 = vmatprep.mubr.bf16.mxu0 %v381
    %2240 = vmatmul.mubr.bf16.gmra.mxu0 %v380
    %v2241 = vpop.f32.mrf.mxu0
    %v2242 = vadd.f32 %v668, %v2241
    %v2243 = vpop.f32.mrf.mxu0
    %v2244 = vadd.f32 %v672, %v2243
    %v2245 = vpop.f32.mrf.mxu0
    %v2246 = vpop.f32.mrf.mxu0
    %2247 = vdwg.mxu0
    %2248 = vmatprep.subr.bf16.mxu0 %v1640
    %2249 = vmatpush1.bf16.msra.mxu0 %v1639
    %2250 = vmatprep.subr.bf16.mxu0 %v1632
    %2251 = vmatpush1.bf16.msra.mxu0 %v1631
    %2252 = vmatprep.subr.bf16.mxu0 %v1624
    %2253 = vmatpush1.bf16.msra.mxu0 %v1623
    %2254 = vmatprep.subr.bf16.mxu0 %v1616
    %2255 = vmatpush1.bf16.msra.mxu0 %v1615
    %2256 = vmatprep.subr.bf16.mxu0 %v1608
    %2257 = vmatpush1.bf16.msra.mxu0 %v1607
    %2258 = vmatprep.subr.bf16.mxu0 %v1600
    %2259 = vmatpush1.bf16.msra.mxu0 %v1599
    %2260 = vmatprep.subr.bf16.mxu0 %v1592
    %2261 = vmatpush1.bf16.msra.mxu0 %v1591
    %2262 = vmatprep.subr.bf16.mxu0 %v1584
    %2263 = vmatpush1.bf16.msra.mxu0 %v1583
    %2264 = vmatprep.subr.bf16.mxu0 %v1704
    %2265 = vmatpush2.bf16.msra.mxu0 %v1703
    %2266 = vmatprep.subr.bf16.mxu0 %v1696
    %2267 = vmatpush2.bf16.msra.mxu0 %v1695
    %2268 = vmatprep.subr.bf16.mxu0 %v1688
    %2269 = vmatpush2.bf16.msra.mxu0 %v1687
    %2270 = vmatprep.subr.bf16.mxu0 %v1680
    %2271 = vmatpush2.bf16.msra.mxu0 %v1679
    %2272 = vmatprep.subr.bf16.mxu0 %v1672
    %2273 = vmatpush2.bf16.msra.mxu0 %v1671
    %2274 = vmatprep.subr.bf16.mxu0 %v1664
    %2275 = vmatpush2.bf16.msra.mxu0 %v1663
    %2276 = vmatprep.subr.bf16.mxu0 %v1656
    %2277 = vmatpush2.bf16.msra.mxu0 %v1655
    %2278 = vmatprep.subr.bf16.mxu0 %v1648
    %2279 = vmatpush2.bf16.msra.mxu0 %v1647
    %2280 = vmatprep.mubr.bf16.mxu0 %v383
    %2281 = vmatmul.mubr.bf16.gmra.mxu0 %v382
    %v2282 = vpop.f32.mrf.mxu0
    %v2283 = vadd.f32 %v2242, %v2282
    %v2284 = vpop.f32.mrf.mxu0
    %v2285 = vadd.f32 %v2244, %v2284
    %v2286 = vpop.f32.mrf.mxu0
    %v2287 = vpop.f32.mrf.mxu0
    %2288 = vdwg.mxu0
    %v2289 = vmax.f32 %v2037, 0.0
    %v2290 = vmax.f32 %v2039, 0.0
    %v2291 = vmax.f32 %v2119, 0.0
    %v2292 = vmax.f32 %v2121, 0.0
    %v2293 = vmax.f32 %v2201, 0.0
    %v2294 = vmax.f32 %v2203, 0.0
    %v2295 = vmax.f32 %v2283, 0.0
    %v2296 = vmax.f32 %v2285, 0.0
    %v2297 = vpack.c.bf16 %v2289, %v2289
    %v2298 = vpack.c.bf16 %v2290, %v2290
    %v2299 = vpack.c.bf16 %v2291, %v2291
    %v2300 = vpack.c.bf16 %v2292, %v2292
    %v2301 = vpack.c.bf16 %v2293, %v2293
    %v2302 = vpack.c.bf16 %v2294, %v2294
    %v2303 = vpack.c.bf16 %v2295, %v2295
    %v2304 = vpack.c.bf16 %v2296, %v2296
    %v2305 = vld [vmem:[%s3] sm:$0xff]
    %v2306 = vld [vmem:[%s3 + $0x8] sm:$0xff]
    %v2307 = vld [vmem:[%s3 + $0x10] sm:$0xff]
    %v2308 = vld [vmem:[%s3 + $0x18] sm:$0xf]
    %v2309 = vld [vmem:[%s3 + $0x1c] sm:$0xff]
    %v2310 = vld [vmem:[%s3 + $0x24] sm:$0xff]
    %v2311 = vld [vmem:[%s3 + $0x2c] sm:$0xff]
    %v2312 = vld [vmem:[%s3 + $0x34] sm:$0xf]
    %v2313 = vld [vmem:[%s3 + $0x38] sm:$0xff]
    %v2314 = vld [vmem:[%s3 + $0x40] sm:$0xff]
    %v2315 = vld [vmem:[%s3 + $0x48] sm:$0xff]
    %v2316 = vld [vmem:[%s3 + $0x50] sm:$0xf]
    %v2317 = vld [vmem:[%s3 + $0x54] sm:$0xff]
    %v2318 = vld [vmem:[%s3 + $0x5c] sm:$0xff]
    %v2319 = vld [vmem:[%s3 + $0x64] sm:$0xff]
    %v2320 = vld [vmem:[%s3 + $0x6c] sm:$0xf]
    %v2321 = vld [vmem:[%s3 + $0x70] sm:$0xff]
    %v2322 = vld [vmem:[%s3 + $0x78] sm:$0xff]
    %v2323 = vld [vmem:[%s3 + $0x80] sm:$0xff]
    %v2324 = vld [vmem:[%s3 + $0x88] sm:$0xf]
    %v2325 = vld [vmem:[%s3 + $0x8c] sm:$0xff]
    %v2326 = vld [vmem:[%s3 + $0x94] sm:$0xff]
    %v2327 = vld [vmem:[%s3 + $0x9c] sm:$0xff]
    %v2328 = vld [vmem:[%s3 + $0xa4] sm:$0xf]
    %v2329 = vld [vmem:[%s3 + $0xa8] sm:$0xff]
    %v2330 = vld [vmem:[%s3 + $0xb0] sm:$0xff]
    %v2331 = vld [vmem:[%s3 + $0xb8] sm:$0xff]
    %v2332 = vld [vmem:[%s3 + $0xc0] sm:$0xf]
    %v2333 = vld [vmem:[%s3 + $0xc4] sm:$0xff]
    %v2334 = vld [vmem:[%s3 + $0xcc] sm:$0xff]
    %v2335 = vld [vmem:[%s3 + $0xd4] sm:$0xff]
    %v2336 = vld [vmem:[%s3 + $0xdc] sm:$0xf]
    %v2337 = vld [vmem:[%s3 + $0xe0] sm:$0xff]
    %v2338 = vld [vmem:[%s3 + $0xe8] sm:$0xff]
    %v2339 = vld [vmem:[%s3 + $0xf0] sm:$0xff]
    %v2340 = vld [vmem:[%s3 + $0xf8] sm:$0xf]
    %v2341 = vld [vmem:[%s3 + $0xfc] sm:$0xff]
    %v2342 = vld [vmem:[%s3 + $0x104] sm:$0xff]
    %v2343 = vld [vmem:[%s3 + $0x10c] sm:$0xff]
    %v2344 = vld [vmem:[%s3 + $0x114] sm:$0xf]
    %v2345 = vld [vmem:[%s3 + $0x118] sm:$0xff]
    %v2346 = vld [vmem:[%s3 + $0x120] sm:$0xff]
    %v2347 = vld [vmem:[%s3 + $0x128] sm:$0xff]
    %v2348 = vld [vmem:[%s3 + $0x130] sm:$0xf]
    %v2349 = vld [vmem:[%s3 + $0x134] sm:$0xff]
    %v2350 = vld [vmem:[%s3 + $0x13c] sm:$0xff]
    %v2351 = vld [vmem:[%s3 + $0x144] sm:$0xff]
    %v2352 = vld [vmem:[%s3 + $0x14c] sm:$0xf]
    %v2353 = vld [vmem:[%s3 + $0x150] sm:$0xff]
    %v2354 = vld [vmem:[%s3 + $0x158] sm:$0xff]
    %v2355 = vld [vmem:[%s3 + $0x160] sm:$0xff]
    %v2356 = vld [vmem:[%s3 + $0x168] sm:$0xf]
    %v2357 = vld [vmem:[%s3 + $0x16c] sm:$0xff]
    %v2358 = vld [vmem:[%s3 + $0x174] sm:$0xff]
    %v2359 = vld [vmem:[%s3 + $0x17c] sm:$0xff]
    %v2360 = vld [vmem:[%s3 + $0x184] sm:$0xf]
    %v2361 = vld [vmem:[%s3 + $0x188] sm:$0xff]
    %v2362 = vld [vmem:[%s3 + $0x190] sm:$0xff]
    %v2363 = vld [vmem:[%s3 + $0x198] sm:$0xff]
    %v2364 = vld [vmem:[%s3 + $0x1a0] sm:$0xf]
    %v2365 = vld [vmem:[%s3 + $0x1a4] sm:$0xff]
    %v2366 = vld [vmem:[%s3 + $0x1ac] sm:$0xff]
    %v2367 = vld [vmem:[%s3 + $0x1b4] sm:$0xff]
    %v2368 = vld [vmem:[%s3 + $0x1bc] sm:$0xf]
    %v2369 = vld [vmem:[%s3 + $0x1c0] sm:$0xff]
    %v2370 = vld [vmem:[%s3 + $0x1c8] sm:$0xff]
    %v2371 = vld [vmem:[%s3 + $0x1d0] sm:$0xff]
    %v2372 = vld [vmem:[%s3 + $0x1d8] sm:$0xf]
    %v2373 = vld [vmem:[%s3 + $0x1dc] sm:$0xff]
    %v2374 = vld [vmem:[%s3 + $0x1e4] sm:$0xff]
    %v2375 = vld [vmem:[%s3 + $0x1ec] sm:$0xff]
    %v2376 = vld [vmem:[%s3 + $0x1f4] sm:$0xf]
    %v2377 = vld [vmem:[%s3 + $0x1f8] sm:$0xff]
    %v2378 = vld [vmem:[%s3 + $0x200] sm:$0xff]
    %v2379 = vld [vmem:[%s3 + $0x208] sm:$0xff]
    %v2380 = vld [vmem:[%s3 + $0x210] sm:$0xf]
    %v2381 = vld [vmem:[%s3 + $0x214] sm:$0xff]
    %v2382 = vld [vmem:[%s3 + $0x21c] sm:$0xff]
    %v2383 = vld [vmem:[%s3 + $0x224] sm:$0xff]
    %v2384 = vld [vmem:[%s3 + $0x22c] sm:$0xf]
    %v2385 = vld [vmem:[%s3 + $0x230] sm:$0xff]
    %v2386 = vld [vmem:[%s3 + $0x238] sm:$0xff]
    %v2387 = vld [vmem:[%s3 + $0x240] sm:$0xff]
    %v2388 = vld [vmem:[%s3 + $0x248] sm:$0xf]
    %v2389 = vld [vmem:[%s3 + $0x24c] sm:$0xff]
    %v2390 = vld [vmem:[%s3 + $0x254] sm:$0xff]
    %v2391 = vld [vmem:[%s3 + $0x25c] sm:$0xff]
    %v2392 = vld [vmem:[%s3 + $0x264] sm:$0xf]
    %v2393 = vld [vmem:[%s3 + $0x268] sm:$0xff]
    %v2394 = vld [vmem:[%s3 + $0x270] sm:$0xff]
    %v2395 = vld [vmem:[%s3 + $0x278] sm:$0xff]
    %v2396 = vld [vmem:[%s3 + $0x280] sm:$0xf]
    %v2397 = vld [vmem:[%s3 + $0x284] sm:$0xff]
    %v2398 = vld [vmem:[%s3 + $0x28c] sm:$0xff]
    %v2399 = vld [vmem:[%s3 + $0x294] sm:$0xff]
    %v2400 = vld [vmem:[%s3 + $0x29c] sm:$0xf]
    %v2401 = vld [vmem:[%s3 + $0x2a0] sm:$0xff]
    %v2402 = vld [vmem:[%s3 + $0x2a8] sm:$0xff]
    %v2403 = vld [vmem:[%s3 + $0x2b0] sm:$0xff]
    %v2404 = vld [vmem:[%s3 + $0x2b8] sm:$0xf]
    %v2405 = vld [vmem:[%s3 + $0x2bc] sm:$0xff]
    %v2406 = vld [vmem:[%s3 + $0x2c4] sm:$0xff]
    %v2407 = vld [vmem:[%s3 + $0x2cc] sm:$0xff]
    %v2408 = vld [vmem:[%s3 + $0x2d4] sm:$0xf]
    %v2409 = vld [vmem:[%s3 + $0x2d8] sm:$0xff]
    %v2410 = vld [vmem:[%s3 + $0x2e0] sm:$0xff]
    %v2411 = vld [vmem:[%s3 + $0x2e8] sm:$0xff]
    %v2412 = vld [vmem:[%s3 + $0x2f0] sm:$0xf]
    %v2413 = vld [vmem:[%s3 + $0x2f4] sm:$0xff]
    %v2414 = vld [vmem:[%s3 + $0x2fc] sm:$0xff]
    %v2415 = vld [vmem:[%s3 + $0x304] sm:$0xff]
    %v2416 = vld [vmem:[%s3 + $0x30c] sm:$0xf]
    %v2417 = vld [vmem:[%s3 + $0x310] sm:$0xff]
    %v2418 = vld [vmem:[%s3 + $0x318] sm:$0xff]
    %v2419 = vld [vmem:[%s3 + $0x320] sm:$0xff]
    %v2420 = vld [vmem:[%s3 + $0x328] sm:$0xf]
    %v2421 = vld [vmem:[%s3 + $0x32c] sm:$0xff]
    %v2422 = vld [vmem:[%s3 + $0x334] sm:$0xff]
    %v2423 = vld [vmem:[%s3 + $0x33c] sm:$0xff]
    %v2424 = vld [vmem:[%s3 + $0x344] sm:$0xf]
    %v2425 = vld [vmem:[%s3 + $0x348] sm:$0xff]
    %v2426 = vld [vmem:[%s3 + $0x350] sm:$0xff]
    %v2427 = vld [vmem:[%s3 + $0x358] sm:$0xff]
    %v2428 = vld [vmem:[%s3 + $0x360] sm:$0xf]
    %v2429 = vld [vmem:[%s3 + $0x364] sm:$0xff]
    %v2430 = vld [vmem:[%s3 + $0x36c] sm:$0xff]
    %v2431 = vld [vmem:[%s3 + $0x374] sm:$0xff]
    %v2432 = vld [vmem:[%s3 + $0x37c] sm:$0xf]
    %v2433 = vld [vmem:[%s3 + $0x380] sm:$0xff]
    %v2434 = vld [vmem:[%s3 + $0x388] sm:$0xff]
    %v2435 = vld [vmem:[%s3 + $0x390] sm:$0xff]
    %v2436 = vld [vmem:[%s3 + $0x398] sm:$0xf]
    %v2437 = vld [vmem:[%s3 + $0x39c] sm:$0xff]
    %v2438 = vld [vmem:[%s3 + $0x3a4] sm:$0xff]
    %v2439 = vld [vmem:[%s3 + $0x3ac] sm:$0xff]
    %v2440 = vld [vmem:[%s3 + $0x3b4] sm:$0xf]
    %v2441 = vld [vmem:[%s3 + $0x3b8] sm:$0xff]
    %v2442 = vld [vmem:[%s3 + $0x3c0] sm:$0xff]
    %v2443 = vld [vmem:[%s3 + $0x3c8] sm:$0xff]
    %v2444 = vld [vmem:[%s3 + $0x3d0] sm:$0xf]
    %v2445 = vld [vmem:[%s3 + $0x3d4] sm:$0xff]
    %v2446 = vld [vmem:[%s3 + $0x3dc] sm:$0xff]
    %v2447 = vld [vmem:[%s3 + $0x3e4] sm:$0xff]
    %v2448 = vld [vmem:[%s3 + $0x3ec] sm:$0xf]
    %v2449 = vld [vmem:[%s3 + $0x3f0] sm:$0xff]
    %v2450 = vld [vmem:[%s3 + $0x3f8] sm:$0xff]
    %v2451 = vld [vmem:[%s3 + $0x400] sm:$0xff]
    %v2452 = vld [vmem:[%s3 + $0x408] sm:$0xf]
    %v2453 = vld [vmem:[%s3 + $0x40c] sm:$0xff]
    %v2454 = vld [vmem:[%s3 + $0x414] sm:$0xff]
    %v2455 = vld [vmem:[%s3 + $0x41c] sm:$0xff]
    %v2456 = vld [vmem:[%s3 + $0x424] sm:$0xf]
    %v2457 = vld [vmem:[%s3 + $0x428] sm:$0xff]
    %v2458 = vld [vmem:[%s3 + $0x430] sm:$0xff]
    %v2459 = vld [vmem:[%s3 + $0x438] sm:$0xff]
    %v2460 = vld [vmem:[%s3 + $0x440] sm:$0xf]
    %v2461 = vld [vmem:[%s3 + $0x444] sm:$0xff]
    %v2462 = vld [vmem:[%s3 + $0x44c] sm:$0xff]
    %v2463 = vld [vmem:[%s3 + $0x454] sm:$0xff]
    %v2464 = vld [vmem:[%s3 + $0x45c] sm:$0xf]
    %v2465 = vld [vmem:[%s3 + $0x460] sm:$0xff]
    %v2466 = vld [vmem:[%s3 + $0x468] sm:$0xff]
    %v2467 = vld [vmem:[%s3 + $0x470] sm:$0xff]
    %v2468 = vld [vmem:[%s3 + $0x478] sm:$0xf]
    %v2469 = vld [vmem:[%s3 + $0x47c] sm:$0xff]
    %v2470 = vld [vmem:[%s3 + $0x484] sm:$0xff]
    %v2471 = vld [vmem:[%s3 + $0x48c] sm:$0xff]
    %v2472 = vld [vmem:[%s3 + $0x494] sm:$0xf]
    %v2473 = vld [vmem:[%s3 + $0x498] sm:$0xff]
    %v2474 = vld [vmem:[%s3 + $0x4a0] sm:$0xff]
    %v2475 = vld [vmem:[%s3 + $0x4a8] sm:$0xff]
    %v2476 = vld [vmem:[%s3 + $0x4b0] sm:$0xf]
    %v2477 = vld [vmem:[%s3 + $0x4b4] sm:$0xff]
    %v2478 = vld [vmem:[%s3 + $0x4bc] sm:$0xff]
    %v2479 = vld [vmem:[%s3 + $0x4c4] sm:$0xff]
    %v2480 = vld [vmem:[%s3 + $0x4cc] sm:$0xf]
    %v2481 = vld [vmem:[%s3 + $0x4d0] sm:$0xff]
    %v2482 = vld [vmem:[%s3 + $0x4d8] sm:$0xff]
    %v2483 = vld [vmem:[%s3 + $0x4e0] sm:$0xff]
    %v2484 = vld [vmem:[%s3 + $0x4e8] sm:$0xf]
    %v2485 = vld [vmem:[%s3 + $0x4ec] sm:$0xff]
    %v2486 = vld [vmem:[%s3 + $0x4f4] sm:$0xff]
    %v2487 = vld [vmem:[%s3 + $0x4fc] sm:$0xff]
    %v2488 = vld [vmem:[%s3 + $0x504] sm:$0xf]
    %v2489 = vld [vmem:[%s3 + $0x508] sm:$0xff]
    %v2490 = vld [vmem:[%s3 + $0x510] sm:$0xff]
    %v2491 = vld [vmem:[%s3 + $0x518] sm:$0xff]
    %v2492 = vld [vmem:[%s3 + $0x520] sm:$0xf]
    %v2493 = vld [vmem:[%s3 + $0x524] sm:$0xff]
    %v2494 = vld [vmem:[%s3 + $0x52c] sm:$0xff]
    %v2495 = vld [vmem:[%s3 + $0x534] sm:$0xff]
    %v2496 = vld [vmem:[%s3 + $0x53c] sm:$0xf]
    %v2497 = vld [vmem:[%s3 + $0x540] sm:$0xff]
    %v2498 = vld [vmem:[%s3 + $0x548] sm:$0xff]
    %v2499 = vld [vmem:[%s3 + $0x550] sm:$0xff]
    %v2500 = vld [vmem:[%s3 + $0x558] sm:$0xf]
    %v2501 = vld [vmem:[%s3 + $0x55c] sm:$0xff]
    %v2502 = vld [vmem:[%s3 + $0x564] sm:$0xff]
    %v2503 = vld [vmem:[%s3 + $0x56c] sm:$0xff]
    %v2504 = vld [vmem:[%s3 + $0x574] sm:$0xf]
    %v2505 = vld [vmem:[%s3 + $0x578] sm:$0xff]
    %v2506 = vld [vmem:[%s3 + $0x580] sm:$0xff]
    %v2507 = vld [vmem:[%s3 + $0x588] sm:$0xff]
    %v2508 = vld [vmem:[%s3 + $0x590] sm:$0xf]
    %v2509 = vld [vmem:[%s3 + $0x594] sm:$0xff]
    %v2510 = vld [vmem:[%s3 + $0x59c] sm:$0xff]
    %v2511 = vld [vmem:[%s3 + $0x5a4] sm:$0xff]
    %v2512 = vld [vmem:[%s3 + $0x5ac] sm:$0xf]
    %v2513 = vld [vmem:[%s3 + $0x5b0] sm:$0xff]
    %v2514 = vld [vmem:[%s3 + $0x5b8] sm:$0xff]
    %v2515 = vld [vmem:[%s3 + $0x5c0] sm:$0xff]
    %v2516 = vld [vmem:[%s3 + $0x5c8] sm:$0xf]
    %v2517 = vld [vmem:[%s3 + $0x5cc] sm:$0xff]
    %v2518 = vld [vmem:[%s3 + $0x5d4] sm:$0xff]
    %v2519 = vld [vmem:[%s3 + $0x5dc] sm:$0xff]
    %v2520 = vld [vmem:[%s3 + $0x5e4] sm:$0xf]
    %v2521 = vld [vmem:[%s3 + $0x5e8] sm:$0xff]
    %v2522 = vld [vmem:[%s3 + $0x5f0] sm:$0xff]
    %v2523 = vld [vmem:[%s3 + $0x5f8] sm:$0xff]
    %v2524 = vld [vmem:[%s3 + $0x600] sm:$0xf]
    %v2525 = vld [vmem:[%s3 + $0x604] sm:$0xff]
    %v2526 = vld [vmem:[%s3 + $0x60c] sm:$0xff]
    %v2527 = vld [vmem:[%s3 + $0x614] sm:$0xff]
    %v2528 = vld [vmem:[%s3 + $0x61c] sm:$0xf]
    %v2529 = vld [vmem:[%s3 + $0x620] sm:$0xff]
    %v2530 = vld [vmem:[%s3 + $0x628] sm:$0xff]
    %v2531 = vld [vmem:[%s3 + $0x630] sm:$0xff]
    %v2532 = vld [vmem:[%s3 + $0x638] sm:$0xf]
    %v2533 = vld [vmem:[%s3 + $0x63c] sm:$0xff]
    %v2534 = vld [vmem:[%s3 + $0x644] sm:$0xff]
    %v2535 = vld [vmem:[%s3 + $0x64c] sm:$0xff]
    %v2536 = vld [vmem:[%s3 + $0x654] sm:$0xf]
    %v2537 = vld [vmem:[%s3 + $0x658] sm:$0xff]
    %v2538 = vld [vmem:[%s3 + $0x660] sm:$0xff]
    %v2539 = vld [vmem:[%s3 + $0x668] sm:$0xff]
    %v2540 = vld [vmem:[%s3 + $0x670] sm:$0xf]
    %v2541 = vld [vmem:[%s3 + $0x674] sm:$0xff]
    %v2542 = vld [vmem:[%s3 + $0x67c] sm:$0xff]
    %v2543 = vld [vmem:[%s3 + $0x684] sm:$0xff]
    %v2544 = vld [vmem:[%s3 + $0x68c] sm:$0xf]
    %v2545 = vld [vmem:[%s3 + $0x690] sm:$0xff]
    %v2546 = vld [vmem:[%s3 + $0x698] sm:$0xff]
    %v2547 = vld [vmem:[%s3 + $0x6a0] sm:$0xff]
    %v2548 = vld [vmem:[%s3 + $0x6a8] sm:$0xf]
    %v2549 = vld [vmem:[%s3 + $0x6ac] sm:$0xff]
    %v2550 = vld [vmem:[%s3 + $0x6b4] sm:$0xff]
    %v2551 = vld [vmem:[%s3 + $0x6bc] sm:$0xff]
    %v2552 = vld [vmem:[%s3 + $0x6c4] sm:$0xf]
    %v2553 = vld [vmem:[%s3 + $0x6c8] sm:$0xff]
    %v2554 = vld [vmem:[%s3 + $0x6d0] sm:$0xff]
    %v2555 = vld [vmem:[%s3 + $0x6d8] sm:$0xff]
    %v2556 = vld [vmem:[%s3 + $0x6e0] sm:$0xf]
    %v2557 = vld [vmem:[%s3 + $0x6e4] sm:$0xff]
    %v2558 = vld [vmem:[%s3 + $0x6ec] sm:$0xff]
    %v2559 = vld [vmem:[%s3 + $0x6f4] sm:$0xff]
    %v2560 = vld [vmem:[%s3 + $0x6fc] sm:$0xf]
    %v2561 = vld [vmem:[%s3 + $0x700] sm:$0xff]
    %v2562 = vld [vmem:[%s3 + $0x708] sm:$0xff]
    %v2563 = vld [vmem:[%s3 + $0x710] sm:$0xff]
    %v2564 = vld [vmem:[%s3 + $0x718] sm:$0xf]
    %v2565 = vld [vmem:[%s3 + $0x71c] sm:$0xff]
    %v2566 = vld [vmem:[%s3 + $0x724] sm:$0xff]
    %v2567 = vld [vmem:[%s3 + $0x72c] sm:$0xff]
    %v2568 = vld [vmem:[%s3 + $0x734] sm:$0xf]
    %v2569 = vld [vmem:[%s3 + $0x738] sm:$0xff]
    %v2570 = vld [vmem:[%s3 + $0x740] sm:$0xff]
    %v2571 = vld [vmem:[%s3 + $0x748] sm:$0xff]
    %v2572 = vld [vmem:[%s3 + $0x750] sm:$0xf]
    %v2573 = vld [vmem:[%s3 + $0x754] sm:$0xff]
    %v2574 = vld [vmem:[%s3 + $0x75c] sm:$0xff]
    %v2575 = vld [vmem:[%s3 + $0x764] sm:$0xff]
    %v2576 = vld [vmem:[%s3 + $0x76c] sm:$0xf]
    %v2577 = vld [vmem:[%s3 + $0x770] sm:$0xff]
    %v2578 = vld [vmem:[%s3 + $0x778] sm:$0xff]
    %v2579 = vld [vmem:[%s3 + $0x780] sm:$0xff]
    %v2580 = vld [vmem:[%s3 + $0x788] sm:$0xf]
    %v2581 = vld [vmem:[%s3 + $0x78c] sm:$0xff]
    %v2582 = vld [vmem:[%s3 + $0x794] sm:$0xff]
    %v2583 = vld [vmem:[%s3 + $0x79c] sm:$0xff]
    %v2584 = vld [vmem:[%s3 + $0x7a4] sm:$0xf]
    %v2585 = vld [vmem:[%s3 + $0x7a8] sm:$0xff]
    %v2586 = vld [vmem:[%s3 + $0x7b0] sm:$0xff]
    %v2587 = vld [vmem:[%s3 + $0x7b8] sm:$0xff]
    %v2588 = vld [vmem:[%s3 + $0x7c0] sm:$0xf]
    %v2589 = vld [vmem:[%s3 + $0x7c4] sm:$0xff]
    %v2590 = vld [vmem:[%s3 + $0x7cc] sm:$0xff]
    %v2591 = vld [vmem:[%s3 + $0x7d4] sm:$0xff]
    %v2592 = vld [vmem:[%s3 + $0x7dc] sm:$0xf]
    %v2593 = vld [vmem:[%s3 + $0x7e0] sm:$0xff]
    %v2594 = vld [vmem:[%s3 + $0x7e8] sm:$0xff]
    %v2595 = vld [vmem:[%s3 + $0x7f0] sm:$0xff]
    %v2596 = vld [vmem:[%s3 + $0x7f8] sm:$0xf]
    %v2597 = vld [vmem:[%s3 + $0x7fc] sm:$0xff]
    %v2598 = vld [vmem:[%s3 + $0x804] sm:$0xff]
    %v2599 = vld [vmem:[%s3 + $0x80c] sm:$0xff]
    %v2600 = vld [vmem:[%s3 + $0x814] sm:$0xf]
    %v2601 = vld [vmem:[%s3 + $0x818] sm:$0xff]
    %v2602 = vld [vmem:[%s3 + $0x820] sm:$0xff]
    %v2603 = vld [vmem:[%s3 + $0x828] sm:$0xff]
    %v2604 = vld [vmem:[%s3 + $0x830] sm:$0xf]
    %v2605 = vld [vmem:[%s3 + $0x834] sm:$0xff]
    %v2606 = vld [vmem:[%s3 + $0x83c] sm:$0xff]
    %v2607 = vld [vmem:[%s3 + $0x844] sm:$0xff]
    %v2608 = vld [vmem:[%s3 + $0x84c] sm:$0xf]
    %v2609 = vld [vmem:[%s3 + $0x850] sm:$0xff]
    %v2610 = vld [vmem:[%s3 + $0x858] sm:$0xff]
    %v2611 = vld [vmem:[%s3 + $0x860] sm:$0xff]
    %v2612 = vld [vmem:[%s3 + $0x868] sm:$0xf]
    %v2613 = vld [vmem:[%s3 + $0x86c] sm:$0xff]
    %v2614 = vld [vmem:[%s3 + $0x874] sm:$0xff]
    %v2615 = vld [vmem:[%s3 + $0x87c] sm:$0xff]
    %v2616 = vld [vmem:[%s3 + $0x884] sm:$0xf]
    %v2617 = vld [vmem:[%s3 + $0x888] sm:$0xff]
    %v2618 = vld [vmem:[%s3 + $0x890] sm:$0xff]
    %v2619 = vld [vmem:[%s3 + $0x898] sm:$0xff]
    %v2620 = vld [vmem:[%s3 + $0x8a0] sm:$0xf]
    %v2621 = vld [vmem:[%s3 + $0x8a4] sm:$0xff]
    %v2622 = vld [vmem:[%s3 + $0x8ac] sm:$0xff]
    %v2623 = vld [vmem:[%s3 + $0x8b4] sm:$0xff]
    %v2624 = vld [vmem:[%s3 + $0x8bc] sm:$0xf]
    %v2625 = vld [vmem:[%s3 + $0x8c0] sm:$0xff]
    %v2626 = vld [vmem:[%s3 + $0x8c8] sm:$0xff]
    %v2627 = vld [vmem:[%s3 + $0x8d0] sm:$0xff]
    %v2628 = vld [vmem:[%s3 + $0x8d8] sm:$0xf]
    %v2629 = vld [vmem:[%s3 + $0x8dc] sm:$0xff]
    %v2630 = vld [vmem:[%s3 + $0x8e4] sm:$0xff]
    %v2631 = vld [vmem:[%s3 + $0x8ec] sm:$0xff]
    %v2632 = vld [vmem:[%s3 + $0x8f4] sm:$0xf]
    %v2633 = vld [vmem:[%s3 + $0x8f8] sm:$0xff]
    %v2634 = vld [vmem:[%s3 + $0x900] sm:$0xff]
    %v2635 = vld [vmem:[%s3 + $0x908] sm:$0xff]
    %v2636 = vld [vmem:[%s3 + $0x910] sm:$0xf]
    %v2637 = vld [vmem:[%s3 + $0x914] sm:$0xff]
    %v2638 = vld [vmem:[%s3 + $0x91c] sm:$0xff]
    %v2639 = vld [vmem:[%s3 + $0x924] sm:$0xff]
    %v2640 = vld [vmem:[%s3 + $0x92c] sm:$0xf]
    %v2641 = vld [vmem:[%s3 + $0x930] sm:$0xff]
    %v2642 = vld [vmem:[%s3 + $0x938] sm:$0xff]
    %v2643 = vld [vmem:[%s3 + $0x940] sm:$0xff]
    %v2644 = vld [vmem:[%s3 + $0x948] sm:$0xf]
    %v2645 = vld [vmem:[%s3 + $0x94c] sm:$0xff]
    %v2646 = vld [vmem:[%s3 + $0x954] sm:$0xff]
    %v2647 = vld [vmem:[%s3 + $0x95c] sm:$0xff]
    %v2648 = vld [vmem:[%s3 + $0x964] sm:$0xf]
    %v2649 = vld [vmem:[%s3 + $0x968] sm:$0xff]
    %v2650 = vld [vmem:[%s3 + $0x970] sm:$0xff]
    %v2651 = vld [vmem:[%s3 + $0x978] sm:$0xff]
    %v2652 = vld [vmem:[%s3 + $0x980] sm:$0xf]
    %v2653 = vld [vmem:[%s3 + $0x984] sm:$0xff]
    %v2654 = vld [vmem:[%s3 + $0x98c] sm:$0xff]
    %v2655 = vld [vmem:[%s3 + $0x994] sm:$0xff]
    %v2656 = vld [vmem:[%s3 + $0x99c] sm:$0xf]
    %v2657 = vld [vmem:[%s3 + $0x9a0] sm:$0xff]
    %v2658 = vld [vmem:[%s3 + $0x9a8] sm:$0xff]
    %v2659 = vld [vmem:[%s3 + $0x9b0] sm:$0xff]
    %v2660 = vld [vmem:[%s3 + $0x9b8] sm:$0xf]
    %v2661 = vld [vmem:[%s3 + $0x9bc] sm:$0xff]
    %v2662 = vld [vmem:[%s3 + $0x9c4] sm:$0xff]
    %v2663 = vld [vmem:[%s3 + $0x9cc] sm:$0xff]
    %v2664 = vld [vmem:[%s3 + $0x9d4] sm:$0xf]
    %v2665 = vld [vmem:[%s3 + $0x9d8] sm:$0xff]
    %v2666 = vld [vmem:[%s3 + $0x9e0] sm:$0xff]
    %v2667 = vld [vmem:[%s3 + $0x9e8] sm:$0xff]
    %v2668 = vld [vmem:[%s3 + $0x9f0] sm:$0xf]
    %v2669 = vld [vmem:[%s3 + $0x9f4] sm:$0xff]
    %v2670 = vld [vmem:[%s3 + $0x9fc] sm:$0xff]
    %v2671 = vld [vmem:[%s3 + $0xa04] sm:$0xff]
    %v2672 = vld [vmem:[%s3 + $0xa0c] sm:$0xf]
    %v2673 = vld [vmem:[%s3 + $0xa10] sm:$0xff]
    %v2674 = vld [vmem:[%s3 + $0xa18] sm:$0xff]
    %v2675 = vld [vmem:[%s3 + $0xa20] sm:$0xff]
    %v2676 = vld [vmem:[%s3 + $0xa28] sm:$0xf]
    %v2677 = vld [vmem:[%s3 + $0xa2c] sm:$0xff]
    %v2678 = vld [vmem:[%s3 + $0xa34] sm:$0xff]
    %v2679 = vld [vmem:[%s3 + $0xa3c] sm:$0xff]
    %v2680 = vld [vmem:[%s3 + $0xa44] sm:$0xf]
    %v2681 = vld [vmem:[%s3 + $0xa48] sm:$0xff]
    %v2682 = vld [vmem:[%s3 + $0xa50] sm:$0xff]
    %v2683 = vld [vmem:[%s3 + $0xa58] sm:$0xff]
    %v2684 = vld [vmem:[%s3 + $0xa60] sm:$0xf]
    %v2685 = vld [vmem:[%s3 + $0xa64] sm:$0xff]
    %v2686 = vld [vmem:[%s3 + $0xa6c] sm:$0xff]
    %v2687 = vld [vmem:[%s3 + $0xa74] sm:$0xff]
    %v2688 = vld [vmem:[%s3 + $0xa7c] sm:$0xf]
    %v2689 = vld [vmem:[%s3 + $0xa80] sm:$0xff]
    %v2690 = vld [vmem:[%s3 + $0xa88] sm:$0xff]
    %v2691 = vld [vmem:[%s3 + $0xa90] sm:$0xff]
    %v2692 = vld [vmem:[%s3 + $0xa98] sm:$0xf]
    %v2693 = vld [vmem:[%s3 + $0xa9c] sm:$0xff]
    %v2694 = vld [vmem:[%s3 + $0xaa4] sm:$0xff]
    %v2695 = vld [vmem:[%s3 + $0xaac] sm:$0xff]
    %v2696 = vld [vmem:[%s3 + $0xab4] sm:$0xf]
    %v2697 = vld [vmem:[%s3 + $0xab8] sm:$0xff]
    %v2698 = vld [vmem:[%s3 + $0xac0] sm:$0xff]
    %v2699 = vld [vmem:[%s3 + $0xac8] sm:$0xff]
    %v2700 = vld [vmem:[%s3 + $0xad0] sm:$0xf]
    %v2701 = vld [vmem:[%s3 + $0xad4] sm:$0xff]
    %v2702 = vld [vmem:[%s3 + $0xadc] sm:$0xff]
    %v2703 = vld [vmem:[%s3 + $0xae4] sm:$0xff]
    %v2704 = vld [vmem:[%s3 + $0xaec] sm:$0xf]
    %v2705 = vld [vmem:[%s3 + $0xaf0] sm:$0xff]
    %v2706 = vld [vmem:[%s3 + $0xaf8] sm:$0xff]
    %v2707 = vld [vmem:[%s3 + $0xb00] sm:$0xff]
    %v2708 = vld [vmem:[%s3 + $0xb08] sm:$0xf]
    %v2709 = vld [vmem:[%s3 + $0xb0c] sm:$0xff]
    %v2710 = vld [vmem:[%s3 + $0xb14] sm:$0xff]
    %v2711 = vld [vmem:[%s3 + $0xb1c] sm:$0xff]
    %v2712 = vld [vmem:[%s3 + $0xb24] sm:$0xf]
    %v2713 = vld [vmem:[%s3 + $0xb28] sm:$0xff]
    %v2714 = vld [vmem:[%s3 + $0xb30] sm:$0xff]
    %v2715 = vld [vmem:[%s3 + $0xb38] sm:$0xff]
    %v2716 = vld [vmem:[%s3 + $0xb40] sm:$0xf]
    %v2717 = vld [vmem:[%s3 + $0xb44] sm:$0xff]
    %v2718 = vld [vmem:[%s3 + $0xb4c] sm:$0xff]
    %v2719 = vld [vmem:[%s3 + $0xb54] sm:$0xff]
    %v2720 = vld [vmem:[%s3 + $0xb5c] sm:$0xf]
    %v2721 = vld [vmem:[%s3 + $0xb60] sm:$0xff]
    %v2722 = vld [vmem:[%s3 + $0xb68] sm:$0xff]
    %v2723 = vld [vmem:[%s3 + $0xb70] sm:$0xff]
    %v2724 = vld [vmem:[%s3 + $0xb78] sm:$0xf]
    %v2725 = vld [vmem:[%s3 + $0xb7c] sm:$0xff]
    %v2726 = vld [vmem:[%s3 + $0xb84] sm:$0xff]
    %v2727 = vld [vmem:[%s3 + $0xb8c] sm:$0xff]
    %v2728 = vld [vmem:[%s3 + $0xb94] sm:$0xf]
    %v2729 = vld [vmem:[%s3 + $0xb98] sm:$0xff]
    %v2730 = vld [vmem:[%s3 + $0xba0] sm:$0xff]
    %v2731 = vld [vmem:[%s3 + $0xba8] sm:$0xff]
    %v2732 = vld [vmem:[%s3 + $0xbb0] sm:$0xf]
    %v2733 = vld [vmem:[%s3 + $0xbb4] sm:$0xff]
    %v2734 = vld [vmem:[%s3 + $0xbbc] sm:$0xff]
    %v2735 = vld [vmem:[%s3 + $0xbc4] sm:$0xff]
    %v2736 = vld [vmem:[%s3 + $0xbcc] sm:$0xf]
    %v2737 = vld [vmem:[%s3 + $0xbd0] sm:$0xff]
    %v2738 = vld [vmem:[%s3 + $0xbd8] sm:$0xff]
    %v2739 = vld [vmem:[%s3 + $0xbe0] sm:$0xff]
    %v2740 = vld [vmem:[%s3 + $0xbe8] sm:$0xf]
    %v2741 = vld [vmem:[%s3 + $0xbec] sm:$0xff]
    %v2742 = vld [vmem:[%s3 + $0xbf4] sm:$0xff]
    %v2743 = vld [vmem:[%s3 + $0xbfc] sm:$0xff]
    %v2744 = vld [vmem:[%s3 + $0xc04] sm:$0xf]
    %v2745 = vld [vmem:[%s3 + $0xc08] sm:$0xff]
    %v2746 = vld [vmem:[%s3 + $0xc10] sm:$0xff]
    %v2747 = vld [vmem:[%s3 + $0xc18] sm:$0xff]
    %v2748 = vld [vmem:[%s3 + $0xc20] sm:$0xf]
    %v2749 = vld [vmem:[%s3 + $0xc24] sm:$0xff]
    %v2750 = vld [vmem:[%s3 + $0xc2c] sm:$0xff]
    %v2751 = vld [vmem:[%s3 + $0xc34] sm:$0xff]
    %v2752 = vld [vmem:[%s3 + $0xc3c] sm:$0xf]
    %v2753 = vld [vmem:[%s3 + $0xc40] sm:$0xff]
    %v2754 = vld [vmem:[%s3 + $0xc48] sm:$0xff]
    %v2755 = vld [vmem:[%s3 + $0xc50] sm:$0xff]
    %v2756 = vld [vmem:[%s3 + $0xc58] sm:$0xf]
    %v2757 = vld [vmem:[%s3 + $0xc5c] sm:$0xff]
    %v2758 = vld [vmem:[%s3 + $0xc64] sm:$0xff]
    %v2759 = vld [vmem:[%s3 + $0xc6c] sm:$0xff]
    %v2760 = vld [vmem:[%s3 + $0xc74] sm:$0xf]
    %v2761 = vld [vmem:[%s3 + $0xc78] sm:$0xff]
    %v2762 = vld [vmem:[%s3 + $0xc80] sm:$0xff]
    %v2763 = vld [vmem:[%s3 + $0xc88] sm:$0xff]
    %v2764 = vld [vmem:[%s3 + $0xc90] sm:$0xf]
    %v2765 = vld [vmem:[%s3 + $0xc94] sm:$0xff]
    %v2766 = vld [vmem:[%s3 + $0xc9c] sm:$0xff]
    %v2767 = vld [vmem:[%s3 + $0xca4] sm:$0xff]
    %v2768 = vld [vmem:[%s3 + $0xcac] sm:$0xf]
    %v2769 = vld [vmem:[%s3 + $0xcb0] sm:$0xff]
    %v2770 = vld [vmem:[%s3 + $0xcb8] sm:$0xff]
    %v2771 = vld [vmem:[%s3 + $0xcc0] sm:$0xff]
    %v2772 = vld [vmem:[%s3 + $0xcc8] sm:$0xf]
    %v2773 = vld [vmem:[%s3 + $0xccc] sm:$0xff]
    %v2774 = vld [vmem:[%s3 + $0xcd4] sm:$0xff]
    %v2775 = vld [vmem:[%s3 + $0xcdc] sm:$0xff]
    %v2776 = vld [vmem:[%s3 + $0xce4] sm:$0xf]
    %v2777 = vld [vmem:[%s3 + $0xce8] sm:$0xff]
    %v2778 = vld [vmem:[%s3 + $0xcf0] sm:$0xff]
    %v2779 = vld [vmem:[%s3 + $0xcf8] sm:$0xff]
    %v2780 = vld [vmem:[%s3 + $0xd00] sm:$0xf]
    %v2781 = vld [vmem:[%s3 + $0xd04] sm:$0xff]
    %v2782 = vld [vmem:[%s3 + $0xd0c] sm:$0xff]
    %v2783 = vld [vmem:[%s3 + $0xd14] sm:$0xff]
    %v2784 = vld [vmem:[%s3 + $0xd1c] sm:$0xf]
    %v2785 = vld [vmem:[%s3 + $0xd20] sm:$0xff]
    %v2786 = vld [vmem:[%s3 + $0xd28] sm:$0xff]
    %v2787 = vld [vmem:[%s3 + $0xd30] sm:$0xff]
    %v2788 = vld [vmem:[%s3 + $0xd38] sm:$0xf]
    %v2789 = vld [vmem:[%s3 + $0xd3c] sm:$0xff]
    %v2790 = vld [vmem:[%s3 + $0xd44] sm:$0xff]
    %v2791 = vld [vmem:[%s3 + $0xd4c] sm:$0xff]
    %v2792 = vld [vmem:[%s3 + $0xd54] sm:$0xf]
    %v2793 = vld [vmem:[%s3 + $0xd58] sm:$0xff]
    %v2794 = vld [vmem:[%s3 + $0xd60] sm:$0xff]
    %v2795 = vld [vmem:[%s3 + $0xd68] sm:$0xff]
    %v2796 = vld [vmem:[%s3 + $0xd70] sm:$0xf]
    %v2797 = vld [vmem:[%s3 + $0xd74] sm:$0xff]
    %v2798 = vld [vmem:[%s3 + $0xd7c] sm:$0xff]
    %v2799 = vld [vmem:[%s3 + $0xd84] sm:$0xff]
    %v2800 = vld [vmem:[%s3 + $0xd8c] sm:$0xf]
    %v2801 = vld [vmem:[%s3 + $0xd90] sm:$0xff]
    %v2802 = vld [vmem:[%s3 + $0xd98] sm:$0xff]
    %v2803 = vld [vmem:[%s3 + $0xda0] sm:$0xff]
    %v2804 = vld [vmem:[%s3 + $0xda8] sm:$0xf]
    %v2805 = vld [vmem:[%s3 + $0xdac] sm:$0xff]
    %v2806 = vld [vmem:[%s3 + $0xdb4] sm:$0xff]
    %v2807 = vld [vmem:[%s3 + $0xdbc] sm:$0xff]
    %v2808 = vld [vmem:[%s3 + $0xdc4] sm:$0xf]
    %v2809 = vld [vmem:[%s3 + $0xdc8] sm:$0xff]
    %v2810 = vld [vmem:[%s3 + $0xdd0] sm:$0xff]
    %v2811 = vld [vmem:[%s3 + $0xdd8] sm:$0xff]
    %v2812 = vld [vmem:[%s3 + $0xde0] sm:$0xf]
    %v2813 = vld [vmem:[%s3 + $0xde4] sm:$0xff]
    %v2814 = vld [vmem:[%s3 + $0xdec] sm:$0xff]
    %v2815 = vld [vmem:[%s3 + $0xdf4] sm:$0xff]
    %v2816 = vld [vmem:[%s3 + $0xdfc] sm:$0xf]
    %v2818 = vlaneseq
    %v2819 = vshrl.u32 %v2818, 7
    %v2820 = vsub.s32 0, %v2819
    %v2821 = vrot.slane %v28, %v2820
    %v2822 = vlaneseq
    %v2823 = vshrl.u32 %v2822, 7
    %v2824 = vsub.s32 1, %v2823
    %v2825 = vrot.slane %v28, %v2824
    %v2826 = vlaneseq
    %v2827 = vshrl.u32 %v2826, 7
    %v2828 = vsub.s32 2, %v2827
    %v2829 = vrot.slane %v28, %v2828
    %v2830 = vlaneseq
    %v2831 = vshrl.u32 %v2830, 7
    %v2832 = vsub.s32 3, %v2831
    %v2833 = vrot.slane %v28, %v2832
    %v2834 = vlaneseq
    %v2835 = vshrl.u32 %v2834, 7
    %v2836 = vsub.s32 4, %v2835
    %v2837 = vrot.slane %v28, %v2836
    %v2838 = vlaneseq
    %v2839 = vshrl.u32 %v2838, 7
    %v2840 = vsub.s32 5, %v2839
    %v2841 = vrot.slane %v28, %v2840
    %v2842 = vlaneseq
    %v2843 = vshrl.u32 %v2842, 7
    %v2844 = vsub.s32 6, %v2843
    %v2845 = vrot.slane %v28, %v2844
    %v3365 = vunpack.c.l.b16 %v2305
    %v3366 = vunpack.c.h.b16 %v2305
    %v3367 = vunpack.c.l.b16 %v2306
    %v3368 = vunpack.c.h.b16 %v2306
    %v3369 = vunpack.c.l.b16 %v2307
    %v3370 = vunpack.c.h.b16 %v2307
    %v3371 = vunpack.c.l.b16 %v2308
    %v3372 = vunpack.c.l.b16 %v2309
    %v3373 = vunpack.c.h.b16 %v2309
    %v3374 = vunpack.c.l.b16 %v2310
    %v3375 = vunpack.c.h.b16 %v2310
    %v3376 = vunpack.c.l.b16 %v2311
    %v3377 = vunpack.c.h.b16 %v2311
    %v3378 = vunpack.c.l.b16 %v2312
    %v3379 = vunpack.c.l.b16 %v2313
    %v3380 = vunpack.c.h.b16 %v2313
    %v3381 = vunpack.c.l.b16 %v2314
    %v3382 = vunpack.c.h.b16 %v2314
    %v3383 = vunpack.c.l.b16 %v2315
    %v3384 = vunpack.c.h.b16 %v2315
    %v3385 = vunpack.c.l.b16 %v2316
    %v3386 = vunpack.c.l.b16 %v2317
    %v3387 = vunpack.c.h.b16 %v2317
    %v3388 = vunpack.c.l.b16 %v2318
    %v3389 = vunpack.c.h.b16 %v2318
    %v3390 = vunpack.c.l.b16 %v2319
    %v3391 = vunpack.c.h.b16 %v2319
    %v3392 = vunpack.c.l.b16 %v2320
    %v3393 = vunpack.c.l.b16 %v2321
    %v3394 = vunpack.c.h.b16 %v2321
    %v3395 = vunpack.c.l.b16 %v2322
    %v3396 = vunpack.c.h.b16 %v2322
    %v3397 = vunpack.c.l.b16 %v2323
    %v3398 = vunpack.c.h.b16 %v2323
    %v3399 = vunpack.c.l.b16 %v2324
    %v3400 = vunpack.c.l.b16 %v2325
    %v3401 = vunpack.c.h.b16 %v2325
    %v3402 = vunpack.c.l.b16 %v2326
    %v3403 = vunpack.c.h.b16 %v2326
    %v3404 = vunpack.c.l.b16 %v2327
    %v3405 = vunpack.c.h.b16 %v2327
    %v3406 = vunpack.c.l.b16 %v2328
    %v3407 = vunpack.c.l.b16 %v2329
    %v3408 = vunpack.c.h.b16 %v2329
    %v3409 = vunpack.c.l.b16 %v2330
    %v3410 = vunpack.c.h.b16 %v2330
    %v3411 = vunpack.c.l.b16 %v2331
    %v3412 = vunpack.c.h.b16 %v2331
    %v3413 = vunpack.c.l.b16 %v2332
    %v3414 = vunpack.c.l.b16 %v2333
    %v3415 = vunpack.c.h.b16 %v2333
    %v3416 = vunpack.c.l.b16 %v2334
    %v3417 = vunpack.c.h.b16 %v2334
    %v3418 = vunpack.c.l.b16 %v2335
    %v3419 = vunpack.c.h.b16 %v2335
    %v3420 = vunpack.c.l.b16 %v2336
    %v3421 = vunpack.c.l.b16 %v2337
    %v3422 = vunpack.c.h.b16 %v2337
    %v3423 = vunpack.c.l.b16 %v2338
    %v3424 = vunpack.c.h.b16 %v2338
    %v3425 = vunpack.c.l.b16 %v2339
    %v3426 = vunpack.c.h.b16 %v2339
    %v3427 = vunpack.c.l.b16 %v2340
    %v3428 = vunpack.c.l.b16 %v2341
    %v3429 = vunpack.c.h.b16 %v2341
    %v3430 = vunpack.c.l.b16 %v2342
    %v3431 = vunpack.c.h.b16 %v2342
    %v3432 = vunpack.c.l.b16 %v2343
    %v3433 = vunpack.c.h.b16 %v2343
    %v3434 = vunpack.c.l.b16 %v2344
    %v3435 = vunpack.c.l.b16 %v2345
    %v3436 = vunpack.c.h.b16 %v2345
    %v3437 = vunpack.c.l.b16 %v2346
    %v3438 = vunpack.c.h.b16 %v2346
    %v3439 = vunpack.c.l.b16 %v2347
    %v3440 = vunpack.c.h.b16 %v2347
    %v3441 = vunpack.c.l.b16 %v2348
    %v3442 = vunpack.c.l.b16 %v2349
    %v3443 = vunpack.c.h.b16 %v2349
    %v3444 = vunpack.c.l.b16 %v2350
    %v3445 = vunpack.c.h.b16 %v2350
    %v3446 = vunpack.c.l.b16 %v2351
    %v3447 = vunpack.c.h.b16 %v2351
    %v3448 = vunpack.c.l.b16 %v2352
    %v3449 = vunpack.c.l.b16 %v2353
    %v3450 = vunpack.c.h.b16 %v2353
    %v3451 = vunpack.c.l.b16 %v2354
    %v3452 = vunpack.c.h.b16 %v2354
    %v3453 = vunpack.c.l.b16 %v2355
    %v3454 = vunpack.c.h.b16 %v2355
    %v3455 = vunpack.c.l.b16 %v2356
    %v3456 = vunpack.c.l.b16 %v2357
    %v3457 = vunpack.c.h.b16 %v2357
    %v3458 = vunpack.c.l.b16 %v2358
    %v3459 = vunpack.c.h.b16 %v2358
    %v3460 = vunpack.c.l.b16 %v2359
    %v3461 = vunpack.c.h.b16 %v2359
    %v3462 = vunpack.c.l.b16 %v2360
    %v3463 = vunpack.c.l.b16 %v2361
    %v3464 = vunpack.c.h.b16 %v2361
    %v3465 = vunpack.c.l.b16 %v2362
    %v3466 = vunpack.c.h.b16 %v2362
    %v3467 = vunpack.c.l.b16 %v2363
    %v3468 = vunpack.c.h.b16 %v2363
    %v3469 = vunpack.c.l.b16 %v2364
    %v3470 = vunpack.c.l.b16 %v2365
    %v3471 = vunpack.c.h.b16 %v2365
    %v3472 = vunpack.c.l.b16 %v2366
    %v3473 = vunpack.c.h.b16 %v2366
    %v3474 = vunpack.c.l.b16 %v2367
    %v3475 = vunpack.c.h.b16 %v2367
    %v3476 = vunpack.c.l.b16 %v2368
    %v3477 = vunpack.c.l.b16 %v2369
    %v3478 = vunpack.c.h.b16 %v2369
    %v3479 = vunpack.c.l.b16 %v2370
    %v3480 = vunpack.c.h.b16 %v2370
    %v3481 = vunpack.c.l.b16 %v2371
    %v3482 = vunpack.c.h.b16 %v2371
    %v3483 = vunpack.c.l.b16 %v2372
    %v3484 = vunpack.c.l.b16 %v2373
    %v3485 = vunpack.c.h.b16 %v2373
    %v3486 = vunpack.c.l.b16 %v2374
    %v3487 = vunpack.c.h.b16 %v2374
    %v3488 = vunpack.c.l.b16 %v2375
    %v3489 = vunpack.c.h.b16 %v2375
    %v3490 = vunpack.c.l.b16 %v2376
    %v3491 = vunpack.c.l.b16 %v2377
    %v3492 = vunpack.c.h.b16 %v2377
    %v3493 = vunpack.c.l.b16 %v2378
    %v3494 = vunpack.c.h.b16 %v2378
    %v3495 = vunpack.c.l.b16 %v2379
    %v3496 = vunpack.c.h.b16 %v2379
    %v3497 = vunpack.c.l.b16 %v2380
    %v3498 = vunpack.c.l.b16 %v2381
    %v3499 = vunpack.c.h.b16 %v2381
    %v3500 = vunpack.c.l.b16 %v2382
    %v3501 = vunpack.c.h.b16 %v2382
    %v3502 = vunpack.c.l.b16 %v2383
    %v3503 = vunpack.c.h.b16 %v2383
    %v3504 = vunpack.c.l.b16 %v2384
    %v3505 = vunpack.c.l.b16 %v2385
    %v3506 = vunpack.c.h.b16 %v2385
    %v3507 = vunpack.c.l.b16 %v2386
    %v3508 = vunpack.c.h.b16 %v2386
    %v3509 = vunpack.c.l.b16 %v2387
    %v3510 = vunpack.c.h.b16 %v2387
    %v3511 = vunpack.c.l.b16 %v2388
    %v3512 = vunpack.c.l.b16 %v2389
    %v3513 = vunpack.c.h.b16 %v2389
    %v3514 = vunpack.c.l.b16 %v2390
    %v3515 = vunpack.c.h.b16 %v2390
    %v3516 = vunpack.c.l.b16 %v2391
    %v3517 = vunpack.c.h.b16 %v2391
    %v3518 = vunpack.c.l.b16 %v2392
    %v3519 = vunpack.c.l.b16 %v2393
    %v3520 = vunpack.c.h.b16 %v2393
    %v3521 = vunpack.c.l.b16 %v2394
    %v3522 = vunpack.c.h.b16 %v2394
    %v3523 = vunpack.c.l.b16 %v2395
    %v3524 = vunpack.c.h.b16 %v2395
    %v3525 = vunpack.c.l.b16 %v2396
    %v3526 = vunpack.c.l.b16 %v2397
    %v3527 = vunpack.c.h.b16 %v2397
    %v3528 = vunpack.c.l.b16 %v2398
    %v3529 = vunpack.c.h.b16 %v2398
    %v3530 = vunpack.c.l.b16 %v2399
    %v3531 = vunpack.c.h.b16 %v2399
    %v3532 = vunpack.c.l.b16 %v2400
    %v3533 = vunpack.c.l.b16 %v2401
    %v3534 = vunpack.c.h.b16 %v2401
    %v3535 = vunpack.c.l.b16 %v2402
    %v3536 = vunpack.c.h.b16 %v2402
    %v3537 = vunpack.c.l.b16 %v2403
    %v3538 = vunpack.c.h.b16 %v2403
    %v3539 = vunpack.c.l.b16 %v2404
    %v3540 = vunpack.c.l.b16 %v2405
    %v3541 = vunpack.c.h.b16 %v2405
    %v3542 = vunpack.c.l.b16 %v2406
    %v3543 = vunpack.c.h.b16 %v2406
    %v3544 = vunpack.c.l.b16 %v2407
    %v3545 = vunpack.c.h.b16 %v2407
    %v3546 = vunpack.c.l.b16 %v2408
    %v3547 = vunpack.c.l.b16 %v2409
    %v3548 = vunpack.c.h.b16 %v2409
    %v3549 = vunpack.c.l.b16 %v2410
    %v3550 = vunpack.c.h.b16 %v2410
    %v3551 = vunpack.c.l.b16 %v2411
    %v3552 = vunpack.c.h.b16 %v2411
    %v3553 = vunpack.c.l.b16 %v2412
    %v3554 = vunpack.c.l.b16 %v2413
    %v3555 = vunpack.c.h.b16 %v2413
    %v3556 = vunpack.c.l.b16 %v2414
    %v3557 = vunpack.c.h.b16 %v2414
    %v3558 = vunpack.c.l.b16 %v2415
    %v3559 = vunpack.c.h.b16 %v2415
    %v3560 = vunpack.c.l.b16 %v2416
    %v3561 = vunpack.c.l.b16 %v2417
    %v3562 = vunpack.c.h.b16 %v2417
    %v3563 = vunpack.c.l.b16 %v2418
    %v3564 = vunpack.c.h.b16 %v2418
    %v3565 = vunpack.c.l.b16 %v2419
    %v3566 = vunpack.c.h.b16 %v2419
    %v3567 = vunpack.c.l.b16 %v2420
    %v3568 = vunpack.c.l.b16 %v2421
    %v3569 = vunpack.c.h.b16 %v2421
    %v3570 = vunpack.c.l.b16 %v2422
    %v3571 = vunpack.c.h.b16 %v2422
    %v3572 = vunpack.c.l.b16 %v2423
    %v3573 = vunpack.c.h.b16 %v2423
    %v3574 = vunpack.c.l.b16 %v2424
    %v3575 = vunpack.c.l.b16 %v2425
    %v3576 = vunpack.c.h.b16 %v2425
    %v3577 = vunpack.c.l.b16 %v2426
    %v3578 = vunpack.c.h.b16 %v2426
    %v3579 = vunpack.c.l.b16 %v2427
    %v3580 = vunpack.c.h.b16 %v2427
    %v3581 = vunpack.c.l.b16 %v2428
    %v3582 = vunpack.c.l.b16 %v2429
    %v3583 = vunpack.c.h.b16 %v2429
    %v3584 = vunpack.c.l.b16 %v2430
    %v3585 = vunpack.c.h.b16 %v2430
    %v3586 = vunpack.c.l.b16 %v2431
    %v3587 = vunpack.c.h.b16 %v2431
    %v3588 = vunpack.c.l.b16 %v2432
    %v3589 = vunpack.c.l.b16 %v2433
    %v3590 = vunpack.c.h.b16 %v2433
    %v3591 = vunpack.c.l.b16 %v2434
    %v3592 = vunpack.c.h.b16 %v2434
    %v3593 = vunpack.c.l.b16 %v2435
    %v3594 = vunpack.c.h.b16 %v2435
    %v3595 = vunpack.c.l.b16 %v2436
    %v3596 = vunpack.c.l.b16 %v2437
    %v3597 = vunpack.c.h.b16 %v2437
    %v3598 = vunpack.c.l.b16 %v2438
    %v3599 = vunpack.c.h.b16 %v2438
    %v3600 = vunpack.c.l.b16 %v2439
    %v3601 = vunpack.c.h.b16 %v2439
    %v3602 = vunpack.c.l.b16 %v2440
    %v3603 = vunpack.c.l.b16 %v2441
    %v3604 = vunpack.c.h.b16 %v2441
    %v3605 = vunpack.c.l.b16 %v2442
    %v3606 = vunpack.c.h.b16 %v2442
    %v3607 = vunpack.c.l.b16 %v2443
    %v3608 = vunpack.c.h.b16 %v2443
    %v3609 = vunpack.c.l.b16 %v2444
    %v3610 = vunpack.c.l.b16 %v2445
    %v3611 = vunpack.c.h.b16 %v2445
    %v3612 = vunpack.c.l.b16 %v2446
    %v3613 = vunpack.c.h.b16 %v2446
    %v3614 = vunpack.c.l.b16 %v2447
    %v3615 = vunpack.c.h.b16 %v2447
    %v3616 = vunpack.c.l.b16 %v2448
    %v3617 = vunpack.c.l.b16 %v2449
    %v3618 = vunpack.c.h.b16 %v2449
    %v3619 = vunpack.c.l.b16 %v2450
    %v3620 = vunpack.c.h.b16 %v2450
    %v3621 = vunpack.c.l.b16 %v2451
    %v3622 = vunpack.c.h.b16 %v2451
    %v3623 = vunpack.c.l.b16 %v2452
    %v3624 = vunpack.c.l.b16 %v2453
    %v3625 = vunpack.c.h.b16 %v2453
    %v3626 = vunpack.c.l.b16 %v2454
    %v3627 = vunpack.c.h.b16 %v2454
    %v3628 = vunpack.c.l.b16 %v2455
    %v3629 = vunpack.c.h.b16 %v2455
    %v3630 = vunpack.c.l.b16 %v2456
    %v3631 = vunpack.c.l.b16 %v2457
    %v3632 = vunpack.c.h.b16 %v2457
    %v3633 = vunpack.c.l.b16 %v2458
    %v3634 = vunpack.c.h.b16 %v2458
    %v3635 = vunpack.c.l.b16 %v2459
    %v3636 = vunpack.c.h.b16 %v2459
    %v3637 = vunpack.c.l.b16 %v2460
    %v3638 = vunpack.c.l.b16 %v2461
    %v3639 = vunpack.c.h.b16 %v2461
    %v3640 = vunpack.c.l.b16 %v2462
    %v3641 = vunpack.c.h.b16 %v2462
    %v3642 = vunpack.c.l.b16 %v2463
    %v3643 = vunpack.c.h.b16 %v2463
    %v3644 = vunpack.c.l.b16 %v2464
    %v3645 = vunpack.c.l.b16 %v2465
    %v3646 = vunpack.c.h.b16 %v2465
    %v3647 = vunpack.c.l.b16 %v2466
    %v3648 = vunpack.c.h.b16 %v2466
    %v3649 = vunpack.c.l.b16 %v2467
    %v3650 = vunpack.c.h.b16 %v2467
    %v3651 = vunpack.c.l.b16 %v2468
    %v3652 = vunpack.c.l.b16 %v2469
    %v3653 = vunpack.c.h.b16 %v2469
    %v3654 = vunpack.c.l.b16 %v2470
    %v3655 = vunpack.c.h.b16 %v2470
    %v3656 = vunpack.c.l.b16 %v2471
    %v3657 = vunpack.c.h.b16 %v2471
    %v3658 = vunpack.c.l.b16 %v2472
    %v3659 = vunpack.c.l.b16 %v2473
    %v3660 = vunpack.c.h.b16 %v2473
    %v3661 = vunpack.c.l.b16 %v2474
    %v3662 = vunpack.c.h.b16 %v2474
    %v3663 = vunpack.c.l.b16 %v2475
    %v3664 = vunpack.c.h.b16 %v2475
    %v3665 = vunpack.c.l.b16 %v2476
    %v3666 = vunpack.c.l.b16 %v2477
    %v3667 = vunpack.c.h.b16 %v2477
    %v3668 = vunpack.c.l.b16 %v2478
    %v3669 = vunpack.c.h.b16 %v2478
    %v3670 = vunpack.c.l.b16 %v2479
    %v3671 = vunpack.c.h.b16 %v2479
    %v3672 = vunpack.c.l.b16 %v2480
    %v3673 = vunpack.c.l.b16 %v2481
    %v3674 = vunpack.c.h.b16 %v2481
    %v3675 = vunpack.c.l.b16 %v2482
    %v3676 = vunpack.c.h.b16 %v2482
    %v3677 = vunpack.c.l.b16 %v2483
    %v3678 = vunpack.c.h.b16 %v2483
    %v3679 = vunpack.c.l.b16 %v2484
    %v3680 = vunpack.c.l.b16 %v2485
    %v3681 = vunpack.c.h.b16 %v2485
    %v3682 = vunpack.c.l.b16 %v2486
    %v3683 = vunpack.c.h.b16 %v2486
    %v3684 = vunpack.c.l.b16 %v2487
    %v3685 = vunpack.c.h.b16 %v2487
    %v3686 = vunpack.c.l.b16 %v2488
    %v3687 = vunpack.c.l.b16 %v2489
    %v3688 = vunpack.c.h.b16 %v2489
    %v3689 = vunpack.c.l.b16 %v2490
    %v3690 = vunpack.c.h.b16 %v2490
    %v3691 = vunpack.c.l.b16 %v2491
    %v3692 = vunpack.c.h.b16 %v2491
    %v3693 = vunpack.c.l.b16 %v2492
    %v3694 = vunpack.c.l.b16 %v2493
    %v3695 = vunpack.c.h.b16 %v2493
    %v3696 = vunpack.c.l.b16 %v2494
    %v3697 = vunpack.c.h.b16 %v2494
    %v3698 = vunpack.c.l.b16 %v2495
    %v3699 = vunpack.c.h.b16 %v2495
    %v3700 = vunpack.c.l.b16 %v2496
    %v3701 = vunpack.c.l.b16 %v2497
    %v3702 = vunpack.c.h.b16 %v2497
    %v3703 = vunpack.c.l.b16 %v2498
    %v3704 = vunpack.c.h.b16 %v2498
    %v3705 = vunpack.c.l.b16 %v2499
    %v3706 = vunpack.c.h.b16 %v2499
    %v3707 = vunpack.c.l.b16 %v2500
    %v3708 = vunpack.c.l.b16 %v2501
    %v3709 = vunpack.c.h.b16 %v2501
    %v3710 = vunpack.c.l.b16 %v2502
    %v3711 = vunpack.c.h.b16 %v2502
    %v3712 = vunpack.c.l.b16 %v2503
    %v3713 = vunpack.c.h.b16 %v2503
    %v3714 = vunpack.c.l.b16 %v2504
    %v3715 = vunpack.c.l.b16 %v2505
    %v3716 = vunpack.c.h.b16 %v2505
    %v3717 = vunpack.c.l.b16 %v2506
    %v3718 = vunpack.c.h.b16 %v2506
    %v3719 = vunpack.c.l.b16 %v2507
    %v3720 = vunpack.c.h.b16 %v2507
    %v3721 = vunpack.c.l.b16 %v2508
    %v3722 = vunpack.c.l.b16 %v2509
    %v3723 = vunpack.c.h.b16 %v2509
    %v3724 = vunpack.c.l.b16 %v2510
    %v3725 = vunpack.c.h.b16 %v2510
    %v3726 = vunpack.c.l.b16 %v2511
    %v3727 = vunpack.c.h.b16 %v2511
    %v3728 = vunpack.c.l.b16 %v2512
    %v3729 = vunpack.c.l.b16 %v2513
    %v3730 = vunpack.c.h.b16 %v2513
    %v3731 = vunpack.c.l.b16 %v2514
    %v3732 = vunpack.c.h.b16 %v2514
    %v3733 = vunpack.c.l.b16 %v2515
    %v3734 = vunpack.c.h.b16 %v2515
    %v3735 = vunpack.c.l.b16 %v2516
    %v3736 = vunpack.c.l.b16 %v2517
    %v3737 = vunpack.c.h.b16 %v2517
    %v3738 = vunpack.c.l.b16 %v2518
    %v3739 = vunpack.c.h.b16 %v2518
    %v3740 = vunpack.c.l.b16 %v2519
    %v3741 = vunpack.c.h.b16 %v2519
    %v3742 = vunpack.c.l.b16 %v2520
    %v3743 = vunpack.c.l.b16 %v2521
    %v3744 = vunpack.c.h.b16 %v2521
    %v3745 = vunpack.c.l.b16 %v2522
    %v3746 = vunpack.c.h.b16 %v2522
    %v3747 = vunpack.c.l.b16 %v2523
    %v3748 = vunpack.c.h.b16 %v2523
    %v3749 = vunpack.c.l.b16 %v2524
    %v3750 = vunpack.c.l.b16 %v2525
    %v3751 = vunpack.c.h.b16 %v2525
    %v3752 = vunpack.c.l.b16 %v2526
    %v3753 = vunpack.c.h.b16 %v2526
    %v3754 = vunpack.c.l.b16 %v2527
    %v3755 = vunpack.c.h.b16 %v2527
    %v3756 = vunpack.c.l.b16 %v2528
    %v3757 = vunpack.c.l.b16 %v2529
    %v3758 = vunpack.c.h.b16 %v2529
    %v3759 = vunpack.c.l.b16 %v2530
    %v3760 = vunpack.c.h.b16 %v2530
    %v3761 = vunpack.c.l.b16 %v2531
    %v3762 = vunpack.c.h.b16 %v2531
    %v3763 = vunpack.c.l.b16 %v2532
    %v3764 = vunpack.c.l.b16 %v2533
    %v3765 = vunpack.c.h.b16 %v2533
    %v3766 = vunpack.c.l.b16 %v2534
    %v3767 = vunpack.c.h.b16 %v2534
    %v3768 = vunpack.c.l.b16 %v2535
    %v3769 = vunpack.c.h.b16 %v2535
    %v3770 = vunpack.c.l.b16 %v2536
    %v3771 = vunpack.c.l.b16 %v2537
    %v3772 = vunpack.c.h.b16 %v2537
    %v3773 = vunpack.c.l.b16 %v2538
    %v3774 = vunpack.c.h.b16 %v2538
    %v3775 = vunpack.c.l.b16 %v2539
    %v3776 = vunpack.c.h.b16 %v2539
    %v3777 = vunpack.c.l.b16 %v2540
    %v3778 = vunpack.c.l.b16 %v2541
    %v3779 = vunpack.c.h.b16 %v2541
    %v3780 = vunpack.c.l.b16 %v2542
    %v3781 = vunpack.c.h.b16 %v2542
    %v3782 = vunpack.c.l.b16 %v2543
    %v3783 = vunpack.c.h.b16 %v2543
    %v3784 = vunpack.c.l.b16 %v2544
    %v3785 = vunpack.c.l.b16 %v2545
    %v3786 = vunpack.c.h.b16 %v2545
    %v3787 = vunpack.c.l.b16 %v2546
    %v3788 = vunpack.c.h.b16 %v2546
    %v3789 = vunpack.c.l.b16 %v2547
    %v3790 = vunpack.c.h.b16 %v2547
    %v3791 = vunpack.c.l.b16 %v2548
    %v3792 = vunpack.c.l.b16 %v2549
    %v3793 = vunpack.c.h.b16 %v2549
    %v3794 = vunpack.c.l.b16 %v2550
    %v3795 = vunpack.c.h.b16 %v2550
    %v3796 = vunpack.c.l.b16 %v2551
    %v3797 = vunpack.c.h.b16 %v2551
    %v3798 = vunpack.c.l.b16 %v2552
    %v3799 = vunpack.c.l.b16 %v2553
    %v3800 = vunpack.c.h.b16 %v2553
    %v3801 = vunpack.c.l.b16 %v2554
    %v3802 = vunpack.c.h.b16 %v2554
    %v3803 = vunpack.c.l.b16 %v2555
    %v3804 = vunpack.c.h.b16 %v2555
    %v3805 = vunpack.c.l.b16 %v2556
    %v3806 = vunpack.c.l.b16 %v2557
    %v3807 = vunpack.c.h.b16 %v2557
    %v3808 = vunpack.c.l.b16 %v2558
    %v3809 = vunpack.c.h.b16 %v2558
    %v3810 = vunpack.c.l.b16 %v2559
    %v3811 = vunpack.c.h.b16 %v2559
    %v3812 = vunpack.c.l.b16 %v2560
    %v3813 = vunpack.c.l.b16 %v2561
    %v3814 = vunpack.c.h.b16 %v2561
    %v3815 = vunpack.c.l.b16 %v2562
    %v3816 = vunpack.c.h.b16 %v2562
    %v3817 = vunpack.c.l.b16 %v2563
    %v3818 = vunpack.c.h.b16 %v2563
    %v3819 = vunpack.c.l.b16 %v2564
    %v3820 = vunpack.c.l.b16 %v2565
    %v3821 = vunpack.c.h.b16 %v2565
    %v3822 = vunpack.c.l.b16 %v2566
    %v3823 = vunpack.c.h.b16 %v2566
    %v3824 = vunpack.c.l.b16 %v2567
    %v3825 = vunpack.c.h.b16 %v2567
    %v3826 = vunpack.c.l.b16 %v2568
    %v3827 = vunpack.c.l.b16 %v2569
    %v3828 = vunpack.c.h.b16 %v2569
    %v3829 = vunpack.c.l.b16 %v2570
    %v3830 = vunpack.c.h.b16 %v2570
    %v3831 = vunpack.c.l.b16 %v2571
    %v3832 = vunpack.c.h.b16 %v2571
    %v3833 = vunpack.c.l.b16 %v2572
    %v3834 = vunpack.c.l.b16 %v2573
    %v3835 = vunpack.c.h.b16 %v2573
    %v3836 = vunpack.c.l.b16 %v2574
    %v3837 = vunpack.c.h.b16 %v2574
    %v3838 = vunpack.c.l.b16 %v2575
    %v3839 = vunpack.c.h.b16 %v2575
    %v3840 = vunpack.c.l.b16 %v2576
    %v3841 = vunpack.c.l.b16 %v2577
    %v3842 = vunpack.c.h.b16 %v2577
    %v3843 = vunpack.c.l.b16 %v2578
    %v3844 = vunpack.c.h.b16 %v2578
    %v3845 = vunpack.c.l.b16 %v2579
    %v3846 = vunpack.c.h.b16 %v2579
    %v3847 = vunpack.c.l.b16 %v2580
    %v3848 = vunpack.c.l.b16 %v2581
    %v3849 = vunpack.c.h.b16 %v2581
    %v3850 = vunpack.c.l.b16 %v2582
    %v3851 = vunpack.c.h.b16 %v2582
    %v3852 = vunpack.c.l.b16 %v2583
    %v3853 = vunpack.c.h.b16 %v2583
    %v3854 = vunpack.c.l.b16 %v2584
    %v3855 = vunpack.c.l.b16 %v2585
    %v3856 = vunpack.c.h.b16 %v2585
    %v3857 = vunpack.c.l.b16 %v2586
    %v3858 = vunpack.c.h.b16 %v2586
    %v3859 = vunpack.c.l.b16 %v2587
    %v3860 = vunpack.c.h.b16 %v2587
    %v3861 = vunpack.c.l.b16 %v2588
    %v3862 = vunpack.c.l.b16 %v2589
    %v3863 = vunpack.c.h.b16 %v2589
    %v3864 = vunpack.c.l.b16 %v2590
    %v3865 = vunpack.c.h.b16 %v2590
    %v3866 = vunpack.c.l.b16 %v2591
    %v3867 = vunpack.c.h.b16 %v2591
    %v3868 = vunpack.c.l.b16 %v2592
    %v3869 = vunpack.c.l.b16 %v2593
    %v3870 = vunpack.c.h.b16 %v2593
    %v3871 = vunpack.c.l.b16 %v2594
    %v3872 = vunpack.c.h.b16 %v2594
    %v3873 = vunpack.c.l.b16 %v2595
    %v3874 = vunpack.c.h.b16 %v2595
    %v3875 = vunpack.c.l.b16 %v2596
    %v3876 = vunpack.c.l.b16 %v2597
    %v3877 = vunpack.c.h.b16 %v2597
    %v3878 = vunpack.c.l.b16 %v2598
    %v3879 = vunpack.c.h.b16 %v2598
    %v3880 = vunpack.c.l.b16 %v2599
    %v3881 = vunpack.c.h.b16 %v2599
    %v3882 = vunpack.c.l.b16 %v2600
    %v3883 = vunpack.c.l.b16 %v2601
    %v3884 = vunpack.c.h.b16 %v2601
    %v3885 = vunpack.c.l.b16 %v2602
    %v3886 = vunpack.c.h.b16 %v2602
    %v3887 = vunpack.c.l.b16 %v2603
    %v3888 = vunpack.c.h.b16 %v2603
    %v3889 = vunpack.c.l.b16 %v2604
    %v3890 = vunpack.c.l.b16 %v2605
    %v3891 = vunpack.c.h.b16 %v2605
    %v3892 = vunpack.c.l.b16 %v2606
    %v3893 = vunpack.c.h.b16 %v2606
    %v3894 = vunpack.c.l.b16 %v2607
    %v3895 = vunpack.c.h.b16 %v2607
    %v3896 = vunpack.c.l.b16 %v2608
    %v3897 = vunpack.c.l.b16 %v2609
    %v3898 = vunpack.c.h.b16 %v2609
    %v3899 = vunpack.c.l.b16 %v2610
    %v3900 = vunpack.c.h.b16 %v2610
    %v3901 = vunpack.c.l.b16 %v2611
    %v3902 = vunpack.c.h.b16 %v2611
    %v3903 = vunpack.c.l.b16 %v2612
    %v3904 = vunpack.c.l.b16 %v2613
    %v3905 = vunpack.c.h.b16 %v2613
    %v3906 = vunpack.c.l.b16 %v2614
    %v3907 = vunpack.c.h.b16 %v2614
    %v3908 = vunpack.c.l.b16 %v2615
    %v3909 = vunpack.c.h.b16 %v2615
    %v3910 = vunpack.c.l.b16 %v2616
    %v3911 = vunpack.c.l.b16 %v2617
    %v3912 = vunpack.c.h.b16 %v2617
    %v3913 = vunpack.c.l.b16 %v2618
    %v3914 = vunpack.c.h.b16 %v2618
    %v3915 = vunpack.c.l.b16 %v2619
    %v3916 = vunpack.c.h.b16 %v2619
    %v3917 = vunpack.c.l.b16 %v2620
    %v3918 = vunpack.c.l.b16 %v2621
    %v3919 = vunpack.c.h.b16 %v2621
    %v3920 = vunpack.c.l.b16 %v2622
    %v3921 = vunpack.c.h.b16 %v2622
    %v3922 = vunpack.c.l.b16 %v2623
    %v3923 = vunpack.c.h.b16 %v2623
    %v3924 = vunpack.c.l.b16 %v2624
    %v3925 = vunpack.c.l.b16 %v2625
    %v3926 = vunpack.c.h.b16 %v2625
    %v3927 = vunpack.c.l.b16 %v2626
    %v3928 = vunpack.c.h.b16 %v2626
    %v3929 = vunpack.c.l.b16 %v2627
    %v3930 = vunpack.c.h.b16 %v2627
    %v3931 = vunpack.c.l.b16 %v2628
    %v3932 = vunpack.c.l.b16 %v2629
    %v3933 = vunpack.c.h.b16 %v2629
    %v3934 = vunpack.c.l.b16 %v2630
    %v3935 = vunpack.c.h.b16 %v2630
    %v3936 = vunpack.c.l.b16 %v2631
    %v3937 = vunpack.c.h.b16 %v2631
    %v3938 = vunpack.c.l.b16 %v2632
    %v3939 = vunpack.c.l.b16 %v2633
    %v3940 = vunpack.c.h.b16 %v2633
    %v3941 = vunpack.c.l.b16 %v2634
    %v3942 = vunpack.c.h.b16 %v2634
    %v3943 = vunpack.c.l.b16 %v2635
    %v3944 = vunpack.c.h.b16 %v2635
    %v3945 = vunpack.c.l.b16 %v2636
    %v3946 = vunpack.c.l.b16 %v2637
    %v3947 = vunpack.c.h.b16 %v2637
    %v3948 = vunpack.c.l.b16 %v2638
    %v3949 = vunpack.c.h.b16 %v2638
    %v3950 = vunpack.c.l.b16 %v2639
    %v3951 = vunpack.c.h.b16 %v2639
    %v3952 = vunpack.c.l.b16 %v2640
    %v3953 = vunpack.c.l.b16 %v2641
    %v3954 = vunpack.c.h.b16 %v2641
    %v3955 = vunpack.c.l.b16 %v2642
    %v3956 = vunpack.c.h.b16 %v2642
    %v3957 = vunpack.c.l.b16 %v2643
    %v3958 = vunpack.c.h.b16 %v2643
    %v3959 = vunpack.c.l.b16 %v2644
    %v3960 = vunpack.c.l.b16 %v2645
    %v3961 = vunpack.c.h.b16 %v2645
    %v3962 = vunpack.c.l.b16 %v2646
    %v3963 = vunpack.c.h.b16 %v2646
    %v3964 = vunpack.c.l.b16 %v2647
    %v3965 = vunpack.c.h.b16 %v2647
    %v3966 = vunpack.c.l.b16 %v2648
    %v3967 = vunpack.c.l.b16 %v2649
    %v3968 = vunpack.c.h.b16 %v2649
    %v3969 = vunpack.c.l.b16 %v2650
    %v3970 = vunpack.c.h.b16 %v2650
    %v3971 = vunpack.c.l.b16 %v2651
    %v3972 = vunpack.c.h.b16 %v2651
    %v3973 = vunpack.c.l.b16 %v2652
    %v3974 = vunpack.c.l.b16 %v2653
    %v3975 = vunpack.c.h.b16 %v2653
    %v3976 = vunpack.c.l.b16 %v2654
    %v3977 = vunpack.c.h.b16 %v2654
    %v3978 = vunpack.c.l.b16 %v2655
    %v3979 = vunpack.c.h.b16 %v2655
    %v3980 = vunpack.c.l.b16 %v2656
    %v3981 = vunpack.c.l.b16 %v2657
    %v3982 = vunpack.c.h.b16 %v2657
    %v3983 = vunpack.c.l.b16 %v2658
    %v3984 = vunpack.c.h.b16 %v2658
    %v3985 = vunpack.c.l.b16 %v2659
    %v3986 = vunpack.c.h.b16 %v2659
    %v3987 = vunpack.c.l.b16 %v2660
    %v3988 = vunpack.c.l.b16 %v2661
    %v3989 = vunpack.c.h.b16 %v2661
    %v3990 = vunpack.c.l.b16 %v2662
    %v3991 = vunpack.c.h.b16 %v2662
    %v3992 = vunpack.c.l.b16 %v2663
    %v3993 = vunpack.c.h.b16 %v2663
    %v3994 = vunpack.c.l.b16 %v2664
    %v3995 = vunpack.c.l.b16 %v2665
    %v3996 = vunpack.c.h.b16 %v2665
    %v3997 = vunpack.c.l.b16 %v2666
    %v3998 = vunpack.c.h.b16 %v2666
    %v3999 = vunpack.c.l.b16 %v2667
    %v4000 = vunpack.c.h.b16 %v2667
    %v4001 = vunpack.c.l.b16 %v2668
    %v4002 = vunpack.c.l.b16 %v2669
    %v4003 = vunpack.c.h.b16 %v2669
    %v4004 = vunpack.c.l.b16 %v2670
    %v4005 = vunpack.c.h.b16 %v2670
    %v4006 = vunpack.c.l.b16 %v2671
    %v4007 = vunpack.c.h.b16 %v2671
    %v4008 = vunpack.c.l.b16 %v2672
    %v4009 = vunpack.c.l.b16 %v2673
    %v4010 = vunpack.c.h.b16 %v2673
    %v4011 = vunpack.c.l.b16 %v2674
    %v4012 = vunpack.c.h.b16 %v2674
    %v4013 = vunpack.c.l.b16 %v2675
    %v4014 = vunpack.c.h.b16 %v2675
    %v4015 = vunpack.c.l.b16 %v2676
    %v4016 = vunpack.c.l.b16 %v2677
    %v4017 = vunpack.c.h.b16 %v2677
    %v4018 = vunpack.c.l.b16 %v2678
    %v4019 = vunpack.c.h.b16 %v2678
    %v4020 = vunpack.c.l.b16 %v2679
    %v4021 = vunpack.c.h.b16 %v2679
    %v4022 = vunpack.c.l.b16 %v2680
    %v4023 = vunpack.c.l.b16 %v2681
    %v4024 = vunpack.c.h.b16 %v2681
    %v4025 = vunpack.c.l.b16 %v2682
    %v4026 = vunpack.c.h.b16 %v2682
    %v4027 = vunpack.c.l.b16 %v2683
    %v4028 = vunpack.c.h.b16 %v2683
    %v4029 = vunpack.c.l.b16 %v2684
    %v4030 = vunpack.c.l.b16 %v2685
    %v4031 = vunpack.c.h.b16 %v2685
    %v4032 = vunpack.c.l.b16 %v2686
    %v4033 = vunpack.c.h.b16 %v2686
    %v4034 = vunpack.c.l.b16 %v2687
    %v4035 = vunpack.c.h.b16 %v2687
    %v4036 = vunpack.c.l.b16 %v2688
    %v4037 = vunpack.c.l.b16 %v2689
    %v4038 = vunpack.c.h.b16 %v2689
    %v4039 = vunpack.c.l.b16 %v2690
    %v4040 = vunpack.c.h.b16 %v2690
    %v4041 = vunpack.c.l.b16 %v2691
    %v4042 = vunpack.c.h.b16 %v2691
    %v4043 = vunpack.c.l.b16 %v2692
    %v4044 = vunpack.c.l.b16 %v2693
    %v4045 = vunpack.c.h.b16 %v2693
    %v4046 = vunpack.c.l.b16 %v2694
    %v4047 = vunpack.c.h.b16 %v2694
    %v4048 = vunpack.c.l.b16 %v2695
    %v4049 = vunpack.c.h.b16 %v2695
    %v4050 = vunpack.c.l.b16 %v2696
    %v4051 = vunpack.c.l.b16 %v2697
    %v4052 = vunpack.c.h.b16 %v2697
    %v4053 = vunpack.c.l.b16 %v2698
    %v4054 = vunpack.c.h.b16 %v2698
    %v4055 = vunpack.c.l.b16 %v2699
    %v4056 = vunpack.c.h.b16 %v2699
    %v4057 = vunpack.c.l.b16 %v2700
    %v4058 = vunpack.c.l.b16 %v2701
    %v4059 = vunpack.c.h.b16 %v2701
    %v4060 = vunpack.c.l.b16 %v2702
    %v4061 = vunpack.c.h.b16 %v2702
    %v4062 = vunpack.c.l.b16 %v2703
    %v4063 = vunpack.c.h.b16 %v2703
    %v4064 = vunpack.c.l.b16 %v2704
    %v4065 = vunpack.c.l.b16 %v2705
    %v4066 = vunpack.c.h.b16 %v2705
    %v4067 = vunpack.c.l.b16 %v2706
    %v4068 = vunpack.c.h.b16 %v2706
    %v4069 = vunpack.c.l.b16 %v2707
    %v4070 = vunpack.c.h.b16 %v2707
    %v4071 = vunpack.c.l.b16 %v2708
    %v4072 = vunpack.c.l.b16 %v2709
    %v4073 = vunpack.c.h.b16 %v2709
    %v4074 = vunpack.c.l.b16 %v2710
    %v4075 = vunpack.c.h.b16 %v2710
    %v4076 = vunpack.c.l.b16 %v2711
    %v4077 = vunpack.c.h.b16 %v2711
    %v4078 = vunpack.c.l.b16 %v2712
    %v4079 = vunpack.c.l.b16 %v2713
    %v4080 = vunpack.c.h.b16 %v2713
    %v4081 = vunpack.c.l.b16 %v2714
    %v4082 = vunpack.c.h.b16 %v2714
    %v4083 = vunpack.c.l.b16 %v2715
    %v4084 = vunpack.c.h.b16 %v2715
    %v4085 = vunpack.c.l.b16 %v2716
    %v4086 = vunpack.c.l.b16 %v2717
    %v4087 = vunpack.c.h.b16 %v2717
    %v4088 = vunpack.c.l.b16 %v2718
    %v4089 = vunpack.c.h.b16 %v2718
    %v4090 = vunpack.c.l.b16 %v2719
    %v4091 = vunpack.c.h.b16 %v2719
    %v4092 = vunpack.c.l.b16 %v2720
    %v4093 = vunpack.c.l.b16 %v2721
    %v4094 = vunpack.c.h.b16 %v2721
    %v4095 = vunpack.c.l.b16 %v2722
    %v4096 = vunpack.c.h.b16 %v2722
    %v4097 = vunpack.c.l.b16 %v2723
    %v4098 = vunpack.c.h.b16 %v2723
    %v4099 = vunpack.c.l.b16 %v2724
    %v4100 = vunpack.c.l.b16 %v2725
    %v4101 = vunpack.c.h.b16 %v2725
    %v4102 = vunpack.c.l.b16 %v2726
    %v4103 = vunpack.c.h.b16 %v2726
    %v4104 = vunpack.c.l.b16 %v2727
    %v4105 = vunpack.c.h.b16 %v2727
    %v4106 = vunpack.c.l.b16 %v2728
    %v4107 = vunpack.c.l.b16 %v2729
    %v4108 = vunpack.c.h.b16 %v2729
    %v4109 = vunpack.c.l.b16 %v2730
    %v4110 = vunpack.c.h.b16 %v2730
    %v4111 = vunpack.c.l.b16 %v2731
    %v4112 = vunpack.c.h.b16 %v2731
    %v4113 = vunpack.c.l.b16 %v2732
    %v4114 = vunpack.c.l.b16 %v2733
    %v4115 = vunpack.c.h.b16 %v2733
    %v4116 = vunpack.c.l.b16 %v2734
    %v4117 = vunpack.c.h.b16 %v2734
    %v4118 = vunpack.c.l.b16 %v2735
    %v4119 = vunpack.c.h.b16 %v2735
    %v4120 = vunpack.c.l.b16 %v2736
    %v4121 = vunpack.c.l.b16 %v2737
    %v4122 = vunpack.c.h.b16 %v2737
    %v4123 = vunpack.c.l.b16 %v2738
    %v4124 = vunpack.c.h.b16 %v2738
    %v4125 = vunpack.c.l.b16 %v2739
    %v4126 = vunpack.c.h.b16 %v2739
    %v4127 = vunpack.c.l.b16 %v2740
    %v4128 = vunpack.c.l.b16 %v2741
    %v4129 = vunpack.c.h.b16 %v2741
    %v4130 = vunpack.c.l.b16 %v2742
    %v4131 = vunpack.c.h.b16 %v2742
    %v4132 = vunpack.c.l.b16 %v2743
    %v4133 = vunpack.c.h.b16 %v2743
    %v4134 = vunpack.c.l.b16 %v2744
    %v4135 = vunpack.c.l.b16 %v2745
    %v4136 = vunpack.c.h.b16 %v2745
    %v4137 = vunpack.c.l.b16 %v2746
    %v4138 = vunpack.c.h.b16 %v2746
    %v4139 = vunpack.c.l.b16 %v2747
    %v4140 = vunpack.c.h.b16 %v2747
    %v4141 = vunpack.c.l.b16 %v2748
    %v4142 = vunpack.c.l.b16 %v2749
    %v4143 = vunpack.c.h.b16 %v2749
    %v4144 = vunpack.c.l.b16 %v2750
    %v4145 = vunpack.c.h.b16 %v2750
    %v4146 = vunpack.c.l.b16 %v2751
    %v4147 = vunpack.c.h.b16 %v2751
    %v4148 = vunpack.c.l.b16 %v2752
    %v4149 = vunpack.c.l.b16 %v2753
    %v4150 = vunpack.c.h.b16 %v2753
    %v4151 = vunpack.c.l.b16 %v2754
    %v4152 = vunpack.c.h.b16 %v2754
    %v4153 = vunpack.c.l.b16 %v2755
    %v4154 = vunpack.c.h.b16 %v2755
    %v4155 = vunpack.c.l.b16 %v2756
    %v4156 = vunpack.c.l.b16 %v2757
    %v4157 = vunpack.c.h.b16 %v2757
    %v4158 = vunpack.c.l.b16 %v2758
    %v4159 = vunpack.c.h.b16 %v2758
    %v4160 = vunpack.c.l.b16 %v2759
    %v4161 = vunpack.c.h.b16 %v2759
    %v4162 = vunpack.c.l.b16 %v2760
    %v4163 = vunpack.c.l.b16 %v2761
    %v4164 = vunpack.c.h.b16 %v2761
    %v4165 = vunpack.c.l.b16 %v2762
    %v4166 = vunpack.c.h.b16 %v2762
    %v4167 = vunpack.c.l.b16 %v2763
    %v4168 = vunpack.c.h.b16 %v2763
    %v4169 = vunpack.c.l.b16 %v2764
    %v4170 = vunpack.c.l.b16 %v2765
    %v4171 = vunpack.c.h.b16 %v2765
    %v4172 = vunpack.c.l.b16 %v2766
    %v4173 = vunpack.c.h.b16 %v2766
    %v4174 = vunpack.c.l.b16 %v2767
    %v4175 = vunpack.c.h.b16 %v2767
    %v4176 = vunpack.c.l.b16 %v2768
    %v4177 = vunpack.c.l.b16 %v2769
    %v4178 = vunpack.c.h.b16 %v2769
    %v4179 = vunpack.c.l.b16 %v2770
    %v4180 = vunpack.c.h.b16 %v2770
    %v4181 = vunpack.c.l.b16 %v2771
    %v4182 = vunpack.c.h.b16 %v2771
    %v4183 = vunpack.c.l.b16 %v2772
    %v4184 = vunpack.c.l.b16 %v2773
    %v4185 = vunpack.c.h.b16 %v2773
    %v4186 = vunpack.c.l.b16 %v2774
    %v4187 = vunpack.c.h.b16 %v2774
    %v4188 = vunpack.c.l.b16 %v2775
    %v4189 = vunpack.c.h.b16 %v2775
    %v4190 = vunpack.c.l.b16 %v2776
    %v4191 = vunpack.c.l.b16 %v2777
    %v4192 = vunpack.c.h.b16 %v2777
    %v4193 = vunpack.c.l.b16 %v2778
    %v4194 = vunpack.c.h.b16 %v2778
    %v4195 = vunpack.c.l.b16 %v2779
    %v4196 = vunpack.c.h.b16 %v2779
    %v4197 = vunpack.c.l.b16 %v2780
    %v4198 = vunpack.c.l.b16 %v2781
    %v4199 = vunpack.c.h.b16 %v2781
    %v4200 = vunpack.c.l.b16 %v2782
    %v4201 = vunpack.c.h.b16 %v2782
    %v4202 = vunpack.c.l.b16 %v2783
    %v4203 = vunpack.c.h.b16 %v2783
    %v4204 = vunpack.c.l.b16 %v2784
    %v4205 = vunpack.c.l.b16 %v2785
    %v4206 = vunpack.c.h.b16 %v2785
    %v4207 = vunpack.c.l.b16 %v2786
    %v4208 = vunpack.c.h.b16 %v2786
    %v4209 = vunpack.c.l.b16 %v2787
    %v4210 = vunpack.c.h.b16 %v2787
    %v4211 = vunpack.c.l.b16 %v2788
    %v4212 = vunpack.c.l.b16 %v2789
    %v4213 = vunpack.c.h.b16 %v2789
    %v4214 = vunpack.c.l.b16 %v2790
    %v4215 = vunpack.c.h.b16 %v2790
    %v4216 = vunpack.c.l.b16 %v2791
    %v4217 = vunpack.c.h.b16 %v2791
    %v4218 = vunpack.c.l.b16 %v2792
    %v4219 = vunpack.c.l.b16 %v2793
    %v4220 = vunpack.c.h.b16 %v2793
    %v4221 = vunpack.c.l.b16 %v2794
    %v4222 = vunpack.c.h.b16 %v2794
    %v4223 = vunpack.c.l.b16 %v2795
    %v4224 = vunpack.c.h.b16 %v2795
    %v4225 = vunpack.c.l.b16 %v2796
    %v4226 = vunpack.c.l.b16 %v2797
    %v4227 = vunpack.c.h.b16 %v2797
    %v4228 = vunpack.c.l.b16 %v2798
    %v4229 = vunpack.c.h.b16 %v2798
    %v4230 = vunpack.c.l.b16 %v2799
    %v4231 = vunpack.c.h.b16 %v2799
    %v4232 = vunpack.c.l.b16 %v2800
    %v4233 = vunpack.c.l.b16 %v2801
    %v4234 = vunpack.c.h.b16 %v2801
    %v4235 = vunpack.c.l.b16 %v2802
    %v4236 = vunpack.c.h.b16 %v2802
    %v4237 = vunpack.c.l.b16 %v2803
    %v4238 = vunpack.c.h.b16 %v2803
    %v4239 = vunpack.c.l.b16 %v2804
    %v4240 = vunpack.c.l.b16 %v2805
    %v4241 = vunpack.c.h.b16 %v2805
    %v4242 = vunpack.c.l.b16 %v2806
    %v4243 = vunpack.c.h.b16 %v2806
    %v4244 = vunpack.c.l.b16 %v2807
    %v4245 = vunpack.c.h.b16 %v2807
    %v4246 = vunpack.c.l.b16 %v2808
    %v4247 = vunpack.c.l.b16 %v2809
    %v4248 = vunpack.c.h.b16 %v2809
    %v4249 = vunpack.c.l.b16 %v2810
    %v4250 = vunpack.c.h.b16 %v2810
    %v4251 = vunpack.c.l.b16 %v2811
    %v4252 = vunpack.c.h.b16 %v2811
    %v4253 = vunpack.c.l.b16 %v2812
    %v4254 = vunpack.c.l.b16 %v2813
    %v4255 = vunpack.c.h.b16 %v2813
    %v4256 = vunpack.c.l.b16 %v2814
    %v4257 = vunpack.c.h.b16 %v2814
    %v4258 = vunpack.c.l.b16 %v2815
    %v4259 = vunpack.c.h.b16 %v2815
    %v4260 = vunpack.c.l.b16 %v2816
    %v4261 = vpack.c.b16 %v3372, %v3365
    %v4262 = vpack.c.b16 %v3373, %v3366
    %v4263 = vpack.c.b16 %v3374, %v3367
    %v4264 = vpack.c.b16 %v3375, %v3368
    %v4265 = vpack.c.b16 %v3376, %v3369
    %v4266 = vpack.c.b16 %v3377, %v3370
    %v4267 = vpack.c.b16 %v3378, %v3371
    %v4268 = vpack.c.b16 %v3386, %v3379
    %v4269 = vpack.c.b16 %v3387, %v3380
    %v4270 = vpack.c.b16 %v3388, %v3381
    %v4271 = vpack.c.b16 %v3389, %v3382
    %v4272 = vpack.c.b16 %v3390, %v3383
    %v4273 = vpack.c.b16 %v3391, %v3384
    %v4274 = vpack.c.b16 %v3392, %v3385
    %v4275 = vpack.c.b16 %v3400, %v3393
    %v4276 = vpack.c.b16 %v3401, %v3394
    %v4277 = vpack.c.b16 %v3402, %v3395
    %v4278 = vpack.c.b16 %v3403, %v3396
    %v4279 = vpack.c.b16 %v3404, %v3397
    %v4280 = vpack.c.b16 %v3405, %v3398
    %v4281 = vpack.c.b16 %v3406, %v3399
    %v4282 = vpack.c.b16 %v3414, %v3407
    %v4283 = vpack.c.b16 %v3415, %v3408
    %v4284 = vpack.c.b16 %v3416, %v3409
    %v4285 = vpack.c.b16 %v3417, %v3410
    %v4286 = vpack.c.b16 %v3418, %v3411
    %v4287 = vpack.c.b16 %v3419, %v3412
    %v4288 = vpack.c.b16 %v3420, %v3413
    %v4289 = vpack.c.b16 %v3428, %v3421
    %v4290 = vpack.c.b16 %v3429, %v3422
    %v4291 = vpack.c.b16 %v3430, %v3423
    %v4292 = vpack.c.b16 %v3431, %v3424
    %v4293 = vpack.c.b16 %v3432, %v3425
    %v4294 = vpack.c.b16 %v3433, %v3426
    %v4295 = vpack.c.b16 %v3434, %v3427
    %v4296 = vpack.c.b16 %v3442, %v3435
    %v4297 = vpack.c.b16 %v3443, %v3436
    %v4298 = vpack.c.b16 %v3444, %v3437
    %v4299 = vpack.c.b16 %v3445, %v3438
    %v4300 = vpack.c.b16 %v3446, %v3439
    %v4301 = vpack.c.b16 %v3447, %v3440
    %v4302 = vpack.c.b16 %v3448, %v3441
    %v4303 = vpack.c.b16 %v3456, %v3449
    %v4304 = vpack.c.b16 %v3457, %v3450
    %v4305 = vpack.c.b16 %v3458, %v3451
    %v4306 = vpack.c.b16 %v3459, %v3452
    %v4307 = vpack.c.b16 %v3460, %v3453
    %v4308 = vpack.c.b16 %v3461, %v3454
    %v4309 = vpack.c.b16 %v3462, %v3455
    %v4310 = vpack.c.b16 %v3470, %v3463
    %v4311 = vpack.c.b16 %v3471, %v3464
    %v4312 = vpack.c.b16 %v3472, %v3465
    %v4313 = vpack.c.b16 %v3473, %v3466
    %v4314 = vpack.c.b16 %v3474, %v3467
    %v4315 = vpack.c.b16 %v3475, %v3468
    %v4316 = vpack.c.b16 %v3476, %v3469
    %v4317 = vpack.c.b16 %v3484, %v3477
    %v4318 = vpack.c.b16 %v3485, %v3478
    %v4319 = vpack.c.b16 %v3486, %v3479
    %v4320 = vpack.c.b16 %v3487, %v3480
    %v4321 = vpack.c.b16 %v3488, %v3481
    %v4322 = vpack.c.b16 %v3489, %v3482
    %v4323 = vpack.c.b16 %v3490, %v3483
    %v4324 = vpack.c.b16 %v3498, %v3491
    %v4325 = vpack.c.b16 %v3499, %v3492
    %v4326 = vpack.c.b16 %v3500, %v3493
    %v4327 = vpack.c.b16 %v3501, %v3494
    %v4328 = vpack.c.b16 %v3502, %v3495
    %v4329 = vpack.c.b16 %v3503, %v3496
    %v4330 = vpack.c.b16 %v3504, %v3497
    %v4331 = vpack.c.b16 %v3512, %v3505
    %v4332 = vpack.c.b16 %v3513, %v3506
    %v4333 = vpack.c.b16 %v3514, %v3507
    %v4334 = vpack.c.b16 %v3515, %v3508
    %v4335 = vpack.c.b16 %v3516, %v3509
    %v4336 = vpack.c.b16 %v3517, %v3510
    %v4337 = vpack.c.b16 %v3518, %v3511
    %v4338 = vpack.c.b16 %v3526, %v3519
    %v4339 = vpack.c.b16 %v3527, %v3520
    %v4340 = vpack.c.b16 %v3528, %v3521
    %v4341 = vpack.c.b16 %v3529, %v3522
    %v4342 = vpack.c.b16 %v3530, %v3523
    %v4343 = vpack.c.b16 %v3531, %v3524
    %v4344 = vpack.c.b16 %v3532, %v3525
    %v4345 = vpack.c.b16 %v3540, %v3533
    %v4346 = vpack.c.b16 %v3541, %v3534
    %v4347 = vpack.c.b16 %v3542, %v3535
    %v4348 = vpack.c.b16 %v3543, %v3536
    %v4349 = vpack.c.b16 %v3544, %v3537
    %v4350 = vpack.c.b16 %v3545, %v3538
    %v4351 = vpack.c.b16 %v3546, %v3539
    %v4352 = vpack.c.b16 %v3554, %v3547
    %v4353 = vpack.c.b16 %v3555, %v3548
    %v4354 = vpack.c.b16 %v3556, %v3549
    %v4355 = vpack.c.b16 %v3557, %v3550
    %v4356 = vpack.c.b16 %v3558, %v3551
    %v4357 = vpack.c.b16 %v3559, %v3552
    %v4358 = vpack.c.b16 %v3560, %v3553
    %v4359 = vpack.c.b16 %v3568, %v3561
    %v4360 = vpack.c.b16 %v3569, %v3562
    %v4361 = vpack.c.b16 %v3570, %v3563
    %v4362 = vpack.c.b16 %v3571, %v3564
    %v4363 = vpack.c.b16 %v3572, %v3565
    %v4364 = vpack.c.b16 %v3573, %v3566
    %v4365 = vpack.c.b16 %v3574, %v3567
    %v4366 = vpack.c.b16 %v3582, %v3575
    %v4367 = vpack.c.b16 %v3583, %v3576
    %v4368 = vpack.c.b16 %v3584, %v3577
    %v4369 = vpack.c.b16 %v3585, %v3578
    %v4370 = vpack.c.b16 %v3586, %v3579
    %v4371 = vpack.c.b16 %v3587, %v3580
    %v4372 = vpack.c.b16 %v3588, %v3581
    %v4373 = vpack.c.b16 %v3596, %v3589
    %v4374 = vpack.c.b16 %v3597, %v3590
    %v4375 = vpack.c.b16 %v3598, %v3591
    %v4376 = vpack.c.b16 %v3599, %v3592
    %v4377 = vpack.c.b16 %v3600, %v3593
    %v4378 = vpack.c.b16 %v3601, %v3594
    %v4379 = vpack.c.b16 %v3602, %v3595
    %v4380 = vpack.c.b16 %v3610, %v3603
    %v4381 = vpack.c.b16 %v3611, %v3604
    %v4382 = vpack.c.b16 %v3612, %v3605
    %v4383 = vpack.c.b16 %v3613, %v3606
    %v4384 = vpack.c.b16 %v3614, %v3607
    %v4385 = vpack.c.b16 %v3615, %v3608
    %v4386 = vpack.c.b16 %v3616, %v3609
    %v4387 = vpack.c.b16 %v3624, %v3617
    %v4388 = vpack.c.b16 %v3625, %v3618
    %v4389 = vpack.c.b16 %v3626, %v3619
    %v4390 = vpack.c.b16 %v3627, %v3620
    %v4391 = vpack.c.b16 %v3628, %v3621
    %v4392 = vpack.c.b16 %v3629, %v3622
    %v4393 = vpack.c.b16 %v3630, %v3623
    %v4394 = vpack.c.b16 %v3638, %v3631
    %v4395 = vpack.c.b16 %v3639, %v3632
    %v4396 = vpack.c.b16 %v3640, %v3633
    %v4397 = vpack.c.b16 %v3641, %v3634
    %v4398 = vpack.c.b16 %v3642, %v3635
    %v4399 = vpack.c.b16 %v3643, %v3636
    %v4400 = vpack.c.b16 %v3644, %v3637
    %v4401 = vpack.c.b16 %v3652, %v3645
    %v4402 = vpack.c.b16 %v3653, %v3646
    %v4403 = vpack.c.b16 %v3654, %v3647
    %v4404 = vpack.c.b16 %v3655, %v3648
    %v4405 = vpack.c.b16 %v3656, %v3649
    %v4406 = vpack.c.b16 %v3657, %v3650
    %v4407 = vpack.c.b16 %v3658, %v3651
    %v4408 = vpack.c.b16 %v3666, %v3659
    %v4409 = vpack.c.b16 %v3667, %v3660
    %v4410 = vpack.c.b16 %v3668, %v3661
    %v4411 = vpack.c.b16 %v3669, %v3662
    %v4412 = vpack.c.b16 %v3670, %v3663
    %v4413 = vpack.c.b16 %v3671, %v3664
    %v4414 = vpack.c.b16 %v3672, %v3665
    %v4415 = vpack.c.b16 %v3680, %v3673
    %v4416 = vpack.c.b16 %v3681, %v3674
    %v4417 = vpack.c.b16 %v3682, %v3675
    %v4418 = vpack.c.b16 %v3683, %v3676
    %v4419 = vpack.c.b16 %v3684, %v3677
    %v4420 = vpack.c.b16 %v3685, %v3678
    %v4421 = vpack.c.b16 %v3686, %v3679
    %v4422 = vpack.c.b16 %v3694, %v3687
    %v4423 = vpack.c.b16 %v3695, %v3688
    %v4424 = vpack.c.b16 %v3696, %v3689
    %v4425 = vpack.c.b16 %v3697, %v3690
    %v4426 = vpack.c.b16 %v3698, %v3691
    %v4427 = vpack.c.b16 %v3699, %v3692
    %v4428 = vpack.c.b16 %v3700, %v3693
    %v4429 = vpack.c.b16 %v3708, %v3701
    %v4430 = vpack.c.b16 %v3709, %v3702
    %v4431 = vpack.c.b16 %v3710, %v3703
    %v4432 = vpack.c.b16 %v3711, %v3704
    %v4433 = vpack.c.b16 %v3712, %v3705
    %v4434 = vpack.c.b16 %v3713, %v3706
    %v4435 = vpack.c.b16 %v3714, %v3707
    %v4436 = vpack.c.b16 %v3722, %v3715
    %v4437 = vpack.c.b16 %v3723, %v3716
    %v4438 = vpack.c.b16 %v3724, %v3717
    %v4439 = vpack.c.b16 %v3725, %v3718
    %v4440 = vpack.c.b16 %v3726, %v3719
    %v4441 = vpack.c.b16 %v3727, %v3720
    %v4442 = vpack.c.b16 %v3728, %v3721
    %v4443 = vpack.c.b16 %v3736, %v3729
    %v4444 = vpack.c.b16 %v3737, %v3730
    %v4445 = vpack.c.b16 %v3738, %v3731
    %v4446 = vpack.c.b16 %v3739, %v3732
    %v4447 = vpack.c.b16 %v3740, %v3733
    %v4448 = vpack.c.b16 %v3741, %v3734
    %v4449 = vpack.c.b16 %v3742, %v3735
    %v4450 = vpack.c.b16 %v3750, %v3743
    %v4451 = vpack.c.b16 %v3751, %v3744
    %v4452 = vpack.c.b16 %v3752, %v3745
    %v4453 = vpack.c.b16 %v3753, %v3746
    %v4454 = vpack.c.b16 %v3754, %v3747
    %v4455 = vpack.c.b16 %v3755, %v3748
    %v4456 = vpack.c.b16 %v3756, %v3749
    %v4457 = vpack.c.b16 %v3764, %v3757
    %v4458 = vpack.c.b16 %v3765, %v3758
    %v4459 = vpack.c.b16 %v3766, %v3759
    %v4460 = vpack.c.b16 %v3767, %v3760
    %v4461 = vpack.c.b16 %v3768, %v3761
    %v4462 = vpack.c.b16 %v3769, %v3762
    %v4463 = vpack.c.b16 %v3770, %v3763
    %v4464 = vpack.c.b16 %v3778, %v3771
    %v4465 = vpack.c.b16 %v3779, %v3772
    %v4466 = vpack.c.b16 %v3780, %v3773
    %v4467 = vpack.c.b16 %v3781, %v3774
    %v4468 = vpack.c.b16 %v3782, %v3775
    %v4469 = vpack.c.b16 %v3783, %v3776
    %v4470 = vpack.c.b16 %v3784, %v3777
    %v4471 = vpack.c.b16 %v3792, %v3785
    %v4472 = vpack.c.b16 %v3793, %v3786
    %v4473 = vpack.c.b16 %v3794, %v3787
    %v4474 = vpack.c.b16 %v3795, %v3788
    %v4475 = vpack.c.b16 %v3796, %v3789
    %v4476 = vpack.c.b16 %v3797, %v3790
    %v4477 = vpack.c.b16 %v3798, %v3791
    %v4478 = vpack.c.b16 %v3806, %v3799
    %v4479 = vpack.c.b16 %v3807, %v3800
    %v4480 = vpack.c.b16 %v3808, %v3801
    %v4481 = vpack.c.b16 %v3809, %v3802
    %v4482 = vpack.c.b16 %v3810, %v3803
    %v4483 = vpack.c.b16 %v3811, %v3804
    %v4484 = vpack.c.b16 %v3812, %v3805
    %v4485 = vpack.c.b16 %v3820, %v3813
    %v4486 = vpack.c.b16 %v3821, %v3814
    %v4487 = vpack.c.b16 %v3822, %v3815
    %v4488 = vpack.c.b16 %v3823, %v3816
    %v4489 = vpack.c.b16 %v3824, %v3817
    %v4490 = vpack.c.b16 %v3825, %v3818
    %v4491 = vpack.c.b16 %v3826, %v3819
    %v4492 = vpack.c.b16 %v3834, %v3827
    %v4493 = vpack.c.b16 %v3835, %v3828
    %v4494 = vpack.c.b16 %v3836, %v3829
    %v4495 = vpack.c.b16 %v3837, %v3830
    %v4496 = vpack.c.b16 %v3838, %v3831
    %v4497 = vpack.c.b16 %v3839, %v3832
    %v4498 = vpack.c.b16 %v3840, %v3833
    %v4499 = vpack.c.b16 %v3848, %v3841
    %v4500 = vpack.c.b16 %v3849, %v3842
    %v4501 = vpack.c.b16 %v3850, %v3843
    %v4502 = vpack.c.b16 %v3851, %v3844
    %v4503 = vpack.c.b16 %v3852, %v3845
    %v4504 = vpack.c.b16 %v3853, %v3846
    %v4505 = vpack.c.b16 %v3854, %v3847
    %v4506 = vpack.c.b16 %v3862, %v3855
    %v4507 = vpack.c.b16 %v3863, %v3856
    %v4508 = vpack.c.b16 %v3864, %v3857
    %v4509 = vpack.c.b16 %v3865, %v3858
    %v4510 = vpack.c.b16 %v3866, %v3859
    %v4511 = vpack.c.b16 %v3867, %v3860
    %v4512 = vpack.c.b16 %v3868, %v3861
    %v4513 = vpack.c.b16 %v3876, %v3869
    %v4514 = vpack.c.b16 %v3877, %v3870
    %v4515 = vpack.c.b16 %v3878, %v3871
    %v4516 = vpack.c.b16 %v3879, %v3872
    %v4517 = vpack.c.b16 %v3880, %v3873
    %v4518 = vpack.c.b16 %v3881, %v3874
    %v4519 = vpack.c.b16 %v3882, %v3875
    %v4520 = vpack.c.b16 %v3890, %v3883
    %v4521 = vpack.c.b16 %v3891, %v3884
    %v4522 = vpack.c.b16 %v3892, %v3885
    %v4523 = vpack.c.b16 %v3893, %v3886
    %v4524 = vpack.c.b16 %v3894, %v3887
    %v4525 = vpack.c.b16 %v3895, %v3888
    %v4526 = vpack.c.b16 %v3896, %v3889
    %v4527 = vpack.c.b16 %v3904, %v3897
    %v4528 = vpack.c.b16 %v3905, %v3898
    %v4529 = vpack.c.b16 %v3906, %v3899
    %v4530 = vpack.c.b16 %v3907, %v3900
    %v4531 = vpack.c.b16 %v3908, %v3901
    %v4532 = vpack.c.b16 %v3909, %v3902
    %v4533 = vpack.c.b16 %v3910, %v3903
    %v4534 = vpack.c.b16 %v3918, %v3911
    %v4535 = vpack.c.b16 %v3919, %v3912
    %v4536 = vpack.c.b16 %v3920, %v3913
    %v4537 = vpack.c.b16 %v3921, %v3914
    %v4538 = vpack.c.b16 %v3922, %v3915
    %v4539 = vpack.c.b16 %v3923, %v3916
    %v4540 = vpack.c.b16 %v3924, %v3917
    %v4541 = vpack.c.b16 %v3932, %v3925
    %v4542 = vpack.c.b16 %v3933, %v3926
    %v4543 = vpack.c.b16 %v3934, %v3927
    %v4544 = vpack.c.b16 %v3935, %v3928
    %v4545 = vpack.c.b16 %v3936, %v3929
    %v4546 = vpack.c.b16 %v3937, %v3930
    %v4547 = vpack.c.b16 %v3938, %v3931
    %v4548 = vpack.c.b16 %v3946, %v3939
    %v4549 = vpack.c.b16 %v3947, %v3940
    %v4550 = vpack.c.b16 %v3948, %v3941
    %v4551 = vpack.c.b16 %v3949, %v3942
    %v4552 = vpack.c.b16 %v3950, %v3943
    %v4553 = vpack.c.b16 %v3951, %v3944
    %v4554 = vpack.c.b16 %v3952, %v3945
    %v4555 = vpack.c.b16 %v3960, %v3953
    %v4556 = vpack.c.b16 %v3961, %v3954
    %v4557 = vpack.c.b16 %v3962, %v3955
    %v4558 = vpack.c.b16 %v3963, %v3956
    %v4559 = vpack.c.b16 %v3964, %v3957
    %v4560 = vpack.c.b16 %v3965, %v3958
    %v4561 = vpack.c.b16 %v3966, %v3959
    %v4562 = vpack.c.b16 %v3974, %v3967
    %v4563 = vpack.c.b16 %v3975, %v3968
    %v4564 = vpack.c.b16 %v3976, %v3969
    %v4565 = vpack.c.b16 %v3977, %v3970
    %v4566 = vpack.c.b16 %v3978, %v3971
    %v4567 = vpack.c.b16 %v3979, %v3972
    %v4568 = vpack.c.b16 %v3980, %v3973
    %v4569 = vpack.c.b16 %v3988, %v3981
    %v4570 = vpack.c.b16 %v3989, %v3982
    %v4571 = vpack.c.b16 %v3990, %v3983
    %v4572 = vpack.c.b16 %v3991, %v3984
    %v4573 = vpack.c.b16 %v3992, %v3985
    %v4574 = vpack.c.b16 %v3993, %v3986
    %v4575 = vpack.c.b16 %v3994, %v3987
    %v4576 = vpack.c.b16 %v4002, %v3995
    %v4577 = vpack.c.b16 %v4003, %v3996
    %v4578 = vpack.c.b16 %v4004, %v3997
    %v4579 = vpack.c.b16 %v4005, %v3998
    %v4580 = vpack.c.b16 %v4006, %v3999
    %v4581 = vpack.c.b16 %v4007, %v4000
    %v4582 = vpack.c.b16 %v4008, %v4001
    %v4583 = vpack.c.b16 %v4016, %v4009
    %v4584 = vpack.c.b16 %v4017, %v4010
    %v4585 = vpack.c.b16 %v4018, %v4011
    %v4586 = vpack.c.b16 %v4019, %v4012
    %v4587 = vpack.c.b16 %v4020, %v4013
    %v4588 = vpack.c.b16 %v4021, %v4014
    %v4589 = vpack.c.b16 %v4022, %v4015
    %v4590 = vpack.c.b16 %v4030, %v4023
    %v4591 = vpack.c.b16 %v4031, %v4024
    %v4592 = vpack.c.b16 %v4032, %v4025
    %v4593 = vpack.c.b16 %v4033, %v4026
    %v4594 = vpack.c.b16 %v4034, %v4027
    %v4595 = vpack.c.b16 %v4035, %v4028
    %v4596 = vpack.c.b16 %v4036, %v4029
    %v4597 = vpack.c.b16 %v4044, %v4037
    %v4598 = vpack.c.b16 %v4045, %v4038
    %v4599 = vpack.c.b16 %v4046, %v4039
    %v4600 = vpack.c.b16 %v4047, %v4040
    %v4601 = vpack.c.b16 %v4048, %v4041
    %v4602 = vpack.c.b16 %v4049, %v4042
    %v4603 = vpack.c.b16 %v4050, %v4043
    %v4604 = vpack.c.b16 %v4058, %v4051
    %v4605 = vpack.c.b16 %v4059, %v4052
    %v4606 = vpack.c.b16 %v4060, %v4053
    %v4607 = vpack.c.b16 %v4061, %v4054
    %v4608 = vpack.c.b16 %v4062, %v4055
    %v4609 = vpack.c.b16 %v4063, %v4056
    %v4610 = vpack.c.b16 %v4064, %v4057
    %v4611 = vpack.c.b16 %v4072, %v4065
    %v4612 = vpack.c.b16 %v4073, %v4066
    %v4613 = vpack.c.b16 %v4074, %v4067
    %v4614 = vpack.c.b16 %v4075, %v4068
    %v4615 = vpack.c.b16 %v4076, %v4069
    %v4616 = vpack.c.b16 %v4077, %v4070
    %v4617 = vpack.c.b16 %v4078, %v4071
    %v4618 = vpack.c.b16 %v4086, %v4079
    %v4619 = vpack.c.b16 %v4087, %v4080
    %v4620 = vpack.c.b16 %v4088, %v4081
    %v4621 = vpack.c.b16 %v4089, %v4082
    %v4622 = vpack.c.b16 %v4090, %v4083
    %v4623 = vpack.c.b16 %v4091, %v4084
    %v4624 = vpack.c.b16 %v4092, %v4085
    %v4625 = vpack.c.b16 %v4100, %v4093
    %v4626 = vpack.c.b16 %v4101, %v4094
    %v4627 = vpack.c.b16 %v4102, %v4095
    %v4628 = vpack.c.b16 %v4103, %v4096
    %v4629 = vpack.c.b16 %v4104, %v4097
    %v4630 = vpack.c.b16 %v4105, %v4098
    %v4631 = vpack.c.b16 %v4106, %v4099
    %v4632 = vpack.c.b16 %v4114, %v4107
    %v4633 = vpack.c.b16 %v4115, %v4108
    %v4634 = vpack.c.b16 %v4116, %v4109
    %v4635 = vpack.c.b16 %v4117, %v4110
    %v4636 = vpack.c.b16 %v4118, %v4111
    %v4637 = vpack.c.b16 %v4119, %v4112
    %v4638 = vpack.c.b16 %v4120, %v4113
    %v4639 = vpack.c.b16 %v4128, %v4121
    %v4640 = vpack.c.b16 %v4129, %v4122
    %v4641 = vpack.c.b16 %v4130, %v4123
    %v4642 = vpack.c.b16 %v4131, %v4124
    %v4643 = vpack.c.b16 %v4132, %v4125
    %v4644 = vpack.c.b16 %v4133, %v4126
    %v4645 = vpack.c.b16 %v4134, %v4127
    %v4646 = vpack.c.b16 %v4142, %v4135
    %v4647 = vpack.c.b16 %v4143, %v4136
    %v4648 = vpack.c.b16 %v4144, %v4137
    %v4649 = vpack.c.b16 %v4145, %v4138
    %v4650 = vpack.c.b16 %v4146, %v4139
    %v4651 = vpack.c.b16 %v4147, %v4140
    %v4652 = vpack.c.b16 %v4148, %v4141
    %v4653 = vpack.c.b16 %v4156, %v4149
    %v4654 = vpack.c.b16 %v4157, %v4150
    %v4655 = vpack.c.b16 %v4158, %v4151
    %v4656 = vpack.c.b16 %v4159, %v4152
    %v4657 = vpack.c.b16 %v4160, %v4153
    %v4658 = vpack.c.b16 %v4161, %v4154
    %v4659 = vpack.c.b16 %v4162, %v4155
    %v4660 = vpack.c.b16 %v4170, %v4163
    %v4661 = vpack.c.b16 %v4171, %v4164
    %v4662 = vpack.c.b16 %v4172, %v4165
    %v4663 = vpack.c.b16 %v4173, %v4166
    %v4664 = vpack.c.b16 %v4174, %v4167
    %v4665 = vpack.c.b16 %v4175, %v4168
    %v4666 = vpack.c.b16 %v4176, %v4169
    %v4667 = vpack.c.b16 %v4184, %v4177
    %v4668 = vpack.c.b16 %v4185, %v4178
    %v4669 = vpack.c.b16 %v4186, %v4179
    %v4670 = vpack.c.b16 %v4187, %v4180
    %v4671 = vpack.c.b16 %v4188, %v4181
    %v4672 = vpack.c.b16 %v4189, %v4182
    %v4673 = vpack.c.b16 %v4190, %v4183
    %v4674 = vpack.c.b16 %v4198, %v4191
    %v4675 = vpack.c.b16 %v4199, %v4192
    %v4676 = vpack.c.b16 %v4200, %v4193
    %v4677 = vpack.c.b16 %v4201, %v4194
    %v4678 = vpack.c.b16 %v4202, %v4195
    %v4679 = vpack.c.b16 %v4203, %v4196
    %v4680 = vpack.c.b16 %v4204, %v4197
    %v4681 = vpack.c.b16 %v4212, %v4205
    %v4682 = vpack.c.b16 %v4213, %v4206
    %v4683 = vpack.c.b16 %v4214, %v4207
    %v4684 = vpack.c.b16 %v4215, %v4208
    %v4685 = vpack.c.b16 %v4216, %v4209
    %v4686 = vpack.c.b16 %v4217, %v4210
    %v4687 = vpack.c.b16 %v4218, %v4211
    %v4688 = vpack.c.b16 %v4226, %v4219
    %v4689 = vpack.c.b16 %v4227, %v4220
    %v4690 = vpack.c.b16 %v4228, %v4221
    %v4691 = vpack.c.b16 %v4229, %v4222
    %v4692 = vpack.c.b16 %v4230, %v4223
    %v4693 = vpack.c.b16 %v4231, %v4224
    %v4694 = vpack.c.b16 %v4232, %v4225
    %v4695 = vpack.c.b16 %v4240, %v4233
    %v4696 = vpack.c.b16 %v4241, %v4234
    %v4697 = vpack.c.b16 %v4242, %v4235
    %v4698 = vpack.c.b16 %v4243, %v4236
    %v4699 = vpack.c.b16 %v4244, %v4237
    %v4700 = vpack.c.b16 %v4245, %v4238
    %v4701 = vpack.c.b16 %v4246, %v4239
    %v4702 = vpack.c.b16 %v4254, %v4247
    %v4703 = vpack.c.b16 %v4255, %v4248
    %v4704 = vpack.c.b16 %v4256, %v4249
    %v4705 = vpack.c.b16 %v4257, %v4250
    %v4706 = vpack.c.b16 %v4258, %v4251
    %v4707 = vpack.c.b16 %v4259, %v4252
    %v4708 = vpack.c.b16 %v4260, %v4253
    %5157 = vmatprep.subr.bf16.mxu0 %v4311
    %5158 = vmatpush1.bf16.msra.mxu0 %v4310
    %5159 = vmatprep.subr.bf16.mxu0 %v4304
    %5160 = vmatpush1.bf16.msra.mxu0 %v4303
    %5161 = vmatprep.subr.bf16.mxu0 %v4297
    %5162 = vmatpush1.bf16.msra.mxu0 %v4296
    %5163 = vmatprep.subr.bf16.mxu0 %v4290
    %5164 = vmatpush1.bf16.msra.mxu0 %v4289
    %5165 = vmatprep.subr.bf16.mxu0 %v4283
    %5166 = vmatpush1.bf16.msra.mxu0 %v4282
    %5167 = vmatprep.subr.bf16.mxu0 %v4276
    %5168 = vmatpush1.bf16.msra.mxu0 %v4275
    %5169 = vmatprep.subr.bf16.mxu0 %v4269
    %5170 = vmatpush1.bf16.msra.mxu0 %v4268
    %5171 = vmatprep.subr.bf16.mxu0 %v4262
    %5172 = vmatpush1.bf16.msra.mxu0 %v4261
    %5173 = vmatprep.subr.bf16.mxu0 %v4367
    %5174 = vmatpush2.bf16.msra.mxu0 %v4366
    %5175 = vmatprep.subr.bf16.mxu0 %v4360
    %5176 = vmatpush2.bf16.msra.mxu0 %v4359
    %5177 = vmatprep.subr.bf16.mxu0 %v4353
    %5178 = vmatpush2.bf16.msra.mxu0 %v4352
    %5179 = vmatprep.subr.bf16.mxu0 %v4346
    %5180 = vmatpush2.bf16.msra.mxu0 %v4345
    %5181 = vmatprep.subr.bf16.mxu0 %v4339
    %5182 = vmatpush2.bf16.msra.mxu0 %v4338
    %5183 = vmatprep.subr.bf16.mxu0 %v4332
    %5184 = vmatpush2.bf16.msra.mxu0 %v4331
    %5185 = vmatprep.subr.bf16.mxu0 %v4325
    %5186 = vmatpush2.bf16.msra.mxu0 %v4324
    %5187 = vmatprep.subr.bf16.mxu0 %v4318
    %5188 = vmatpush2.bf16.msra.mxu0 %v4317
    %5189 = vmatprep.mubr.bf16.mxu0 %v2298
    %5190 = vmatmul.mubr.bf16.gmra.mxu0 %v2297
    %v5191 = vpop.f32.mrf.mxu0
    %v5192 = vadd.f32 %v2821, %v5191
    %v5193 = vpop.f32.mrf.mxu0
    %v5194 = vadd.f32 %v2825, %v5193
    %v5195 = vpop.f32.mrf.mxu0
    %v5196 = vpop.f32.mrf.mxu0
    %5197 = vdwg.mxu0
    %5198 = vmatprep.subr.bf16.mxu0 %v4423
    %5199 = vmatpush1.bf16.msra.mxu0 %v4422
    %5200 = vmatprep.subr.bf16.mxu0 %v4416
    %5201 = vmatpush1.bf16.msra.mxu0 %v4415
    %5202 = vmatprep.subr.bf16.mxu0 %v4409
    %5203 = vmatpush1.bf16.msra.mxu0 %v4408
    %5204 = vmatprep.subr.bf16.mxu0 %v4402
    %5205 = vmatpush1.bf16.msra.mxu0 %v4401
    %5206 = vmatprep.subr.bf16.mxu0 %v4395
    %5207 = vmatpush1.bf16.msra.mxu0 %v4394
    %5208 = vmatprep.subr.bf16.mxu0 %v4388
    %5209 = vmatpush1.bf16.msra.mxu0 %v4387
    %5210 = vmatprep.subr.bf16.mxu0 %v4381
    %5211 = vmatpush1.bf16.msra.mxu0 %v4380
    %5212 = vmatprep.subr.bf16.mxu0 %v4374
    %5213 = vmatpush1.bf16.msra.mxu0 %v4373
    %5214 = vmatprep.subr.bf16.mxu0 %v4479
    %5215 = vmatpush2.bf16.msra.mxu0 %v4478
    %5216 = vmatprep.subr.bf16.mxu0 %v4472
    %5217 = vmatpush2.bf16.msra.mxu0 %v4471
    %5218 = vmatprep.subr.bf16.mxu0 %v4465
    %5219 = vmatpush2.bf16.msra.mxu0 %v4464
    %5220 = vmatprep.subr.bf16.mxu0 %v4458
    %5221 = vmatpush2.bf16.msra.mxu0 %v4457
    %5222 = vmatprep.subr.bf16.mxu0 %v4451
    %5223 = vmatpush2.bf16.msra.mxu0 %v4450
    %5224 = vmatprep.subr.bf16.mxu0 %v4444
    %5225 = vmatpush2.bf16.msra.mxu0 %v4443
    %5226 = vmatprep.subr.bf16.mxu0 %v4437
    %5227 = vmatpush2.bf16.msra.mxu0 %v4436
    %5228 = vmatprep.subr.bf16.mxu0 %v4430
    %5229 = vmatpush2.bf16.msra.mxu0 %v4429
    %5230 = vmatprep.mubr.bf16.mxu0 %v2300
    %5231 = vmatmul.mubr.bf16.gmra.mxu0 %v2299
    %v5232 = vpop.f32.mrf.mxu0
    %v5233 = vadd.f32 %v5192, %v5232
    %v5234 = vpop.f32.mrf.mxu0
    %v5235 = vadd.f32 %v5194, %v5234
    %v5236 = vpop.f32.mrf.mxu0
    %v5237 = vpop.f32.mrf.mxu0
    %5238 = vdwg.mxu0
    %5239 = vmatprep.subr.bf16.mxu0 %v4535
    %5240 = vmatpush1.bf16.msra.mxu0 %v4534
    %5241 = vmatprep.subr.bf16.mxu0 %v4528
    %5242 = vmatpush1.bf16.msra.mxu0 %v4527
    %5243 = vmatprep.subr.bf16.mxu0 %v4521
    %5244 = vmatpush1.bf16.msra.mxu0 %v4520
    %5245 = vmatprep.subr.bf16.mxu0 %v4514
    %5246 = vmatpush1.bf16.msra.mxu0 %v4513
    %5247 = vmatprep.subr.bf16.mxu0 %v4507
    %5248 = vmatpush1.bf16.msra.mxu0 %v4506
    %5249 = vmatprep.subr.bf16.mxu0 %v4500
    %5250 = vmatpush1.bf16.msra.mxu0 %v4499
    %5251 = vmatprep.subr.bf16.mxu0 %v4493
    %5252 = vmatpush1.bf16.msra.mxu0 %v4492
    %5253 = vmatprep.subr.bf16.mxu0 %v4486
    %5254 = vmatpush1.bf16.msra.mxu0 %v4485
    %5255 = vmatprep.subr.bf16.mxu0 %v4591
    %5256 = vmatpush2.bf16.msra.mxu0 %v4590
    %5257 = vmatprep.subr.bf16.mxu0 %v4584
    %5258 = vmatpush2.bf16.msra.mxu0 %v4583
    %5259 = vmatprep.subr.bf16.mxu0 %v4577
    %5260 = vmatpush2.bf16.msra.mxu0 %v4576
    %5261 = vmatprep.subr.bf16.mxu0 %v4570
    %5262 = vmatpush2.bf16.msra.mxu0 %v4569
    %5263 = vmatprep.subr.bf16.mxu0 %v4563
    %5264 = vmatpush2.bf16.msra.mxu0 %v4562
    %5265 = vmatprep.subr.bf16.mxu0 %v4556
    %5266 = vmatpush2.bf16.msra.mxu0 %v4555
    %5267 = vmatprep.subr.bf16.mxu0 %v4549
    %5268 = vmatpush2.bf16.msra.mxu0 %v4548
    %5269 = vmatprep.subr.bf16.mxu0 %v4542
    %5270 = vmatpush2.bf16.msra.mxu0 %v4541
    %5271 = vmatprep.mubr.bf16.mxu0 %v2302
    %5272 = vmatmul.mubr.bf16.gmra.mxu0 %v2301
    %v5273 = vpop.f32.mrf.mxu0
    %v5274 = vadd.f32 %v5233, %v5273
    %v5275 = vpop.f32.mrf.mxu0
    %v5276 = vadd.f32 %v5235, %v5275
    %v5277 = vpop.f32.mrf.mxu0
    %v5278 = vpop.f32.mrf.mxu0
    %5279 = vdwg.mxu0
    %5280 = vmatprep.subr.bf16.mxu0 %v4647
    %5281 = vmatpush1.bf16.msra.mxu0 %v4646
    %5282 = vmatprep.subr.bf16.mxu0 %v4640
    %5283 = vmatpush1.bf16.msra.mxu0 %v4639
    %5284 = vmatprep.subr.bf16.mxu0 %v4633
    %5285 = vmatpush1.bf16.msra.mxu0 %v4632
    %5286 = vmatprep.subr.bf16.mxu0 %v4626
    %5287 = vmatpush1.bf16.msra.mxu0 %v4625
    %5288 = vmatprep.subr.bf16.mxu0 %v4619
    %5289 = vmatpush1.bf16.msra.mxu0 %v4618
    %5290 = vmatprep.subr.bf16.mxu0 %v4612
    %5291 = vmatpush1.bf16.msra.mxu0 %v4611
    %5292 = vmatprep.subr.bf16.mxu0 %v4605
    %5293 = vmatpush1.bf16.msra.mxu0 %v4604
    %5294 = vmatprep.subr.bf16.mxu0 %v4598
    %5295 = vmatpush1.bf16.msra.mxu0 %v4597
    %5296 = vmatprep.subr.bf16.mxu0 %v4703
    %5297 = vmatpush2.bf16.msra.mxu0 %v4702
    %5298 = vmatprep.subr.bf16.mxu0 %v4696
    %5299 = vmatpush2.bf16.msra.mxu0 %v4695
    %5300 = vmatprep.subr.bf16.mxu0 %v4689
    %5301 = vmatpush2.bf16.msra.mxu0 %v4688
    %5302 = vmatprep.subr.bf16.mxu0 %v4682
    %5303 = vmatpush2.bf16.msra.mxu0 %v4681
    %5304 = vmatprep.subr.bf16.mxu0 %v4675
    %5305 = vmatpush2.bf16.msra.mxu0 %v4674
    %5306 = vmatprep.subr.bf16.mxu0 %v4668
    %5307 = vmatpush2.bf16.msra.mxu0 %v4667
    %5308 = vmatprep.subr.bf16.mxu0 %v4661
    %5309 = vmatpush2.bf16.msra.mxu0 %v4660
    %5310 = vmatprep.subr.bf16.mxu0 %v4654
    %5311 = vmatpush2.bf16.msra.mxu0 %v4653
    %5312 = vmatprep.mubr.bf16.mxu0 %v2304
    %5313 = vmatmul.mubr.bf16.gmra.mxu0 %v2303
    %v5314 = vpop.f32.mrf.mxu0
    %v5315 = vadd.f32 %v5274, %v5314
    %v5316 = vpop.f32.mrf.mxu0
    %v5317 = vadd.f32 %v5276, %v5316
    %v5318 = vpop.f32.mrf.mxu0
    %v5319 = vpop.f32.mrf.mxu0
    %5320 = vdwg.mxu0
    %5321 = vmatprep.subr.bf16.mxu0 %v4313
    %5322 = vmatpush1.bf16.msra.mxu0 %v4312
    %5323 = vmatprep.subr.bf16.mxu0 %v4306
    %5324 = vmatpush1.bf16.msra.mxu0 %v4305
    %5325 = vmatprep.subr.bf16.mxu0 %v4299
    %5326 = vmatpush1.bf16.msra.mxu0 %v4298
    %5327 = vmatprep.subr.bf16.mxu0 %v4292
    %5328 = vmatpush1.bf16.msra.mxu0 %v4291
    %5329 = vmatprep.subr.bf16.mxu0 %v4285
    %5330 = vmatpush1.bf16.msra.mxu0 %v4284
    %5331 = vmatprep.subr.bf16.mxu0 %v4278
    %5332 = vmatpush1.bf16.msra.mxu0 %v4277
    %5333 = vmatprep.subr.bf16.mxu0 %v4271
    %5334 = vmatpush1.bf16.msra.mxu0 %v4270
    %5335 = vmatprep.subr.bf16.mxu0 %v4264
    %5336 = vmatpush1.bf16.msra.mxu0 %v4263
    %5337 = vmatprep.subr.bf16.mxu0 %v4369
    %5338 = vmatpush2.bf16.msra.mxu0 %v4368
    %5339 = vmatprep.subr.bf16.mxu0 %v4362
    %5340 = vmatpush2.bf16.msra.mxu0 %v4361
    %5341 = vmatprep.subr.bf16.mxu0 %v4355
    %5342 = vmatpush2.bf16.msra.mxu0 %v4354
    %5343 = vmatprep.subr.bf16.mxu0 %v4348
    %5344 = vmatpush2.bf16.msra.mxu0 %v4347
    %5345 = vmatprep.subr.bf16.mxu0 %v4341
    %5346 = vmatpush2.bf16.msra.mxu0 %v4340
    %5347 = vmatprep.subr.bf16.mxu0 %v4334
    %5348 = vmatpush2.bf16.msra.mxu0 %v4333
    %5349 = vmatprep.subr.bf16.mxu0 %v4327
    %5350 = vmatpush2.bf16.msra.mxu0 %v4326
    %5351 = vmatprep.subr.bf16.mxu0 %v4320
    %5352 = vmatpush2.bf16.msra.mxu0 %v4319
    %5353 = vmatprep.mubr.bf16.mxu0 %v2298
    %5354 = vmatmul.mubr.bf16.gmra.mxu0 %v2297
    %v5355 = vpop.f32.mrf.mxu0
    %v5356 = vadd.f32 %v2829, %v5355
    %v5357 = vpop.f32.mrf.mxu0
    %v5358 = vadd.f32 %v2833, %v5357
    %v5359 = vpop.f32.mrf.mxu0
    %v5360 = vpop.f32.mrf.mxu0
    %5361 = vdwg.mxu0
    %5362 = vmatprep.subr.bf16.mxu0 %v4425
    %5363 = vmatpush1.bf16.msra.mxu0 %v4424
    %5364 = vmatprep.subr.bf16.mxu0 %v4418
    %5365 = vmatpush1.bf16.msra.mxu0 %v4417
    %5366 = vmatprep.subr.bf16.mxu0 %v4411
    %5367 = vmatpush1.bf16.msra.mxu0 %v4410
    %5368 = vmatprep.subr.bf16.mxu0 %v4404
    %5369 = vmatpush1.bf16.msra.mxu0 %v4403
    %5370 = vmatprep.subr.bf16.mxu0 %v4397
    %5371 = vmatpush1.bf16.msra.mxu0 %v4396
    %5372 = vmatprep.subr.bf16.mxu0 %v4390
    %5373 = vmatpush1.bf16.msra.mxu0 %v4389
    %5374 = vmatprep.subr.bf16.mxu0 %v4383
    %5375 = vmatpush1.bf16.msra.mxu0 %v4382
    %5376 = vmatprep.subr.bf16.mxu0 %v4376
    %5377 = vmatpush1.bf16.msra.mxu0 %v4375
    %5378 = vmatprep.subr.bf16.mxu0 %v4481
    %5379 = vmatpush2.bf16.msra.mxu0 %v4480
    %5380 = vmatprep.subr.bf16.mxu0 %v4474
    %5381 = vmatpush2.bf16.msra.mxu0 %v4473
    %5382 = vmatprep.subr.bf16.mxu0 %v4467
    %5383 = vmatpush2.bf16.msra.mxu0 %v4466
    %5384 = vmatprep.subr.bf16.mxu0 %v4460
    %5385 = vmatpush2.bf16.msra.mxu0 %v4459
    %5386 = vmatprep.subr.bf16.mxu0 %v4453
    %5387 = vmatpush2.bf16.msra.mxu0 %v4452
    %5388 = vmatprep.subr.bf16.mxu0 %v4446
    %5389 = vmatpush2.bf16.msra.mxu0 %v4445
    %5390 = vmatprep.subr.bf16.mxu0 %v4439
    %5391 = vmatpush2.bf16.msra.mxu0 %v4438
    %5392 = vmatprep.subr.bf16.mxu0 %v4432
    %5393 = vmatpush2.bf16.msra.mxu0 %v4431
    %5394 = vmatprep.mubr.bf16.mxu0 %v2300
    %5395 = vmatmul.mubr.bf16.gmra.mxu0 %v2299
    %v5396 = vpop.f32.mrf.mxu0
    %v5397 = vadd.f32 %v5356, %v5396
    %v5398 = vpop.f32.mrf.mxu0
    %v5399 = vadd.f32 %v5358, %v5398
    %v5400 = vpop.f32.mrf.mxu0
    %v5401 = vpop.f32.mrf.mxu0
    %5402 = vdwg.mxu0
    %5403 = vmatprep.subr.bf16.mxu0 %v4537
    %5404 = vmatpush1.bf16.msra.mxu0 %v4536
    %5405 = vmatprep.subr.bf16.mxu0 %v4530
    %5406 = vmatpush1.bf16.msra.mxu0 %v4529
    %5407 = vmatprep.subr.bf16.mxu0 %v4523
    %5408 = vmatpush1.bf16.msra.mxu0 %v4522
    %5409 = vmatprep.subr.bf16.mxu0 %v4516
    %5410 = vmatpush1.bf16.msra.mxu0 %v4515
    %5411 = vmatprep.subr.bf16.mxu0 %v4509
    %5412 = vmatpush1.bf16.msra.mxu0 %v4508
    %5413 = vmatprep.subr.bf16.mxu0 %v4502
    %5414 = vmatpush1.bf16.msra.mxu0 %v4501
    %5415 = vmatprep.subr.bf16.mxu0 %v4495
    %5416 = vmatpush1.bf16.msra.mxu0 %v4494
    %5417 = vmatprep.subr.bf16.mxu0 %v4488
    %5418 = vmatpush1.bf16.msra.mxu0 %v4487
    %5419 = vmatprep.subr.bf16.mxu0 %v4593
    %5420 = vmatpush2.bf16.msra.mxu0 %v4592
    %5421 = vmatprep.subr.bf16.mxu0 %v4586
    %5422 = vmatpush2.bf16.msra.mxu0 %v4585
    %5423 = vmatprep.subr.bf16.mxu0 %v4579
    %5424 = vmatpush2.bf16.msra.mxu0 %v4578
    %5425 = vmatprep.subr.bf16.mxu0 %v4572
    %5426 = vmatpush2.bf16.msra.mxu0 %v4571
    %5427 = vmatprep.subr.bf16.mxu0 %v4565
    %5428 = vmatpush2.bf16.msra.mxu0 %v4564
    %5429 = vmatprep.subr.bf16.mxu0 %v4558
    %5430 = vmatpush2.bf16.msra.mxu0 %v4557
    %5431 = vmatprep.subr.bf16.mxu0 %v4551
    %5432 = vmatpush2.bf16.msra.mxu0 %v4550
    %5433 = vmatprep.subr.bf16.mxu0 %v4544
    %5434 = vmatpush2.bf16.msra.mxu0 %v4543
    %5435 = vmatprep.mubr.bf16.mxu0 %v2302
    %5436 = vmatmul.mubr.bf16.gmra.mxu0 %v2301
    %v5437 = vpop.f32.mrf.mxu0
    %v5438 = vadd.f32 %v5397, %v5437
    %v5439 = vpop.f32.mrf.mxu0
    %v5440 = vadd.f32 %v5399, %v5439
    %v5441 = vpop.f32.mrf.mxu0
    %v5442 = vpop.f32.mrf.mxu0
    %5443 = vdwg.mxu0
    %5444 = vmatprep.subr.bf16.mxu0 %v4649
    %5445 = vmatpush1.bf16.msra.mxu0 %v4648
    %5446 = vmatprep.subr.bf16.mxu0 %v4642
    %5447 = vmatpush1.bf16.msra.mxu0 %v4641
    %5448 = vmatprep.subr.bf16.mxu0 %v4635
    %5449 = vmatpush1.bf16.msra.mxu0 %v4634
    %5450 = vmatprep.subr.bf16.mxu0 %v4628
    %5451 = vmatpush1.bf16.msra.mxu0 %v4627
    %5452 = vmatprep.subr.bf16.mxu0 %v4621
    %5453 = vmatpush1.bf16.msra.mxu0 %v4620
    %5454 = vmatprep.subr.bf16.mxu0 %v4614
    %5455 = vmatpush1.bf16.msra.mxu0 %v4613
    %5456 = vmatprep.subr.bf16.mxu0 %v4607
    %5457 = vmatpush1.bf16.msra.mxu0 %v4606
    %5458 = vmatprep.subr.bf16.mxu0 %v4600
    %5459 = vmatpush1.bf16.msra.mxu0 %v4599
    %5460 = vmatprep.subr.bf16.mxu0 %v4705
    %5461 = vmatpush2.bf16.msra.mxu0 %v4704
    %5462 = vmatprep.subr.bf16.mxu0 %v4698
    %5463 = vmatpush2.bf16.msra.mxu0 %v4697
    %5464 = vmatprep.subr.bf16.mxu0 %v4691
    %5465 = vmatpush2.bf16.msra.mxu0 %v4690
    %5466 = vmatprep.subr.bf16.mxu0 %v4684
    %5467 = vmatpush2.bf16.msra.mxu0 %v4683
    %5468 = vmatprep.subr.bf16.mxu0 %v4677
    %5469 = vmatpush2.bf16.msra.mxu0 %v4676
    %5470 = vmatprep.subr.bf16.mxu0 %v4670
    %5471 = vmatpush2.bf16.msra.mxu0 %v4669
    %5472 = vmatprep.subr.bf16.mxu0 %v4663
    %5473 = vmatpush2.bf16.msra.mxu0 %v4662
    %5474 = vmatprep.subr.bf16.mxu0 %v4656
    %5475 = vmatpush2.bf16.msra.mxu0 %v4655
    %5476 = vmatprep.mubr.bf16.mxu0 %v2304
    %5477 = vmatmul.mubr.bf16.gmra.mxu0 %v2303
    %v5478 = vpop.f32.mrf.mxu0
    %v5479 = vadd.f32 %v5438, %v5478
    %v5480 = vpop.f32.mrf.mxu0
    %v5481 = vadd.f32 %v5440, %v5480
    %v5482 = vpop.f32.mrf.mxu0
    %v5483 = vpop.f32.mrf.mxu0
    %5484 = vdwg.mxu0
    %5485 = vmatprep.subr.bf16.mxu0 %v4315
    %5486 = vmatpush1.bf16.msra.mxu0 %v4314
    %5487 = vmatprep.subr.bf16.mxu0 %v4308
    %5488 = vmatpush1.bf16.msra.mxu0 %v4307
    %5489 = vmatprep.subr.bf16.mxu0 %v4301
    %5490 = vmatpush1.bf16.msra.mxu0 %v4300
    %5491 = vmatprep.subr.bf16.mxu0 %v4294
    %5492 = vmatpush1.bf16.msra.mxu0 %v4293
    %5493 = vmatprep.subr.bf16.mxu0 %v4287
    %5494 = vmatpush1.bf16.msra.mxu0 %v4286
    %5495 = vmatprep.subr.bf16.mxu0 %v4280
    %5496 = vmatpush1.bf16.msra.mxu0 %v4279
    %5497 = vmatprep.subr.bf16.mxu0 %v4273
    %5498 = vmatpush1.bf16.msra.mxu0 %v4272
    %5499 = vmatprep.subr.bf16.mxu0 %v4266
    %5500 = vmatpush1.bf16.msra.mxu0 %v4265
    %5501 = vmatprep.subr.bf16.mxu0 %v4371
    %5502 = vmatpush2.bf16.msra.mxu0 %v4370
    %5503 = vmatprep.subr.bf16.mxu0 %v4364
    %5504 = vmatpush2.bf16.msra.mxu0 %v4363
    %5505 = vmatprep.subr.bf16.mxu0 %v4357
    %5506 = vmatpush2.bf16.msra.mxu0 %v4356
    %5507 = vmatprep.subr.bf16.mxu0 %v4350
    %5508 = vmatpush2.bf16.msra.mxu0 %v4349
    %5509 = vmatprep.subr.bf16.mxu0 %v4343
    %5510 = vmatpush2.bf16.msra.mxu0 %v4342
    %5511 = vmatprep.subr.bf16.mxu0 %v4336
    %5512 = vmatpush2.bf16.msra.mxu0 %v4335
    %5513 = vmatprep.subr.bf16.mxu0 %v4329
    %5514 = vmatpush2.bf16.msra.mxu0 %v4328
    %5515 = vmatprep.subr.bf16.mxu0 %v4322
    %5516 = vmatpush2.bf16.msra.mxu0 %v4321
    %5517 = vmatprep.mubr.bf16.mxu0 %v2298
    %5518 = vmatmul.mubr.bf16.gmra.mxu0 %v2297
    %v5519 = vpop.f32.mrf.mxu0
    %v5520 = vadd.f32 %v2837, %v5519
    %v5521 = vpop.f32.mrf.mxu0
    %v5522 = vadd.f32 %v2841, %v5521
    %v5523 = vpop.f32.mrf.mxu0
    %v5524 = vpop.f32.mrf.mxu0
    %5525 = vdwg.mxu0
    %5526 = vmatprep.subr.bf16.mxu0 %v4427
    %5527 = vmatpush1.bf16.msra.mxu0 %v4426
    %5528 = vmatprep.subr.bf16.mxu0 %v4420
    %5529 = vmatpush1.bf16.msra.mxu0 %v4419
    %5530 = vmatprep.subr.bf16.mxu0 %v4413
    %5531 = vmatpush1.bf16.msra.mxu0 %v4412
    %5532 = vmatprep.subr.bf16.mxu0 %v4406
    %5533 = vmatpush1.bf16.msra.mxu0 %v4405
    %5534 = vmatprep.subr.bf16.mxu0 %v4399
    %5535 = vmatpush1.bf16.msra.mxu0 %v4398
    %5536 = vmatprep.subr.bf16.mxu0 %v4392
    %5537 = vmatpush1.bf16.msra.mxu0 %v4391
    %5538 = vmatprep.subr.bf16.mxu0 %v4385
    %5539 = vmatpush1.bf16.msra.mxu0 %v4384
    %5540 = vmatprep.subr.bf16.mxu0 %v4378
    %5541 = vmatpush1.bf16.msra.mxu0 %v4377
    %5542 = vmatprep.subr.bf16.mxu0 %v4483
    %5543 = vmatpush2.bf16.msra.mxu0 %v4482
    %5544 = vmatprep.subr.bf16.mxu0 %v4476
    %5545 = vmatpush2.bf16.msra.mxu0 %v4475
    %5546 = vmatprep.subr.bf16.mxu0 %v4469
    %5547 = vmatpush2.bf16.msra.mxu0 %v4468
    %5548 = vmatprep.subr.bf16.mxu0 %v4462
    %5549 = vmatpush2.bf16.msra.mxu0 %v4461
    %5550 = vmatprep.subr.bf16.mxu0 %v4455
    %5551 = vmatpush2.bf16.msra.mxu0 %v4454
    %5552 = vmatprep.subr.bf16.mxu0 %v4448
    %5553 = vmatpush2.bf16.msra.mxu0 %v4447
    %5554 = vmatprep.subr.bf16.mxu0 %v4441
    %5555 = vmatpush2.bf16.msra.mxu0 %v4440
    %5556 = vmatprep.subr.bf16.mxu0 %v4434
    %5557 = vmatpush2.bf16.msra.mxu0 %v4433
    %5558 = vmatprep.mubr.bf16.mxu0 %v2300
    %5559 = vmatmul.mubr.bf16.gmra.mxu0 %v2299
    %v5560 = vpop.f32.mrf.mxu0
    %v5561 = vadd.f32 %v5520, %v5560
    %v5562 = vpop.f32.mrf.mxu0
    %v5563 = vadd.f32 %v5522, %v5562
    %v5564 = vpop.f32.mrf.mxu0
    %v5565 = vpop.f32.mrf.mxu0
    %5566 = vdwg.mxu0
    %5567 = vmatprep.subr.bf16.mxu0 %v4539
    %5568 = vmatpush1.bf16.msra.mxu0 %v4538
    %5569 = vmatprep.subr.bf16.mxu0 %v4532
    %5570 = vmatpush1.bf16.msra.mxu0 %v4531
    %5571 = vmatprep.subr.bf16.mxu0 %v4525
    %5572 = vmatpush1.bf16.msra.mxu0 %v4524
    %5573 = vmatprep.subr.bf16.mxu0 %v4518
    %5574 = vmatpush1.bf16.msra.mxu0 %v4517
    %5575 = vmatprep.subr.bf16.mxu0 %v4511
    %5576 = vmatpush1.bf16.msra.mxu0 %v4510
    %5577 = vmatprep.subr.bf16.mxu0 %v4504
    %5578 = vmatpush1.bf16.msra.mxu0 %v4503
    %5579 = vmatprep.subr.bf16.mxu0 %v4497
    %5580 = vmatpush1.bf16.msra.mxu0 %v4496
    %5581 = vmatprep.subr.bf16.mxu0 %v4490
    %5582 = vmatpush1.bf16.msra.mxu0 %v4489
    %5583 = vmatprep.subr.bf16.mxu0 %v4595
    %5584 = vmatpush2.bf16.msra.mxu0 %v4594
    %5585 = vmatprep.subr.bf16.mxu0 %v4588
    %5586 = vmatpush2.bf16.msra.mxu0 %v4587
    %5587 = vmatprep.subr.bf16.mxu0 %v4581
    %5588 = vmatpush2.bf16.msra.mxu0 %v4580
    %5589 = vmatprep.subr.bf16.mxu0 %v4574
    %5590 = vmatpush2.bf16.msra.mxu0 %v4573
    %5591 = vmatprep.subr.bf16.mxu0 %v4567
    %5592 = vmatpush2.bf16.msra.mxu0 %v4566
    %5593 = vmatprep.subr.bf16.mxu0 %v4560
    %5594 = vmatpush2.bf16.msra.mxu0 %v4559
    %5595 = vmatprep.subr.bf16.mxu0 %v4553
    %5596 = vmatpush2.bf16.msra.mxu0 %v4552
    %5597 = vmatprep.subr.bf16.mxu0 %v4546
    %5598 = vmatpush2.bf16.msra.mxu0 %v4545
    %5599 = vmatprep.mubr.bf16.mxu0 %v2302
    %5600 = vmatmul.mubr.bf16.gmra.mxu0 %v2301
    %v5601 = vpop.f32.mrf.mxu0
    %v5602 = vadd.f32 %v5561, %v5601
    %v5603 = vpop.f32.mrf.mxu0
    %v5604 = vadd.f32 %v5563, %v5603
    %v5605 = vpop.f32.mrf.mxu0
    %v5606 = vpop.f32.mrf.mxu0
    %5607 = vdwg.mxu0
    %5608 = vmatprep.subr.bf16.mxu0 %v4651
    %5609 = vmatpush1.bf16.msra.mxu0 %v4650
    %5610 = vmatprep.subr.bf16.mxu0 %v4644
    %5611 = vmatpush1.bf16.msra.mxu0 %v4643
    %5612 = vmatprep.subr.bf16.mxu0 %v4637
    %5613 = vmatpush1.bf16.msra.mxu0 %v4636
    %5614 = vmatprep.subr.bf16.mxu0 %v4630
    %5615 = vmatpush1.bf16.msra.mxu0 %v4629
    %5616 = vmatprep.subr.bf16.mxu0 %v4623
    %5617 = vmatpush1.bf16.msra.mxu0 %v4622
    %5618 = vmatprep.subr.bf16.mxu0 %v4616
    %5619 = vmatpush1.bf16.msra.mxu0 %v4615
    %5620 = vmatprep.subr.bf16.mxu0 %v4609
    %5621 = vmatpush1.bf16.msra.mxu0 %v4608
    %5622 = vmatprep.subr.bf16.mxu0 %v4602
    %5623 = vmatpush1.bf16.msra.mxu0 %v4601
    %5624 = vmatprep.subr.bf16.mxu0 %v4707
    %5625 = vmatpush2.bf16.msra.mxu0 %v4706
    %5626 = vmatprep.subr.bf16.mxu0 %v4700
    %5627 = vmatpush2.bf16.msra.mxu0 %v4699
    %5628 = vmatprep.subr.bf16.mxu0 %v4693
    %5629 = vmatpush2.bf16.msra.mxu0 %v4692
    %5630 = vmatprep.subr.bf16.mxu0 %v4686
    %5631 = vmatpush2.bf16.msra.mxu0 %v4685
    %5632 = vmatprep.subr.bf16.mxu0 %v4679
    %5633 = vmatpush2.bf16.msra.mxu0 %v4678
    %5634 = vmatprep.subr.bf16.mxu0 %v4672
    %5635 = vmatpush2.bf16.msra.mxu0 %v4671
    %5636 = vmatprep.subr.bf16.mxu0 %v4665
    %5637 = vmatpush2.bf16.msra.mxu0 %v4664
    %5638 = vmatprep.subr.bf16.mxu0 %v4658
    %5639 = vmatpush2.bf16.msra.mxu0 %v4657
    %5640 = vmatprep.mubr.bf16.mxu0 %v2304
    %5641 = vmatmul.mubr.bf16.gmra.mxu0 %v2303
    %v5642 = vpop.f32.mrf.mxu0
    %v5643 = vadd.f32 %v5602, %v5642
    %v5644 = vpop.f32.mrf.mxu0
    %v5645 = vadd.f32 %v5604, %v5644
    %v5646 = vpop.f32.mrf.mxu0
    %v5647 = vpop.f32.mrf.mxu0
    %5648 = vdwg.mxu0
    %5649 = vmatprep.subr.bf16.mxu0 0
    %5650 = vmatpush1.bf16.msra.mxu0 %v4316
    %5651 = vmatprep.subr.bf16.mxu0 0
    %5652 = vmatpush1.bf16.msra.mxu0 %v4309
    %5653 = vmatprep.subr.bf16.mxu0 0
    %5654 = vmatpush1.bf16.msra.mxu0 %v4302
    %5655 = vmatprep.subr.bf16.mxu0 0
    %5656 = vmatpush1.bf16.msra.mxu0 %v4295
    %5657 = vmatprep.subr.bf16.mxu0 0
    %5658 = vmatpush1.bf16.msra.mxu0 %v4288
    %5659 = vmatprep.subr.bf16.mxu0 0
    %5660 = vmatpush1.bf16.msra.mxu0 %v4281
    %5661 = vmatprep.subr.bf16.mxu0 0
    %5662 = vmatpush1.bf16.msra.mxu0 %v4274
    %5663 = vmatprep.subr.bf16.mxu0 0
    %5664 = vmatpush1.bf16.msra.mxu0 %v4267
    %5665 = vmatprep.subr.bf16.mxu0 0
    %5666 = vmatpush2.bf16.msra.mxu0 %v4372
    %5667 = vmatprep.subr.bf16.mxu0 0
    %5668 = vmatpush2.bf16.msra.mxu0 %v4365
    %5669 = vmatprep.subr.bf16.mxu0 0
    %5670 = vmatpush2.bf16.msra.mxu0 %v4358
    %5671 = vmatprep.subr.bf16.mxu0 0
    %5672 = vmatpush2.bf16.msra.mxu0 %v4351
    %5673 = vmatprep.subr.bf16.mxu0 0
    %5674 = vmatpush2.bf16.msra.mxu0 %v4344
    %5675 = vmatprep.subr.bf16.mxu0 0
    %5676 = vmatpush2.bf16.msra.mxu0 %v4337
    %5677 = vmatprep.subr.bf16.mxu0 0
    %5678 = vmatpush2.bf16.msra.mxu0 %v4330
    %5679 = vmatprep.subr.bf16.mxu0 0
    %5680 = vmatpush2.bf16.msra.mxu0 %v4323
    %5681 = vmatprep.mubr.bf16.mxu0 %v2298
    %5682 = vmatmul.mubr.bf16.gmra.mxu0 %v2297
    %v5683 = vpop.f32.mrf.mxu0
    %v5684 = vadd.f32 %v2845, %v5683
    %v5685 = vpop.f32.mrf.mxu0
    %v5686 = vpop.f32.mrf.mxu0
    %v5687 = vpop.f32.mrf.mxu0
    %5688 = vdwg.mxu0
    %5689 = vmatprep.subr.bf16.mxu0 0
    %5690 = vmatpush1.bf16.msra.mxu0 %v4428
    %5691 = vmatprep.subr.bf16.mxu0 0
    %5692 = vmatpush1.bf16.msra.mxu0 %v4421
    %5693 = vmatprep.subr.bf16.mxu0 0
    %5694 = vmatpush1.bf16.msra.mxu0 %v4414
    %5695 = vmatprep.subr.bf16.mxu0 0
    %5696 = vmatpush1.bf16.msra.mxu0 %v4407
    %5697 = vmatprep.subr.bf16.mxu0 0
    %5698 = vmatpush1.bf16.msra.mxu0 %v4400
    %5699 = vmatprep.subr.bf16.mxu0 0
    %5700 = vmatpush1.bf16.msra.mxu0 %v4393
    %5701 = vmatprep.subr.bf16.mxu0 0
    %5702 = vmatpush1.bf16.msra.mxu0 %v4386
    %5703 = vmatprep.subr.bf16.mxu0 0
    %5704 = vmatpush1.bf16.msra.mxu0 %v4379
    %5705 = vmatprep.subr.bf16.mxu0 0
    %5706 = vmatpush2.bf16.msra.mxu0 %v4484
    %5707 = vmatprep.subr.bf16.mxu0 0
    %5708 = vmatpush2.bf16.msra.mxu0 %v4477
    %5709 = vmatprep.subr.bf16.mxu0 0
    %5710 = vmatpush2.bf16.msra.mxu0 %v4470
    %5711 = vmatprep.subr.bf16.mxu0 0
    %5712 = vmatpush2.bf16.msra.mxu0 %v4463
    %5713 = vmatprep.subr.bf16.mxu0 0
    %5714 = vmatpush2.bf16.msra.mxu0 %v4456
    %5715 = vmatprep.subr.bf16.mxu0 0
    %5716 = vmatpush2.bf16.msra.mxu0 %v4449
    %5717 = vmatprep.subr.bf16.mxu0 0
    %5718 = vmatpush2.bf16.msra.mxu0 %v4442
    %5719 = vmatprep.subr.bf16.mxu0 0
    %5720 = vmatpush2.bf16.msra.mxu0 %v4435
    %5721 = vmatprep.mubr.bf16.mxu0 %v2300
    %5722 = vmatmul.mubr.bf16.gmra.mxu0 %v2299
    %v5723 = vpop.f32.mrf.mxu0
    %v5724 = vadd.f32 %v5684, %v5723
    %v5725 = vpop.f32.mrf.mxu0
    %v5726 = vpop.f32.mrf.mxu0
    %v5727 = vpop.f32.mrf.mxu0
    %5728 = vdwg.mxu0
    %5729 = vmatprep.subr.bf16.mxu0 0
    %5730 = vmatpush1.bf16.msra.mxu0 %v4540
    %5731 = vmatprep.subr.bf16.mxu0 0
    %5732 = vmatpush1.bf16.msra.mxu0 %v4533
    %5733 = vmatprep.subr.bf16.mxu0 0
    %5734 = vmatpush1.bf16.msra.mxu0 %v4526
    %5735 = vmatprep.subr.bf16.mxu0 0
    %5736 = vmatpush1.bf16.msra.mxu0 %v4519
    %5737 = vmatprep.subr.bf16.mxu0 0
    %5738 = vmatpush1.bf16.msra.mxu0 %v4512
    %5739 = vmatprep.subr.bf16.mxu0 0
    %5740 = vmatpush1.bf16.msra.mxu0 %v4505
    %5741 = vmatprep.subr.bf16.mxu0 0
    %5742 = vmatpush1.bf16.msra.mxu0 %v4498
    %5743 = vmatprep.subr.bf16.mxu0 0
    %5744 = vmatpush1.bf16.msra.mxu0 %v4491
    %5745 = vmatprep.subr.bf16.mxu0 0
    %5746 = vmatpush2.bf16.msra.mxu0 %v4596
    %5747 = vmatprep.subr.bf16.mxu0 0
    %5748 = vmatpush2.bf16.msra.mxu0 %v4589
    %5749 = vmatprep.subr.bf16.mxu0 0
    %5750 = vmatpush2.bf16.msra.mxu0 %v4582
    %5751 = vmatprep.subr.bf16.mxu0 0
    %5752 = vmatpush2.bf16.msra.mxu0 %v4575
    %5753 = vmatprep.subr.bf16.mxu0 0
    %5754 = vmatpush2.bf16.msra.mxu0 %v4568
    %5755 = vmatprep.subr.bf16.mxu0 0
    %5756 = vmatpush2.bf16.msra.mxu0 %v4561
    %5757 = vmatprep.subr.bf16.mxu0 0
    %5758 = vmatpush2.bf16.msra.mxu0 %v4554
    %5759 = vmatprep.subr.bf16.mxu0 0
    %5760 = vmatpush2.bf16.msra.mxu0 %v4547
    %5761 = vmatprep.mubr.bf16.mxu0 %v2302
    %5762 = vmatmul.mubr.bf16.gmra.mxu0 %v2301
    %v5763 = vpop.f32.mrf.mxu0
    %v5764 = vadd.f32 %v5724, %v5763
    %v5765 = vpop.f32.mrf.mxu0
    %v5766 = vpop.f32.mrf.mxu0
    %v5767 = vpop.f32.mrf.mxu0
    %5768 = vdwg.mxu0
    %5769 = vmatprep.subr.bf16.mxu0 0
    %5770 = vmatpush1.bf16.msra.mxu0 %v4652
    %5771 = vmatprep.subr.bf16.mxu0 0
    %5772 = vmatpush1.bf16.msra.mxu0 %v4645
    %5773 = vmatprep.subr.bf16.mxu0 0
    %5774 = vmatpush1.bf16.msra.mxu0 %v4638
    %5775 = vmatprep.subr.bf16.mxu0 0
    %5776 = vmatpush1.bf16.msra.mxu0 %v4631
    %5777 = vmatprep.subr.bf16.mxu0 0
    %5778 = vmatpush1.bf16.msra.mxu0 %v4624
    %5779 = vmatprep.subr.bf16.mxu0 0
    %5780 = vmatpush1.bf16.msra.mxu0 %v4617
    %5781 = vmatprep.subr.bf16.mxu0 0
    %5782 = vmatpush1.bf16.msra.mxu0 %v4610
    %5783 = vmatprep.subr.bf16.mxu0 0
    %5784 = vmatpush1.bf16.msra.mxu0 %v4603
    %5785 = vmatprep.subr.bf16.mxu0 0
    %5786 = vmatpush2.bf16.msra.mxu0 %v4708
    %5787 = vmatprep.subr.bf16.mxu0 0
    %5788 = vmatpush2.bf16.msra.mxu0 %v4701
    %5789 = vmatprep.subr.bf16.mxu0 0
    %5790 = vmatpush2.bf16.msra.mxu0 %v4694
    %5791 = vmatprep.subr.bf16.mxu0 0
    %5792 = vmatpush2.bf16.msra.mxu0 %v4687
    %5793 = vmatprep.subr.bf16.mxu0 0
    %5794 = vmatpush2.bf16.msra.mxu0 %v4680
    %5795 = vmatprep.subr.bf16.mxu0 0
    %5796 = vmatpush2.bf16.msra.mxu0 %v4673
    %5797 = vmatprep.subr.bf16.mxu0 0
    %5798 = vmatpush2.bf16.msra.mxu0 %v4666
    %5799 = vmatprep.subr.bf16.mxu0 0
    %5800 = vmatpush2.bf16.msra.mxu0 %v4659
    %5801 = vmatprep.mubr.bf16.mxu0 %v2304
    %5802 = vmatmul.mubr.bf16.gmra.mxu0 %v2303
    %v5803 = vpop.f32.mrf.mxu0
    %v5804 = vadd.f32 %v5764, %v5803
    %v5805 = vpop.f32.mrf.mxu0
    %v5806 = vpop.f32.mrf.mxu0
    %v5807 = vpop.f32.mrf.mxu0
    %5808 = vdwg.mxu0
    %v5809 = vxor.u32 %v5315, 2147483648
    %v5810 = vxor.u32 %v5317, 2147483648
    %v5811 = vxor.u32 %v5479, 2147483648
    %v5812 = vxor.u32 %v5481, 2147483648
    %v5813 = vxor.u32 %v5643, 2147483648
    %v5814 = vxor.u32 %v5645, 2147483648
    %v5815 = vxor.u32 %v5804, 2147483648
    %v5816 = vmul.f32 %v5809, 1.442695
    %v5817 = vpow.pop %v5816
    %v5818 = vmul.f32 %v5810, 1.442695
    %v5819 = vpow.pop %v5818
    %v5820 = vmul.f32 %v5811, 1.442695
    %v5821 = vpow.pop %v5820
    %v5822 = vmul.f32 %v5812, 1.442695
    %v5823 = vpow.pop %v5822
    %v5824 = vmul.f32 %v5813, 1.442695
    %v5825 = vpow.pop %v5824
    %v5826 = vmul.f32 %v5814, 1.442695
    %v5827 = vpow.pop %v5826
    %v5828 = vmul.f32 %v5815, 1.442695
    %v5829 = vpow.pop %v5828
    %v5830 = vadd.f32 %v5817, 1.0
    %v5831 = vadd.f32 %v5819, 1.0
    %v5832 = vadd.f32 %v5821, 1.0
    %v5833 = vadd.f32 %v5823, 1.0
    %v5834 = vadd.f32 %v5825, 1.0
    %v5835 = vadd.f32 %v5827, 1.0
    %v5836 = vadd.f32 %v5829, 1.0
    %v5837 = vrcp.pop %v5830
    %v5838 = vmul.f32 1.0, %v5837
    %v5839 = vrcp.pop %v5831
    %v5840 = vmul.f32 1.0, %v5839
    %v5841 = vrcp.pop %v5832
    %v5842 = vmul.f32 1.0, %v5841
    %v5843 = vrcp.pop %v5833
    %v5844 = vmul.f32 1.0, %v5843
    %v5845 = vrcp.pop %v5834
    %v5846 = vmul.f32 1.0, %v5845
    %v5847 = vrcp.pop %v5835
    %v5848 = vmul.f32 1.0, %v5847
    %v5849 = vrcp.pop %v5836
    %v5850 = vmul.f32 1.0, %v5849
    %5851 = vst [vmem:[#allocation2] sm:$0xff] %v5838
    %5852 = vst [vmem:[#allocation2 + $0x8] sm:$0xff] %v5840
    %5853 = vst [vmem:[#allocation2 + $0x10] sm:$0xff] %v5842
    %5854 = vst [vmem:[#allocation2 + $0x18] sm:$0xff] %v5844
    %5855 = vst [vmem:[#allocation2 + $0x20] sm:$0xff] %v5846
    %5856 = vst [vmem:[#allocation2 + $0x28] sm:$0xff] %v5848
    %vm5857 = vcmask 130048
    %5858 = vst.msk [vmem:[#allocation2 + $0x30] sm:$0xff] %vm5857, %v5850
    // Predicated region
    $region22: #{tpu_custom_call.1} parent=1 // pred_check
      _
    $region23: #{tpu_custom_call.1} parent=1 // pred_check_branch
      %5860 = sbr.rel (0) target = $region25
    $region24: #{tpu_custom_call.1} parent=1 // pred_region
      %s5862 = ssub.s32 896, 896
      %5863 = vsyncadd [#allocation3], %s5862
      %s5865 = sshll.u32 [#allocation2], 4
      %s5866 = int_to_ptr.vmem [resolvable:$true] %s5865
      %5868 = dma.vmem_to_hbm [thread:$0]  %s5866, 896, %s5, [#allocation3]
    $region25: #{tpu_custom_call.1} parent=1 // pred_fallthru
      _
    // Predicated region
    $region26: #{tpu_custom_call.1} parent=1 // pred_check
      _
    $region27: #{tpu_custom_call.1} parent=1 // pred_check_branch
      %5870 = sbr.rel (0) target = $region29
    $region28: #{tpu_custom_call.1} parent=1 // pred_region
      %5871 = dma.done [#allocation3], 896
    $region29: #{tpu_custom_call.1} parent=1 // pred_fallthru
      _
    %5872 = vsyncpa [#allocation3], 1

</llo_original>
